<compile_context>
chip_gen: v5e
topology: v5e:2x2
jax: 0.10.0
libtpu: 0.0.40
codegen_flags: <defaults>
</compile_context>

<pallas_src>
import jax
import jax.numpy as jnp
from jax.experimental import pallas as pl
from jax.experimental.pallas import tpu as pltpu

FEAT_C = 2048
NUM_CLASSES = 10
LANE = 128
SUBLANE = 8


def _round_up(x, m):
    return (x + m - 1) // m * m


def _cdiv(a, b):
    return -(-a // b)


def _physical_vmem_bytes():
    """Physical VMEM of the current generation; conservative fallback."""
    try:
        info = pltpu.get_tpu_info()
        v = getattr(info, "vmem_capacity_bytes", None)
        if v:
            return int(v)
    except Exception:
        pass
    return 64 * 1024 * 1024  # v7x per-TC capacity (smallest of v5e/v6e/v7x)


def _plan_tiles(n, k_total, itemsize, ncpad):
    """Choose (tn, tk, k_tiles, vmem_limit) from the generation's VMEM size."""
    phys = _physical_vmem_bytes()
    # ~96 MiB scoped limit on 128-MiB parts (v5e/v6e), ~48 MiB on v7x (64 MiB).
    vmem_limit = min((phys * 3) // 4, 96 * 1024 * 1024)

    # Keep the expanded weight resident (constant index map -> fetched once)
    # when it fits in ~1/3 of the limit; otherwise K-tile the contraction.
    # K-tile sizes remain lane-aligned multiples of 128 that divide C*HW
    # exactly, so no out-of-range data ever enters the accumulation.
    w_total = k_total * ncpad * itemsize
    k_tiles = 1
    while (w_total // k_tiles > vmem_limit // 3
           and k_tiles < 16
           and k_total % (2 * k_tiles) == 0
           and (k_total // (2 * k_tiles)) % LANE == 0):
        k_tiles *= 2
    tk = k_total // k_tiles

    # Batch-tile rows: fill what is left after the weight block (+ slack for
    # the small bias/output blocks), split across the two pipeline buffers.
    w_block = tk * ncpad * itemsize
    slack = 2 * 1024 * 1024
    per_buf = max(1 * 1024 * 1024, (vmem_limit - w_block - slack) // 2)
    rows = max(1, per_buf // max(1, tk * itemsize))
    if rows >= n:
        tn = n
    else:
        tn = max(SUBLANE, (rows // SUBLANE) * SUBLANE)
    # Keep >=2 batch steps when the batch is big enough: guarantees DMA/compute
    # overlap and gives v7x's second TensorCore a share of the grid.
    if _cdiv(n, tn) == 1 and n >= 2 * SUBLANE:
        tn = _round_up(_cdiv(n, 2), SUBLANE)
    return tn, tk, k_tiles, vmem_limit


def _head_kernel(x_ref, w_ref, b_ref, o_ref):
    """One (batch-tile, K-tile) step of the fused pool+fc:  o = x @ w_exp + b.

    x_ref: [TN, TK]     flattened NCHW feature slab (native dtype, lane-dense)
    w_ref: [TK, NCpad]  HW-expanded fc weight, pre-scaled by 1/HW, x's dtype
    b_ref: [1,  NCpad]  f32 bias (lane-padded)
    o_ref: [TN, NCpad]  f32 logits block; resident across the K grid axis
    """
    @pl.when(pl.program_id(1) == 0)
    def _():
        o_ref[...] = jnp.broadcast_to(b_ref[...], o_ref.shape)

    # MXU contraction performs avg-pool + fc in one shot (1/HW folded into w);
    # f32 accumulation regardless of input dtype.
    o_ref[...] += jnp.dot(x_ref[...], w_ref[...],
                          preferred_element_type=jnp.float32)


def classification_head(x_nchw, weight, bias):
    """x_nchw: [N, 2048, H, W] float32 or bfloat16 (ResNet pre-pool feature map, NCHW).
    weight:   [num_classes, 2048]  (PyTorch nn.Linear convention)
    bias:     [num_classes]
    returns logits [N, num_classes] — same semantics as
    avgpool -> flatten -> fc of the torchvision ResNet head."""
    n, c, h, w = x_nchw.shape
    assert c == weight.shape[1], "fc expects the ResNet 2048-channel feature map"
    hw = h * w
    k_total = c * hw
    nc = weight.shape[0]
    ncpad = _round_up(nc, LANE)
    dtype = x_nchw.dtype

    # Free contiguous reshape: lane-dense [N, C*HW] slab (no transpose, no copy).
    x = x_nchw.reshape(n, k_total)

    # HW-expanded fc weight: row (ci*HW + s) = weight[:, ci] / HW, matching the
    # flattened NCHW layout.  Scaling is done in f32, then cast to x's dtype so
    # the in-kernel matmul needs no upcast pass.  (For repeated calls under jit
    # with fixed weights this prep is constant-folded / amortized.)
    w_scaled = weight.T.astype(jnp.float32) * (1.0 / float(hw))          # [C, nc]
    w_pad = jnp.zeros((c, ncpad), jnp.float32).at[:, :nc].set(w_scaled)
    w_exp = jnp.repeat(w_pad, hw, axis=0).astype(dtype)                  # [C*HW, NCpad]
    b_pad = jnp.zeros((1, ncpad), jnp.float32).at[0, :nc].set(
        bias.astype(jnp.float32))

    itemsize = jnp.dtype(dtype).itemsize
    tn, tk, k_tiles, vmem_limit = _plan_tiles(n, k_total, itemsize, ncpad)
    grid = (pl.cdiv(n, tn), k_tiles)

    out = pl.pallas_call(
        _head_kernel,
        out_shape=jax.ShapeDtypeStruct((n, ncpad), jnp.float32),
        grid=grid,
        in_specs=[
            # x tile marches over batch (i) and contraction (k); Pallas
            # double-buffers its long contiguous DMA.
            pl.BlockSpec((tn, tk), lambda i, k: (i, k)),
            # Expanded weight: constant over i; resident when k_tiles == 1.
            pl.BlockSpec((tk, ncpad), lambda i, k: (k, 0)),
            # Bias: constant block -> fetched once.
            pl.BlockSpec((1, ncpad), lambda i, k: (0, 0)),
        ],
        # Output block constant over k -> accumulator resident across the
        # reduction axis; lane-dense (128-wide) unmasked stores.
        out_specs=pl.BlockSpec((tn, ncpad), lambda i, k: (i, 0)),
        compiler_params=pltpu.CompilerParams(
            dimension_semantics=("parallel", "arbitrary"),
            vmem_limit_bytes=vmem_limit,
        ),
    )(x, w_exp, b_pad)
    return out[:, :nc]


def init_params(num_classes=NUM_CLASSES, feat_c=FEAT_C, seed=0):
    """Deterministic init matching build_model():
       fc.weight ~ Normal(mean=0, std=0.01), fc.bias = 0."""
    key = jax.random.PRNGKey(seed)
    weight = 0.01 * jax.random.normal(key, (num_classes, feat_c), dtype=jnp.float32)
    bias = jnp.zeros((num_classes,), dtype=jnp.float32)
    return weight, bias


if __name__ == "__main__":
    # Small example: batch=4, 2048-channel feature map (fc requires 2048 inputs),
    # 4x4 spatial, NCHW — the ResNet pre-pool tensor shape at toy resolution.
    key = jax.random.PRNGKey(0)
    k_x, _ = jax.random.split(key)
    n, c, h, w = 4, FEAT_C, 4, 4
    x_f32 = jax.random.normal(k_x, (n, c, h, w), dtype=jnp.float32)

    weight, bias = init_params()

    # fp32 path, zero bias (exactly the module's init).
    logits = jax.block_until_ready(classification_head(x_f32, weight, bias))
    pooled_ref = jnp.mean(x_f32, axis=(2, 3))                  # [N, 2048]
    logits_ref = pooled_ref @ weight.T + bias                  # [N, num_classes]
    assert logits.shape == (n, NUM_CLASSES)
    assert jnp.allclose(logits, logits_ref, atol=3e-3, rtol=3e-3)

    # bf16 feature-map path (half the HBM traffic), nonzero bias to exercise
    # the bias-init branch; accumulation is f32 inside the kernel.
    x_bf16 = x_f32.astype(jnp.bfloat16)
    bias_nz = 0.05 * jnp.arange(NUM_CLASSES, dtype=jnp.float32)
    logits_bf = jax.block_until_ready(classification_head(x_bf16, weight, bias_nz))
    ref_bf = jnp.mean(x_bf16.astype(jnp.float32), axis=(2, 3)) @ weight.T + bias_nz
    assert jnp.allclose(logits_bf, ref_bf, atol=3e-3, rtol=3e-3)

    print("KERNEL_OK")
</pallas_src>

<mosaic_0001>
module attributes {stable_mosaic.version = 11 : i64} {
  func.func @_head_kernel(%arg0: i32, %arg1: i32, %arg2: memref<4x32768xf32, #tpu.memory_space<vmem>>, %arg3: memref<32768x128xf32, #tpu.memory_space<vmem>>, %arg4: memref<1x128xf32, #tpu.memory_space<vmem>>, %arg5: memref<4x128xf32, #tpu.memory_space<vmem>>) attributes {dimension_semantics = [#tpu.dimension_semantics<parallel>, #tpu.dimension_semantics<arbitrary>], iteration_bounds = array<i64: 1, 1>, scalar_prefetch = 0 : i64, scratch_operands = 0 : i64, tpu.core_type = #tpu.core_type<tc>, window_params = [{transform_indices = @transform_0, window_bounds = array<i64: 4, 32768>}, {transform_indices = @transform_1, window_bounds = array<i64: 32768, 128>}, {pipeline_mode = #tpu.pipeline_mode<synchronous>, transform_indices = @transform_2, window_bounds = array<i64: 1, 128>}, {transform_indices = @transform_3, window_bounds = array<i64: 4, 128>}]} {
    %c0_i32 = arith.constant 0 : i32
    %0 = arith.cmpi eq, %arg1, %c0_i32 : i32
    %1 = arith.extui %0 : i1 to i32
    %c0_i32_0 = arith.constant 0 : i32
    %2 = arith.cmpi ne, %1, %c0_i32_0 : i32
    scf.if %2 {
      %c0_8 = arith.constant 0 : index
      %c0_9 = arith.constant 0 : index
      %9 = vector.load %arg4[%c0_8, %c0_9] : memref<1x128xf32, #tpu.memory_space<vmem>>, vector<1x128xf32>
      %10 = vector.shape_cast %9 : vector<1x128xf32> to vector<1x128xf32>
      %11 = vector.broadcast %10 : vector<1x128xf32> to vector<4x128xf32>
      %c0_10 = arith.constant 0 : index
      %c0_11 = arith.constant 0 : index
      %12 = vector.load %arg5[%c0_10, %c0_11] : memref<4x128xf32, #tpu.memory_space<vmem>>, vector<4x128xf32>
      tpu.vector_store %arg5[%c0_10, %c0_11], %11 {strides = array<i32>} : memref<4x128xf32, #tpu.memory_space<vmem>>, vector<4x128xf32>,
    } else {
    }
    %c0 = arith.constant 0 : index
    %c0_1 = arith.constant 0 : index
    %3 = vector.load %arg5[%c0, %c0_1] : memref<4x128xf32, #tpu.memory_space<vmem>>, vector<4x128xf32>
    %c0_2 = arith.constant 0 : index
    %c0_3 = arith.constant 0 : index
    %4 = vector.load %arg2[%c0_2, %c0_3] : memref<4x32768xf32, #tpu.memory_space<vmem>>, vector<4x32768xf32>
    %c0_4 = arith.constant 0 : index
    %c0_5 = arith.constant 0 : index
    %5 = vector.load %arg3[%c0_4, %c0_5] : memref<32768x128xf32, #tpu.memory_space<vmem>>, vector<32768x128xf32>
    %cst = arith.constant dense<0.000000e+00> : vector<4x128xf32>
    %6 = tpu.matmul %4, %5, %cst {dimension_numbers = #tpu.dot_dimension_numbers<[1], [0], [0], [1], [0, 0, 1, 1], [], []>} : vector<4x32768xf32>, vector<32768x128xf32>, vector<4x128xf32> -> vector<4x128xf32>
    %7 = arith.addf %3, %6 : vector<4x128xf32>
    %c0_6 = arith.constant 0 : index
    %c0_7 = arith.constant 0 : index
    %8 = vector.load %arg5[%c0_6, %c0_7] : memref<4x128xf32, #tpu.memory_space<vmem>>, vector<4x128xf32>
    tpu.vector_store %arg5[%c0_6, %c0_7], %7 {strides = array<i32>} : memref<4x128xf32, #tpu.memory_space<vmem>>, vector<4x128xf32>,
    return
  }
  func.func @transform_0(%arg0: i32, %arg1: i32) -> (i32, i32) {
    %c0_i32 = arith.constant 0 : i32
    return %arg0, %arg1 : i32, i32
  }
  func.func @transform_1(%arg0: i32, %arg1: i32) -> (i32, i32) {
    %c0_i32 = arith.constant 0 : i32
    %c0_i32_0 = arith.constant 0 : i32
    return %arg1, %c0_i32 : i32, i32
  }
  func.func @transform_2(%arg0: i32, %arg1: i32) -> (i32, i32) {
    %c0_i32 = arith.constant 0 : i32
    %c0_i32_0 = arith.constant 0 : i32
    %c0_i32_1 = arith.constant 0 : i32
    return %c0_i32, %c0_i32_0 : i32, i32
  }
  func.func @transform_3(%arg0: i32, %arg1: i32) -> (i32, i32) {
    %c0_i32 = arith.constant 0 : i32
    %c0_i32_0 = arith.constant 0 : i32
    return %arg0, %c0_i32 : i32, i32
  }
}

</mosaic_0001>

<llo_original>
// kernel: tpu_custom_call.1
$region0: #{tpu_custom_call.1}
  #allocation0 [shape = 'u32[]', space=smem, size = 0x4, offset = 0x4, fixed_abs, tag = 'smem constant byte address 0x4 - core index']
  #allocation1 [shape = 'u32[72,128]{1,0:T(1,128)}', space=vmem, size = 0x9000, scoped, tag = 'internal scratch']
  %s0 = inlined_call_operand.hbm [shape: f32[4,32768], index: 0, kind: input, shape index: {}]
  %s1 = inlined_call_operand.hbm [shape: f32[32768,128], index: 1, kind: input, shape index: {}]
  %s2 = inlined_call_operand.hbm [shape: f32[1,128], index: 2, kind: input, shape index: {}]
  %s3 = inlined_call_operand.hbm [shape: f32[4,128], index: 3, kind: output, shape index: {}]
  %s4 = sld [smem:[#allocation0]]
  $region38: #{tpu_custom_call.1} parent=0
    _
  %s6 = ssub.s32 1, %s4
  %s7 = scalar_select 0, %s6, %s4
  $region1: #{tpu_custom_call.1} parent=0
    #allocation2 [shape = 'u8[524288]{0}', space=vmem, size = 0x80000, scoped, tag = 'input window, operand 0, single buffered']
    #allocation3 [shape = 's32[1]{0}', space=sflag, size = 0x4, scoped, tag = 'scoped memory for tpu_custom_call.1']
    #allocation4 [shape = 's32[1]{0}', space=sflag, size = 0x4, scoped, tag = 'scoped memory for tpu_custom_call.1']
    #allocation5 [shape = 'u8[16777216]{0}', space=vmem, size = 0x1000000, scoped, tag = 'input window, operand 1, single buffered']
    #allocation6 [shape = 's32[1]{0}', space=sflag, size = 0x4, scoped, tag = 'scoped memory for tpu_custom_call.1']
    #allocation7 [shape = 'u8[512]{0}', space=vmem, size = 0x400, scoped, tag = 'input window, operand 2, single buffered']
    #allocation8 [shape = 'u8[2048]{0}', space=vmem, size = 0x800, scoped, tag = 'output window, operand 0, single buffered']
    %8 = vsyncpa [#allocation3], 0
    %9 = vsyncpa [#allocation6], 0
    %10 = vsyncpa [#allocation4], 0
    // Predicated region
    $region2: #{tpu_custom_call.1} parent=1 // pred_check
      _
    $region3: #{tpu_custom_call.1} parent=1 // pred_check_branch
      %12 = sbr.rel (0) target = $region5
    $region4: #{tpu_custom_call.1} parent=1 // pred_region
      %14 = vsyncadd [#allocation3], 0
      %s16 = sshll.u32 %s0, 4
      %s17 = int_to_ptr.hbm [resolvable:$true] %s16
      %s18 = sshll.u32 [#allocation2], 4
      %s19 = int_to_ptr.vmem [resolvable:$true] %s18
      %21 = dma.hbm_to_vmem [thread:$0]  %s17, 16384, %s19, [#allocation3]
    $region5: #{tpu_custom_call.1} parent=1 // pred_fallthru
      _
    // Predicated region
    $region6: #{tpu_custom_call.1} parent=1 // pred_check
      _
    $region7: #{tpu_custom_call.1} parent=1 // pred_check_branch
      %23 = sbr.rel (0) target = $region9
    $region8: #{tpu_custom_call.1} parent=1 // pred_region
      %25 = vsyncadd [#allocation6], 0
      %s26 = sshll.u32 %s1, 4
      %s27 = int_to_ptr.hbm [resolvable:$true] %s26
      %s28 = sshll.u32 [#allocation5], 4
      %s29 = int_to_ptr.vmem [resolvable:$true] %s28
      %34 = dma.hbm_to_vmem [thread:$0]  %s27, 524288, %s29, [#allocation6], 128, 128, 8
    $region9: #{tpu_custom_call.1} parent=1 // pred_fallthru
      _
    // Predicated region
    $region10: #{tpu_custom_call.1} parent=1 // pred_check
      _
    $region11: #{tpu_custom_call.1} parent=1 // pred_check_branch
      %36 = sbr.rel (0) target = $region13
    $region12: #{tpu_custom_call.1} parent=1 // pred_region
      %38 = vsyncadd [#allocation6], 0
      %s40 = sshll.u32 %s2, 4
      %s41 = int_to_ptr.hbm [resolvable:$true] %s40
      %s42 = sshll.u32 [#allocation7], 4
      %s43 = int_to_ptr.vmem [resolvable:$true] %s42
      %45 = dma.hbm_to_vmem [thread:$0]  %s41, 16, %s43, [#allocation6]
    $region13: #{tpu_custom_call.1} parent=1 // pred_fallthru
      _
    // Predicated region
    $region14: #{tpu_custom_call.1} parent=1 // pred_check
      _
    $region15: #{tpu_custom_call.1} parent=1 // pred_check_branch
      %47 = sbr.rel (0) target = $region17
    $region16: #{tpu_custom_call.1} parent=1 // pred_region
      %49 = dma.done [#allocation3], 16384
    $region17: #{tpu_custom_call.1} parent=1 // pred_fallthru
      _
    // Predicated region
    $region18: #{tpu_custom_call.1} parent=1 // pred_check
      _
    $region19: #{tpu_custom_call.1} parent=1 // pred_check_branch
      %51 = sbr.rel (0) target = $region21
    $region20: #{tpu_custom_call.1} parent=1 // pred_region
      %53 = dma.done [#allocation6], 524288
    $region21: #{tpu_custom_call.1} parent=1 // pred_fallthru
      _
    // Predicated region
    $region22: #{tpu_custom_call.1} parent=1 // pred_check
      _
    $region23: #{tpu_custom_call.1} parent=1 // pred_check_branch
      %55 = sbr.rel (0) target = $region25
    $region24: #{tpu_custom_call.1} parent=1 // pred_region
      %57 = dma.done [#allocation6], 16
    $region25: #{tpu_custom_call.1} parent=1 // pred_fallthru
      _
    %p58 = scmp.eq.s32.totalorder 0, 0
    // Predicated region
    $region26: #{tpu_custom_call.1} parent=1 // pred_check
      %p59 = pneg %p58
    $region27: #{tpu_custom_call.1} parent=1 // pred_check_branch
      %61 = sbr.rel (%p59) target = $region29
    $region28: #{tpu_custom_call.1} parent=1 // pred_region
      %v62 = vld [vmem:[#allocation7] sm:$0x1]
      %v64 = vperm.slane %v62, 0
      %66 = vst [vmem:[#allocation8] sm:$0xf] %v64
    $region29: #{tpu_custom_call.1} parent=1 // pred_fallthru
      _
    %v67 = vld [vmem:[#allocation8] sm:$0xf]
    %v68 = vld [vmem:[#allocation2] sm:$0xff]
    %v69 = vld [vmem:[#allocation2 + $0x8] sm:$0xff]
    %v70 = vld [vmem:[#allocation2 + $0x10] sm:$0xff]
    %v71 = vld [vmem:[#allocation2 + $0x18] sm:$0xff]
    %v72 = vld [vmem:[#allocation2 + $0x20] sm:$0xff]
    %v73 = vld [vmem:[#allocation2 + $0x28] sm:$0xff]
    %v74 = vld [vmem:[#allocation2 + $0x30] sm:$0xff]
    %v75 = vld [vmem:[#allocation2 + $0x38] sm:$0xff]
    %v76 = vld [vmem:[#allocation2 + $0x40] sm:$0xff]
    %v77 = vld [vmem:[#allocation2 + $0x48] sm:$0xff]
    %v78 = vld [vmem:[#allocation2 + $0x50] sm:$0xff]
    %v79 = vld [vmem:[#allocation2 + $0x58] sm:$0xff]
    %v80 = vld [vmem:[#allocation2 + $0x60] sm:$0xff]
    %v81 = vld [vmem:[#allocation2 + $0x68] sm:$0xff]
    %v82 = vld [vmem:[#allocation2 + $0x70] sm:$0xff]
    %v83 = vld [vmem:[#allocation2 + $0x78] sm:$0xff]
    %v84 = vld [vmem:[#allocation2 + $0x80] sm:$0xff]
    %v85 = vld [vmem:[#allocation2 + $0x88] sm:$0xff]
    %v86 = vld [vmem:[#allocation2 + $0x90] sm:$0xff]
    %v87 = vld [vmem:[#allocation2 + $0x98] sm:$0xff]
    %v88 = vld [vmem:[#allocation2 + $0xa0] sm:$0xff]
    %v89 = vld [vmem:[#allocation2 + $0xa8] sm:$0xff]
    %v90 = vld [vmem:[#allocation2 + $0xb0] sm:$0xff]
    %v91 = vld [vmem:[#allocation2 + $0xb8] sm:$0xff]
    %v92 = vld [vmem:[#allocation2 + $0xc0] sm:$0xff]
    %v93 = vld [vmem:[#allocation2 + $0xc8] sm:$0xff]
    %v94 = vld [vmem:[#allocation2 + $0xd0] sm:$0xff]
    %v95 = vld [vmem:[#allocation2 + $0xd8] sm:$0xff]
    %v96 = vld [vmem:[#allocation2 + $0xe0] sm:$0xff]
    %v97 = vld [vmem:[#allocation2 + $0xe8] sm:$0xff]
    %v98 = vld [vmem:[#allocation2 + $0xf0] sm:$0xff]
    %v99 = vld [vmem:[#allocation2 + $0xf8] sm:$0xff]
    %v100 = vld [vmem:[#allocation2 + $0x100] sm:$0xff]
    %v101 = vld [vmem:[#allocation2 + $0x108] sm:$0xff]
    %v102 = vld [vmem:[#allocation2 + $0x110] sm:$0xff]
    %v103 = vld [vmem:[#allocation2 + $0x118] sm:$0xff]
    %v104 = vld [vmem:[#allocation2 + $0x120] sm:$0xff]
    %v105 = vld [vmem:[#allocation2 + $0x128] sm:$0xff]
    %v106 = vld [vmem:[#allocation2 + $0x130] sm:$0xff]
    %v107 = vld [vmem:[#allocation2 + $0x138] sm:$0xff]
    %v108 = vld [vmem:[#allocation2 + $0x140] sm:$0xff]
    %v109 = vld [vmem:[#allocation2 + $0x148] sm:$0xff]
    %v110 = vld [vmem:[#allocation2 + $0x150] sm:$0xff]
    %v111 = vld [vmem:[#allocation2 + $0x158] sm:$0xff]
    %v112 = vld [vmem:[#allocation2 + $0x160] sm:$0xff]
    %v113 = vld [vmem:[#allocation2 + $0x168] sm:$0xff]
    %v114 = vld [vmem:[#allocation2 + $0x170] sm:$0xff]
    %v115 = vld [vmem:[#allocation2 + $0x178] sm:$0xff]
    %v116 = vld [vmem:[#allocation2 + $0x180] sm:$0xff]
    %v117 = vld [vmem:[#allocation2 + $0x188] sm:$0xff]
    %v118 = vld [vmem:[#allocation2 + $0x190] sm:$0xff]
    %v119 = vld [vmem:[#allocation2 + $0x198] sm:$0xff]
    %v120 = vld [vmem:[#allocation2 + $0x1a0] sm:$0xff]
    %v121 = vld [vmem:[#allocation2 + $0x1a8] sm:$0xff]
    %v122 = vld [vmem:[#allocation2 + $0x1b0] sm:$0xff]
    %v123 = vld [vmem:[#allocation2 + $0x1b8] sm:$0xff]
    %v124 = vld [vmem:[#allocation2 + $0x1c0] sm:$0xff]
    %v125 = vld [vmem:[#allocation2 + $0x1c8] sm:$0xff]
    %v126 = vld [vmem:[#allocation2 + $0x1d0] sm:$0xff]
    %v127 = vld [vmem:[#allocation2 + $0x1d8] sm:$0xff]
    %v128 = vld [vmem:[#allocation2 + $0x1e0] sm:$0xff]
    %v129 = vld [vmem:[#allocation2 + $0x1e8] sm:$0xff]
    %v130 = vld [vmem:[#allocation2 + $0x1f0] sm:$0xff]
    %v131 = vld [vmem:[#allocation2 + $0x1f8] sm:$0xff]
    %v132 = vld [vmem:[#allocation2 + $0x200] sm:$0xff]
    %v133 = vld [vmem:[#allocation2 + $0x208] sm:$0xff]
    %v134 = vld [vmem:[#allocation2 + $0x210] sm:$0xff]
    %v135 = vld [vmem:[#allocation2 + $0x218] sm:$0xff]
    %v136 = vld [vmem:[#allocation2 + $0x220] sm:$0xff]
    %v137 = vld [vmem:[#allocation2 + $0x228] sm:$0xff]
    %v138 = vld [vmem:[#allocation2 + $0x230] sm:$0xff]
    %v139 = vld [vmem:[#allocation2 + $0x238] sm:$0xff]
    %v140 = vld [vmem:[#allocation2 + $0x240] sm:$0xff]
    %v141 = vld [vmem:[#allocation2 + $0x248] sm:$0xff]
    %v142 = vld [vmem:[#allocation2 + $0x250] sm:$0xff]
    %v143 = vld [vmem:[#allocation2 + $0x258] sm:$0xff]
    %v144 = vld [vmem:[#allocation2 + $0x260] sm:$0xff]
    %v145 = vld [vmem:[#allocation2 + $0x268] sm:$0xff]
    %v146 = vld [vmem:[#allocation2 + $0x270] sm:$0xff]
    %v147 = vld [vmem:[#allocation2 + $0x278] sm:$0xff]
    %v148 = vld [vmem:[#allocation2 + $0x280] sm:$0xff]
    %v149 = vld [vmem:[#allocation2 + $0x288] sm:$0xff]
    %v150 = vld [vmem:[#allocation2 + $0x290] sm:$0xff]
    %v151 = vld [vmem:[#allocation2 + $0x298] sm:$0xff]
    %v152 = vld [vmem:[#allocation2 + $0x2a0] sm:$0xff]
    %v153 = vld [vmem:[#allocation2 + $0x2a8] sm:$0xff]
    %v154 = vld [vmem:[#allocation2 + $0x2b0] sm:$0xff]
    %v155 = vld [vmem:[#allocation2 + $0x2b8] sm:$0xff]
    %v156 = vld [vmem:[#allocation2 + $0x2c0] sm:$0xff]
    %v157 = vld [vmem:[#allocation2 + $0x2c8] sm:$0xff]
    %v158 = vld [vmem:[#allocation2 + $0x2d0] sm:$0xff]
    %v159 = vld [vmem:[#allocation2 + $0x2d8] sm:$0xff]
    %v160 = vld [vmem:[#allocation2 + $0x2e0] sm:$0xff]
    %v161 = vld [vmem:[#allocation2 + $0x2e8] sm:$0xff]
    %v162 = vld [vmem:[#allocation2 + $0x2f0] sm:$0xff]
    %v163 = vld [vmem:[#allocation2 + $0x2f8] sm:$0xff]
    %v164 = vld [vmem:[#allocation2 + $0x300] sm:$0xff]
    %v165 = vld [vmem:[#allocation2 + $0x308] sm:$0xff]
    %v166 = vld [vmem:[#allocation2 + $0x310] sm:$0xff]
    %v167 = vld [vmem:[#allocation2 + $0x318] sm:$0xff]
    %v168 = vld [vmem:[#allocation2 + $0x320] sm:$0xff]
    %v169 = vld [vmem:[#allocation2 + $0x328] sm:$0xff]
    %v170 = vld [vmem:[#allocation2 + $0x330] sm:$0xff]
    %v171 = vld [vmem:[#allocation2 + $0x338] sm:$0xff]
    %v172 = vld [vmem:[#allocation2 + $0x340] sm:$0xff]
    %v173 = vld [vmem:[#allocation2 + $0x348] sm:$0xff]
    %v174 = vld [vmem:[#allocation2 + $0x350] sm:$0xff]
    %v175 = vld [vmem:[#allocation2 + $0x358] sm:$0xff]
    %v176 = vld [vmem:[#allocation2 + $0x360] sm:$0xff]
    %v177 = vld [vmem:[#allocation2 + $0x368] sm:$0xff]
    %v178 = vld [vmem:[#allocation2 + $0x370] sm:$0xff]
    %v179 = vld [vmem:[#allocation2 + $0x378] sm:$0xff]
    %v180 = vld [vmem:[#allocation2 + $0x380] sm:$0xff]
    %v181 = vld [vmem:[#allocation2 + $0x388] sm:$0xff]
    %v182 = vld [vmem:[#allocation2 + $0x390] sm:$0xff]
    %v183 = vld [vmem:[#allocation2 + $0x398] sm:$0xff]
    %v184 = vld [vmem:[#allocation2 + $0x3a0] sm:$0xff]
    %v185 = vld [vmem:[#allocation2 + $0x3a8] sm:$0xff]
    %v186 = vld [vmem:[#allocation2 + $0x3b0] sm:$0xff]
    %v187 = vld [vmem:[#allocation2 + $0x3b8] sm:$0xff]
    %v188 = vld [vmem:[#allocation2 + $0x3c0] sm:$0xff]
    %v189 = vld [vmem:[#allocation2 + $0x3c8] sm:$0xff]
    %v190 = vld [vmem:[#allocation2 + $0x3d0] sm:$0xff]
    %v191 = vld [vmem:[#allocation2 + $0x3d8] sm:$0xff]
    %v192 = vld [vmem:[#allocation2 + $0x3e0] sm:$0xff]
    %v193 = vld [vmem:[#allocation2 + $0x3e8] sm:$0xff]
    %v194 = vld [vmem:[#allocation2 + $0x3f0] sm:$0xff]
    %v195 = vld [vmem:[#allocation2 + $0x3f8] sm:$0xff]
    %v196 = vld [vmem:[#allocation5] sm:$0xff]
    %v197 = vld [vmem:[#allocation5 + $0x8] sm:$0xff]
    %v198 = vld [vmem:[#allocation5 + $0x10] sm:$0xff]
    %v199 = vld [vmem:[#allocation5 + $0x18] sm:$0xff]
    %v200 = vld [vmem:[#allocation5 + $0x20] sm:$0xff]
    %v201 = vld [vmem:[#allocation5 + $0x28] sm:$0xff]
    %v202 = vld [vmem:[#allocation5 + $0x30] sm:$0xff]
    %v203 = vld [vmem:[#allocation5 + $0x38] sm:$0xff]
    %v204 = vld [vmem:[#allocation5 + $0x40] sm:$0xff]
    %v205 = vld [vmem:[#allocation5 + $0x48] sm:$0xff]
    %v206 = vld [vmem:[#allocation5 + $0x50] sm:$0xff]
    %v207 = vld [vmem:[#allocation5 + $0x58] sm:$0xff]
    %v208 = vld [vmem:[#allocation5 + $0x60] sm:$0xff]
    %v209 = vld [vmem:[#allocation5 + $0x68] sm:$0xff]
    %v210 = vld [vmem:[#allocation5 + $0x70] sm:$0xff]
    %v211 = vld [vmem:[#allocation5 + $0x78] sm:$0xff]
    %v212 = vld [vmem:[#allocation5 + $0x80] sm:$0xff]
    %v213 = vld [vmem:[#allocation5 + $0x88] sm:$0xff]
    %v214 = vld [vmem:[#allocation5 + $0x90] sm:$0xff]
    %v215 = vld [vmem:[#allocation5 + $0x98] sm:$0xff]
    %v216 = vld [vmem:[#allocation5 + $0xa0] sm:$0xff]
    %v217 = vld [vmem:[#allocation5 + $0xa8] sm:$0xff]
    %v218 = vld [vmem:[#allocation5 + $0xb0] sm:$0xff]
    %v219 = vld [vmem:[#allocation5 + $0xb8] sm:$0xff]
    %v220 = vld [vmem:[#allocation5 + $0xc0] sm:$0xff]
    %v221 = vld [vmem:[#allocation5 + $0xc8] sm:$0xff]
    %v222 = vld [vmem:[#allocation5 + $0xd0] sm:$0xff]
    %v223 = vld [vmem:[#allocation5 + $0xd8] sm:$0xff]
    %v224 = vld [vmem:[#allocation5 + $0xe0] sm:$0xff]
    %v225 = vld [vmem:[#allocation5 + $0xe8] sm:$0xff]
    %v226 = vld [vmem:[#allocation5 + $0xf0] sm:$0xff]
    %v227 = vld [vmem:[#allocation5 + $0xf8] sm:$0xff]
    %v228 = vld [vmem:[#allocation5 + $0x100] sm:$0xff]
    %v229 = vld [vmem:[#allocation5 + $0x108] sm:$0xff]
    %v230 = vld [vmem:[#allocation5 + $0x110] sm:$0xff]
    %v231 = vld [vmem:[#allocation5 + $0x118] sm:$0xff]
    %v232 = vld [vmem:[#allocation5 + $0x120] sm:$0xff]
    %v233 = vld [vmem:[#allocation5 + $0x128] sm:$0xff]
    %v234 = vld [vmem:[#allocation5 + $0x130] sm:$0xff]
    %v235 = vld [vmem:[#allocation5 + $0x138] sm:$0xff]
    %v236 = vld [vmem:[#allocation5 + $0x140] sm:$0xff]
    %v237 = vld [vmem:[#allocation5 + $0x148] sm:$0xff]
    %v238 = vld [vmem:[#allocation5 + $0x150] sm:$0xff]
    %v239 = vld [vmem:[#allocation5 + $0x158] sm:$0xff]
    %v240 = vld [vmem:[#allocation5 + $0x160] sm:$0xff]
    %v241 = vld [vmem:[#allocation5 + $0x168] sm:$0xff]
    %v242 = vld [vmem:[#allocation5 + $0x170] sm:$0xff]
    %v243 = vld [vmem:[#allocation5 + $0x178] sm:$0xff]
    %v244 = vld [vmem:[#allocation5 + $0x180] sm:$0xff]
    %v245 = vld [vmem:[#allocation5 + $0x188] sm:$0xff]
    %v246 = vld [vmem:[#allocation5 + $0x190] sm:$0xff]
    %v247 = vld [vmem:[#allocation5 + $0x198] sm:$0xff]
    %v248 = vld [vmem:[#allocation5 + $0x1a0] sm:$0xff]
    %v249 = vld [vmem:[#allocation5 + $0x1a8] sm:$0xff]
    %v250 = vld [vmem:[#allocation5 + $0x1b0] sm:$0xff]
    %v251 = vld [vmem:[#allocation5 + $0x1b8] sm:$0xff]
    %v252 = vld [vmem:[#allocation5 + $0x1c0] sm:$0xff]
    %v253 = vld [vmem:[#allocation5 + $0x1c8] sm:$0xff]
    %v254 = vld [vmem:[#allocation5 + $0x1d0] sm:$0xff]
    %v255 = vld [vmem:[#allocation5 + $0x1d8] sm:$0xff]
    %v256 = vld [vmem:[#allocation5 + $0x1e0] sm:$0xff]
    %v257 = vld [vmem:[#allocation5 + $0x1e8] sm:$0xff]
    %v258 = vld [vmem:[#allocation5 + $0x1f0] sm:$0xff]
    %v259 = vld [vmem:[#allocation5 + $0x1f8] sm:$0xff]
    %v260 = vld [vmem:[#allocation5 + $0x200] sm:$0xff]
    %v261 = vld [vmem:[#allocation5 + $0x208] sm:$0xff]
    %v262 = vld [vmem:[#allocation5 + $0x210] sm:$0xff]
    %v263 = vld [vmem:[#allocation5 + $0x218] sm:$0xff]
    %v264 = vld [vmem:[#allocation5 + $0x220] sm:$0xff]
    %v265 = vld [vmem:[#allocation5 + $0x228] sm:$0xff]
    %v266 = vld [vmem:[#allocation5 + $0x230] sm:$0xff]
    %v267 = vld [vmem:[#allocation5 + $0x238] sm:$0xff]
    %v268 = vld [vmem:[#allocation5 + $0x240] sm:$0xff]
    %v269 = vld [vmem:[#allocation5 + $0x248] sm:$0xff]
    %v270 = vld [vmem:[#allocation5 + $0x250] sm:$0xff]
    %v271 = vld [vmem:[#allocation5 + $0x258] sm:$0xff]
    %v272 = vld [vmem:[#allocation5 + $0x260] sm:$0xff]
    %v273 = vld [vmem:[#allocation5 + $0x268] sm:$0xff]
    %v274 = vld [vmem:[#allocation5 + $0x270] sm:$0xff]
    %v275 = vld [vmem:[#allocation5 + $0x278] sm:$0xff]
    %v276 = vld [vmem:[#allocation5 + $0x280] sm:$0xff]
    %v277 = vld [vmem:[#allocation5 + $0x288] sm:$0xff]
    %v278 = vld [vmem:[#allocation5 + $0x290] sm:$0xff]
    %v279 = vld [vmem:[#allocation5 + $0x298] sm:$0xff]
    %v280 = vld [vmem:[#allocation5 + $0x2a0] sm:$0xff]
    %v281 = vld [vmem:[#allocation5 + $0x2a8] sm:$0xff]
    %v282 = vld [vmem:[#allocation5 + $0x2b0] sm:$0xff]
    %v283 = vld [vmem:[#allocation5 + $0x2b8] sm:$0xff]
    %v284 = vld [vmem:[#allocation5 + $0x2c0] sm:$0xff]
    %v285 = vld [vmem:[#allocation5 + $0x2c8] sm:$0xff]
    %v286 = vld [vmem:[#allocation5 + $0x2d0] sm:$0xff]
    %v287 = vld [vmem:[#allocation5 + $0x2d8] sm:$0xff]
    %v288 = vld [vmem:[#allocation5 + $0x2e0] sm:$0xff]
    %v289 = vld [vmem:[#allocation5 + $0x2e8] sm:$0xff]
    %v290 = vld [vmem:[#allocation5 + $0x2f0] sm:$0xff]
    %v291 = vld [vmem:[#allocation5 + $0x2f8] sm:$0xff]
    %v292 = vld [vmem:[#allocation5 + $0x300] sm:$0xff]
    %v293 = vld [vmem:[#allocation5 + $0x308] sm:$0xff]
    %v294 = vld [vmem:[#allocation5 + $0x310] sm:$0xff]
    %v295 = vld [vmem:[#allocation5 + $0x318] sm:$0xff]
    %v296 = vld [vmem:[#allocation5 + $0x320] sm:$0xff]
    %v297 = vld [vmem:[#allocation5 + $0x328] sm:$0xff]
    %v298 = vld [vmem:[#allocation5 + $0x330] sm:$0xff]
    %v299 = vld [vmem:[#allocation5 + $0x338] sm:$0xff]
    %v300 = vld [vmem:[#allocation5 + $0x340] sm:$0xff]
    %v301 = vld [vmem:[#allocation5 + $0x348] sm:$0xff]
    %v302 = vld [vmem:[#allocation5 + $0x350] sm:$0xff]
    %v303 = vld [vmem:[#allocation5 + $0x358] sm:$0xff]
    %v304 = vld [vmem:[#allocation5 + $0x360] sm:$0xff]
    %v305 = vld [vmem:[#allocation5 + $0x368] sm:$0xff]
    %v306 = vld [vmem:[#allocation5 + $0x370] sm:$0xff]
    %v307 = vld [vmem:[#allocation5 + $0x378] sm:$0xff]
    %v308 = vld [vmem:[#allocation5 + $0x380] sm:$0xff]
    %v309 = vld [vmem:[#allocation5 + $0x388] sm:$0xff]
    %v310 = vld [vmem:[#allocation5 + $0x390] sm:$0xff]
    %v311 = vld [vmem:[#allocation5 + $0x398] sm:$0xff]
    %v312 = vld [vmem:[#allocation5 + $0x3a0] sm:$0xff]
    %v313 = vld [vmem:[#allocation5 + $0x3a8] sm:$0xff]
    %v314 = vld [vmem:[#allocation5 + $0x3b0] sm:$0xff]
    %v315 = vld [vmem:[#allocation5 + $0x3b8] sm:$0xff]
    %v316 = vld [vmem:[#allocation5 + $0x3c0] sm:$0xff]
    %v317 = vld [vmem:[#allocation5 + $0x3c8] sm:$0xff]
    %v318 = vld [vmem:[#allocation5 + $0x3d0] sm:$0xff]
    %v319 = vld [vmem:[#allocation5 + $0x3d8] sm:$0xff]
    %v320 = vld [vmem:[#allocation5 + $0x3e0] sm:$0xff]
    %v321 = vld [vmem:[#allocation5 + $0x3e8] sm:$0xff]
    %v322 = vld [vmem:[#allocation5 + $0x3f0] sm:$0xff]
    %v323 = vld [vmem:[#allocation5 + $0x3f8] sm:$0xff]
    %v324 = vld [vmem:[#allocation5 + $0x400] sm:$0xff]
    %v325 = vld [vmem:[#allocation5 + $0x408] sm:$0xff]
    %v326 = vld [vmem:[#allocation5 + $0x410] sm:$0xff]
    %v327 = vld [vmem:[#allocation5 + $0x418] sm:$0xff]
    %v328 = vld [vmem:[#allocation5 + $0x420] sm:$0xff]
    %v329 = vld [vmem:[#allocation5 + $0x428] sm:$0xff]
    %v330 = vld [vmem:[#allocation5 + $0x430] sm:$0xff]
    %v331 = vld [vmem:[#allocation5 + $0x438] sm:$0xff]
    %v332 = vld [vmem:[#allocation5 + $0x440] sm:$0xff]
    %v333 = vld [vmem:[#allocation5 + $0x448] sm:$0xff]
    %v334 = vld [vmem:[#allocation5 + $0x450] sm:$0xff]
    %v335 = vld [vmem:[#allocation5 + $0x458] sm:$0xff]
    %v336 = vld [vmem:[#allocation5 + $0x460] sm:$0xff]
    %v337 = vld [vmem:[#allocation5 + $0x468] sm:$0xff]
    %v338 = vld [vmem:[#allocation5 + $0x470] sm:$0xff]
    %v339 = vld [vmem:[#allocation5 + $0x478] sm:$0xff]
    %v340 = vld [vmem:[#allocation5 + $0x480] sm:$0xff]
    %v341 = vld [vmem:[#allocation5 + $0x488] sm:$0xff]
    %v342 = vld [vmem:[#allocation5 + $0x490] sm:$0xff]
    %v343 = vld [vmem:[#allocation5 + $0x498] sm:$0xff]
    %v344 = vld [vmem:[#allocation5 + $0x4a0] sm:$0xff]
    %v345 = vld [vmem:[#allocation5 + $0x4a8] sm:$0xff]
    %v346 = vld [vmem:[#allocation5 + $0x4b0] sm:$0xff]
    %v347 = vld [vmem:[#allocation5 + $0x4b8] sm:$0xff]
    %v348 = vld [vmem:[#allocation5 + $0x4c0] sm:$0xff]
    %v349 = vld [vmem:[#allocation5 + $0x4c8] sm:$0xff]
    %v350 = vld [vmem:[#allocation5 + $0x4d0] sm:$0xff]
    %v351 = vld [vmem:[#allocation5 + $0x4d8] sm:$0xff]
    %v352 = vld [vmem:[#allocation5 + $0x4e0] sm:$0xff]
    %v353 = vld [vmem:[#allocation5 + $0x4e8] sm:$0xff]
    %v354 = vld [vmem:[#allocation5 + $0x4f0] sm:$0xff]
    %v355 = vld [vmem:[#allocation5 + $0x4f8] sm:$0xff]
    %v356 = vld [vmem:[#allocation5 + $0x500] sm:$0xff]
    %v357 = vld [vmem:[#allocation5 + $0x508] sm:$0xff]
    %v358 = vld [vmem:[#allocation5 + $0x510] sm:$0xff]
    %v359 = vld [vmem:[#allocation5 + $0x518] sm:$0xff]
    %v360 = vld [vmem:[#allocation5 + $0x520] sm:$0xff]
    %v361 = vld [vmem:[#allocation5 + $0x528] sm:$0xff]
    %v362 = vld [vmem:[#allocation5 + $0x530] sm:$0xff]
    %v363 = vld [vmem:[#allocation5 + $0x538] sm:$0xff]
    %v364 = vld [vmem:[#allocation5 + $0x540] sm:$0xff]
    %v365 = vld [vmem:[#allocation5 + $0x548] sm:$0xff]
    %v366 = vld [vmem:[#allocation5 + $0x550] sm:$0xff]
    %v367 = vld [vmem:[#allocation5 + $0x558] sm:$0xff]
    %v368 = vld [vmem:[#allocation5 + $0x560] sm:$0xff]
    %v369 = vld [vmem:[#allocation5 + $0x568] sm:$0xff]
    %v370 = vld [vmem:[#allocation5 + $0x570] sm:$0xff]
    %v371 = vld [vmem:[#allocation5 + $0x578] sm:$0xff]
    %v372 = vld [vmem:[#allocation5 + $0x580] sm:$0xff]
    %v373 = vld [vmem:[#allocation5 + $0x588] sm:$0xff]
    %v374 = vld [vmem:[#allocation5 + $0x590] sm:$0xff]
    %v375 = vld [vmem:[#allocation5 + $0x598] sm:$0xff]
    %v376 = vld [vmem:[#allocation5 + $0x5a0] sm:$0xff]
    %v377 = vld [vmem:[#allocation5 + $0x5a8] sm:$0xff]
    %v378 = vld [vmem:[#allocation5 + $0x5b0] sm:$0xff]
    %v379 = vld [vmem:[#allocation5 + $0x5b8] sm:$0xff]
    %v380 = vld [vmem:[#allocation5 + $0x5c0] sm:$0xff]
    %v381 = vld [vmem:[#allocation5 + $0x5c8] sm:$0xff]
    %v382 = vld [vmem:[#allocation5 + $0x5d0] sm:$0xff]
    %v383 = vld [vmem:[#allocation5 + $0x5d8] sm:$0xff]
    %v384 = vld [vmem:[#allocation5 + $0x5e0] sm:$0xff]
    %v385 = vld [vmem:[#allocation5 + $0x5e8] sm:$0xff]
    %v386 = vld [vmem:[#allocation5 + $0x5f0] sm:$0xff]
    %v387 = vld [vmem:[#allocation5 + $0x5f8] sm:$0xff]
    %v388 = vld [vmem:[#allocation5 + $0x600] sm:$0xff]
    %v389 = vld [vmem:[#allocation5 + $0x608] sm:$0xff]
    %v390 = vld [vmem:[#allocation5 + $0x610] sm:$0xff]
    %v391 = vld [vmem:[#allocation5 + $0x618] sm:$0xff]
    %v392 = vld [vmem:[#allocation5 + $0x620] sm:$0xff]
    %v393 = vld [vmem:[#allocation5 + $0x628] sm:$0xff]
    %v394 = vld [vmem:[#allocation5 + $0x630] sm:$0xff]
    %v395 = vld [vmem:[#allocation5 + $0x638] sm:$0xff]
    %v396 = vld [vmem:[#allocation5 + $0x640] sm:$0xff]
    %v397 = vld [vmem:[#allocation5 + $0x648] sm:$0xff]
    %v398 = vld [vmem:[#allocation5 + $0x650] sm:$0xff]
    %v399 = vld [vmem:[#allocation5 + $0x658] sm:$0xff]
    %v400 = vld [vmem:[#allocation5 + $0x660] sm:$0xff]
    %v401 = vld [vmem:[#allocation5 + $0x668] sm:$0xff]
    %v402 = vld [vmem:[#allocation5 + $0x670] sm:$0xff]
    %v403 = vld [vmem:[#allocation5 + $0x678] sm:$0xff]
    %v404 = vld [vmem:[#allocation5 + $0x680] sm:$0xff]
    %v405 = vld [vmem:[#allocation5 + $0x688] sm:$0xff]
    %v406 = vld [vmem:[#allocation5 + $0x690] sm:$0xff]
    %v407 = vld [vmem:[#allocation5 + $0x698] sm:$0xff]
    %v408 = vld [vmem:[#allocation5 + $0x6a0] sm:$0xff]
    %v409 = vld [vmem:[#allocation5 + $0x6a8] sm:$0xff]
    %v410 = vld [vmem:[#allocation5 + $0x6b0] sm:$0xff]
    %v411 = vld [vmem:[#allocation5 + $0x6b8] sm:$0xff]
    %v412 = vld [vmem:[#allocation5 + $0x6c0] sm:$0xff]
    %v413 = vld [vmem:[#allocation5 + $0x6c8] sm:$0xff]
    %v414 = vld [vmem:[#allocation5 + $0x6d0] sm:$0xff]
    %v415 = vld [vmem:[#allocation5 + $0x6d8] sm:$0xff]
    %v416 = vld [vmem:[#allocation5 + $0x6e0] sm:$0xff]
    %v417 = vld [vmem:[#allocation5 + $0x6e8] sm:$0xff]
    %v418 = vld [vmem:[#allocation5 + $0x6f0] sm:$0xff]
    %v419 = vld [vmem:[#allocation5 + $0x6f8] sm:$0xff]
    %v420 = vld [vmem:[#allocation5 + $0x700] sm:$0xff]
    %v421 = vld [vmem:[#allocation5 + $0x708] sm:$0xff]
    %v422 = vld [vmem:[#allocation5 + $0x710] sm:$0xff]
    %v423 = vld [vmem:[#allocation5 + $0x718] sm:$0xff]
    %v424 = vld [vmem:[#allocation5 + $0x720] sm:$0xff]
    %v425 = vld [vmem:[#allocation5 + $0x728] sm:$0xff]
    %v426 = vld [vmem:[#allocation5 + $0x730] sm:$0xff]
    %v427 = vld [vmem:[#allocation5 + $0x738] sm:$0xff]
    %v428 = vld [vmem:[#allocation5 + $0x740] sm:$0xff]
    %v429 = vld [vmem:[#allocation5 + $0x748] sm:$0xff]
    %v430 = vld [vmem:[#allocation5 + $0x750] sm:$0xff]
    %v431 = vld [vmem:[#allocation5 + $0x758] sm:$0xff]
    %v432 = vld [vmem:[#allocation5 + $0x760] sm:$0xff]
    %v433 = vld [vmem:[#allocation5 + $0x768] sm:$0xff]
    %v434 = vld [vmem:[#allocation5 + $0x770] sm:$0xff]
    %v435 = vld [vmem:[#allocation5 + $0x778] sm:$0xff]
    %v436 = vld [vmem:[#allocation5 + $0x780] sm:$0xff]
    %v437 = vld [vmem:[#allocation5 + $0x788] sm:$0xff]
    %v438 = vld [vmem:[#allocation5 + $0x790] sm:$0xff]
    %v439 = vld [vmem:[#allocation5 + $0x798] sm:$0xff]
    %v440 = vld [vmem:[#allocation5 + $0x7a0] sm:$0xff]
    %v441 = vld [vmem:[#allocation5 + $0x7a8] sm:$0xff]
    %v442 = vld [vmem:[#allocation5 + $0x7b0] sm:$0xff]
    %v443 = vld [vmem:[#allocation5 + $0x7b8] sm:$0xff]
    %v444 = vld [vmem:[#allocation5 + $0x7c0] sm:$0xff]
    %v445 = vld [vmem:[#allocation5 + $0x7c8] sm:$0xff]
    %v446 = vld [vmem:[#allocation5 + $0x7d0] sm:$0xff]
    %v447 = vld [vmem:[#allocation5 + $0x7d8] sm:$0xff]
    %v448 = vld [vmem:[#allocation5 + $0x7e0] sm:$0xff]
    %v449 = vld [vmem:[#allocation5 + $0x7e8] sm:$0xff]
    %v450 = vld [vmem:[#allocation5 + $0x7f0] sm:$0xff]
    %v451 = vld [vmem:[#allocation5 + $0x7f8] sm:$0xff]
    %v452 = vld [vmem:[#allocation5 + $0x800] sm:$0xff]
    %v453 = vld [vmem:[#allocation5 + $0x808] sm:$0xff]
    %v454 = vld [vmem:[#allocation5 + $0x810] sm:$0xff]
    %v455 = vld [vmem:[#allocation5 + $0x818] sm:$0xff]
    %v456 = vld [vmem:[#allocation5 + $0x820] sm:$0xff]
    %v457 = vld [vmem:[#allocation5 + $0x828] sm:$0xff]
    %v458 = vld [vmem:[#allocation5 + $0x830] sm:$0xff]
    %v459 = vld [vmem:[#allocation5 + $0x838] sm:$0xff]
    %v460 = vld [vmem:[#allocation5 + $0x840] sm:$0xff]
    %v461 = vld [vmem:[#allocation5 + $0x848] sm:$0xff]
    %v462 = vld [vmem:[#allocation5 + $0x850] sm:$0xff]
    %v463 = vld [vmem:[#allocation5 + $0x858] sm:$0xff]
    %v464 = vld [vmem:[#allocation5 + $0x860] sm:$0xff]
    %v465 = vld [vmem:[#allocation5 + $0x868] sm:$0xff]
    %v466 = vld [vmem:[#allocation5 + $0x870] sm:$0xff]
    %v467 = vld [vmem:[#allocation5 + $0x878] sm:$0xff]
    %v468 = vld [vmem:[#allocation5 + $0x880] sm:$0xff]
    %v469 = vld [vmem:[#allocation5 + $0x888] sm:$0xff]
    %v470 = vld [vmem:[#allocation5 + $0x890] sm:$0xff]
    %v471 = vld [vmem:[#allocation5 + $0x898] sm:$0xff]
    %v472 = vld [vmem:[#allocation5 + $0x8a0] sm:$0xff]
    %v473 = vld [vmem:[#allocation5 + $0x8a8] sm:$0xff]
    %v474 = vld [vmem:[#allocation5 + $0x8b0] sm:$0xff]
    %v475 = vld [vmem:[#allocation5 + $0x8b8] sm:$0xff]
    %v476 = vld [vmem:[#allocation5 + $0x8c0] sm:$0xff]
    %v477 = vld [vmem:[#allocation5 + $0x8c8] sm:$0xff]
    %v478 = vld [vmem:[#allocation5 + $0x8d0] sm:$0xff]
    %v479 = vld [vmem:[#allocation5 + $0x8d8] sm:$0xff]
    %v480 = vld [vmem:[#allocation5 + $0x8e0] sm:$0xff]
    %v481 = vld [vmem:[#allocation5 + $0x8e8] sm:$0xff]
    %v482 = vld [vmem:[#allocation5 + $0x8f0] sm:$0xff]
    %v483 = vld [vmem:[#allocation5 + $0x8f8] sm:$0xff]
    %v484 = vld [vmem:[#allocation5 + $0x900] sm:$0xff]
    %v485 = vld [vmem:[#allocation5 + $0x908] sm:$0xff]
    %v486 = vld [vmem:[#allocation5 + $0x910] sm:$0xff]
    %v487 = vld [vmem:[#allocation5 + $0x918] sm:$0xff]
    %v488 = vld [vmem:[#allocation5 + $0x920] sm:$0xff]
    %v489 = vld [vmem:[#allocation5 + $0x928] sm:$0xff]
    %v490 = vld [vmem:[#allocation5 + $0x930] sm:$0xff]
    %v491 = vld [vmem:[#allocation5 + $0x938] sm:$0xff]
    %v492 = vld [vmem:[#allocation5 + $0x940] sm:$0xff]
    %v493 = vld [vmem:[#allocation5 + $0x948] sm:$0xff]
    %v494 = vld [vmem:[#allocation5 + $0x950] sm:$0xff]
    %v495 = vld [vmem:[#allocation5 + $0x958] sm:$0xff]
    %v496 = vld [vmem:[#allocation5 + $0x960] sm:$0xff]
    %v497 = vld [vmem:[#allocation5 + $0x968] sm:$0xff]
    %v498 = vld [vmem:[#allocation5 + $0x970] sm:$0xff]
    %v499 = vld [vmem:[#allocation5 + $0x978] sm:$0xff]
    %v500 = vld [vmem:[#allocation5 + $0x980] sm:$0xff]
    %v501 = vld [vmem:[#allocation5 + $0x988] sm:$0xff]
    %v502 = vld [vmem:[#allocation5 + $0x990] sm:$0xff]
    %v503 = vld [vmem:[#allocation5 + $0x998] sm:$0xff]
    %v504 = vld [vmem:[#allocation5 + $0x9a0] sm:$0xff]
    %v505 = vld [vmem:[#allocation5 + $0x9a8] sm:$0xff]
    %v506 = vld [vmem:[#allocation5 + $0x9b0] sm:$0xff]
    %v507 = vld [vmem:[#allocation5 + $0x9b8] sm:$0xff]
    %v508 = vld [vmem:[#allocation5 + $0x9c0] sm:$0xff]
    %v509 = vld [vmem:[#allocation5 + $0x9c8] sm:$0xff]
    %v510 = vld [vmem:[#allocation5 + $0x9d0] sm:$0xff]
    %v511 = vld [vmem:[#allocation5 + $0x9d8] sm:$0xff]
    %v512 = vld [vmem:[#allocation5 + $0x9e0] sm:$0xff]
    %v513 = vld [vmem:[#allocation5 + $0x9e8] sm:$0xff]
    %v514 = vld [vmem:[#allocation5 + $0x9f0] sm:$0xff]
    %v515 = vld [vmem:[#allocation5 + $0x9f8] sm:$0xff]
    %v516 = vld [vmem:[#allocation5 + $0xa00] sm:$0xff]
    %v517 = vld [vmem:[#allocation5 + $0xa08] sm:$0xff]
    %v518 = vld [vmem:[#allocation5 + $0xa10] sm:$0xff]
    %v519 = vld [vmem:[#allocation5 + $0xa18] sm:$0xff]
    %v520 = vld [vmem:[#allocation5 + $0xa20] sm:$0xff]
    %v521 = vld [vmem:[#allocation5 + $0xa28] sm:$0xff]
    %v522 = vld [vmem:[#allocation5 + $0xa30] sm:$0xff]
    %v523 = vld [vmem:[#allocation5 + $0xa38] sm:$0xff]
    %v524 = vld [vmem:[#allocation5 + $0xa40] sm:$0xff]
    %v525 = vld [vmem:[#allocation5 + $0xa48] sm:$0xff]
    %v526 = vld [vmem:[#allocation5 + $0xa50] sm:$0xff]
    %v527 = vld [vmem:[#allocation5 + $0xa58] sm:$0xff]
    %v528 = vld [vmem:[#allocation5 + $0xa60] sm:$0xff]
    %v529 = vld [vmem:[#allocation5 + $0xa68] sm:$0xff]
    %v530 = vld [vmem:[#allocation5 + $0xa70] sm:$0xff]
    %v531 = vld [vmem:[#allocation5 + $0xa78] sm:$0xff]
    %v532 = vld [vmem:[#allocation5 + $0xa80] sm:$0xff]
    %v533 = vld [vmem:[#allocation5 + $0xa88] sm:$0xff]
    %v534 = vld [vmem:[#allocation5 + $0xa90] sm:$0xff]
    %v535 = vld [vmem:[#allocation5 + $0xa98] sm:$0xff]
    %v536 = vld [vmem:[#allocation5 + $0xaa0] sm:$0xff]
    %v537 = vld [vmem:[#allocation5 + $0xaa8] sm:$0xff]
    %v538 = vld [vmem:[#allocation5 + $0xab0] sm:$0xff]
    %v539 = vld [vmem:[#allocation5 + $0xab8] sm:$0xff]
    %v540 = vld [vmem:[#allocation5 + $0xac0] sm:$0xff]
    %v541 = vld [vmem:[#allocation5 + $0xac8] sm:$0xff]
    %v542 = vld [vmem:[#allocation5 + $0xad0] sm:$0xff]
    %v543 = vld [vmem:[#allocation5 + $0xad8] sm:$0xff]
    %v544 = vld [vmem:[#allocation5 + $0xae0] sm:$0xff]
    %v545 = vld [vmem:[#allocation5 + $0xae8] sm:$0xff]
    %v546 = vld [vmem:[#allocation5 + $0xaf0] sm:$0xff]
    %v547 = vld [vmem:[#allocation5 + $0xaf8] sm:$0xff]
    %v548 = vld [vmem:[#allocation5 + $0xb00] sm:$0xff]
    %v549 = vld [vmem:[#allocation5 + $0xb08] sm:$0xff]
    %v550 = vld [vmem:[#allocation5 + $0xb10] sm:$0xff]
    %v551 = vld [vmem:[#allocation5 + $0xb18] sm:$0xff]
    %v552 = vld [vmem:[#allocation5 + $0xb20] sm:$0xff]
    %v553 = vld [vmem:[#allocation5 + $0xb28] sm:$0xff]
    %v554 = vld [vmem:[#allocation5 + $0xb30] sm:$0xff]
    %v555 = vld [vmem:[#allocation5 + $0xb38] sm:$0xff]
    %v556 = vld [vmem:[#allocation5 + $0xb40] sm:$0xff]
    %v557 = vld [vmem:[#allocation5 + $0xb48] sm:$0xff]
    %v558 = vld [vmem:[#allocation5 + $0xb50] sm:$0xff]
    %v559 = vld [vmem:[#allocation5 + $0xb58] sm:$0xff]
    %v560 = vld [vmem:[#allocation5 + $0xb60] sm:$0xff]
    %v561 = vld [vmem:[#allocation5 + $0xb68] sm:$0xff]
    %v562 = vld [vmem:[#allocation5 + $0xb70] sm:$0xff]
    %v563 = vld [vmem:[#allocation5 + $0xb78] sm:$0xff]
    %v564 = vld [vmem:[#allocation5 + $0xb80] sm:$0xff]
    %v565 = vld [vmem:[#allocation5 + $0xb88] sm:$0xff]
    %v566 = vld [vmem:[#allocation5 + $0xb90] sm:$0xff]
    %v567 = vld [vmem:[#allocation5 + $0xb98] sm:$0xff]
    %v568 = vld [vmem:[#allocation5 + $0xba0] sm:$0xff]
    %v569 = vld [vmem:[#allocation5 + $0xba8] sm:$0xff]
    %v570 = vld [vmem:[#allocation5 + $0xbb0] sm:$0xff]
    %v571 = vld [vmem:[#allocation5 + $0xbb8] sm:$0xff]
    %v572 = vld [vmem:[#allocation5 + $0xbc0] sm:$0xff]
    %v573 = vld [vmem:[#allocation5 + $0xbc8] sm:$0xff]
    %v574 = vld [vmem:[#allocation5 + $0xbd0] sm:$0xff]
    %v575 = vld [vmem:[#allocation5 + $0xbd8] sm:$0xff]
    %v576 = vld [vmem:[#allocation5 + $0xbe0] sm:$0xff]
    %v577 = vld [vmem:[#allocation5 + $0xbe8] sm:$0xff]
    %v578 = vld [vmem:[#allocation5 + $0xbf0] sm:$0xff]
    %v579 = vld [vmem:[#allocation5 + $0xbf8] sm:$0xff]
    %v580 = vld [vmem:[#allocation5 + $0xc00] sm:$0xff]
    %v581 = vld [vmem:[#allocation5 + $0xc08] sm:$0xff]
    %v582 = vld [vmem:[#allocation5 + $0xc10] sm:$0xff]
    %v583 = vld [vmem:[#allocation5 + $0xc18] sm:$0xff]
    %v584 = vld [vmem:[#allocation5 + $0xc20] sm:$0xff]
    %v585 = vld [vmem:[#allocation5 + $0xc28] sm:$0xff]
    %v586 = vld [vmem:[#allocation5 + $0xc30] sm:$0xff]
    %v587 = vld [vmem:[#allocation5 + $0xc38] sm:$0xff]
    %v588 = vld [vmem:[#allocation5 + $0xc40] sm:$0xff]
    %v589 = vld [vmem:[#allocation5 + $0xc48] sm:$0xff]
    %v590 = vld [vmem:[#allocation5 + $0xc50] sm:$0xff]
    %v591 = vld [vmem:[#allocation5 + $0xc58] sm:$0xff]
    %v592 = vld [vmem:[#allocation5 + $0xc60] sm:$0xff]
    %v593 = vld [vmem:[#allocation5 + $0xc68] sm:$0xff]
    %v594 = vld [vmem:[#allocation5 + $0xc70] sm:$0xff]
    %v595 = vld [vmem:[#allocation5 + $0xc78] sm:$0xff]
    %v596 = vld [vmem:[#allocation5 + $0xc80] sm:$0xff]
    %v597 = vld [vmem:[#allocation5 + $0xc88] sm:$0xff]
    %v598 = vld [vmem:[#allocation5 + $0xc90] sm:$0xff]
    %v599 = vld [vmem:[#allocation5 + $0xc98] sm:$0xff]
    %v600 = vld [vmem:[#allocation5 + $0xca0] sm:$0xff]
    %v601 = vld [vmem:[#allocation5 + $0xca8] sm:$0xff]
    %v602 = vld [vmem:[#allocation5 + $0xcb0] sm:$0xff]
    %v603 = vld [vmem:[#allocation5 + $0xcb8] sm:$0xff]
    %v604 = vld [vmem:[#allocation5 + $0xcc0] sm:$0xff]
    %v605 = vld [vmem:[#allocation5 + $0xcc8] sm:$0xff]
    %v606 = vld [vmem:[#allocation5 + $0xcd0] sm:$0xff]
    %v607 = vld [vmem:[#allocation5 + $0xcd8] sm:$0xff]
    %v608 = vld [vmem:[#allocation5 + $0xce0] sm:$0xff]
    %v609 = vld [vmem:[#allocation5 + $0xce8] sm:$0xff]
    %v610 = vld [vmem:[#allocation5 + $0xcf0] sm:$0xff]
    %v611 = vld [vmem:[#allocation5 + $0xcf8] sm:$0xff]
    %v612 = vld [vmem:[#allocation5 + $0xd00] sm:$0xff]
    %v613 = vld [vmem:[#allocation5 + $0xd08] sm:$0xff]
    %v614 = vld [vmem:[#allocation5 + $0xd10] sm:$0xff]
    %v615 = vld [vmem:[#allocation5 + $0xd18] sm:$0xff]
    %v616 = vld [vmem:[#allocation5 + $0xd20] sm:$0xff]
    %v617 = vld [vmem:[#allocation5 + $0xd28] sm:$0xff]
    %v618 = vld [vmem:[#allocation5 + $0xd30] sm:$0xff]
    %v619 = vld [vmem:[#allocation5 + $0xd38] sm:$0xff]
    %v620 = vld [vmem:[#allocation5 + $0xd40] sm:$0xff]
    %v621 = vld [vmem:[#allocation5 + $0xd48] sm:$0xff]
    %v622 = vld [vmem:[#allocation5 + $0xd50] sm:$0xff]
    %v623 = vld [vmem:[#allocation5 + $0xd58] sm:$0xff]
    %v624 = vld [vmem:[#allocation5 + $0xd60] sm:$0xff]
    %v625 = vld [vmem:[#allocation5 + $0xd68] sm:$0xff]
    %v626 = vld [vmem:[#allocation5 + $0xd70] sm:$0xff]
    %v627 = vld [vmem:[#allocation5 + $0xd78] sm:$0xff]
    %v628 = vld [vmem:[#allocation5 + $0xd80] sm:$0xff]
    %v629 = vld [vmem:[#allocation5 + $0xd88] sm:$0xff]
    %v630 = vld [vmem:[#allocation5 + $0xd90] sm:$0xff]
    %v631 = vld [vmem:[#allocation5 + $0xd98] sm:$0xff]
    %v632 = vld [vmem:[#allocation5 + $0xda0] sm:$0xff]
    %v633 = vld [vmem:[#allocation5 + $0xda8] sm:$0xff]
    %v634 = vld [vmem:[#allocation5 + $0xdb0] sm:$0xff]
    %v635 = vld [vmem:[#allocation5 + $0xdb8] sm:$0xff]
    %v636 = vld [vmem:[#allocation5 + $0xdc0] sm:$0xff]
    %v637 = vld [vmem:[#allocation5 + $0xdc8] sm:$0xff]
    %v638 = vld [vmem:[#allocation5 + $0xdd0] sm:$0xff]
    %v639 = vld [vmem:[#allocation5 + $0xdd8] sm:$0xff]
    %v640 = vld [vmem:[#allocation5 + $0xde0] sm:$0xff]
    %v641 = vld [vmem:[#allocation5 + $0xde8] sm:$0xff]
    %v642 = vld [vmem:[#allocation5 + $0xdf0] sm:$0xff]
    %v643 = vld [vmem:[#allocation5 + $0xdf8] sm:$0xff]
    %v644 = vld [vmem:[#allocation5 + $0xe00] sm:$0xff]
    %v645 = vld [vmem:[#allocation5 + $0xe08] sm:$0xff]
    %v646 = vld [vmem:[#allocation5 + $0xe10] sm:$0xff]
    %v647 = vld [vmem:[#allocation5 + $0xe18] sm:$0xff]
    %v648 = vld [vmem:[#allocation5 + $0xe20] sm:$0xff]
    %v649 = vld [vmem:[#allocation5 + $0xe28] sm:$0xff]
    %v650 = vld [vmem:[#allocation5 + $0xe30] sm:$0xff]
    %v651 = vld [vmem:[#allocation5 + $0xe38] sm:$0xff]
    %v652 = vld [vmem:[#allocation5 + $0xe40] sm:$0xff]
    %v653 = vld [vmem:[#allocation5 + $0xe48] sm:$0xff]
    %v654 = vld [vmem:[#allocation5 + $0xe50] sm:$0xff]
    %v655 = vld [vmem:[#allocation5 + $0xe58] sm:$0xff]
    %v656 = vld [vmem:[#allocation5 + $0xe60] sm:$0xff]
    %v657 = vld [vmem:[#allocation5 + $0xe68] sm:$0xff]
    %v658 = vld [vmem:[#allocation5 + $0xe70] sm:$0xff]
    %v659 = vld [vmem:[#allocation5 + $0xe78] sm:$0xff]
    %v660 = vld [vmem:[#allocation5 + $0xe80] sm:$0xff]
    %v661 = vld [vmem:[#allocation5 + $0xe88] sm:$0xff]
    %v662 = vld [vmem:[#allocation5 + $0xe90] sm:$0xff]
    %v663 = vld [vmem:[#allocation5 + $0xe98] sm:$0xff]
    %v664 = vld [vmem:[#allocation5 + $0xea0] sm:$0xff]
    %v665 = vld [vmem:[#allocation5 + $0xea8] sm:$0xff]
    %v666 = vld [vmem:[#allocation5 + $0xeb0] sm:$0xff]
    %v667 = vld [vmem:[#allocation5 + $0xeb8] sm:$0xff]
    %v668 = vld [vmem:[#allocation5 + $0xec0] sm:$0xff]
    %v669 = vld [vmem:[#allocation5 + $0xec8] sm:$0xff]
    %v670 = vld [vmem:[#allocation5 + $0xed0] sm:$0xff]
    %v671 = vld [vmem:[#allocation5 + $0xed8] sm:$0xff]
    %v672 = vld [vmem:[#allocation5 + $0xee0] sm:$0xff]
    %v673 = vld [vmem:[#allocation5 + $0xee8] sm:$0xff]
    %v674 = vld [vmem:[#allocation5 + $0xef0] sm:$0xff]
    %v675 = vld [vmem:[#allocation5 + $0xef8] sm:$0xff]
    %v676 = vld [vmem:[#allocation5 + $0xf00] sm:$0xff]
    %v677 = vld [vmem:[#allocation5 + $0xf08] sm:$0xff]
    %v678 = vld [vmem:[#allocation5 + $0xf10] sm:$0xff]
    %v679 = vld [vmem:[#allocation5 + $0xf18] sm:$0xff]
    %v680 = vld [vmem:[#allocation5 + $0xf20] sm:$0xff]
    %v681 = vld [vmem:[#allocation5 + $0xf28] sm:$0xff]
    %v682 = vld [vmem:[#allocation5 + $0xf30] sm:$0xff]
    %v683 = vld [vmem:[#allocation5 + $0xf38] sm:$0xff]
    %v684 = vld [vmem:[#allocation5 + $0xf40] sm:$0xff]
    %v685 = vld [vmem:[#allocation5 + $0xf48] sm:$0xff]
    %v686 = vld [vmem:[#allocation5 + $0xf50] sm:$0xff]
    %v687 = vld [vmem:[#allocation5 + $0xf58] sm:$0xff]
    %v688 = vld [vmem:[#allocation5 + $0xf60] sm:$0xff]
    %v689 = vld [vmem:[#allocation5 + $0xf68] sm:$0xff]
    %v690 = vld [vmem:[#allocation5 + $0xf70] sm:$0xff]
    %v691 = vld [vmem:[#allocation5 + $0xf78] sm:$0xff]
    %v692 = vld [vmem:[#allocation5 + $0xf80] sm:$0xff]
    %v693 = vld [vmem:[#allocation5 + $0xf88] sm:$0xff]
    %v694 = vld [vmem:[#allocation5 + $0xf90] sm:$0xff]
    %v695 = vld [vmem:[#allocation5 + $0xf98] sm:$0xff]
    %v696 = vld [vmem:[#allocation5 + $0xfa0] sm:$0xff]
    %v697 = vld [vmem:[#allocation5 + $0xfa8] sm:$0xff]
    %v698 = vld [vmem:[#allocation5 + $0xfb0] sm:$0xff]
    %v699 = vld [vmem:[#allocation5 + $0xfb8] sm:$0xff]
    %v700 = vld [vmem:[#allocation5 + $0xfc0] sm:$0xff]
    %v701 = vld [vmem:[#allocation5 + $0xfc8] sm:$0xff]
    %v702 = vld [vmem:[#allocation5 + $0xfd0] sm:$0xff]
    %v703 = vld [vmem:[#allocation5 + $0xfd8] sm:$0xff]
    %v704 = vld [vmem:[#allocation5 + $0xfe0] sm:$0xff]
    %v705 = vld [vmem:[#allocation5 + $0xfe8] sm:$0xff]
    %v706 = vld [vmem:[#allocation5 + $0xff0] sm:$0xff]
    %v707 = vld [vmem:[#allocation5 + $0xff8] sm:$0xff]
    %v708 = vld [vmem:[#allocation5 + $0x1000] sm:$0xff]
    %v709 = vld [vmem:[#allocation5 + $0x1008] sm:$0xff]
    %v710 = vld [vmem:[#allocation5 + $0x1010] sm:$0xff]
    %v711 = vld [vmem:[#allocation5 + $0x1018] sm:$0xff]
    %v712 = vld [vmem:[#allocation5 + $0x1020] sm:$0xff]
    %v713 = vld [vmem:[#allocation5 + $0x1028] sm:$0xff]
    %v714 = vld [vmem:[#allocation5 + $0x1030] sm:$0xff]
    %v715 = vld [vmem:[#allocation5 + $0x1038] sm:$0xff]
    %v716 = vld [vmem:[#allocation5 + $0x1040] sm:$0xff]
    %v717 = vld [vmem:[#allocation5 + $0x1048] sm:$0xff]
    %v718 = vld [vmem:[#allocation5 + $0x1050] sm:$0xff]
    %v719 = vld [vmem:[#allocation5 + $0x1058] sm:$0xff]
    %v720 = vld [vmem:[#allocation5 + $0x1060] sm:$0xff]
    %v721 = vld [vmem:[#allocation5 + $0x1068] sm:$0xff]
    %v722 = vld [vmem:[#allocation5 + $0x1070] sm:$0xff]
    %v723 = vld [vmem:[#allocation5 + $0x1078] sm:$0xff]
    %v724 = vld [vmem:[#allocation5 + $0x1080] sm:$0xff]
    %v725 = vld [vmem:[#allocation5 + $0x1088] sm:$0xff]
    %v726 = vld [vmem:[#allocation5 + $0x1090] sm:$0xff]
    %v727 = vld [vmem:[#allocation5 + $0x1098] sm:$0xff]
    %v728 = vld [vmem:[#allocation5 + $0x10a0] sm:$0xff]
    %v729 = vld [vmem:[#allocation5 + $0x10a8] sm:$0xff]
    %v730 = vld [vmem:[#allocation5 + $0x10b0] sm:$0xff]
    %v731 = vld [vmem:[#allocation5 + $0x10b8] sm:$0xff]
    %v732 = vld [vmem:[#allocation5 + $0x10c0] sm:$0xff]
    %v733 = vld [vmem:[#allocation5 + $0x10c8] sm:$0xff]
    %v734 = vld [vmem:[#allocation5 + $0x10d0] sm:$0xff]
    %v735 = vld [vmem:[#allocation5 + $0x10d8] sm:$0xff]
    %v736 = vld [vmem:[#allocation5 + $0x10e0] sm:$0xff]
    %v737 = vld [vmem:[#allocation5 + $0x10e8] sm:$0xff]
    %v738 = vld [vmem:[#allocation5 + $0x10f0] sm:$0xff]
    %v739 = vld [vmem:[#allocation5 + $0x10f8] sm:$0xff]
    %v740 = vld [vmem:[#allocation5 + $0x1100] sm:$0xff]
    %v741 = vld [vmem:[#allocation5 + $0x1108] sm:$0xff]
    %v742 = vld [vmem:[#allocation5 + $0x1110] sm:$0xff]
    %v743 = vld [vmem:[#allocation5 + $0x1118] sm:$0xff]
    %v744 = vld [vmem:[#allocation5 + $0x1120] sm:$0xff]
    %v745 = vld [vmem:[#allocation5 + $0x1128] sm:$0xff]
    %v746 = vld [vmem:[#allocation5 + $0x1130] sm:$0xff]
    %v747 = vld [vmem:[#allocation5 + $0x1138] sm:$0xff]
    %v748 = vld [vmem:[#allocation5 + $0x1140] sm:$0xff]
    %v749 = vld [vmem:[#allocation5 + $0x1148] sm:$0xff]
    %v750 = vld [vmem:[#allocation5 + $0x1150] sm:$0xff]
    %v751 = vld [vmem:[#allocation5 + $0x1158] sm:$0xff]
    %v752 = vld [vmem:[#allocation5 + $0x1160] sm:$0xff]
    %v753 = vld [vmem:[#allocation5 + $0x1168] sm:$0xff]
    %v754 = vld [vmem:[#allocation5 + $0x1170] sm:$0xff]
    %v755 = vld [vmem:[#allocation5 + $0x1178] sm:$0xff]
    %v756 = vld [vmem:[#allocation5 + $0x1180] sm:$0xff]
    %v757 = vld [vmem:[#allocation5 + $0x1188] sm:$0xff]
    %v758 = vld [vmem:[#allocation5 + $0x1190] sm:$0xff]
    %v759 = vld [vmem:[#allocation5 + $0x1198] sm:$0xff]
    %v760 = vld [vmem:[#allocation5 + $0x11a0] sm:$0xff]
    %v761 = vld [vmem:[#allocation5 + $0x11a8] sm:$0xff]
    %v762 = vld [vmem:[#allocation5 + $0x11b0] sm:$0xff]
    %v763 = vld [vmem:[#allocation5 + $0x11b8] sm:$0xff]
    %v764 = vld [vmem:[#allocation5 + $0x11c0] sm:$0xff]
    %v765 = vld [vmem:[#allocation5 + $0x11c8] sm:$0xff]
    %v766 = vld [vmem:[#allocation5 + $0x11d0] sm:$0xff]
    %v767 = vld [vmem:[#allocation5 + $0x11d8] sm:$0xff]
    %v768 = vld [vmem:[#allocation5 + $0x11e0] sm:$0xff]
    %v769 = vld [vmem:[#allocation5 + $0x11e8] sm:$0xff]
    %v770 = vld [vmem:[#allocation5 + $0x11f0] sm:$0xff]
    %v771 = vld [vmem:[#allocation5 + $0x11f8] sm:$0xff]
    %v772 = vld [vmem:[#allocation5 + $0x1200] sm:$0xff]
    %v773 = vld [vmem:[#allocation5 + $0x1208] sm:$0xff]
    %v774 = vld [vmem:[#allocation5 + $0x1210] sm:$0xff]
    %v775 = vld [vmem:[#allocation5 + $0x1218] sm:$0xff]
    %v776 = vld [vmem:[#allocation5 + $0x1220] sm:$0xff]
    %v777 = vld [vmem:[#allocation5 + $0x1228] sm:$0xff]
    %v778 = vld [vmem:[#allocation5 + $0x1230] sm:$0xff]
    %v779 = vld [vmem:[#allocation5 + $0x1238] sm:$0xff]
    %v780 = vld [vmem:[#allocation5 + $0x1240] sm:$0xff]
    %v781 = vld [vmem:[#allocation5 + $0x1248] sm:$0xff]
    %v782 = vld [vmem:[#allocation5 + $0x1250] sm:$0xff]
    %v783 = vld [vmem:[#allocation5 + $0x1258] sm:$0xff]
    %v784 = vld [vmem:[#allocation5 + $0x1260] sm:$0xff]
    %v785 = vld [vmem:[#allocation5 + $0x1268] sm:$0xff]
    %v786 = vld [vmem:[#allocation5 + $0x1270] sm:$0xff]
    %v787 = vld [vmem:[#allocation5 + $0x1278] sm:$0xff]
    %v788 = vld [vmem:[#allocation5 + $0x1280] sm:$0xff]
    %v789 = vld [vmem:[#allocation5 + $0x1288] sm:$0xff]
    %v790 = vld [vmem:[#allocation5 + $0x1290] sm:$0xff]
    %v791 = vld [vmem:[#allocation5 + $0x1298] sm:$0xff]
    %v792 = vld [vmem:[#allocation5 + $0x12a0] sm:$0xff]
    %v793 = vld [vmem:[#allocation5 + $0x12a8] sm:$0xff]
    %v794 = vld [vmem:[#allocation5 + $0x12b0] sm:$0xff]
    %v795 = vld [vmem:[#allocation5 + $0x12b8] sm:$0xff]
    %v796 = vld [vmem:[#allocation5 + $0x12c0] sm:$0xff]
    %v797 = vld [vmem:[#allocation5 + $0x12c8] sm:$0xff]
    %v798 = vld [vmem:[#allocation5 + $0x12d0] sm:$0xff]
    %v799 = vld [vmem:[#allocation5 + $0x12d8] sm:$0xff]
    %v800 = vld [vmem:[#allocation5 + $0x12e0] sm:$0xff]
    %v801 = vld [vmem:[#allocation5 + $0x12e8] sm:$0xff]
    %v802 = vld [vmem:[#allocation5 + $0x12f0] sm:$0xff]
    %v803 = vld [vmem:[#allocation5 + $0x12f8] sm:$0xff]
    %v804 = vld [vmem:[#allocation5 + $0x1300] sm:$0xff]
    %v805 = vld [vmem:[#allocation5 + $0x1308] sm:$0xff]
    %v806 = vld [vmem:[#allocation5 + $0x1310] sm:$0xff]
    %v807 = vld [vmem:[#allocation5 + $0x1318] sm:$0xff]
    %v808 = vld [vmem:[#allocation5 + $0x1320] sm:$0xff]
    %v809 = vld [vmem:[#allocation5 + $0x1328] sm:$0xff]
    %v810 = vld [vmem:[#allocation5 + $0x1330] sm:$0xff]
    %v811 = vld [vmem:[#allocation5 + $0x1338] sm:$0xff]
    %v812 = vld [vmem:[#allocation5 + $0x1340] sm:$0xff]
    %v813 = vld [vmem:[#allocation5 + $0x1348] sm:$0xff]
    %v814 = vld [vmem:[#allocation5 + $0x1350] sm:$0xff]
    %v815 = vld [vmem:[#allocation5 + $0x1358] sm:$0xff]
    %v816 = vld [vmem:[#allocation5 + $0x1360] sm:$0xff]
    %v817 = vld [vmem:[#allocation5 + $0x1368] sm:$0xff]
    %v818 = vld [vmem:[#allocation5 + $0x1370] sm:$0xff]
    %v819 = vld [vmem:[#allocation5 + $0x1378] sm:$0xff]
    %v820 = vld [vmem:[#allocation5 + $0x1380] sm:$0xff]
    %v821 = vld [vmem:[#allocation5 + $0x1388] sm:$0xff]
    %v822 = vld [vmem:[#allocation5 + $0x1390] sm:$0xff]
    %v823 = vld [vmem:[#allocation5 + $0x1398] sm:$0xff]
    %v824 = vld [vmem:[#allocation5 + $0x13a0] sm:$0xff]
    %v825 = vld [vmem:[#allocation5 + $0x13a8] sm:$0xff]
    %v826 = vld [vmem:[#allocation5 + $0x13b0] sm:$0xff]
    %v827 = vld [vmem:[#allocation5 + $0x13b8] sm:$0xff]
    %v828 = vld [vmem:[#allocation5 + $0x13c0] sm:$0xff]
    %v829 = vld [vmem:[#allocation5 + $0x13c8] sm:$0xff]
    %v830 = vld [vmem:[#allocation5 + $0x13d0] sm:$0xff]
    %v831 = vld [vmem:[#allocation5 + $0x13d8] sm:$0xff]
    %v832 = vld [vmem:[#allocation5 + $0x13e0] sm:$0xff]
    %v833 = vld [vmem:[#allocation5 + $0x13e8] sm:$0xff]
    %v834 = vld [vmem:[#allocation5 + $0x13f0] sm:$0xff]
    %v835 = vld [vmem:[#allocation5 + $0x13f8] sm:$0xff]
    %v836 = vld [vmem:[#allocation5 + $0x1400] sm:$0xff]
    %v837 = vld [vmem:[#allocation5 + $0x1408] sm:$0xff]
    %v838 = vld [vmem:[#allocation5 + $0x1410] sm:$0xff]
    %v839 = vld [vmem:[#allocation5 + $0x1418] sm:$0xff]
    %v840 = vld [vmem:[#allocation5 + $0x1420] sm:$0xff]
    %v841 = vld [vmem:[#allocation5 + $0x1428] sm:$0xff]
    %v842 = vld [vmem:[#allocation5 + $0x1430] sm:$0xff]
    %v843 = vld [vmem:[#allocation5 + $0x1438] sm:$0xff]
    %v844 = vld [vmem:[#allocation5 + $0x1440] sm:$0xff]
    %v845 = vld [vmem:[#allocation5 + $0x1448] sm:$0xff]
    %v846 = vld [vmem:[#allocation5 + $0x1450] sm:$0xff]
    %v847 = vld [vmem:[#allocation5 + $0x1458] sm:$0xff]
    %v848 = vld [vmem:[#allocation5 + $0x1460] sm:$0xff]
    %v849 = vld [vmem:[#allocation5 + $0x1468] sm:$0xff]
    %v850 = vld [vmem:[#allocation5 + $0x1470] sm:$0xff]
    %v851 = vld [vmem:[#allocation5 + $0x1478] sm:$0xff]
    %v852 = vld [vmem:[#allocation5 + $0x1480] sm:$0xff]
    %v853 = vld [vmem:[#allocation5 + $0x1488] sm:$0xff]
    %v854 = vld [vmem:[#allocation5 + $0x1490] sm:$0xff]
    %v855 = vld [vmem:[#allocation5 + $0x1498] sm:$0xff]
    %v856 = vld [vmem:[#allocation5 + $0x14a0] sm:$0xff]
    %v857 = vld [vmem:[#allocation5 + $0x14a8] sm:$0xff]
    %v858 = vld [vmem:[#allocation5 + $0x14b0] sm:$0xff]
    %v859 = vld [vmem:[#allocation5 + $0x14b8] sm:$0xff]
    %v860 = vld [vmem:[#allocation5 + $0x14c0] sm:$0xff]
    %v861 = vld [vmem:[#allocation5 + $0x14c8] sm:$0xff]
    %v862 = vld [vmem:[#allocation5 + $0x14d0] sm:$0xff]
    %v863 = vld [vmem:[#allocation5 + $0x14d8] sm:$0xff]
    %v864 = vld [vmem:[#allocation5 + $0x14e0] sm:$0xff]
    %v865 = vld [vmem:[#allocation5 + $0x14e8] sm:$0xff]
    %v866 = vld [vmem:[#allocation5 + $0x14f0] sm:$0xff]
    %v867 = vld [vmem:[#allocation5 + $0x14f8] sm:$0xff]
    %v868 = vld [vmem:[#allocation5 + $0x1500] sm:$0xff]
    %v869 = vld [vmem:[#allocation5 + $0x1508] sm:$0xff]
    %v870 = vld [vmem:[#allocation5 + $0x1510] sm:$0xff]
    %v871 = vld [vmem:[#allocation5 + $0x1518] sm:$0xff]
    %v872 = vld [vmem:[#allocation5 + $0x1520] sm:$0xff]
    %v873 = vld [vmem:[#allocation5 + $0x1528] sm:$0xff]
    %v874 = vld [vmem:[#allocation5 + $0x1530] sm:$0xff]
    %v875 = vld [vmem:[#allocation5 + $0x1538] sm:$0xff]
    %v876 = vld [vmem:[#allocation5 + $0x1540] sm:$0xff]
    %v877 = vld [vmem:[#allocation5 + $0x1548] sm:$0xff]
    %v878 = vld [vmem:[#allocation5 + $0x1550] sm:$0xff]
    %v879 = vld [vmem:[#allocation5 + $0x1558] sm:$0xff]
    %v880 = vld [vmem:[#allocation5 + $0x1560] sm:$0xff]
    %v881 = vld [vmem:[#allocation5 + $0x1568] sm:$0xff]
    %v882 = vld [vmem:[#allocation5 + $0x1570] sm:$0xff]
    %v883 = vld [vmem:[#allocation5 + $0x1578] sm:$0xff]
    %v884 = vld [vmem:[#allocation5 + $0x1580] sm:$0xff]
    %v885 = vld [vmem:[#allocation5 + $0x1588] sm:$0xff]
    %v886 = vld [vmem:[#allocation5 + $0x1590] sm:$0xff]
    %v887 = vld [vmem:[#allocation5 + $0x1598] sm:$0xff]
    %v888 = vld [vmem:[#allocation5 + $0x15a0] sm:$0xff]
    %v889 = vld [vmem:[#allocation5 + $0x15a8] sm:$0xff]
    %v890 = vld [vmem:[#allocation5 + $0x15b0] sm:$0xff]
    %v891 = vld [vmem:[#allocation5 + $0x15b8] sm:$0xff]
    %v892 = vld [vmem:[#allocation5 + $0x15c0] sm:$0xff]
    %v893 = vld [vmem:[#allocation5 + $0x15c8] sm:$0xff]
    %v894 = vld [vmem:[#allocation5 + $0x15d0] sm:$0xff]
    %v895 = vld [vmem:[#allocation5 + $0x15d8] sm:$0xff]
    %v896 = vld [vmem:[#allocation5 + $0x15e0] sm:$0xff]
    %v897 = vld [vmem:[#allocation5 + $0x15e8] sm:$0xff]
    %v898 = vld [vmem:[#allocation5 + $0x15f0] sm:$0xff]
    %v899 = vld [vmem:[#allocation5 + $0x15f8] sm:$0xff]
    %v900 = vld [vmem:[#allocation5 + $0x1600] sm:$0xff]
    %v901 = vld [vmem:[#allocation5 + $0x1608] sm:$0xff]
    %v902 = vld [vmem:[#allocation5 + $0x1610] sm:$0xff]
    %v903 = vld [vmem:[#allocation5 + $0x1618] sm:$0xff]
    %v904 = vld [vmem:[#allocation5 + $0x1620] sm:$0xff]
    %v905 = vld [vmem:[#allocation5 + $0x1628] sm:$0xff]
    %v906 = vld [vmem:[#allocation5 + $0x1630] sm:$0xff]
    %v907 = vld [vmem:[#allocation5 + $0x1638] sm:$0xff]
    %v908 = vld [vmem:[#allocation5 + $0x1640] sm:$0xff]
    %v909 = vld [vmem:[#allocation5 + $0x1648] sm:$0xff]
    %v910 = vld [vmem:[#allocation5 + $0x1650] sm:$0xff]
    %v911 = vld [vmem:[#allocation5 + $0x1658] sm:$0xff]
    %v912 = vld [vmem:[#allocation5 + $0x1660] sm:$0xff]
    %v913 = vld [vmem:[#allocation5 + $0x1668] sm:$0xff]
    %v914 = vld [vmem:[#allocation5 + $0x1670] sm:$0xff]
    %v915 = vld [vmem:[#allocation5 + $0x1678] sm:$0xff]
    %v916 = vld [vmem:[#allocation5 + $0x1680] sm:$0xff]
    %v917 = vld [vmem:[#allocation5 + $0x1688] sm:$0xff]
    %v918 = vld [vmem:[#allocation5 + $0x1690] sm:$0xff]
    %v919 = vld [vmem:[#allocation5 + $0x1698] sm:$0xff]
    %v920 = vld [vmem:[#allocation5 + $0x16a0] sm:$0xff]
    %v921 = vld [vmem:[#allocation5 + $0x16a8] sm:$0xff]
    %v922 = vld [vmem:[#allocation5 + $0x16b0] sm:$0xff]
    %v923 = vld [vmem:[#allocation5 + $0x16b8] sm:$0xff]
    %v924 = vld [vmem:[#allocation5 + $0x16c0] sm:$0xff]
    %v925 = vld [vmem:[#allocation5 + $0x16c8] sm:$0xff]
    %v926 = vld [vmem:[#allocation5 + $0x16d0] sm:$0xff]
    %v927 = vld [vmem:[#allocation5 + $0x16d8] sm:$0xff]
    %v928 = vld [vmem:[#allocation5 + $0x16e0] sm:$0xff]
    %v929 = vld [vmem:[#allocation5 + $0x16e8] sm:$0xff]
    %v930 = vld [vmem:[#allocation5 + $0x16f0] sm:$0xff]
    %v931 = vld [vmem:[#allocation5 + $0x16f8] sm:$0xff]
    %v932 = vld [vmem:[#allocation5 + $0x1700] sm:$0xff]
    %v933 = vld [vmem:[#allocation5 + $0x1708] sm:$0xff]
    %v934 = vld [vmem:[#allocation5 + $0x1710] sm:$0xff]
    %v935 = vld [vmem:[#allocation5 + $0x1718] sm:$0xff]
    %v936 = vld [vmem:[#allocation5 + $0x1720] sm:$0xff]
    %v937 = vld [vmem:[#allocation5 + $0x1728] sm:$0xff]
    %v938 = vld [vmem:[#allocation5 + $0x1730] sm:$0xff]
    %v939 = vld [vmem:[#allocation5 + $0x1738] sm:$0xff]
    %v940 = vld [vmem:[#allocation5 + $0x1740] sm:$0xff]
    %v941 = vld [vmem:[#allocation5 + $0x1748] sm:$0xff]
    %v942 = vld [vmem:[#allocation5 + $0x1750] sm:$0xff]
    %v943 = vld [vmem:[#allocation5 + $0x1758] sm:$0xff]
    %v944 = vld [vmem:[#allocation5 + $0x1760] sm:$0xff]
    %v945 = vld [vmem:[#allocation5 + $0x1768] sm:$0xff]
    %v946 = vld [vmem:[#allocation5 + $0x1770] sm:$0xff]
    %v947 = vld [vmem:[#allocation5 + $0x1778] sm:$0xff]
    %v948 = vld [vmem:[#allocation5 + $0x1780] sm:$0xff]
    %v949 = vld [vmem:[#allocation5 + $0x1788] sm:$0xff]
    %v950 = vld [vmem:[#allocation5 + $0x1790] sm:$0xff]
    %v951 = vld [vmem:[#allocation5 + $0x1798] sm:$0xff]
    %v952 = vld [vmem:[#allocation5 + $0x17a0] sm:$0xff]
    %v953 = vld [vmem:[#allocation5 + $0x17a8] sm:$0xff]
    %v954 = vld [vmem:[#allocation5 + $0x17b0] sm:$0xff]
    %v955 = vld [vmem:[#allocation5 + $0x17b8] sm:$0xff]
    %v956 = vld [vmem:[#allocation5 + $0x17c0] sm:$0xff]
    %v957 = vld [vmem:[#allocation5 + $0x17c8] sm:$0xff]
    %v958 = vld [vmem:[#allocation5 + $0x17d0] sm:$0xff]
    %v959 = vld [vmem:[#allocation5 + $0x17d8] sm:$0xff]
    %v960 = vld [vmem:[#allocation5 + $0x17e0] sm:$0xff]
    %v961 = vld [vmem:[#allocation5 + $0x17e8] sm:$0xff]
    %v962 = vld [vmem:[#allocation5 + $0x17f0] sm:$0xff]
    %v963 = vld [vmem:[#allocation5 + $0x17f8] sm:$0xff]
    %v964 = vld [vmem:[#allocation5 + $0x1800] sm:$0xff]
    %v965 = vld [vmem:[#allocation5 + $0x1808] sm:$0xff]
    %v966 = vld [vmem:[#allocation5 + $0x1810] sm:$0xff]
    %v967 = vld [vmem:[#allocation5 + $0x1818] sm:$0xff]
    %v968 = vld [vmem:[#allocation5 + $0x1820] sm:$0xff]
    %v969 = vld [vmem:[#allocation5 + $0x1828] sm:$0xff]
    %v970 = vld [vmem:[#allocation5 + $0x1830] sm:$0xff]
    %v971 = vld [vmem:[#allocation5 + $0x1838] sm:$0xff]
    %v972 = vld [vmem:[#allocation5 + $0x1840] sm:$0xff]
    %v973 = vld [vmem:[#allocation5 + $0x1848] sm:$0xff]
    %v974 = vld [vmem:[#allocation5 + $0x1850] sm:$0xff]
    %v975 = vld [vmem:[#allocation5 + $0x1858] sm:$0xff]
    %v976 = vld [vmem:[#allocation5 + $0x1860] sm:$0xff]
    %v977 = vld [vmem:[#allocation5 + $0x1868] sm:$0xff]
    %v978 = vld [vmem:[#allocation5 + $0x1870] sm:$0xff]
    %v979 = vld [vmem:[#allocation5 + $0x1878] sm:$0xff]
    %v980 = vld [vmem:[#allocation5 + $0x1880] sm:$0xff]
    %v981 = vld [vmem:[#allocation5 + $0x1888] sm:$0xff]
    %v982 = vld [vmem:[#allocation5 + $0x1890] sm:$0xff]
    %v983 = vld [vmem:[#allocation5 + $0x1898] sm:$0xff]
    %v984 = vld [vmem:[#allocation5 + $0x18a0] sm:$0xff]
    %v985 = vld [vmem:[#allocation5 + $0x18a8] sm:$0xff]
    %v986 = vld [vmem:[#allocation5 + $0x18b0] sm:$0xff]
    %v987 = vld [vmem:[#allocation5 + $0x18b8] sm:$0xff]
    %v988 = vld [vmem:[#allocation5 + $0x18c0] sm:$0xff]
    %v989 = vld [vmem:[#allocation5 + $0x18c8] sm:$0xff]
    %v990 = vld [vmem:[#allocation5 + $0x18d0] sm:$0xff]
    %v991 = vld [vmem:[#allocation5 + $0x18d8] sm:$0xff]
    %v992 = vld [vmem:[#allocation5 + $0x18e0] sm:$0xff]
    %v993 = vld [vmem:[#allocation5 + $0x18e8] sm:$0xff]
    %v994 = vld [vmem:[#allocation5 + $0x18f0] sm:$0xff]
    %v995 = vld [vmem:[#allocation5 + $0x18f8] sm:$0xff]
    %v996 = vld [vmem:[#allocation5 + $0x1900] sm:$0xff]
    %v997 = vld [vmem:[#allocation5 + $0x1908] sm:$0xff]
    %v998 = vld [vmem:[#allocation5 + $0x1910] sm:$0xff]
    %v999 = vld [vmem:[#allocation5 + $0x1918] sm:$0xff]
    %v1000 = vld [vmem:[#allocation5 + $0x1920] sm:$0xff]
    %v1001 = vld [vmem:[#allocation5 + $0x1928] sm:$0xff]
    %v1002 = vld [vmem:[#allocation5 + $0x1930] sm:$0xff]
    %v1003 = vld [vmem:[#allocation5 + $0x1938] sm:$0xff]
    %v1004 = vld [vmem:[#allocation5 + $0x1940] sm:$0xff]
    %v1005 = vld [vmem:[#allocation5 + $0x1948] sm:$0xff]
    %v1006 = vld [vmem:[#allocation5 + $0x1950] sm:$0xff]
    %v1007 = vld [vmem:[#allocation5 + $0x1958] sm:$0xff]
    %v1008 = vld [vmem:[#allocation5 + $0x1960] sm:$0xff]
    %v1009 = vld [vmem:[#allocation5 + $0x1968] sm:$0xff]
    %v1010 = vld [vmem:[#allocation5 + $0x1970] sm:$0xff]
    %v1011 = vld [vmem:[#allocation5 + $0x1978] sm:$0xff]
    %v1012 = vld [vmem:[#allocation5 + $0x1980] sm:$0xff]
    %v1013 = vld [vmem:[#allocation5 + $0x1988] sm:$0xff]
    %v1014 = vld [vmem:[#allocation5 + $0x1990] sm:$0xff]
    %v1015 = vld [vmem:[#allocation5 + $0x1998] sm:$0xff]
    %v1016 = vld [vmem:[#allocation5 + $0x19a0] sm:$0xff]
    %v1017 = vld [vmem:[#allocation5 + $0x19a8] sm:$0xff]
    %v1018 = vld [vmem:[#allocation5 + $0x19b0] sm:$0xff]
    %v1019 = vld [vmem:[#allocation5 + $0x19b8] sm:$0xff]
    %v1020 = vld [vmem:[#allocation5 + $0x19c0] sm:$0xff]
    %v1021 = vld [vmem:[#allocation5 + $0x19c8] sm:$0xff]
    %v1022 = vld [vmem:[#allocation5 + $0x19d0] sm:$0xff]
    %v1023 = vld [vmem:[#allocation5 + $0x19d8] sm:$0xff]
    %v1024 = vld [vmem:[#allocation5 + $0x19e0] sm:$0xff]
    %v1025 = vld [vmem:[#allocation5 + $0x19e8] sm:$0xff]
    %v1026 = vld [vmem:[#allocation5 + $0x19f0] sm:$0xff]
    %v1027 = vld [vmem:[#allocation5 + $0x19f8] sm:$0xff]
    %v1028 = vld [vmem:[#allocation5 + $0x1a00] sm:$0xff]
    %v1029 = vld [vmem:[#allocation5 + $0x1a08] sm:$0xff]
    %v1030 = vld [vmem:[#allocation5 + $0x1a10] sm:$0xff]
    %v1031 = vld [vmem:[#allocation5 + $0x1a18] sm:$0xff]
    %v1032 = vld [vmem:[#allocation5 + $0x1a20] sm:$0xff]
    %v1033 = vld [vmem:[#allocation5 + $0x1a28] sm:$0xff]
    %v1034 = vld [vmem:[#allocation5 + $0x1a30] sm:$0xff]
    %v1035 = vld [vmem:[#allocation5 + $0x1a38] sm:$0xff]
    %v1036 = vld [vmem:[#allocation5 + $0x1a40] sm:$0xff]
    %v1037 = vld [vmem:[#allocation5 + $0x1a48] sm:$0xff]
    %v1038 = vld [vmem:[#allocation5 + $0x1a50] sm:$0xff]
    %v1039 = vld [vmem:[#allocation5 + $0x1a58] sm:$0xff]
    %v1040 = vld [vmem:[#allocation5 + $0x1a60] sm:$0xff]
    %v1041 = vld [vmem:[#allocation5 + $0x1a68] sm:$0xff]
    %v1042 = vld [vmem:[#allocation5 + $0x1a70] sm:$0xff]
    %v1043 = vld [vmem:[#allocation5 + $0x1a78] sm:$0xff]
    %v1044 = vld [vmem:[#allocation5 + $0x1a80] sm:$0xff]
    %v1045 = vld [vmem:[#allocation5 + $0x1a88] sm:$0xff]
    %v1046 = vld [vmem:[#allocation5 + $0x1a90] sm:$0xff]
    %v1047 = vld [vmem:[#allocation5 + $0x1a98] sm:$0xff]
    %v1048 = vld [vmem:[#allocation5 + $0x1aa0] sm:$0xff]
    %v1049 = vld [vmem:[#allocation5 + $0x1aa8] sm:$0xff]
    %v1050 = vld [vmem:[#allocation5 + $0x1ab0] sm:$0xff]
    %v1051 = vld [vmem:[#allocation5 + $0x1ab8] sm:$0xff]
    %v1052 = vld [vmem:[#allocation5 + $0x1ac0] sm:$0xff]
    %v1053 = vld [vmem:[#allocation5 + $0x1ac8] sm:$0xff]
    %v1054 = vld [vmem:[#allocation5 + $0x1ad0] sm:$0xff]
    %v1055 = vld [vmem:[#allocation5 + $0x1ad8] sm:$0xff]
    %v1056 = vld [vmem:[#allocation5 + $0x1ae0] sm:$0xff]
    %v1057 = vld [vmem:[#allocation5 + $0x1ae8] sm:$0xff]
    %v1058 = vld [vmem:[#allocation5 + $0x1af0] sm:$0xff]
    %v1059 = vld [vmem:[#allocation5 + $0x1af8] sm:$0xff]
    %v1060 = vld [vmem:[#allocation5 + $0x1b00] sm:$0xff]
    %v1061 = vld [vmem:[#allocation5 + $0x1b08] sm:$0xff]
    %v1062 = vld [vmem:[#allocation5 + $0x1b10] sm:$0xff]
    %v1063 = vld [vmem:[#allocation5 + $0x1b18] sm:$0xff]
    %v1064 = vld [vmem:[#allocation5 + $0x1b20] sm:$0xff]
    %v1065 = vld [vmem:[#allocation5 + $0x1b28] sm:$0xff]
    %v1066 = vld [vmem:[#allocation5 + $0x1b30] sm:$0xff]
    %v1067 = vld [vmem:[#allocation5 + $0x1b38] sm:$0xff]
    %v1068 = vld [vmem:[#allocation5 + $0x1b40] sm:$0xff]
    %v1069 = vld [vmem:[#allocation5 + $0x1b48] sm:$0xff]
    %v1070 = vld [vmem:[#allocation5 + $0x1b50] sm:$0xff]
    %v1071 = vld [vmem:[#allocation5 + $0x1b58] sm:$0xff]
    %v1072 = vld [vmem:[#allocation5 + $0x1b60] sm:$0xff]
    %v1073 = vld [vmem:[#allocation5 + $0x1b68] sm:$0xff]
    %v1074 = vld [vmem:[#allocation5 + $0x1b70] sm:$0xff]
    %v1075 = vld [vmem:[#allocation5 + $0x1b78] sm:$0xff]
    %v1076 = vld [vmem:[#allocation5 + $0x1b80] sm:$0xff]
    %v1077 = vld [vmem:[#allocation5 + $0x1b88] sm:$0xff]
    %v1078 = vld [vmem:[#allocation5 + $0x1b90] sm:$0xff]
    %v1079 = vld [vmem:[#allocation5 + $0x1b98] sm:$0xff]
    %v1080 = vld [vmem:[#allocation5 + $0x1ba0] sm:$0xff]
    %v1081 = vld [vmem:[#allocation5 + $0x1ba8] sm:$0xff]
    %v1082 = vld [vmem:[#allocation5 + $0x1bb0] sm:$0xff]
    %v1083 = vld [vmem:[#allocation5 + $0x1bb8] sm:$0xff]
    %v1084 = vld [vmem:[#allocation5 + $0x1bc0] sm:$0xff]
    %v1085 = vld [vmem:[#allocation5 + $0x1bc8] sm:$0xff]
    %v1086 = vld [vmem:[#allocation5 + $0x1bd0] sm:$0xff]
    %v1087 = vld [vmem:[#allocation5 + $0x1bd8] sm:$0xff]
    %v1088 = vld [vmem:[#allocation5 + $0x1be0] sm:$0xff]
    %v1089 = vld [vmem:[#allocation5 + $0x1be8] sm:$0xff]
    %v1090 = vld [vmem:[#allocation5 + $0x1bf0] sm:$0xff]
    %v1091 = vld [vmem:[#allocation5 + $0x1bf8] sm:$0xff]
    %v1092 = vld [vmem:[#allocation5 + $0x1c00] sm:$0xff]
    %v1093 = vld [vmem:[#allocation5 + $0x1c08] sm:$0xff]
    %v1094 = vld [vmem:[#allocation5 + $0x1c10] sm:$0xff]
    %v1095 = vld [vmem:[#allocation5 + $0x1c18] sm:$0xff]
    %v1096 = vld [vmem:[#allocation5 + $0x1c20] sm:$0xff]
    %v1097 = vld [vmem:[#allocation5 + $0x1c28] sm:$0xff]
    %v1098 = vld [vmem:[#allocation5 + $0x1c30] sm:$0xff]
    %v1099 = vld [vmem:[#allocation5 + $0x1c38] sm:$0xff]
    %v1100 = vld [vmem:[#allocation5 + $0x1c40] sm:$0xff]
    %v1101 = vld [vmem:[#allocation5 + $0x1c48] sm:$0xff]
    %v1102 = vld [vmem:[#allocation5 + $0x1c50] sm:$0xff]
    %v1103 = vld [vmem:[#allocation5 + $0x1c58] sm:$0xff]
    %v1104 = vld [vmem:[#allocation5 + $0x1c60] sm:$0xff]
    %v1105 = vld [vmem:[#allocation5 + $0x1c68] sm:$0xff]
    %v1106 = vld [vmem:[#allocation5 + $0x1c70] sm:$0xff]
    %v1107 = vld [vmem:[#allocation5 + $0x1c78] sm:$0xff]
    %v1108 = vld [vmem:[#allocation5 + $0x1c80] sm:$0xff]
    %v1109 = vld [vmem:[#allocation5 + $0x1c88] sm:$0xff]
    %v1110 = vld [vmem:[#allocation5 + $0x1c90] sm:$0xff]
    %v1111 = vld [vmem:[#allocation5 + $0x1c98] sm:$0xff]
    %v1112 = vld [vmem:[#allocation5 + $0x1ca0] sm:$0xff]
    %v1113 = vld [vmem:[#allocation5 + $0x1ca8] sm:$0xff]
    %v1114 = vld [vmem:[#allocation5 + $0x1cb0] sm:$0xff]
    %v1115 = vld [vmem:[#allocation5 + $0x1cb8] sm:$0xff]
    %v1116 = vld [vmem:[#allocation5 + $0x1cc0] sm:$0xff]
    %v1117 = vld [vmem:[#allocation5 + $0x1cc8] sm:$0xff]
    %v1118 = vld [vmem:[#allocation5 + $0x1cd0] sm:$0xff]
    %v1119 = vld [vmem:[#allocation5 + $0x1cd8] sm:$0xff]
    %v1120 = vld [vmem:[#allocation5 + $0x1ce0] sm:$0xff]
    %v1121 = vld [vmem:[#allocation5 + $0x1ce8] sm:$0xff]
    %v1122 = vld [vmem:[#allocation5 + $0x1cf0] sm:$0xff]
    %v1123 = vld [vmem:[#allocation5 + $0x1cf8] sm:$0xff]
    %v1124 = vld [vmem:[#allocation5 + $0x1d00] sm:$0xff]
    %v1125 = vld [vmem:[#allocation5 + $0x1d08] sm:$0xff]
    %v1126 = vld [vmem:[#allocation5 + $0x1d10] sm:$0xff]
    %v1127 = vld [vmem:[#allocation5 + $0x1d18] sm:$0xff]
    %v1128 = vld [vmem:[#allocation5 + $0x1d20] sm:$0xff]
    %v1129 = vld [vmem:[#allocation5 + $0x1d28] sm:$0xff]
    %v1130 = vld [vmem:[#allocation5 + $0x1d30] sm:$0xff]
    %v1131 = vld [vmem:[#allocation5 + $0x1d38] sm:$0xff]
    %v1132 = vld [vmem:[#allocation5 + $0x1d40] sm:$0xff]
    %v1133 = vld [vmem:[#allocation5 + $0x1d48] sm:$0xff]
    %v1134 = vld [vmem:[#allocation5 + $0x1d50] sm:$0xff]
    %v1135 = vld [vmem:[#allocation5 + $0x1d58] sm:$0xff]
    %v1136 = vld [vmem:[#allocation5 + $0x1d60] sm:$0xff]
    %v1137 = vld [vmem:[#allocation5 + $0x1d68] sm:$0xff]
    %v1138 = vld [vmem:[#allocation5 + $0x1d70] sm:$0xff]
    %v1139 = vld [vmem:[#allocation5 + $0x1d78] sm:$0xff]
    %v1140 = vld [vmem:[#allocation5 + $0x1d80] sm:$0xff]
    %v1141 = vld [vmem:[#allocation5 + $0x1d88] sm:$0xff]
    %v1142 = vld [vmem:[#allocation5 + $0x1d90] sm:$0xff]
    %v1143 = vld [vmem:[#allocation5 + $0x1d98] sm:$0xff]
    %v1144 = vld [vmem:[#allocation5 + $0x1da0] sm:$0xff]
    %v1145 = vld [vmem:[#allocation5 + $0x1da8] sm:$0xff]
    %v1146 = vld [vmem:[#allocation5 + $0x1db0] sm:$0xff]
    %v1147 = vld [vmem:[#allocation5 + $0x1db8] sm:$0xff]
    %v1148 = vld [vmem:[#allocation5 + $0x1dc0] sm:$0xff]
    %v1149 = vld [vmem:[#allocation5 + $0x1dc8] sm:$0xff]
    %v1150 = vld [vmem:[#allocation5 + $0x1dd0] sm:$0xff]
    %v1151 = vld [vmem:[#allocation5 + $0x1dd8] sm:$0xff]
    %v1152 = vld [vmem:[#allocation5 + $0x1de0] sm:$0xff]
    %v1153 = vld [vmem:[#allocation5 + $0x1de8] sm:$0xff]
    %v1154 = vld [vmem:[#allocation5 + $0x1df0] sm:$0xff]
    %v1155 = vld [vmem:[#allocation5 + $0x1df8] sm:$0xff]
    %v1156 = vld [vmem:[#allocation5 + $0x1e00] sm:$0xff]
    %v1157 = vld [vmem:[#allocation5 + $0x1e08] sm:$0xff]
    %v1158 = vld [vmem:[#allocation5 + $0x1e10] sm:$0xff]
    %v1159 = vld [vmem:[#allocation5 + $0x1e18] sm:$0xff]
    %v1160 = vld [vmem:[#allocation5 + $0x1e20] sm:$0xff]
    %v1161 = vld [vmem:[#allocation5 + $0x1e28] sm:$0xff]
    %v1162 = vld [vmem:[#allocation5 + $0x1e30] sm:$0xff]
    %v1163 = vld [vmem:[#allocation5 + $0x1e38] sm:$0xff]
    %v1164 = vld [vmem:[#allocation5 + $0x1e40] sm:$0xff]
    %v1165 = vld [vmem:[#allocation5 + $0x1e48] sm:$0xff]
    %v1166 = vld [vmem:[#allocation5 + $0x1e50] sm:$0xff]
    %v1167 = vld [vmem:[#allocation5 + $0x1e58] sm:$0xff]
    %v1168 = vld [vmem:[#allocation5 + $0x1e60] sm:$0xff]
    %v1169 = vld [vmem:[#allocation5 + $0x1e68] sm:$0xff]
    %v1170 = vld [vmem:[#allocation5 + $0x1e70] sm:$0xff]
    %v1171 = vld [vmem:[#allocation5 + $0x1e78] sm:$0xff]
    %v1172 = vld [vmem:[#allocation5 + $0x1e80] sm:$0xff]
    %v1173 = vld [vmem:[#allocation5 + $0x1e88] sm:$0xff]
    %v1174 = vld [vmem:[#allocation5 + $0x1e90] sm:$0xff]
    %v1175 = vld [vmem:[#allocation5 + $0x1e98] sm:$0xff]
    %v1176 = vld [vmem:[#allocation5 + $0x1ea0] sm:$0xff]
    %v1177 = vld [vmem:[#allocation5 + $0x1ea8] sm:$0xff]
    %v1178 = vld [vmem:[#allocation5 + $0x1eb0] sm:$0xff]
    %v1179 = vld [vmem:[#allocation5 + $0x1eb8] sm:$0xff]
    %v1180 = vld [vmem:[#allocation5 + $0x1ec0] sm:$0xff]
    %v1181 = vld [vmem:[#allocation5 + $0x1ec8] sm:$0xff]
    %v1182 = vld [vmem:[#allocation5 + $0x1ed0] sm:$0xff]
    %v1183 = vld [vmem:[#allocation5 + $0x1ed8] sm:$0xff]
    %v1184 = vld [vmem:[#allocation5 + $0x1ee0] sm:$0xff]
    %v1185 = vld [vmem:[#allocation5 + $0x1ee8] sm:$0xff]
    %v1186 = vld [vmem:[#allocation5 + $0x1ef0] sm:$0xff]
    %v1187 = vld [vmem:[#allocation5 + $0x1ef8] sm:$0xff]
    %v1188 = vld [vmem:[#allocation5 + $0x1f00] sm:$0xff]
    %v1189 = vld [vmem:[#allocation5 + $0x1f08] sm:$0xff]
    %v1190 = vld [vmem:[#allocation5 + $0x1f10] sm:$0xff]
    %v1191 = vld [vmem:[#allocation5 + $0x1f18] sm:$0xff]
    %v1192 = vld [vmem:[#allocation5 + $0x1f20] sm:$0xff]
    %v1193 = vld [vmem:[#allocation5 + $0x1f28] sm:$0xff]
    %v1194 = vld [vmem:[#allocation5 + $0x1f30] sm:$0xff]
    %v1195 = vld [vmem:[#allocation5 + $0x1f38] sm:$0xff]
    %v1196 = vld [vmem:[#allocation5 + $0x1f40] sm:$0xff]
    %v1197 = vld [vmem:[#allocation5 + $0x1f48] sm:$0xff]
    %v1198 = vld [vmem:[#allocation5 + $0x1f50] sm:$0xff]
    %v1199 = vld [vmem:[#allocation5 + $0x1f58] sm:$0xff]
    %v1200 = vld [vmem:[#allocation5 + $0x1f60] sm:$0xff]
    %v1201 = vld [vmem:[#allocation5 + $0x1f68] sm:$0xff]
    %v1202 = vld [vmem:[#allocation5 + $0x1f70] sm:$0xff]
    %v1203 = vld [vmem:[#allocation5 + $0x1f78] sm:$0xff]
    %v1204 = vld [vmem:[#allocation5 + $0x1f80] sm:$0xff]
    %v1205 = vld [vmem:[#allocation5 + $0x1f88] sm:$0xff]
    %v1206 = vld [vmem:[#allocation5 + $0x1f90] sm:$0xff]
    %v1207 = vld [vmem:[#allocation5 + $0x1f98] sm:$0xff]
    %v1208 = vld [vmem:[#allocation5 + $0x1fa0] sm:$0xff]
    %v1209 = vld [vmem:[#allocation5 + $0x1fa8] sm:$0xff]
    %v1210 = vld [vmem:[#allocation5 + $0x1fb0] sm:$0xff]
    %v1211 = vld [vmem:[#allocation5 + $0x1fb8] sm:$0xff]
    %v1212 = vld [vmem:[#allocation5 + $0x1fc0] sm:$0xff]
    %v1213 = vld [vmem:[#allocation5 + $0x1fc8] sm:$0xff]
    %v1214 = vld [vmem:[#allocation5 + $0x1fd0] sm:$0xff]
    %v1215 = vld [vmem:[#allocation5 + $0x1fd8] sm:$0xff]
    %v1216 = vld [vmem:[#allocation5 + $0x1fe0] sm:$0xff]
    %v1217 = vld [vmem:[#allocation5 + $0x1fe8] sm:$0xff]
    %v1218 = vld [vmem:[#allocation5 + $0x1ff0] sm:$0xff]
    %v1219 = vld [vmem:[#allocation5 + $0x1ff8] sm:$0xff]
    %v1220 = vld [vmem:[#allocation5 + $0x2000] sm:$0xff]
    %v1221 = vld [vmem:[#allocation5 + $0x2008] sm:$0xff]
    %v1222 = vld [vmem:[#allocation5 + $0x2010] sm:$0xff]
    %v1223 = vld [vmem:[#allocation5 + $0x2018] sm:$0xff]
    %v1224 = vld [vmem:[#allocation5 + $0x2020] sm:$0xff]
    %v1225 = vld [vmem:[#allocation5 + $0x2028] sm:$0xff]
    %v1226 = vld [vmem:[#allocation5 + $0x2030] sm:$0xff]
    %v1227 = vld [vmem:[#allocation5 + $0x2038] sm:$0xff]
    %v1228 = vld [vmem:[#allocation5 + $0x2040] sm:$0xff]
    %v1229 = vld [vmem:[#allocation5 + $0x2048] sm:$0xff]
    %v1230 = vld [vmem:[#allocation5 + $0x2050] sm:$0xff]
    %v1231 = vld [vmem:[#allocation5 + $0x2058] sm:$0xff]
    %v1232 = vld [vmem:[#allocation5 + $0x2060] sm:$0xff]
    %v1233 = vld [vmem:[#allocation5 + $0x2068] sm:$0xff]
    %v1234 = vld [vmem:[#allocation5 + $0x2070] sm:$0xff]
    %v1235 = vld [vmem:[#allocation5 + $0x2078] sm:$0xff]
    %v1236 = vld [vmem:[#allocation5 + $0x2080] sm:$0xff]
    %v1237 = vld [vmem:[#allocation5 + $0x2088] sm:$0xff]
    %v1238 = vld [vmem:[#allocation5 + $0x2090] sm:$0xff]
    %v1239 = vld [vmem:[#allocation5 + $0x2098] sm:$0xff]
    %v1240 = vld [vmem:[#allocation5 + $0x20a0] sm:$0xff]
    %v1241 = vld [vmem:[#allocation5 + $0x20a8] sm:$0xff]
    %v1242 = vld [vmem:[#allocation5 + $0x20b0] sm:$0xff]
    %v1243 = vld [vmem:[#allocation5 + $0x20b8] sm:$0xff]
    %v1244 = vld [vmem:[#allocation5 + $0x20c0] sm:$0xff]
    %v1245 = vld [vmem:[#allocation5 + $0x20c8] sm:$0xff]
    %v1246 = vld [vmem:[#allocation5 + $0x20d0] sm:$0xff]
    %v1247 = vld [vmem:[#allocation5 + $0x20d8] sm:$0xff]
    %v1248 = vld [vmem:[#allocation5 + $0x20e0] sm:$0xff]
    %v1249 = vld [vmem:[#allocation5 + $0x20e8] sm:$0xff]
    %v1250 = vld [vmem:[#allocation5 + $0x20f0] sm:$0xff]
    %v1251 = vld [vmem:[#allocation5 + $0x20f8] sm:$0xff]
    %v1252 = vld [vmem:[#allocation5 + $0x2100] sm:$0xff]
    %v1253 = vld [vmem:[#allocation5 + $0x2108] sm:$0xff]
    %v1254 = vld [vmem:[#allocation5 + $0x2110] sm:$0xff]
    %v1255 = vld [vmem:[#allocation5 + $0x2118] sm:$0xff]
    %v1256 = vld [vmem:[#allocation5 + $0x2120] sm:$0xff]
    %v1257 = vld [vmem:[#allocation5 + $0x2128] sm:$0xff]
    %v1258 = vld [vmem:[#allocation5 + $0x2130] sm:$0xff]
    %v1259 = vld [vmem:[#allocation5 + $0x2138] sm:$0xff]
    %v1260 = vld [vmem:[#allocation5 + $0x2140] sm:$0xff]
    %v1261 = vld [vmem:[#allocation5 + $0x2148] sm:$0xff]
    %v1262 = vld [vmem:[#allocation5 + $0x2150] sm:$0xff]
    %v1263 = vld [vmem:[#allocation5 + $0x2158] sm:$0xff]
    %v1264 = vld [vmem:[#allocation5 + $0x2160] sm:$0xff]
    %v1265 = vld [vmem:[#allocation5 + $0x2168] sm:$0xff]
    %v1266 = vld [vmem:[#allocation5 + $0x2170] sm:$0xff]
    %v1267 = vld [vmem:[#allocation5 + $0x2178] sm:$0xff]
    %v1268 = vld [vmem:[#allocation5 + $0x2180] sm:$0xff]
    %v1269 = vld [vmem:[#allocation5 + $0x2188] sm:$0xff]
    %v1270 = vld [vmem:[#allocation5 + $0x2190] sm:$0xff]
    %v1271 = vld [vmem:[#allocation5 + $0x2198] sm:$0xff]
    %v1272 = vld [vmem:[#allocation5 + $0x21a0] sm:$0xff]
    %v1273 = vld [vmem:[#allocation5 + $0x21a8] sm:$0xff]
    %v1274 = vld [vmem:[#allocation5 + $0x21b0] sm:$0xff]
    %v1275 = vld [vmem:[#allocation5 + $0x21b8] sm:$0xff]
    %v1276 = vld [vmem:[#allocation5 + $0x21c0] sm:$0xff]
    %v1277 = vld [vmem:[#allocation5 + $0x21c8] sm:$0xff]
    %v1278 = vld [vmem:[#allocation5 + $0x21d0] sm:$0xff]
    %v1279 = vld [vmem:[#allocation5 + $0x21d8] sm:$0xff]
    %v1280 = vld [vmem:[#allocation5 + $0x21e0] sm:$0xff]
    %v1281 = vld [vmem:[#allocation5 + $0x21e8] sm:$0xff]
    %v1282 = vld [vmem:[#allocation5 + $0x21f0] sm:$0xff]
    %v1283 = vld [vmem:[#allocation5 + $0x21f8] sm:$0xff]
    %v1284 = vld [vmem:[#allocation5 + $0x2200] sm:$0xff]
    %v1285 = vld [vmem:[#allocation5 + $0x2208] sm:$0xff]
    %v1286 = vld [vmem:[#allocation5 + $0x2210] sm:$0xff]
    %v1287 = vld [vmem:[#allocation5 + $0x2218] sm:$0xff]
    %v1288 = vld [vmem:[#allocation5 + $0x2220] sm:$0xff]
    %v1289 = vld [vmem:[#allocation5 + $0x2228] sm:$0xff]
    %v1290 = vld [vmem:[#allocation5 + $0x2230] sm:$0xff]
    %v1291 = vld [vmem:[#allocation5 + $0x2238] sm:$0xff]
    %v1292 = vld [vmem:[#allocation5 + $0x2240] sm:$0xff]
    %v1293 = vld [vmem:[#allocation5 + $0x2248] sm:$0xff]
    %v1294 = vld [vmem:[#allocation5 + $0x2250] sm:$0xff]
    %v1295 = vld [vmem:[#allocation5 + $0x2258] sm:$0xff]
    %v1296 = vld [vmem:[#allocation5 + $0x2260] sm:$0xff]
    %v1297 = vld [vmem:[#allocation5 + $0x2268] sm:$0xff]
    %v1298 = vld [vmem:[#allocation5 + $0x2270] sm:$0xff]
    %v1299 = vld [vmem:[#allocation5 + $0x2278] sm:$0xff]
    %v1300 = vld [vmem:[#allocation5 + $0x2280] sm:$0xff]
    %v1301 = vld [vmem:[#allocation5 + $0x2288] sm:$0xff]
    %v1302 = vld [vmem:[#allocation5 + $0x2290] sm:$0xff]
    %v1303 = vld [vmem:[#allocation5 + $0x2298] sm:$0xff]
    %v1304 = vld [vmem:[#allocation5 + $0x22a0] sm:$0xff]
    %v1305 = vld [vmem:[#allocation5 + $0x22a8] sm:$0xff]
    %v1306 = vld [vmem:[#allocation5 + $0x22b0] sm:$0xff]
    %v1307 = vld [vmem:[#allocation5 + $0x22b8] sm:$0xff]
    %v1308 = vld [vmem:[#allocation5 + $0x22c0] sm:$0xff]
    %v1309 = vld [vmem:[#allocation5 + $0x22c8] sm:$0xff]
    %v1310 = vld [vmem:[#allocation5 + $0x22d0] sm:$0xff]
    %v1311 = vld [vmem:[#allocation5 + $0x22d8] sm:$0xff]
    %v1312 = vld [vmem:[#allocation5 + $0x22e0] sm:$0xff]
    %v1313 = vld [vmem:[#allocation5 + $0x22e8] sm:$0xff]
    %v1314 = vld [vmem:[#allocation5 + $0x22f0] sm:$0xff]
    %v1315 = vld [vmem:[#allocation5 + $0x22f8] sm:$0xff]
    %v1316 = vld [vmem:[#allocation5 + $0x2300] sm:$0xff]
    %v1317 = vld [vmem:[#allocation5 + $0x2308] sm:$0xff]
    %v1318 = vld [vmem:[#allocation5 + $0x2310] sm:$0xff]
    %v1319 = vld [vmem:[#allocation5 + $0x2318] sm:$0xff]
    %v1320 = vld [vmem:[#allocation5 + $0x2320] sm:$0xff]
    %v1321 = vld [vmem:[#allocation5 + $0x2328] sm:$0xff]
    %v1322 = vld [vmem:[#allocation5 + $0x2330] sm:$0xff]
    %v1323 = vld [vmem:[#allocation5 + $0x2338] sm:$0xff]
    %v1324 = vld [vmem:[#allocation5 + $0x2340] sm:$0xff]
    %v1325 = vld [vmem:[#allocation5 + $0x2348] sm:$0xff]
    %v1326 = vld [vmem:[#allocation5 + $0x2350] sm:$0xff]
    %v1327 = vld [vmem:[#allocation5 + $0x2358] sm:$0xff]
    %v1328 = vld [vmem:[#allocation5 + $0x2360] sm:$0xff]
    %v1329 = vld [vmem:[#allocation5 + $0x2368] sm:$0xff]
    %v1330 = vld [vmem:[#allocation5 + $0x2370] sm:$0xff]
    %v1331 = vld [vmem:[#allocation5 + $0x2378] sm:$0xff]
    %v1332 = vld [vmem:[#allocation5 + $0x2380] sm:$0xff]
    %v1333 = vld [vmem:[#allocation5 + $0x2388] sm:$0xff]
    %v1334 = vld [vmem:[#allocation5 + $0x2390] sm:$0xff]
    %v1335 = vld [vmem:[#allocation5 + $0x2398] sm:$0xff]
    %v1336 = vld [vmem:[#allocation5 + $0x23a0] sm:$0xff]
    %v1337 = vld [vmem:[#allocation5 + $0x23a8] sm:$0xff]
    %v1338 = vld [vmem:[#allocation5 + $0x23b0] sm:$0xff]
    %v1339 = vld [vmem:[#allocation5 + $0x23b8] sm:$0xff]
    %v1340 = vld [vmem:[#allocation5 + $0x23c0] sm:$0xff]
    %v1341 = vld [vmem:[#allocation5 + $0x23c8] sm:$0xff]
    %v1342 = vld [vmem:[#allocation5 + $0x23d0] sm:$0xff]
    %v1343 = vld [vmem:[#allocation5 + $0x23d8] sm:$0xff]
    %v1344 = vld [vmem:[#allocation5 + $0x23e0] sm:$0xff]
    %v1345 = vld [vmem:[#allocation5 + $0x23e8] sm:$0xff]
    %v1346 = vld [vmem:[#allocation5 + $0x23f0] sm:$0xff]
    %v1347 = vld [vmem:[#allocation5 + $0x23f8] sm:$0xff]
    %v1348 = vld [vmem:[#allocation5 + $0x2400] sm:$0xff]
    %v1349 = vld [vmem:[#allocation5 + $0x2408] sm:$0xff]
    %v1350 = vld [vmem:[#allocation5 + $0x2410] sm:$0xff]
    %v1351 = vld [vmem:[#allocation5 + $0x2418] sm:$0xff]
    %v1352 = vld [vmem:[#allocation5 + $0x2420] sm:$0xff]
    %v1353 = vld [vmem:[#allocation5 + $0x2428] sm:$0xff]
    %v1354 = vld [vmem:[#allocation5 + $0x2430] sm:$0xff]
    %v1355 = vld [vmem:[#allocation5 + $0x2438] sm:$0xff]
    %v1356 = vld [vmem:[#allocation5 + $0x2440] sm:$0xff]
    %v1357 = vld [vmem:[#allocation5 + $0x2448] sm:$0xff]
    %v1358 = vld [vmem:[#allocation5 + $0x2450] sm:$0xff]
    %v1359 = vld [vmem:[#allocation5 + $0x2458] sm:$0xff]
    %v1360 = vld [vmem:[#allocation5 + $0x2460] sm:$0xff]
    %v1361 = vld [vmem:[#allocation5 + $0x2468] sm:$0xff]
    %v1362 = vld [vmem:[#allocation5 + $0x2470] sm:$0xff]
    %v1363 = vld [vmem:[#allocation5 + $0x2478] sm:$0xff]
    %v1364 = vld [vmem:[#allocation5 + $0x2480] sm:$0xff]
    %v1365 = vld [vmem:[#allocation5 + $0x2488] sm:$0xff]
    %v1366 = vld [vmem:[#allocation5 + $0x2490] sm:$0xff]
    %v1367 = vld [vmem:[#allocation5 + $0x2498] sm:$0xff]
    %v1368 = vld [vmem:[#allocation5 + $0x24a0] sm:$0xff]
    %v1369 = vld [vmem:[#allocation5 + $0x24a8] sm:$0xff]
    %v1370 = vld [vmem:[#allocation5 + $0x24b0] sm:$0xff]
    %v1371 = vld [vmem:[#allocation5 + $0x24b8] sm:$0xff]
    %v1372 = vld [vmem:[#allocation5 + $0x24c0] sm:$0xff]
    %v1373 = vld [vmem:[#allocation5 + $0x24c8] sm:$0xff]
    %v1374 = vld [vmem:[#allocation5 + $0x24d0] sm:$0xff]
    %v1375 = vld [vmem:[#allocation5 + $0x24d8] sm:$0xff]
    %v1376 = vld [vmem:[#allocation5 + $0x24e0] sm:$0xff]
    %v1377 = vld [vmem:[#allocation5 + $0x24e8] sm:$0xff]
    %v1378 = vld [vmem:[#allocation5 + $0x24f0] sm:$0xff]
    %v1379 = vld [vmem:[#allocation5 + $0x24f8] sm:$0xff]
    %v1380 = vld [vmem:[#allocation5 + $0x2500] sm:$0xff]
    %v1381 = vld [vmem:[#allocation5 + $0x2508] sm:$0xff]
    %v1382 = vld [vmem:[#allocation5 + $0x2510] sm:$0xff]
    %v1383 = vld [vmem:[#allocation5 + $0x2518] sm:$0xff]
    %v1384 = vld [vmem:[#allocation5 + $0x2520] sm:$0xff]
    %v1385 = vld [vmem:[#allocation5 + $0x2528] sm:$0xff]
    %v1386 = vld [vmem:[#allocation5 + $0x2530] sm:$0xff]
    %v1387 = vld [vmem:[#allocation5 + $0x2538] sm:$0xff]
    %v1388 = vld [vmem:[#allocation5 + $0x2540] sm:$0xff]
    %v1389 = vld [vmem:[#allocation5 + $0x2548] sm:$0xff]
    %v1390 = vld [vmem:[#allocation5 + $0x2550] sm:$0xff]
    %v1391 = vld [vmem:[#allocation5 + $0x2558] sm:$0xff]
    %v1392 = vld [vmem:[#allocation5 + $0x2560] sm:$0xff]
    %v1393 = vld [vmem:[#allocation5 + $0x2568] sm:$0xff]
    %v1394 = vld [vmem:[#allocation5 + $0x2570] sm:$0xff]
    %v1395 = vld [vmem:[#allocation5 + $0x2578] sm:$0xff]
    %v1396 = vld [vmem:[#allocation5 + $0x2580] sm:$0xff]
    %v1397 = vld [vmem:[#allocation5 + $0x2588] sm:$0xff]
    %v1398 = vld [vmem:[#allocation5 + $0x2590] sm:$0xff]
    %v1399 = vld [vmem:[#allocation5 + $0x2598] sm:$0xff]
    %v1400 = vld [vmem:[#allocation5 + $0x25a0] sm:$0xff]
    %v1401 = vld [vmem:[#allocation5 + $0x25a8] sm:$0xff]
    %v1402 = vld [vmem:[#allocation5 + $0x25b0] sm:$0xff]
    %v1403 = vld [vmem:[#allocation5 + $0x25b8] sm:$0xff]
    %v1404 = vld [vmem:[#allocation5 + $0x25c0] sm:$0xff]
    %v1405 = vld [vmem:[#allocation5 + $0x25c8] sm:$0xff]
    %v1406 = vld [vmem:[#allocation5 + $0x25d0] sm:$0xff]
    %v1407 = vld [vmem:[#allocation5 + $0x25d8] sm:$0xff]
    %v1408 = vld [vmem:[#allocation5 + $0x25e0] sm:$0xff]
    %v1409 = vld [vmem:[#allocation5 + $0x25e8] sm:$0xff]
    %v1410 = vld [vmem:[#allocation5 + $0x25f0] sm:$0xff]
    %v1411 = vld [vmem:[#allocation5 + $0x25f8] sm:$0xff]
    %v1412 = vld [vmem:[#allocation5 + $0x2600] sm:$0xff]
    %v1413 = vld [vmem:[#allocation5 + $0x2608] sm:$0xff]
    %v1414 = vld [vmem:[#allocation5 + $0x2610] sm:$0xff]
    %v1415 = vld [vmem:[#allocation5 + $0x2618] sm:$0xff]
    %v1416 = vld [vmem:[#allocation5 + $0x2620] sm:$0xff]
    %v1417 = vld [vmem:[#allocation5 + $0x2628] sm:$0xff]
    %v1418 = vld [vmem:[#allocation5 + $0x2630] sm:$0xff]
    %v1419 = vld [vmem:[#allocation5 + $0x2638] sm:$0xff]
    %v1420 = vld [vmem:[#allocation5 + $0x2640] sm:$0xff]
    %v1421 = vld [vmem:[#allocation5 + $0x2648] sm:$0xff]
    %v1422 = vld [vmem:[#allocation5 + $0x2650] sm:$0xff]
    %v1423 = vld [vmem:[#allocation5 + $0x2658] sm:$0xff]
    %v1424 = vld [vmem:[#allocation5 + $0x2660] sm:$0xff]
    %v1425 = vld [vmem:[#allocation5 + $0x2668] sm:$0xff]
    %v1426 = vld [vmem:[#allocation5 + $0x2670] sm:$0xff]
    %v1427 = vld [vmem:[#allocation5 + $0x2678] sm:$0xff]
    %v1428 = vld [vmem:[#allocation5 + $0x2680] sm:$0xff]
    %v1429 = vld [vmem:[#allocation5 + $0x2688] sm:$0xff]
    %v1430 = vld [vmem:[#allocation5 + $0x2690] sm:$0xff]
    %v1431 = vld [vmem:[#allocation5 + $0x2698] sm:$0xff]
    %v1432 = vld [vmem:[#allocation5 + $0x26a0] sm:$0xff]
    %v1433 = vld [vmem:[#allocation5 + $0x26a8] sm:$0xff]
    %v1434 = vld [vmem:[#allocation5 + $0x26b0] sm:$0xff]
    %v1435 = vld [vmem:[#allocation5 + $0x26b8] sm:$0xff]
    %v1436 = vld [vmem:[#allocation5 + $0x26c0] sm:$0xff]
    %v1437 = vld [vmem:[#allocation5 + $0x26c8] sm:$0xff]
    %v1438 = vld [vmem:[#allocation5 + $0x26d0] sm:$0xff]
    %v1439 = vld [vmem:[#allocation5 + $0x26d8] sm:$0xff]
    %v1440 = vld [vmem:[#allocation5 + $0x26e0] sm:$0xff]
    %v1441 = vld [vmem:[#allocation5 + $0x26e8] sm:$0xff]
    %v1442 = vld [vmem:[#allocation5 + $0x26f0] sm:$0xff]
    %v1443 = vld [vmem:[#allocation5 + $0x26f8] sm:$0xff]
    %v1444 = vld [vmem:[#allocation5 + $0x2700] sm:$0xff]
    %v1445 = vld [vmem:[#allocation5 + $0x2708] sm:$0xff]
    %v1446 = vld [vmem:[#allocation5 + $0x2710] sm:$0xff]
    %v1447 = vld [vmem:[#allocation5 + $0x2718] sm:$0xff]
    %v1448 = vld [vmem:[#allocation5 + $0x2720] sm:$0xff]
    %v1449 = vld [vmem:[#allocation5 + $0x2728] sm:$0xff]
    %v1450 = vld [vmem:[#allocation5 + $0x2730] sm:$0xff]
    %v1451 = vld [vmem:[#allocation5 + $0x2738] sm:$0xff]
    %v1452 = vld [vmem:[#allocation5 + $0x2740] sm:$0xff]
    %v1453 = vld [vmem:[#allocation5 + $0x2748] sm:$0xff]
    %v1454 = vld [vmem:[#allocation5 + $0x2750] sm:$0xff]
    %v1455 = vld [vmem:[#allocation5 + $0x2758] sm:$0xff]
    %v1456 = vld [vmem:[#allocation5 + $0x2760] sm:$0xff]
    %v1457 = vld [vmem:[#allocation5 + $0x2768] sm:$0xff]
    %v1458 = vld [vmem:[#allocation5 + $0x2770] sm:$0xff]
    %v1459 = vld [vmem:[#allocation5 + $0x2778] sm:$0xff]
    %v1460 = vld [vmem:[#allocation5 + $0x2780] sm:$0xff]
    %v1461 = vld [vmem:[#allocation5 + $0x2788] sm:$0xff]
    %v1462 = vld [vmem:[#allocation5 + $0x2790] sm:$0xff]
    %v1463 = vld [vmem:[#allocation5 + $0x2798] sm:$0xff]
    %v1464 = vld [vmem:[#allocation5 + $0x27a0] sm:$0xff]
    %v1465 = vld [vmem:[#allocation5 + $0x27a8] sm:$0xff]
    %v1466 = vld [vmem:[#allocation5 + $0x27b0] sm:$0xff]
    %v1467 = vld [vmem:[#allocation5 + $0x27b8] sm:$0xff]
    %v1468 = vld [vmem:[#allocation5 + $0x27c0] sm:$0xff]
    %v1469 = vld [vmem:[#allocation5 + $0x27c8] sm:$0xff]
    %v1470 = vld [vmem:[#allocation5 + $0x27d0] sm:$0xff]
    %v1471 = vld [vmem:[#allocation5 + $0x27d8] sm:$0xff]
    %v1472 = vld [vmem:[#allocation5 + $0x27e0] sm:$0xff]
    %v1473 = vld [vmem:[#allocation5 + $0x27e8] sm:$0xff]
    %v1474 = vld [vmem:[#allocation5 + $0x27f0] sm:$0xff]
    %v1475 = vld [vmem:[#allocation5 + $0x27f8] sm:$0xff]
    %v1476 = vld [vmem:[#allocation5 + $0x2800] sm:$0xff]
    %v1477 = vld [vmem:[#allocation5 + $0x2808] sm:$0xff]
    %v1478 = vld [vmem:[#allocation5 + $0x2810] sm:$0xff]
    %v1479 = vld [vmem:[#allocation5 + $0x2818] sm:$0xff]
    %v1480 = vld [vmem:[#allocation5 + $0x2820] sm:$0xff]
    %v1481 = vld [vmem:[#allocation5 + $0x2828] sm:$0xff]
    %v1482 = vld [vmem:[#allocation5 + $0x2830] sm:$0xff]
    %v1483 = vld [vmem:[#allocation5 + $0x2838] sm:$0xff]
    %v1484 = vld [vmem:[#allocation5 + $0x2840] sm:$0xff]
    %v1485 = vld [vmem:[#allocation5 + $0x2848] sm:$0xff]
    %v1486 = vld [vmem:[#allocation5 + $0x2850] sm:$0xff]
    %v1487 = vld [vmem:[#allocation5 + $0x2858] sm:$0xff]
    %v1488 = vld [vmem:[#allocation5 + $0x2860] sm:$0xff]
    %v1489 = vld [vmem:[#allocation5 + $0x2868] sm:$0xff]
    %v1490 = vld [vmem:[#allocation5 + $0x2870] sm:$0xff]
    %v1491 = vld [vmem:[#allocation5 + $0x2878] sm:$0xff]
    %v1492 = vld [vmem:[#allocation5 + $0x2880] sm:$0xff]
    %v1493 = vld [vmem:[#allocation5 + $0x2888] sm:$0xff]
    %v1494 = vld [vmem:[#allocation5 + $0x2890] sm:$0xff]
    %v1495 = vld [vmem:[#allocation5 + $0x2898] sm:$0xff]
    %v1496 = vld [vmem:[#allocation5 + $0x28a0] sm:$0xff]
    %v1497 = vld [vmem:[#allocation5 + $0x28a8] sm:$0xff]
    %v1498 = vld [vmem:[#allocation5 + $0x28b0] sm:$0xff]
    %v1499 = vld [vmem:[#allocation5 + $0x28b8] sm:$0xff]
    %v1500 = vld [vmem:[#allocation5 + $0x28c0] sm:$0xff]
    %v1501 = vld [vmem:[#allocation5 + $0x28c8] sm:$0xff]
    %v1502 = vld [vmem:[#allocation5 + $0x28d0] sm:$0xff]
    %v1503 = vld [vmem:[#allocation5 + $0x28d8] sm:$0xff]
    %v1504 = vld [vmem:[#allocation5 + $0x28e0] sm:$0xff]
    %v1505 = vld [vmem:[#allocation5 + $0x28e8] sm:$0xff]
    %v1506 = vld [vmem:[#allocation5 + $0x28f0] sm:$0xff]
    %v1507 = vld [vmem:[#allocation5 + $0x28f8] sm:$0xff]
    %v1508 = vld [vmem:[#allocation5 + $0x2900] sm:$0xff]
    %v1509 = vld [vmem:[#allocation5 + $0x2908] sm:$0xff]
    %v1510 = vld [vmem:[#allocation5 + $0x2910] sm:$0xff]
    %v1511 = vld [vmem:[#allocation5 + $0x2918] sm:$0xff]
    %v1512 = vld [vmem:[#allocation5 + $0x2920] sm:$0xff]
    %v1513 = vld [vmem:[#allocation5 + $0x2928] sm:$0xff]
    %v1514 = vld [vmem:[#allocation5 + $0x2930] sm:$0xff]
    %v1515 = vld [vmem:[#allocation5 + $0x2938] sm:$0xff]
    %v1516 = vld [vmem:[#allocation5 + $0x2940] sm:$0xff]
    %v1517 = vld [vmem:[#allocation5 + $0x2948] sm:$0xff]
    %v1518 = vld [vmem:[#allocation5 + $0x2950] sm:$0xff]
    %v1519 = vld [vmem:[#allocation5 + $0x2958] sm:$0xff]
    %v1520 = vld [vmem:[#allocation5 + $0x2960] sm:$0xff]
    %v1521 = vld [vmem:[#allocation5 + $0x2968] sm:$0xff]
    %v1522 = vld [vmem:[#allocation5 + $0x2970] sm:$0xff]
    %v1523 = vld [vmem:[#allocation5 + $0x2978] sm:$0xff]
    %v1524 = vld [vmem:[#allocation5 + $0x2980] sm:$0xff]
    %v1525 = vld [vmem:[#allocation5 + $0x2988] sm:$0xff]
    %v1526 = vld [vmem:[#allocation5 + $0x2990] sm:$0xff]
    %v1527 = vld [vmem:[#allocation5 + $0x2998] sm:$0xff]
    %v1528 = vld [vmem:[#allocation5 + $0x29a0] sm:$0xff]
    %v1529 = vld [vmem:[#allocation5 + $0x29a8] sm:$0xff]
    %v1530 = vld [vmem:[#allocation5 + $0x29b0] sm:$0xff]
    %v1531 = vld [vmem:[#allocation5 + $0x29b8] sm:$0xff]
    %v1532 = vld [vmem:[#allocation5 + $0x29c0] sm:$0xff]
    %v1533 = vld [vmem:[#allocation5 + $0x29c8] sm:$0xff]
    %v1534 = vld [vmem:[#allocation5 + $0x29d0] sm:$0xff]
    %v1535 = vld [vmem:[#allocation5 + $0x29d8] sm:$0xff]
    %v1536 = vld [vmem:[#allocation5 + $0x29e0] sm:$0xff]
    %v1537 = vld [vmem:[#allocation5 + $0x29e8] sm:$0xff]
    %v1538 = vld [vmem:[#allocation5 + $0x29f0] sm:$0xff]
    %v1539 = vld [vmem:[#allocation5 + $0x29f8] sm:$0xff]
    %v1540 = vld [vmem:[#allocation5 + $0x2a00] sm:$0xff]
    %v1541 = vld [vmem:[#allocation5 + $0x2a08] sm:$0xff]
    %v1542 = vld [vmem:[#allocation5 + $0x2a10] sm:$0xff]
    %v1543 = vld [vmem:[#allocation5 + $0x2a18] sm:$0xff]
    %v1544 = vld [vmem:[#allocation5 + $0x2a20] sm:$0xff]
    %v1545 = vld [vmem:[#allocation5 + $0x2a28] sm:$0xff]
    %v1546 = vld [vmem:[#allocation5 + $0x2a30] sm:$0xff]
    %v1547 = vld [vmem:[#allocation5 + $0x2a38] sm:$0xff]
    %v1548 = vld [vmem:[#allocation5 + $0x2a40] sm:$0xff]
    %v1549 = vld [vmem:[#allocation5 + $0x2a48] sm:$0xff]
    %v1550 = vld [vmem:[#allocation5 + $0x2a50] sm:$0xff]
    %v1551 = vld [vmem:[#allocation5 + $0x2a58] sm:$0xff]
    %v1552 = vld [vmem:[#allocation5 + $0x2a60] sm:$0xff]
    %v1553 = vld [vmem:[#allocation5 + $0x2a68] sm:$0xff]
    %v1554 = vld [vmem:[#allocation5 + $0x2a70] sm:$0xff]
    %v1555 = vld [vmem:[#allocation5 + $0x2a78] sm:$0xff]
    %v1556 = vld [vmem:[#allocation5 + $0x2a80] sm:$0xff]
    %v1557 = vld [vmem:[#allocation5 + $0x2a88] sm:$0xff]
    %v1558 = vld [vmem:[#allocation5 + $0x2a90] sm:$0xff]
    %v1559 = vld [vmem:[#allocation5 + $0x2a98] sm:$0xff]
    %v1560 = vld [vmem:[#allocation5 + $0x2aa0] sm:$0xff]
    %v1561 = vld [vmem:[#allocation5 + $0x2aa8] sm:$0xff]
    %v1562 = vld [vmem:[#allocation5 + $0x2ab0] sm:$0xff]
    %v1563 = vld [vmem:[#allocation5 + $0x2ab8] sm:$0xff]
    %v1564 = vld [vmem:[#allocation5 + $0x2ac0] sm:$0xff]
    %v1565 = vld [vmem:[#allocation5 + $0x2ac8] sm:$0xff]
    %v1566 = vld [vmem:[#allocation5 + $0x2ad0] sm:$0xff]
    %v1567 = vld [vmem:[#allocation5 + $0x2ad8] sm:$0xff]
    %v1568 = vld [vmem:[#allocation5 + $0x2ae0] sm:$0xff]
    %v1569 = vld [vmem:[#allocation5 + $0x2ae8] sm:$0xff]
    %v1570 = vld [vmem:[#allocation5 + $0x2af0] sm:$0xff]
    %v1571 = vld [vmem:[#allocation5 + $0x2af8] sm:$0xff]
    %v1572 = vld [vmem:[#allocation5 + $0x2b00] sm:$0xff]
    %v1573 = vld [vmem:[#allocation5 + $0x2b08] sm:$0xff]
    %v1574 = vld [vmem:[#allocation5 + $0x2b10] sm:$0xff]
    %v1575 = vld [vmem:[#allocation5 + $0x2b18] sm:$0xff]
    %v1576 = vld [vmem:[#allocation5 + $0x2b20] sm:$0xff]
    %v1577 = vld [vmem:[#allocation5 + $0x2b28] sm:$0xff]
    %v1578 = vld [vmem:[#allocation5 + $0x2b30] sm:$0xff]
    %v1579 = vld [vmem:[#allocation5 + $0x2b38] sm:$0xff]
    %v1580 = vld [vmem:[#allocation5 + $0x2b40] sm:$0xff]
    %v1581 = vld [vmem:[#allocation5 + $0x2b48] sm:$0xff]
    %v1582 = vld [vmem:[#allocation5 + $0x2b50] sm:$0xff]
    %v1583 = vld [vmem:[#allocation5 + $0x2b58] sm:$0xff]
    %v1584 = vld [vmem:[#allocation5 + $0x2b60] sm:$0xff]
    %v1585 = vld [vmem:[#allocation5 + $0x2b68] sm:$0xff]
    %v1586 = vld [vmem:[#allocation5 + $0x2b70] sm:$0xff]
    %v1587 = vld [vmem:[#allocation5 + $0x2b78] sm:$0xff]
    %v1588 = vld [vmem:[#allocation5 + $0x2b80] sm:$0xff]
    %v1589 = vld [vmem:[#allocation5 + $0x2b88] sm:$0xff]
    %v1590 = vld [vmem:[#allocation5 + $0x2b90] sm:$0xff]
    %v1591 = vld [vmem:[#allocation5 + $0x2b98] sm:$0xff]
    %v1592 = vld [vmem:[#allocation5 + $0x2ba0] sm:$0xff]
    %v1593 = vld [vmem:[#allocation5 + $0x2ba8] sm:$0xff]
    %v1594 = vld [vmem:[#allocation5 + $0x2bb0] sm:$0xff]
    %v1595 = vld [vmem:[#allocation5 + $0x2bb8] sm:$0xff]
    %v1596 = vld [vmem:[#allocation5 + $0x2bc0] sm:$0xff]
    %v1597 = vld [vmem:[#allocation5 + $0x2bc8] sm:$0xff]
    %v1598 = vld [vmem:[#allocation5 + $0x2bd0] sm:$0xff]
    %v1599 = vld [vmem:[#allocation5 + $0x2bd8] sm:$0xff]
    %v1600 = vld [vmem:[#allocation5 + $0x2be0] sm:$0xff]
    %v1601 = vld [vmem:[#allocation5 + $0x2be8] sm:$0xff]
    %v1602 = vld [vmem:[#allocation5 + $0x2bf0] sm:$0xff]
    %v1603 = vld [vmem:[#allocation5 + $0x2bf8] sm:$0xff]
    %v1604 = vld [vmem:[#allocation5 + $0x2c00] sm:$0xff]
    %v1605 = vld [vmem:[#allocation5 + $0x2c08] sm:$0xff]
    %v1606 = vld [vmem:[#allocation5 + $0x2c10] sm:$0xff]
    %v1607 = vld [vmem:[#allocation5 + $0x2c18] sm:$0xff]
    %v1608 = vld [vmem:[#allocation5 + $0x2c20] sm:$0xff]
    %v1609 = vld [vmem:[#allocation5 + $0x2c28] sm:$0xff]
    %v1610 = vld [vmem:[#allocation5 + $0x2c30] sm:$0xff]
    %v1611 = vld [vmem:[#allocation5 + $0x2c38] sm:$0xff]
    %v1612 = vld [vmem:[#allocation5 + $0x2c40] sm:$0xff]
    %v1613 = vld [vmem:[#allocation5 + $0x2c48] sm:$0xff]
    %v1614 = vld [vmem:[#allocation5 + $0x2c50] sm:$0xff]
    %v1615 = vld [vmem:[#allocation5 + $0x2c58] sm:$0xff]
    %v1616 = vld [vmem:[#allocation5 + $0x2c60] sm:$0xff]
    %v1617 = vld [vmem:[#allocation5 + $0x2c68] sm:$0xff]
    %v1618 = vld [vmem:[#allocation5 + $0x2c70] sm:$0xff]
    %v1619 = vld [vmem:[#allocation5 + $0x2c78] sm:$0xff]
    %v1620 = vld [vmem:[#allocation5 + $0x2c80] sm:$0xff]
    %v1621 = vld [vmem:[#allocation5 + $0x2c88] sm:$0xff]
    %v1622 = vld [vmem:[#allocation5 + $0x2c90] sm:$0xff]
    %v1623 = vld [vmem:[#allocation5 + $0x2c98] sm:$0xff]
    %v1624 = vld [vmem:[#allocation5 + $0x2ca0] sm:$0xff]
    %v1625 = vld [vmem:[#allocation5 + $0x2ca8] sm:$0xff]
    %v1626 = vld [vmem:[#allocation5 + $0x2cb0] sm:$0xff]
    %v1627 = vld [vmem:[#allocation5 + $0x2cb8] sm:$0xff]
    %v1628 = vld [vmem:[#allocation5 + $0x2cc0] sm:$0xff]
    %v1629 = vld [vmem:[#allocation5 + $0x2cc8] sm:$0xff]
    %v1630 = vld [vmem:[#allocation5 + $0x2cd0] sm:$0xff]
    %v1631 = vld [vmem:[#allocation5 + $0x2cd8] sm:$0xff]
    %v1632 = vld [vmem:[#allocation5 + $0x2ce0] sm:$0xff]
    %v1633 = vld [vmem:[#allocation5 + $0x2ce8] sm:$0xff]
    %v1634 = vld [vmem:[#allocation5 + $0x2cf0] sm:$0xff]
    %v1635 = vld [vmem:[#allocation5 + $0x2cf8] sm:$0xff]
    %v1636 = vld [vmem:[#allocation5 + $0x2d00] sm:$0xff]
    %v1637 = vld [vmem:[#allocation5 + $0x2d08] sm:$0xff]
    %v1638 = vld [vmem:[#allocation5 + $0x2d10] sm:$0xff]
    %v1639 = vld [vmem:[#allocation5 + $0x2d18] sm:$0xff]
    %v1640 = vld [vmem:[#allocation5 + $0x2d20] sm:$0xff]
    %v1641 = vld [vmem:[#allocation5 + $0x2d28] sm:$0xff]
    %v1642 = vld [vmem:[#allocation5 + $0x2d30] sm:$0xff]
    %v1643 = vld [vmem:[#allocation5 + $0x2d38] sm:$0xff]
    %v1644 = vld [vmem:[#allocation5 + $0x2d40] sm:$0xff]
    %v1645 = vld [vmem:[#allocation5 + $0x2d48] sm:$0xff]
    %v1646 = vld [vmem:[#allocation5 + $0x2d50] sm:$0xff]
    %v1647 = vld [vmem:[#allocation5 + $0x2d58] sm:$0xff]
    %v1648 = vld [vmem:[#allocation5 + $0x2d60] sm:$0xff]
    %v1649 = vld [vmem:[#allocation5 + $0x2d68] sm:$0xff]
    %v1650 = vld [vmem:[#allocation5 + $0x2d70] sm:$0xff]
    %v1651 = vld [vmem:[#allocation5 + $0x2d78] sm:$0xff]
    %v1652 = vld [vmem:[#allocation5 + $0x2d80] sm:$0xff]
    %v1653 = vld [vmem:[#allocation5 + $0x2d88] sm:$0xff]
    %v1654 = vld [vmem:[#allocation5 + $0x2d90] sm:$0xff]
    %v1655 = vld [vmem:[#allocation5 + $0x2d98] sm:$0xff]
    %v1656 = vld [vmem:[#allocation5 + $0x2da0] sm:$0xff]
    %v1657 = vld [vmem:[#allocation5 + $0x2da8] sm:$0xff]
    %v1658 = vld [vmem:[#allocation5 + $0x2db0] sm:$0xff]
    %v1659 = vld [vmem:[#allocation5 + $0x2db8] sm:$0xff]
    %v1660 = vld [vmem:[#allocation5 + $0x2dc0] sm:$0xff]
    %v1661 = vld [vmem:[#allocation5 + $0x2dc8] sm:$0xff]
    %v1662 = vld [vmem:[#allocation5 + $0x2dd0] sm:$0xff]
    %v1663 = vld [vmem:[#allocation5 + $0x2dd8] sm:$0xff]
    %v1664 = vld [vmem:[#allocation5 + $0x2de0] sm:$0xff]
    %v1665 = vld [vmem:[#allocation5 + $0x2de8] sm:$0xff]
    %v1666 = vld [vmem:[#allocation5 + $0x2df0] sm:$0xff]
    %v1667 = vld [vmem:[#allocation5 + $0x2df8] sm:$0xff]
    %v1668 = vld [vmem:[#allocation5 + $0x2e00] sm:$0xff]
    %v1669 = vld [vmem:[#allocation5 + $0x2e08] sm:$0xff]
    %v1670 = vld [vmem:[#allocation5 + $0x2e10] sm:$0xff]
    %v1671 = vld [vmem:[#allocation5 + $0x2e18] sm:$0xff]
    %v1672 = vld [vmem:[#allocation5 + $0x2e20] sm:$0xff]
    %v1673 = vld [vmem:[#allocation5 + $0x2e28] sm:$0xff]
    %v1674 = vld [vmem:[#allocation5 + $0x2e30] sm:$0xff]
    %v1675 = vld [vmem:[#allocation5 + $0x2e38] sm:$0xff]
    %v1676 = vld [vmem:[#allocation5 + $0x2e40] sm:$0xff]
    %v1677 = vld [vmem:[#allocation5 + $0x2e48] sm:$0xff]
    %v1678 = vld [vmem:[#allocation5 + $0x2e50] sm:$0xff]
    %v1679 = vld [vmem:[#allocation5 + $0x2e58] sm:$0xff]
    %v1680 = vld [vmem:[#allocation5 + $0x2e60] sm:$0xff]
    %v1681 = vld [vmem:[#allocation5 + $0x2e68] sm:$0xff]
    %v1682 = vld [vmem:[#allocation5 + $0x2e70] sm:$0xff]
    %v1683 = vld [vmem:[#allocation5 + $0x2e78] sm:$0xff]
    %v1684 = vld [vmem:[#allocation5 + $0x2e80] sm:$0xff]
    %v1685 = vld [vmem:[#allocation5 + $0x2e88] sm:$0xff]
    %v1686 = vld [vmem:[#allocation5 + $0x2e90] sm:$0xff]
    %v1687 = vld [vmem:[#allocation5 + $0x2e98] sm:$0xff]
    %v1688 = vld [vmem:[#allocation5 + $0x2ea0] sm:$0xff]
    %v1689 = vld [vmem:[#allocation5 + $0x2ea8] sm:$0xff]
    %v1690 = vld [vmem:[#allocation5 + $0x2eb0] sm:$0xff]
    %v1691 = vld [vmem:[#allocation5 + $0x2eb8] sm:$0xff]
    %v1692 = vld [vmem:[#allocation5 + $0x2ec0] sm:$0xff]
    %v1693 = vld [vmem:[#allocation5 + $0x2ec8] sm:$0xff]
    %v1694 = vld [vmem:[#allocation5 + $0x2ed0] sm:$0xff]
    %v1695 = vld [vmem:[#allocation5 + $0x2ed8] sm:$0xff]
    %v1696 = vld [vmem:[#allocation5 + $0x2ee0] sm:$0xff]
    %v1697 = vld [vmem:[#allocation5 + $0x2ee8] sm:$0xff]
    %v1698 = vld [vmem:[#allocation5 + $0x2ef0] sm:$0xff]
    %v1699 = vld [vmem:[#allocation5 + $0x2ef8] sm:$0xff]
    %v1700 = vld [vmem:[#allocation5 + $0x2f00] sm:$0xff]
    %v1701 = vld [vmem:[#allocation5 + $0x2f08] sm:$0xff]
    %v1702 = vld [vmem:[#allocation5 + $0x2f10] sm:$0xff]
    %v1703 = vld [vmem:[#allocation5 + $0x2f18] sm:$0xff]
    %v1704 = vld [vmem:[#allocation5 + $0x2f20] sm:$0xff]
    %v1705 = vld [vmem:[#allocation5 + $0x2f28] sm:$0xff]
    %v1706 = vld [vmem:[#allocation5 + $0x2f30] sm:$0xff]
    %v1707 = vld [vmem:[#allocation5 + $0x2f38] sm:$0xff]
    %v1708 = vld [vmem:[#allocation5 + $0x2f40] sm:$0xff]
    %v1709 = vld [vmem:[#allocation5 + $0x2f48] sm:$0xff]
    %v1710 = vld [vmem:[#allocation5 + $0x2f50] sm:$0xff]
    %v1711 = vld [vmem:[#allocation5 + $0x2f58] sm:$0xff]
    %v1712 = vld [vmem:[#allocation5 + $0x2f60] sm:$0xff]
    %v1713 = vld [vmem:[#allocation5 + $0x2f68] sm:$0xff]
    %v1714 = vld [vmem:[#allocation5 + $0x2f70] sm:$0xff]
    %v1715 = vld [vmem:[#allocation5 + $0x2f78] sm:$0xff]
    %v1716 = vld [vmem:[#allocation5 + $0x2f80] sm:$0xff]
    %v1717 = vld [vmem:[#allocation5 + $0x2f88] sm:$0xff]
    %v1718 = vld [vmem:[#allocation5 + $0x2f90] sm:$0xff]
    %v1719 = vld [vmem:[#allocation5 + $0x2f98] sm:$0xff]
    %v1720 = vld [vmem:[#allocation5 + $0x2fa0] sm:$0xff]
    %v1721 = vld [vmem:[#allocation5 + $0x2fa8] sm:$0xff]
    %v1722 = vld [vmem:[#allocation5 + $0x2fb0] sm:$0xff]
    %v1723 = vld [vmem:[#allocation5 + $0x2fb8] sm:$0xff]
    %v1724 = vld [vmem:[#allocation5 + $0x2fc0] sm:$0xff]
    %v1725 = vld [vmem:[#allocation5 + $0x2fc8] sm:$0xff]
    %v1726 = vld [vmem:[#allocation5 + $0x2fd0] sm:$0xff]
    %v1727 = vld [vmem:[#allocation5 + $0x2fd8] sm:$0xff]
    %v1728 = vld [vmem:[#allocation5 + $0x2fe0] sm:$0xff]
    %v1729 = vld [vmem:[#allocation5 + $0x2fe8] sm:$0xff]
    %v1730 = vld [vmem:[#allocation5 + $0x2ff0] sm:$0xff]
    %v1731 = vld [vmem:[#allocation5 + $0x2ff8] sm:$0xff]
    %v1732 = vld [vmem:[#allocation5 + $0x3000] sm:$0xff]
    %v1733 = vld [vmem:[#allocation5 + $0x3008] sm:$0xff]
    %v1734 = vld [vmem:[#allocation5 + $0x3010] sm:$0xff]
    %v1735 = vld [vmem:[#allocation5 + $0x3018] sm:$0xff]
    %v1736 = vld [vmem:[#allocation5 + $0x3020] sm:$0xff]
    %v1737 = vld [vmem:[#allocation5 + $0x3028] sm:$0xff]
    %v1738 = vld [vmem:[#allocation5 + $0x3030] sm:$0xff]
    %v1739 = vld [vmem:[#allocation5 + $0x3038] sm:$0xff]
    %v1740 = vld [vmem:[#allocation5 + $0x3040] sm:$0xff]
    %v1741 = vld [vmem:[#allocation5 + $0x3048] sm:$0xff]
    %v1742 = vld [vmem:[#allocation5 + $0x3050] sm:$0xff]
    %v1743 = vld [vmem:[#allocation5 + $0x3058] sm:$0xff]
    %v1744 = vld [vmem:[#allocation5 + $0x3060] sm:$0xff]
    %v1745 = vld [vmem:[#allocation5 + $0x3068] sm:$0xff]
    %v1746 = vld [vmem:[#allocation5 + $0x3070] sm:$0xff]
    %v1747 = vld [vmem:[#allocation5 + $0x3078] sm:$0xff]
    %v1748 = vld [vmem:[#allocation5 + $0x3080] sm:$0xff]
    %v1749 = vld [vmem:[#allocation5 + $0x3088] sm:$0xff]
    %v1750 = vld [vmem:[#allocation5 + $0x3090] sm:$0xff]
    %v1751 = vld [vmem:[#allocation5 + $0x3098] sm:$0xff]
    %v1752 = vld [vmem:[#allocation5 + $0x30a0] sm:$0xff]
    %v1753 = vld [vmem:[#allocation5 + $0x30a8] sm:$0xff]
    %v1754 = vld [vmem:[#allocation5 + $0x30b0] sm:$0xff]
    %v1755 = vld [vmem:[#allocation5 + $0x30b8] sm:$0xff]
    %v1756 = vld [vmem:[#allocation5 + $0x30c0] sm:$0xff]
    %v1757 = vld [vmem:[#allocation5 + $0x30c8] sm:$0xff]
    %v1758 = vld [vmem:[#allocation5 + $0x30d0] sm:$0xff]
    %v1759 = vld [vmem:[#allocation5 + $0x30d8] sm:$0xff]
    %v1760 = vld [vmem:[#allocation5 + $0x30e0] sm:$0xff]
    %v1761 = vld [vmem:[#allocation5 + $0x30e8] sm:$0xff]
    %v1762 = vld [vmem:[#allocation5 + $0x30f0] sm:$0xff]
    %v1763 = vld [vmem:[#allocation5 + $0x30f8] sm:$0xff]
    %v1764 = vld [vmem:[#allocation5 + $0x3100] sm:$0xff]
    %v1765 = vld [vmem:[#allocation5 + $0x3108] sm:$0xff]
    %v1766 = vld [vmem:[#allocation5 + $0x3110] sm:$0xff]
    %v1767 = vld [vmem:[#allocation5 + $0x3118] sm:$0xff]
    %v1768 = vld [vmem:[#allocation5 + $0x3120] sm:$0xff]
    %v1769 = vld [vmem:[#allocation5 + $0x3128] sm:$0xff]
    %v1770 = vld [vmem:[#allocation5 + $0x3130] sm:$0xff]
    %v1771 = vld [vmem:[#allocation5 + $0x3138] sm:$0xff]
    %v1772 = vld [vmem:[#allocation5 + $0x3140] sm:$0xff]
    %v1773 = vld [vmem:[#allocation5 + $0x3148] sm:$0xff]
    %v1774 = vld [vmem:[#allocation5 + $0x3150] sm:$0xff]
    %v1775 = vld [vmem:[#allocation5 + $0x3158] sm:$0xff]
    %v1776 = vld [vmem:[#allocation5 + $0x3160] sm:$0xff]
    %v1777 = vld [vmem:[#allocation5 + $0x3168] sm:$0xff]
    %v1778 = vld [vmem:[#allocation5 + $0x3170] sm:$0xff]
    %v1779 = vld [vmem:[#allocation5 + $0x3178] sm:$0xff]
    %v1780 = vld [vmem:[#allocation5 + $0x3180] sm:$0xff]
    %v1781 = vld [vmem:[#allocation5 + $0x3188] sm:$0xff]
    %v1782 = vld [vmem:[#allocation5 + $0x3190] sm:$0xff]
    %v1783 = vld [vmem:[#allocation5 + $0x3198] sm:$0xff]
    %v1784 = vld [vmem:[#allocation5 + $0x31a0] sm:$0xff]
    %v1785 = vld [vmem:[#allocation5 + $0x31a8] sm:$0xff]
    %v1786 = vld [vmem:[#allocation5 + $0x31b0] sm:$0xff]
    %v1787 = vld [vmem:[#allocation5 + $0x31b8] sm:$0xff]
    %v1788 = vld [vmem:[#allocation5 + $0x31c0] sm:$0xff]
    %v1789 = vld [vmem:[#allocation5 + $0x31c8] sm:$0xff]
    %v1790 = vld [vmem:[#allocation5 + $0x31d0] sm:$0xff]
    %v1791 = vld [vmem:[#allocation5 + $0x31d8] sm:$0xff]
    %v1792 = vld [vmem:[#allocation5 + $0x31e0] sm:$0xff]
    %v1793 = vld [vmem:[#allocation5 + $0x31e8] sm:$0xff]
    %v1794 = vld [vmem:[#allocation5 + $0x31f0] sm:$0xff]
    %v1795 = vld [vmem:[#allocation5 + $0x31f8] sm:$0xff]
    %v1796 = vld [vmem:[#allocation5 + $0x3200] sm:$0xff]
    %v1797 = vld [vmem:[#allocation5 + $0x3208] sm:$0xff]
    %v1798 = vld [vmem:[#allocation5 + $0x3210] sm:$0xff]
    %v1799 = vld [vmem:[#allocation5 + $0x3218] sm:$0xff]
    %v1800 = vld [vmem:[#allocation5 + $0x3220] sm:$0xff]
    %v1801 = vld [vmem:[#allocation5 + $0x3228] sm:$0xff]
    %v1802 = vld [vmem:[#allocation5 + $0x3230] sm:$0xff]
    %v1803 = vld [vmem:[#allocation5 + $0x3238] sm:$0xff]
    %v1804 = vld [vmem:[#allocation5 + $0x3240] sm:$0xff]
    %v1805 = vld [vmem:[#allocation5 + $0x3248] sm:$0xff]
    %v1806 = vld [vmem:[#allocation5 + $0x3250] sm:$0xff]
    %v1807 = vld [vmem:[#allocation5 + $0x3258] sm:$0xff]
    %v1808 = vld [vmem:[#allocation5 + $0x3260] sm:$0xff]
    %v1809 = vld [vmem:[#allocation5 + $0x3268] sm:$0xff]
    %v1810 = vld [vmem:[#allocation5 + $0x3270] sm:$0xff]
    %v1811 = vld [vmem:[#allocation5 + $0x3278] sm:$0xff]
    %v1812 = vld [vmem:[#allocation5 + $0x3280] sm:$0xff]
    %v1813 = vld [vmem:[#allocation5 + $0x3288] sm:$0xff]
    %v1814 = vld [vmem:[#allocation5 + $0x3290] sm:$0xff]
    %v1815 = vld [vmem:[#allocation5 + $0x3298] sm:$0xff]
    %v1816 = vld [vmem:[#allocation5 + $0x32a0] sm:$0xff]
    %v1817 = vld [vmem:[#allocation5 + $0x32a8] sm:$0xff]
    %v1818 = vld [vmem:[#allocation5 + $0x32b0] sm:$0xff]
    %v1819 = vld [vmem:[#allocation5 + $0x32b8] sm:$0xff]
    %v1820 = vld [vmem:[#allocation5 + $0x32c0] sm:$0xff]
    %v1821 = vld [vmem:[#allocation5 + $0x32c8] sm:$0xff]
    %v1822 = vld [vmem:[#allocation5 + $0x32d0] sm:$0xff]
    %v1823 = vld [vmem:[#allocation5 + $0x32d8] sm:$0xff]
    %v1824 = vld [vmem:[#allocation5 + $0x32e0] sm:$0xff]
    %v1825 = vld [vmem:[#allocation5 + $0x32e8] sm:$0xff]
    %v1826 = vld [vmem:[#allocation5 + $0x32f0] sm:$0xff]
    %v1827 = vld [vmem:[#allocation5 + $0x32f8] sm:$0xff]
    %v1828 = vld [vmem:[#allocation5 + $0x3300] sm:$0xff]
    %v1829 = vld [vmem:[#allocation5 + $0x3308] sm:$0xff]
    %v1830 = vld [vmem:[#allocation5 + $0x3310] sm:$0xff]
    %v1831 = vld [vmem:[#allocation5 + $0x3318] sm:$0xff]
    %v1832 = vld [vmem:[#allocation5 + $0x3320] sm:$0xff]
    %v1833 = vld [vmem:[#allocation5 + $0x3328] sm:$0xff]
    %v1834 = vld [vmem:[#allocation5 + $0x3330] sm:$0xff]
    %v1835 = vld [vmem:[#allocation5 + $0x3338] sm:$0xff]
    %v1836 = vld [vmem:[#allocation5 + $0x3340] sm:$0xff]
    %v1837 = vld [vmem:[#allocation5 + $0x3348] sm:$0xff]
    %v1838 = vld [vmem:[#allocation5 + $0x3350] sm:$0xff]
    %v1839 = vld [vmem:[#allocation5 + $0x3358] sm:$0xff]
    %v1840 = vld [vmem:[#allocation5 + $0x3360] sm:$0xff]
    %v1841 = vld [vmem:[#allocation5 + $0x3368] sm:$0xff]
    %v1842 = vld [vmem:[#allocation5 + $0x3370] sm:$0xff]
    %v1843 = vld [vmem:[#allocation5 + $0x3378] sm:$0xff]
    %v1844 = vld [vmem:[#allocation5 + $0x3380] sm:$0xff]
    %v1845 = vld [vmem:[#allocation5 + $0x3388] sm:$0xff]
    %v1846 = vld [vmem:[#allocation5 + $0x3390] sm:$0xff]
    %v1847 = vld [vmem:[#allocation5 + $0x3398] sm:$0xff]
    %v1848 = vld [vmem:[#allocation5 + $0x33a0] sm:$0xff]
    %v1849 = vld [vmem:[#allocation5 + $0x33a8] sm:$0xff]
    %v1850 = vld [vmem:[#allocation5 + $0x33b0] sm:$0xff]
    %v1851 = vld [vmem:[#allocation5 + $0x33b8] sm:$0xff]
    %v1852 = vld [vmem:[#allocation5 + $0x33c0] sm:$0xff]
    %v1853 = vld [vmem:[#allocation5 + $0x33c8] sm:$0xff]
    %v1854 = vld [vmem:[#allocation5 + $0x33d0] sm:$0xff]
    %v1855 = vld [vmem:[#allocation5 + $0x33d8] sm:$0xff]
    %v1856 = vld [vmem:[#allocation5 + $0x33e0] sm:$0xff]
    %v1857 = vld [vmem:[#allocation5 + $0x33e8] sm:$0xff]
    %v1858 = vld [vmem:[#allocation5 + $0x33f0] sm:$0xff]
    %v1859 = vld [vmem:[#allocation5 + $0x33f8] sm:$0xff]
    %v1860 = vld [vmem:[#allocation5 + $0x3400] sm:$0xff]
    %v1861 = vld [vmem:[#allocation5 + $0x3408] sm:$0xff]
    %v1862 = vld [vmem:[#allocation5 + $0x3410] sm:$0xff]
    %v1863 = vld [vmem:[#allocation5 + $0x3418] sm:$0xff]
    %v1864 = vld [vmem:[#allocation5 + $0x3420] sm:$0xff]
    %v1865 = vld [vmem:[#allocation5 + $0x3428] sm:$0xff]
    %v1866 = vld [vmem:[#allocation5 + $0x3430] sm:$0xff]
    %v1867 = vld [vmem:[#allocation5 + $0x3438] sm:$0xff]
    %v1868 = vld [vmem:[#allocation5 + $0x3440] sm:$0xff]
    %v1869 = vld [vmem:[#allocation5 + $0x3448] sm:$0xff]
    %v1870 = vld [vmem:[#allocation5 + $0x3450] sm:$0xff]
    %v1871 = vld [vmem:[#allocation5 + $0x3458] sm:$0xff]
    %v1872 = vld [vmem:[#allocation5 + $0x3460] sm:$0xff]
    %v1873 = vld [vmem:[#allocation5 + $0x3468] sm:$0xff]
    %v1874 = vld [vmem:[#allocation5 + $0x3470] sm:$0xff]
    %v1875 = vld [vmem:[#allocation5 + $0x3478] sm:$0xff]
    %v1876 = vld [vmem:[#allocation5 + $0x3480] sm:$0xff]
    %v1877 = vld [vmem:[#allocation5 + $0x3488] sm:$0xff]
    %v1878 = vld [vmem:[#allocation5 + $0x3490] sm:$0xff]
    %v1879 = vld [vmem:[#allocation5 + $0x3498] sm:$0xff]
    %v1880 = vld [vmem:[#allocation5 + $0x34a0] sm:$0xff]
    %v1881 = vld [vmem:[#allocation5 + $0x34a8] sm:$0xff]
    %v1882 = vld [vmem:[#allocation5 + $0x34b0] sm:$0xff]
    %v1883 = vld [vmem:[#allocation5 + $0x34b8] sm:$0xff]
    %v1884 = vld [vmem:[#allocation5 + $0x34c0] sm:$0xff]
    %v1885 = vld [vmem:[#allocation5 + $0x34c8] sm:$0xff]
    %v1886 = vld [vmem:[#allocation5 + $0x34d0] sm:$0xff]
    %v1887 = vld [vmem:[#allocation5 + $0x34d8] sm:$0xff]
    %v1888 = vld [vmem:[#allocation5 + $0x34e0] sm:$0xff]
    %v1889 = vld [vmem:[#allocation5 + $0x34e8] sm:$0xff]
    %v1890 = vld [vmem:[#allocation5 + $0x34f0] sm:$0xff]
    %v1891 = vld [vmem:[#allocation5 + $0x34f8] sm:$0xff]
    %v1892 = vld [vmem:[#allocation5 + $0x3500] sm:$0xff]
    %v1893 = vld [vmem:[#allocation5 + $0x3508] sm:$0xff]
    %v1894 = vld [vmem:[#allocation5 + $0x3510] sm:$0xff]
    %v1895 = vld [vmem:[#allocation5 + $0x3518] sm:$0xff]
    %v1896 = vld [vmem:[#allocation5 + $0x3520] sm:$0xff]
    %v1897 = vld [vmem:[#allocation5 + $0x3528] sm:$0xff]
    %v1898 = vld [vmem:[#allocation5 + $0x3530] sm:$0xff]
    %v1899 = vld [vmem:[#allocation5 + $0x3538] sm:$0xff]
    %v1900 = vld [vmem:[#allocation5 + $0x3540] sm:$0xff]
    %v1901 = vld [vmem:[#allocation5 + $0x3548] sm:$0xff]
    %v1902 = vld [vmem:[#allocation5 + $0x3550] sm:$0xff]
    %v1903 = vld [vmem:[#allocation5 + $0x3558] sm:$0xff]
    %v1904 = vld [vmem:[#allocation5 + $0x3560] sm:$0xff]
    %v1905 = vld [vmem:[#allocation5 + $0x3568] sm:$0xff]
    %v1906 = vld [vmem:[#allocation5 + $0x3570] sm:$0xff]
    %v1907 = vld [vmem:[#allocation5 + $0x3578] sm:$0xff]
    %v1908 = vld [vmem:[#allocation5 + $0x3580] sm:$0xff]
    %v1909 = vld [vmem:[#allocation5 + $0x3588] sm:$0xff]
    %v1910 = vld [vmem:[#allocation5 + $0x3590] sm:$0xff]
    %v1911 = vld [vmem:[#allocation5 + $0x3598] sm:$0xff]
    %v1912 = vld [vmem:[#allocation5 + $0x35a0] sm:$0xff]
    %v1913 = vld [vmem:[#allocation5 + $0x35a8] sm:$0xff]
    %v1914 = vld [vmem:[#allocation5 + $0x35b0] sm:$0xff]
    %v1915 = vld [vmem:[#allocation5 + $0x35b8] sm:$0xff]
    %v1916 = vld [vmem:[#allocation5 + $0x35c0] sm:$0xff]
    %v1917 = vld [vmem:[#allocation5 + $0x35c8] sm:$0xff]
    %v1918 = vld [vmem:[#allocation5 + $0x35d0] sm:$0xff]
    %v1919 = vld [vmem:[#allocation5 + $0x35d8] sm:$0xff]
    %v1920 = vld [vmem:[#allocation5 + $0x35e0] sm:$0xff]
    %v1921 = vld [vmem:[#allocation5 + $0x35e8] sm:$0xff]
    %v1922 = vld [vmem:[#allocation5 + $0x35f0] sm:$0xff]
    %v1923 = vld [vmem:[#allocation5 + $0x35f8] sm:$0xff]
    %v1924 = vld [vmem:[#allocation5 + $0x3600] sm:$0xff]
    %v1925 = vld [vmem:[#allocation5 + $0x3608] sm:$0xff]
    %v1926 = vld [vmem:[#allocation5 + $0x3610] sm:$0xff]
    %v1927 = vld [vmem:[#allocation5 + $0x3618] sm:$0xff]
    %v1928 = vld [vmem:[#allocation5 + $0x3620] sm:$0xff]
    %v1929 = vld [vmem:[#allocation5 + $0x3628] sm:$0xff]
    %v1930 = vld [vmem:[#allocation5 + $0x3630] sm:$0xff]
    %v1931 = vld [vmem:[#allocation5 + $0x3638] sm:$0xff]
    %v1932 = vld [vmem:[#allocation5 + $0x3640] sm:$0xff]
    %v1933 = vld [vmem:[#allocation5 + $0x3648] sm:$0xff]
    %v1934 = vld [vmem:[#allocation5 + $0x3650] sm:$0xff]
    %v1935 = vld [vmem:[#allocation5 + $0x3658] sm:$0xff]
    %v1936 = vld [vmem:[#allocation5 + $0x3660] sm:$0xff]
    %v1937 = vld [vmem:[#allocation5 + $0x3668] sm:$0xff]
    %v1938 = vld [vmem:[#allocation5 + $0x3670] sm:$0xff]
    %v1939 = vld [vmem:[#allocation5 + $0x3678] sm:$0xff]
    %v1940 = vld [vmem:[#allocation5 + $0x3680] sm:$0xff]
    %v1941 = vld [vmem:[#allocation5 + $0x3688] sm:$0xff]
    %v1942 = vld [vmem:[#allocation5 + $0x3690] sm:$0xff]
    %v1943 = vld [vmem:[#allocation5 + $0x3698] sm:$0xff]
    %v1944 = vld [vmem:[#allocation5 + $0x36a0] sm:$0xff]
    %v1945 = vld [vmem:[#allocation5 + $0x36a8] sm:$0xff]
    %v1946 = vld [vmem:[#allocation5 + $0x36b0] sm:$0xff]
    %v1947 = vld [vmem:[#allocation5 + $0x36b8] sm:$0xff]
    %v1948 = vld [vmem:[#allocation5 + $0x36c0] sm:$0xff]
    %v1949 = vld [vmem:[#allocation5 + $0x36c8] sm:$0xff]
    %v1950 = vld [vmem:[#allocation5 + $0x36d0] sm:$0xff]
    %v1951 = vld [vmem:[#allocation5 + $0x36d8] sm:$0xff]
    %v1952 = vld [vmem:[#allocation5 + $0x36e0] sm:$0xff]
    %v1953 = vld [vmem:[#allocation5 + $0x36e8] sm:$0xff]
    %v1954 = vld [vmem:[#allocation5 + $0x36f0] sm:$0xff]
    %v1955 = vld [vmem:[#allocation5 + $0x36f8] sm:$0xff]
    %v1956 = vld [vmem:[#allocation5 + $0x3700] sm:$0xff]
    %v1957 = vld [vmem:[#allocation5 + $0x3708] sm:$0xff]
    %v1958 = vld [vmem:[#allocation5 + $0x3710] sm:$0xff]
    %v1959 = vld [vmem:[#allocation5 + $0x3718] sm:$0xff]
    %v1960 = vld [vmem:[#allocation5 + $0x3720] sm:$0xff]
    %v1961 = vld [vmem:[#allocation5 + $0x3728] sm:$0xff]
    %v1962 = vld [vmem:[#allocation5 + $0x3730] sm:$0xff]
    %v1963 = vld [vmem:[#allocation5 + $0x3738] sm:$0xff]
    %v1964 = vld [vmem:[#allocation5 + $0x3740] sm:$0xff]
    %v1965 = vld [vmem:[#allocation5 + $0x3748] sm:$0xff]
    %v1966 = vld [vmem:[#allocation5 + $0x3750] sm:$0xff]
    %v1967 = vld [vmem:[#allocation5 + $0x3758] sm:$0xff]
    %v1968 = vld [vmem:[#allocation5 + $0x3760] sm:$0xff]
    %v1969 = vld [vmem:[#allocation5 + $0x3768] sm:$0xff]
    %v1970 = vld [vmem:[#allocation5 + $0x3770] sm:$0xff]
    %v1971 = vld [vmem:[#allocation5 + $0x3778] sm:$0xff]
    %v1972 = vld [vmem:[#allocation5 + $0x3780] sm:$0xff]
    %v1973 = vld [vmem:[#allocation5 + $0x3788] sm:$0xff]
    %v1974 = vld [vmem:[#allocation5 + $0x3790] sm:$0xff]
    %v1975 = vld [vmem:[#allocation5 + $0x3798] sm:$0xff]
    %v1976 = vld [vmem:[#allocation5 + $0x37a0] sm:$0xff]
    %v1977 = vld [vmem:[#allocation5 + $0x37a8] sm:$0xff]
    %v1978 = vld [vmem:[#allocation5 + $0x37b0] sm:$0xff]
    %v1979 = vld [vmem:[#allocation5 + $0x37b8] sm:$0xff]
    %v1980 = vld [vmem:[#allocation5 + $0x37c0] sm:$0xff]
    %v1981 = vld [vmem:[#allocation5 + $0x37c8] sm:$0xff]
    %v1982 = vld [vmem:[#allocation5 + $0x37d0] sm:$0xff]
    %v1983 = vld [vmem:[#allocation5 + $0x37d8] sm:$0xff]
    %v1984 = vld [vmem:[#allocation5 + $0x37e0] sm:$0xff]
    %v1985 = vld [vmem:[#allocation5 + $0x37e8] sm:$0xff]
    %v1986 = vld [vmem:[#allocation5 + $0x37f0] sm:$0xff]
    %v1987 = vld [vmem:[#allocation5 + $0x37f8] sm:$0xff]
    %v1988 = vld [vmem:[#allocation5 + $0x3800] sm:$0xff]
    %v1989 = vld [vmem:[#allocation5 + $0x3808] sm:$0xff]
    %v1990 = vld [vmem:[#allocation5 + $0x3810] sm:$0xff]
    %v1991 = vld [vmem:[#allocation5 + $0x3818] sm:$0xff]
    %v1992 = vld [vmem:[#allocation5 + $0x3820] sm:$0xff]
    %v1993 = vld [vmem:[#allocation5 + $0x3828] sm:$0xff]
    %v1994 = vld [vmem:[#allocation5 + $0x3830] sm:$0xff]
    %v1995 = vld [vmem:[#allocation5 + $0x3838] sm:$0xff]
    %v1996 = vld [vmem:[#allocation5 + $0x3840] sm:$0xff]
    %v1997 = vld [vmem:[#allocation5 + $0x3848] sm:$0xff]
    %v1998 = vld [vmem:[#allocation5 + $0x3850] sm:$0xff]
    %v1999 = vld [vmem:[#allocation5 + $0x3858] sm:$0xff]
    %v2000 = vld [vmem:[#allocation5 + $0x3860] sm:$0xff]
    %v2001 = vld [vmem:[#allocation5 + $0x3868] sm:$0xff]
    %v2002 = vld [vmem:[#allocation5 + $0x3870] sm:$0xff]
    %v2003 = vld [vmem:[#allocation5 + $0x3878] sm:$0xff]
    %v2004 = vld [vmem:[#allocation5 + $0x3880] sm:$0xff]
    %v2005 = vld [vmem:[#allocation5 + $0x3888] sm:$0xff]
    %v2006 = vld [vmem:[#allocation5 + $0x3890] sm:$0xff]
    %v2007 = vld [vmem:[#allocation5 + $0x3898] sm:$0xff]
    %v2008 = vld [vmem:[#allocation5 + $0x38a0] sm:$0xff]
    %v2009 = vld [vmem:[#allocation5 + $0x38a8] sm:$0xff]
    %v2010 = vld [vmem:[#allocation5 + $0x38b0] sm:$0xff]
    %v2011 = vld [vmem:[#allocation5 + $0x38b8] sm:$0xff]
    %v2012 = vld [vmem:[#allocation5 + $0x38c0] sm:$0xff]
    %v2013 = vld [vmem:[#allocation5 + $0x38c8] sm:$0xff]
    %v2014 = vld [vmem:[#allocation5 + $0x38d0] sm:$0xff]
    %v2015 = vld [vmem:[#allocation5 + $0x38d8] sm:$0xff]
    %v2016 = vld [vmem:[#allocation5 + $0x38e0] sm:$0xff]
    %v2017 = vld [vmem:[#allocation5 + $0x38e8] sm:$0xff]
    %v2018 = vld [vmem:[#allocation5 + $0x38f0] sm:$0xff]
    %v2019 = vld [vmem:[#allocation5 + $0x38f8] sm:$0xff]
    %v2020 = vld [vmem:[#allocation5 + $0x3900] sm:$0xff]
    %v2021 = vld [vmem:[#allocation5 + $0x3908] sm:$0xff]
    %v2022 = vld [vmem:[#allocation5 + $0x3910] sm:$0xff]
    %v2023 = vld [vmem:[#allocation5 + $0x3918] sm:$0xff]
    %v2024 = vld [vmem:[#allocation5 + $0x3920] sm:$0xff]
    %v2025 = vld [vmem:[#allocation5 + $0x3928] sm:$0xff]
    %v2026 = vld [vmem:[#allocation5 + $0x3930] sm:$0xff]
    %v2027 = vld [vmem:[#allocation5 + $0x3938] sm:$0xff]
    %v2028 = vld [vmem:[#allocation5 + $0x3940] sm:$0xff]
    %v2029 = vld [vmem:[#allocation5 + $0x3948] sm:$0xff]
    %v2030 = vld [vmem:[#allocation5 + $0x3950] sm:$0xff]
    %v2031 = vld [vmem:[#allocation5 + $0x3958] sm:$0xff]
    %v2032 = vld [vmem:[#allocation5 + $0x3960] sm:$0xff]
    %v2033 = vld [vmem:[#allocation5 + $0x3968] sm:$0xff]
    %v2034 = vld [vmem:[#allocation5 + $0x3970] sm:$0xff]
    %v2035 = vld [vmem:[#allocation5 + $0x3978] sm:$0xff]
    %v2036 = vld [vmem:[#allocation5 + $0x3980] sm:$0xff]
    %v2037 = vld [vmem:[#allocation5 + $0x3988] sm:$0xff]
    %v2038 = vld [vmem:[#allocation5 + $0x3990] sm:$0xff]
    %v2039 = vld [vmem:[#allocation5 + $0x3998] sm:$0xff]
    %v2040 = vld [vmem:[#allocation5 + $0x39a0] sm:$0xff]
    %v2041 = vld [vmem:[#allocation5 + $0x39a8] sm:$0xff]
    %v2042 = vld [vmem:[#allocation5 + $0x39b0] sm:$0xff]
    %v2043 = vld [vmem:[#allocation5 + $0x39b8] sm:$0xff]
    %v2044 = vld [vmem:[#allocation5 + $0x39c0] sm:$0xff]
    %v2045 = vld [vmem:[#allocation5 + $0x39c8] sm:$0xff]
    %v2046 = vld [vmem:[#allocation5 + $0x39d0] sm:$0xff]
    %v2047 = vld [vmem:[#allocation5 + $0x39d8] sm:$0xff]
    %v2048 = vld [vmem:[#allocation5 + $0x39e0] sm:$0xff]
    %v2049 = vld [vmem:[#allocation5 + $0x39e8] sm:$0xff]
    %v2050 = vld [vmem:[#allocation5 + $0x39f0] sm:$0xff]
    %v2051 = vld [vmem:[#allocation5 + $0x39f8] sm:$0xff]
    %v2052 = vld [vmem:[#allocation5 + $0x3a00] sm:$0xff]
    %v2053 = vld [vmem:[#allocation5 + $0x3a08] sm:$0xff]
    %v2054 = vld [vmem:[#allocation5 + $0x3a10] sm:$0xff]
    %v2055 = vld [vmem:[#allocation5 + $0x3a18] sm:$0xff]
    %v2056 = vld [vmem:[#allocation5 + $0x3a20] sm:$0xff]
    %v2057 = vld [vmem:[#allocation5 + $0x3a28] sm:$0xff]
    %v2058 = vld [vmem:[#allocation5 + $0x3a30] sm:$0xff]
    %v2059 = vld [vmem:[#allocation5 + $0x3a38] sm:$0xff]
    %v2060 = vld [vmem:[#allocation5 + $0x3a40] sm:$0xff]
    %v2061 = vld [vmem:[#allocation5 + $0x3a48] sm:$0xff]
    %v2062 = vld [vmem:[#allocation5 + $0x3a50] sm:$0xff]
    %v2063 = vld [vmem:[#allocation5 + $0x3a58] sm:$0xff]
    %v2064 = vld [vmem:[#allocation5 + $0x3a60] sm:$0xff]
    %v2065 = vld [vmem:[#allocation5 + $0x3a68] sm:$0xff]
    %v2066 = vld [vmem:[#allocation5 + $0x3a70] sm:$0xff]
    %v2067 = vld [vmem:[#allocation5 + $0x3a78] sm:$0xff]
    %v2068 = vld [vmem:[#allocation5 + $0x3a80] sm:$0xff]
    %v2069 = vld [vmem:[#allocation5 + $0x3a88] sm:$0xff]
    %v2070 = vld [vmem:[#allocation5 + $0x3a90] sm:$0xff]
    %v2071 = vld [vmem:[#allocation5 + $0x3a98] sm:$0xff]
    %v2072 = vld [vmem:[#allocation5 + $0x3aa0] sm:$0xff]
    %v2073 = vld [vmem:[#allocation5 + $0x3aa8] sm:$0xff]
    %v2074 = vld [vmem:[#allocation5 + $0x3ab0] sm:$0xff]
    %v2075 = vld [vmem:[#allocation5 + $0x3ab8] sm:$0xff]
    %v2076 = vld [vmem:[#allocation5 + $0x3ac0] sm:$0xff]
    %v2077 = vld [vmem:[#allocation5 + $0x3ac8] sm:$0xff]
    %v2078 = vld [vmem:[#allocation5 + $0x3ad0] sm:$0xff]
    %v2079 = vld [vmem:[#allocation5 + $0x3ad8] sm:$0xff]
    %v2080 = vld [vmem:[#allocation5 + $0x3ae0] sm:$0xff]
    %v2081 = vld [vmem:[#allocation5 + $0x3ae8] sm:$0xff]
    %v2082 = vld [vmem:[#allocation5 + $0x3af0] sm:$0xff]
    %v2083 = vld [vmem:[#allocation5 + $0x3af8] sm:$0xff]
    %v2084 = vld [vmem:[#allocation5 + $0x3b00] sm:$0xff]
    %v2085 = vld [vmem:[#allocation5 + $0x3b08] sm:$0xff]
    %v2086 = vld [vmem:[#allocation5 + $0x3b10] sm:$0xff]
    %v2087 = vld [vmem:[#allocation5 + $0x3b18] sm:$0xff]
    %v2088 = vld [vmem:[#allocation5 + $0x3b20] sm:$0xff]
    %v2089 = vld [vmem:[#allocation5 + $0x3b28] sm:$0xff]
    %v2090 = vld [vmem:[#allocation5 + $0x3b30] sm:$0xff]
    %v2091 = vld [vmem:[#allocation5 + $0x3b38] sm:$0xff]
    %v2092 = vld [vmem:[#allocation5 + $0x3b40] sm:$0xff]
    %v2093 = vld [vmem:[#allocation5 + $0x3b48] sm:$0xff]
    %v2094 = vld [vmem:[#allocation5 + $0x3b50] sm:$0xff]
    %v2095 = vld [vmem:[#allocation5 + $0x3b58] sm:$0xff]
    %v2096 = vld [vmem:[#allocation5 + $0x3b60] sm:$0xff]
    %v2097 = vld [vmem:[#allocation5 + $0x3b68] sm:$0xff]
    %v2098 = vld [vmem:[#allocation5 + $0x3b70] sm:$0xff]
    %v2099 = vld [vmem:[#allocation5 + $0x3b78] sm:$0xff]
    %v2100 = vld [vmem:[#allocation5 + $0x3b80] sm:$0xff]
    %v2101 = vld [vmem:[#allocation5 + $0x3b88] sm:$0xff]
    %v2102 = vld [vmem:[#allocation5 + $0x3b90] sm:$0xff]
    %v2103 = vld [vmem:[#allocation5 + $0x3b98] sm:$0xff]
    %v2104 = vld [vmem:[#allocation5 + $0x3ba0] sm:$0xff]
    %v2105 = vld [vmem:[#allocation5 + $0x3ba8] sm:$0xff]
    %v2106 = vld [vmem:[#allocation5 + $0x3bb0] sm:$0xff]
    %v2107 = vld [vmem:[#allocation5 + $0x3bb8] sm:$0xff]
    %v2108 = vld [vmem:[#allocation5 + $0x3bc0] sm:$0xff]
    %v2109 = vld [vmem:[#allocation5 + $0x3bc8] sm:$0xff]
    %v2110 = vld [vmem:[#allocation5 + $0x3bd0] sm:$0xff]
    %v2111 = vld [vmem:[#allocation5 + $0x3bd8] sm:$0xff]
    %v2112 = vld [vmem:[#allocation5 + $0x3be0] sm:$0xff]
    %v2113 = vld [vmem:[#allocation5 + $0x3be8] sm:$0xff]
    %v2114 = vld [vmem:[#allocation5 + $0x3bf0] sm:$0xff]
    %v2115 = vld [vmem:[#allocation5 + $0x3bf8] sm:$0xff]
    %v2116 = vld [vmem:[#allocation5 + $0x3c00] sm:$0xff]
    %v2117 = vld [vmem:[#allocation5 + $0x3c08] sm:$0xff]
    %v2118 = vld [vmem:[#allocation5 + $0x3c10] sm:$0xff]
    %v2119 = vld [vmem:[#allocation5 + $0x3c18] sm:$0xff]
    %v2120 = vld [vmem:[#allocation5 + $0x3c20] sm:$0xff]
    %v2121 = vld [vmem:[#allocation5 + $0x3c28] sm:$0xff]
    %v2122 = vld [vmem:[#allocation5 + $0x3c30] sm:$0xff]
    %v2123 = vld [vmem:[#allocation5 + $0x3c38] sm:$0xff]
    %v2124 = vld [vmem:[#allocation5 + $0x3c40] sm:$0xff]
    %v2125 = vld [vmem:[#allocation5 + $0x3c48] sm:$0xff]
    %v2126 = vld [vmem:[#allocation5 + $0x3c50] sm:$0xff]
    %v2127 = vld [vmem:[#allocation5 + $0x3c58] sm:$0xff]
    %v2128 = vld [vmem:[#allocation5 + $0x3c60] sm:$0xff]
    %v2129 = vld [vmem:[#allocation5 + $0x3c68] sm:$0xff]
    %v2130 = vld [vmem:[#allocation5 + $0x3c70] sm:$0xff]
    %v2131 = vld [vmem:[#allocation5 + $0x3c78] sm:$0xff]
    %v2132 = vld [vmem:[#allocation5 + $0x3c80] sm:$0xff]
    %v2133 = vld [vmem:[#allocation5 + $0x3c88] sm:$0xff]
    %v2134 = vld [vmem:[#allocation5 + $0x3c90] sm:$0xff]
    %v2135 = vld [vmem:[#allocation5 + $0x3c98] sm:$0xff]
    %v2136 = vld [vmem:[#allocation5 + $0x3ca0] sm:$0xff]
    %v2137 = vld [vmem:[#allocation5 + $0x3ca8] sm:$0xff]
    %v2138 = vld [vmem:[#allocation5 + $0x3cb0] sm:$0xff]
    %v2139 = vld [vmem:[#allocation5 + $0x3cb8] sm:$0xff]
    %v2140 = vld [vmem:[#allocation5 + $0x3cc0] sm:$0xff]
    %v2141 = vld [vmem:[#allocation5 + $0x3cc8] sm:$0xff]
    %v2142 = vld [vmem:[#allocation5 + $0x3cd0] sm:$0xff]
    %v2143 = vld [vmem:[#allocation5 + $0x3cd8] sm:$0xff]
    %v2144 = vld [vmem:[#allocation5 + $0x3ce0] sm:$0xff]
    %v2145 = vld [vmem:[#allocation5 + $0x3ce8] sm:$0xff]
    %v2146 = vld [vmem:[#allocation5 + $0x3cf0] sm:$0xff]
    %v2147 = vld [vmem:[#allocation5 + $0x3cf8] sm:$0xff]
    %v2148 = vld [vmem:[#allocation5 + $0x3d00] sm:$0xff]
    %v2149 = vld [vmem:[#allocation5 + $0x3d08] sm:$0xff]
    %v2150 = vld [vmem:[#allocation5 + $0x3d10] sm:$0xff]
    %v2151 = vld [vmem:[#allocation5 + $0x3d18] sm:$0xff]
    %v2152 = vld [vmem:[#allocation5 + $0x3d20] sm:$0xff]
    %v2153 = vld [vmem:[#allocation5 + $0x3d28] sm:$0xff]
    %v2154 = vld [vmem:[#allocation5 + $0x3d30] sm:$0xff]
    %v2155 = vld [vmem:[#allocation5 + $0x3d38] sm:$0xff]
    %v2156 = vld [vmem:[#allocation5 + $0x3d40] sm:$0xff]
    %v2157 = vld [vmem:[#allocation5 + $0x3d48] sm:$0xff]
    %v2158 = vld [vmem:[#allocation5 + $0x3d50] sm:$0xff]
    %v2159 = vld [vmem:[#allocation5 + $0x3d58] sm:$0xff]
    %v2160 = vld [vmem:[#allocation5 + $0x3d60] sm:$0xff]
    %v2161 = vld [vmem:[#allocation5 + $0x3d68] sm:$0xff]
    %v2162 = vld [vmem:[#allocation5 + $0x3d70] sm:$0xff]
    %v2163 = vld [vmem:[#allocation5 + $0x3d78] sm:$0xff]
    %v2164 = vld [vmem:[#allocation5 + $0x3d80] sm:$0xff]
    %v2165 = vld [vmem:[#allocation5 + $0x3d88] sm:$0xff]
    %v2166 = vld [vmem:[#allocation5 + $0x3d90] sm:$0xff]
    %v2167 = vld [vmem:[#allocation5 + $0x3d98] sm:$0xff]
    %v2168 = vld [vmem:[#allocation5 + $0x3da0] sm:$0xff]
    %v2169 = vld [vmem:[#allocation5 + $0x3da8] sm:$0xff]
    %v2170 = vld [vmem:[#allocation5 + $0x3db0] sm:$0xff]
    %v2171 = vld [vmem:[#allocation5 + $0x3db8] sm:$0xff]
    %v2172 = vld [vmem:[#allocation5 + $0x3dc0] sm:$0xff]
    %v2173 = vld [vmem:[#allocation5 + $0x3dc8] sm:$0xff]
    %v2174 = vld [vmem:[#allocation5 + $0x3dd0] sm:$0xff]
    %v2175 = vld [vmem:[#allocation5 + $0x3dd8] sm:$0xff]
    %v2176 = vld [vmem:[#allocation5 + $0x3de0] sm:$0xff]
    %v2177 = vld [vmem:[#allocation5 + $0x3de8] sm:$0xff]
    %v2178 = vld [vmem:[#allocation5 + $0x3df0] sm:$0xff]
    %v2179 = vld [vmem:[#allocation5 + $0x3df8] sm:$0xff]
    %v2180 = vld [vmem:[#allocation5 + $0x3e00] sm:$0xff]
    %v2181 = vld [vmem:[#allocation5 + $0x3e08] sm:$0xff]
    %v2182 = vld [vmem:[#allocation5 + $0x3e10] sm:$0xff]
    %v2183 = vld [vmem:[#allocation5 + $0x3e18] sm:$0xff]
    %v2184 = vld [vmem:[#allocation5 + $0x3e20] sm:$0xff]
    %v2185 = vld [vmem:[#allocation5 + $0x3e28] sm:$0xff]
    %v2186 = vld [vmem:[#allocation5 + $0x3e30] sm:$0xff]
    %v2187 = vld [vmem:[#allocation5 + $0x3e38] sm:$0xff]
    %v2188 = vld [vmem:[#allocation5 + $0x3e40] sm:$0xff]
    %v2189 = vld [vmem:[#allocation5 + $0x3e48] sm:$0xff]
    %v2190 = vld [vmem:[#allocation5 + $0x3e50] sm:$0xff]
    %v2191 = vld [vmem:[#allocation5 + $0x3e58] sm:$0xff]
    %v2192 = vld [vmem:[#allocation5 + $0x3e60] sm:$0xff]
    %v2193 = vld [vmem:[#allocation5 + $0x3e68] sm:$0xff]
    %v2194 = vld [vmem:[#allocation5 + $0x3e70] sm:$0xff]
    %v2195 = vld [vmem:[#allocation5 + $0x3e78] sm:$0xff]
    %v2196 = vld [vmem:[#allocation5 + $0x3e80] sm:$0xff]
    %v2197 = vld [vmem:[#allocation5 + $0x3e88] sm:$0xff]
    %v2198 = vld [vmem:[#allocation5 + $0x3e90] sm:$0xff]
    %v2199 = vld [vmem:[#allocation5 + $0x3e98] sm:$0xff]
    %v2200 = vld [vmem:[#allocation5 + $0x3ea0] sm:$0xff]
    %v2201 = vld [vmem:[#allocation5 + $0x3ea8] sm:$0xff]
    %v2202 = vld [vmem:[#allocation5 + $0x3eb0] sm:$0xff]
    %v2203 = vld [vmem:[#allocation5 + $0x3eb8] sm:$0xff]
    %v2204 = vld [vmem:[#allocation5 + $0x3ec0] sm:$0xff]
    %v2205 = vld [vmem:[#allocation5 + $0x3ec8] sm:$0xff]
    %v2206 = vld [vmem:[#allocation5 + $0x3ed0] sm:$0xff]
    %v2207 = vld [vmem:[#allocation5 + $0x3ed8] sm:$0xff]
    %v2208 = vld [vmem:[#allocation5 + $0x3ee0] sm:$0xff]
    %v2209 = vld [vmem:[#allocation5 + $0x3ee8] sm:$0xff]
    %v2210 = vld [vmem:[#allocation5 + $0x3ef0] sm:$0xff]
    %v2211 = vld [vmem:[#allocation5 + $0x3ef8] sm:$0xff]
    %v2212 = vld [vmem:[#allocation5 + $0x3f00] sm:$0xff]
    %v2213 = vld [vmem:[#allocation5 + $0x3f08] sm:$0xff]
    %v2214 = vld [vmem:[#allocation5 + $0x3f10] sm:$0xff]
    %v2215 = vld [vmem:[#allocation5 + $0x3f18] sm:$0xff]
    %v2216 = vld [vmem:[#allocation5 + $0x3f20] sm:$0xff]
    %v2217 = vld [vmem:[#allocation5 + $0x3f28] sm:$0xff]
    %v2218 = vld [vmem:[#allocation5 + $0x3f30] sm:$0xff]
    %v2219 = vld [vmem:[#allocation5 + $0x3f38] sm:$0xff]
    %v2220 = vld [vmem:[#allocation5 + $0x3f40] sm:$0xff]
    %v2221 = vld [vmem:[#allocation5 + $0x3f48] sm:$0xff]
    %v2222 = vld [vmem:[#allocation5 + $0x3f50] sm:$0xff]
    %v2223 = vld [vmem:[#allocation5 + $0x3f58] sm:$0xff]
    %v2224 = vld [vmem:[#allocation5 + $0x3f60] sm:$0xff]
    %v2225 = vld [vmem:[#allocation5 + $0x3f68] sm:$0xff]
    %v2226 = vld [vmem:[#allocation5 + $0x3f70] sm:$0xff]
    %v2227 = vld [vmem:[#allocation5 + $0x3f78] sm:$0xff]
    %v2228 = vld [vmem:[#allocation5 + $0x3f80] sm:$0xff]
    %v2229 = vld [vmem:[#allocation5 + $0x3f88] sm:$0xff]
    %v2230 = vld [vmem:[#allocation5 + $0x3f90] sm:$0xff]
    %v2231 = vld [vmem:[#allocation5 + $0x3f98] sm:$0xff]
    %v2232 = vld [vmem:[#allocation5 + $0x3fa0] sm:$0xff]
    %v2233 = vld [vmem:[#allocation5 + $0x3fa8] sm:$0xff]
    %v2234 = vld [vmem:[#allocation5 + $0x3fb0] sm:$0xff]
    %v2235 = vld [vmem:[#allocation5 + $0x3fb8] sm:$0xff]
    %v2236 = vld [vmem:[#allocation5 + $0x3fc0] sm:$0xff]
    %v2237 = vld [vmem:[#allocation5 + $0x3fc8] sm:$0xff]
    %v2238 = vld [vmem:[#allocation5 + $0x3fd0] sm:$0xff]
    %v2239 = vld [vmem:[#allocation5 + $0x3fd8] sm:$0xff]
    %v2240 = vld [vmem:[#allocation5 + $0x3fe0] sm:$0xff]
    %v2241 = vld [vmem:[#allocation5 + $0x3fe8] sm:$0xff]
    %v2242 = vld [vmem:[#allocation5 + $0x3ff0] sm:$0xff]
    %v2243 = vld [vmem:[#allocation5 + $0x3ff8] sm:$0xff]
    %v2244 = vld [vmem:[#allocation5 + $0x4000] sm:$0xff]
    %v2245 = vld [vmem:[#allocation5 + $0x4008] sm:$0xff]
    %v2246 = vld [vmem:[#allocation5 + $0x4010] sm:$0xff]
    %v2247 = vld [vmem:[#allocation5 + $0x4018] sm:$0xff]
    %v2248 = vld [vmem:[#allocation5 + $0x4020] sm:$0xff]
    %v2249 = vld [vmem:[#allocation5 + $0x4028] sm:$0xff]
    %v2250 = vld [vmem:[#allocation5 + $0x4030] sm:$0xff]
    %v2251 = vld [vmem:[#allocation5 + $0x4038] sm:$0xff]
    %v2252 = vld [vmem:[#allocation5 + $0x4040] sm:$0xff]
    %v2253 = vld [vmem:[#allocation5 + $0x4048] sm:$0xff]
    %v2254 = vld [vmem:[#allocation5 + $0x4050] sm:$0xff]
    %v2255 = vld [vmem:[#allocation5 + $0x4058] sm:$0xff]
    %v2256 = vld [vmem:[#allocation5 + $0x4060] sm:$0xff]
    %v2257 = vld [vmem:[#allocation5 + $0x4068] sm:$0xff]
    %v2258 = vld [vmem:[#allocation5 + $0x4070] sm:$0xff]
    %v2259 = vld [vmem:[#allocation5 + $0x4078] sm:$0xff]
    %v2260 = vld [vmem:[#allocation5 + $0x4080] sm:$0xff]
    %v2261 = vld [vmem:[#allocation5 + $0x4088] sm:$0xff]
    %v2262 = vld [vmem:[#allocation5 + $0x4090] sm:$0xff]
    %v2263 = vld [vmem:[#allocation5 + $0x4098] sm:$0xff]
    %v2264 = vld [vmem:[#allocation5 + $0x40a0] sm:$0xff]
    %v2265 = vld [vmem:[#allocation5 + $0x40a8] sm:$0xff]
    %v2266 = vld [vmem:[#allocation5 + $0x40b0] sm:$0xff]
    %v2267 = vld [vmem:[#allocation5 + $0x40b8] sm:$0xff]
    %v2268 = vld [vmem:[#allocation5 + $0x40c0] sm:$0xff]
    %v2269 = vld [vmem:[#allocation5 + $0x40c8] sm:$0xff]
    %v2270 = vld [vmem:[#allocation5 + $0x40d0] sm:$0xff]
    %v2271 = vld [vmem:[#allocation5 + $0x40d8] sm:$0xff]
    %v2272 = vld [vmem:[#allocation5 + $0x40e0] sm:$0xff]
    %v2273 = vld [vmem:[#allocation5 + $0x40e8] sm:$0xff]
    %v2274 = vld [vmem:[#allocation5 + $0x40f0] sm:$0xff]
    %v2275 = vld [vmem:[#allocation5 + $0x40f8] sm:$0xff]
    %v2276 = vld [vmem:[#allocation5 + $0x4100] sm:$0xff]
    %v2277 = vld [vmem:[#allocation5 + $0x4108] sm:$0xff]
    %v2278 = vld [vmem:[#allocation5 + $0x4110] sm:$0xff]
    %v2279 = vld [vmem:[#allocation5 + $0x4118] sm:$0xff]
    %v2280 = vld [vmem:[#allocation5 + $0x4120] sm:$0xff]
    %v2281 = vld [vmem:[#allocation5 + $0x4128] sm:$0xff]
    %v2282 = vld [vmem:[#allocation5 + $0x4130] sm:$0xff]
    %v2283 = vld [vmem:[#allocation5 + $0x4138] sm:$0xff]
    %v2284 = vld [vmem:[#allocation5 + $0x4140] sm:$0xff]
    %v2285 = vld [vmem:[#allocation5 + $0x4148] sm:$0xff]
    %v2286 = vld [vmem:[#allocation5 + $0x4150] sm:$0xff]
    %v2287 = vld [vmem:[#allocation5 + $0x4158] sm:$0xff]
    %v2288 = vld [vmem:[#allocation5 + $0x4160] sm:$0xff]
    %v2289 = vld [vmem:[#allocation5 + $0x4168] sm:$0xff]
    %v2290 = vld [vmem:[#allocation5 + $0x4170] sm:$0xff]
    %v2291 = vld [vmem:[#allocation5 + $0x4178] sm:$0xff]
    %v2292 = vld [vmem:[#allocation5 + $0x4180] sm:$0xff]
    %v2293 = vld [vmem:[#allocation5 + $0x4188] sm:$0xff]
    %v2294 = vld [vmem:[#allocation5 + $0x4190] sm:$0xff]
    %v2295 = vld [vmem:[#allocation5 + $0x4198] sm:$0xff]
    %v2296 = vld [vmem:[#allocation5 + $0x41a0] sm:$0xff]
    %v2297 = vld [vmem:[#allocation5 + $0x41a8] sm:$0xff]
    %v2298 = vld [vmem:[#allocation5 + $0x41b0] sm:$0xff]
    %v2299 = vld [vmem:[#allocation5 + $0x41b8] sm:$0xff]
    %v2300 = vld [vmem:[#allocation5 + $0x41c0] sm:$0xff]
    %v2301 = vld [vmem:[#allocation5 + $0x41c8] sm:$0xff]
    %v2302 = vld [vmem:[#allocation5 + $0x41d0] sm:$0xff]
    %v2303 = vld [vmem:[#allocation5 + $0x41d8] sm:$0xff]
    %v2304 = vld [vmem:[#allocation5 + $0x41e0] sm:$0xff]
    %v2305 = vld [vmem:[#allocation5 + $0x41e8] sm:$0xff]
    %v2306 = vld [vmem:[#allocation5 + $0x41f0] sm:$0xff]
    %v2307 = vld [vmem:[#allocation5 + $0x41f8] sm:$0xff]
    %v2308 = vld [vmem:[#allocation5 + $0x4200] sm:$0xff]
    %v2309 = vld [vmem:[#allocation5 + $0x4208] sm:$0xff]
    %v2310 = vld [vmem:[#allocation5 + $0x4210] sm:$0xff]
    %v2311 = vld [vmem:[#allocation5 + $0x4218] sm:$0xff]
    %v2312 = vld [vmem:[#allocation5 + $0x4220] sm:$0xff]
    %v2313 = vld [vmem:[#allocation5 + $0x4228] sm:$0xff]
    %v2314 = vld [vmem:[#allocation5 + $0x4230] sm:$0xff]
    %v2315 = vld [vmem:[#allocation5 + $0x4238] sm:$0xff]
    %v2316 = vld [vmem:[#allocation5 + $0x4240] sm:$0xff]
    %v2317 = vld [vmem:[#allocation5 + $0x4248] sm:$0xff]
    %v2318 = vld [vmem:[#allocation5 + $0x4250] sm:$0xff]
    %v2319 = vld [vmem:[#allocation5 + $0x4258] sm:$0xff]
    %v2320 = vld [vmem:[#allocation5 + $0x4260] sm:$0xff]
    %v2321 = vld [vmem:[#allocation5 + $0x4268] sm:$0xff]
    %v2322 = vld [vmem:[#allocation5 + $0x4270] sm:$0xff]
    %v2323 = vld [vmem:[#allocation5 + $0x4278] sm:$0xff]
    %v2324 = vld [vmem:[#allocation5 + $0x4280] sm:$0xff]
    %v2325 = vld [vmem:[#allocation5 + $0x4288] sm:$0xff]
    %v2326 = vld [vmem:[#allocation5 + $0x4290] sm:$0xff]
    %v2327 = vld [vmem:[#allocation5 + $0x4298] sm:$0xff]
    %v2328 = vld [vmem:[#allocation5 + $0x42a0] sm:$0xff]
    %v2329 = vld [vmem:[#allocation5 + $0x42a8] sm:$0xff]
    %v2330 = vld [vmem:[#allocation5 + $0x42b0] sm:$0xff]
    %v2331 = vld [vmem:[#allocation5 + $0x42b8] sm:$0xff]
    %v2332 = vld [vmem:[#allocation5 + $0x42c0] sm:$0xff]
    %v2333 = vld [vmem:[#allocation5 + $0x42c8] sm:$0xff]
    %v2334 = vld [vmem:[#allocation5 + $0x42d0] sm:$0xff]
    %v2335 = vld [vmem:[#allocation5 + $0x42d8] sm:$0xff]
    %v2336 = vld [vmem:[#allocation5 + $0x42e0] sm:$0xff]
    %v2337 = vld [vmem:[#allocation5 + $0x42e8] sm:$0xff]
    %v2338 = vld [vmem:[#allocation5 + $0x42f0] sm:$0xff]
    %v2339 = vld [vmem:[#allocation5 + $0x42f8] sm:$0xff]
    %v2340 = vld [vmem:[#allocation5 + $0x4300] sm:$0xff]
    %v2341 = vld [vmem:[#allocation5 + $0x4308] sm:$0xff]
    %v2342 = vld [vmem:[#allocation5 + $0x4310] sm:$0xff]
    %v2343 = vld [vmem:[#allocation5 + $0x4318] sm:$0xff]
    %v2344 = vld [vmem:[#allocation5 + $0x4320] sm:$0xff]
    %v2345 = vld [vmem:[#allocation5 + $0x4328] sm:$0xff]
    %v2346 = vld [vmem:[#allocation5 + $0x4330] sm:$0xff]
    %v2347 = vld [vmem:[#allocation5 + $0x4338] sm:$0xff]
    %v2348 = vld [vmem:[#allocation5 + $0x4340] sm:$0xff]
    %v2349 = vld [vmem:[#allocation5 + $0x4348] sm:$0xff]
    %v2350 = vld [vmem:[#allocation5 + $0x4350] sm:$0xff]
    %v2351 = vld [vmem:[#allocation5 + $0x4358] sm:$0xff]
    %v2352 = vld [vmem:[#allocation5 + $0x4360] sm:$0xff]
    %v2353 = vld [vmem:[#allocation5 + $0x4368] sm:$0xff]
    %v2354 = vld [vmem:[#allocation5 + $0x4370] sm:$0xff]
    %v2355 = vld [vmem:[#allocation5 + $0x4378] sm:$0xff]
    %v2356 = vld [vmem:[#allocation5 + $0x4380] sm:$0xff]
    %v2357 = vld [vmem:[#allocation5 + $0x4388] sm:$0xff]
    %v2358 = vld [vmem:[#allocation5 + $0x4390] sm:$0xff]
    %v2359 = vld [vmem:[#allocation5 + $0x4398] sm:$0xff]
    %v2360 = vld [vmem:[#allocation5 + $0x43a0] sm:$0xff]
    %v2361 = vld [vmem:[#allocation5 + $0x43a8] sm:$0xff]
    %v2362 = vld [vmem:[#allocation5 + $0x43b0] sm:$0xff]
    %v2363 = vld [vmem:[#allocation5 + $0x43b8] sm:$0xff]
    %v2364 = vld [vmem:[#allocation5 + $0x43c0] sm:$0xff]
    %v2365 = vld [vmem:[#allocation5 + $0x43c8] sm:$0xff]
    %v2366 = vld [vmem:[#allocation5 + $0x43d0] sm:$0xff]
    %v2367 = vld [vmem:[#allocation5 + $0x43d8] sm:$0xff]
    %v2368 = vld [vmem:[#allocation5 + $0x43e0] sm:$0xff]
    %v2369 = vld [vmem:[#allocation5 + $0x43e8] sm:$0xff]
    %v2370 = vld [vmem:[#allocation5 + $0x43f0] sm:$0xff]
    %v2371 = vld [vmem:[#allocation5 + $0x43f8] sm:$0xff]
    %v2372 = vld [vmem:[#allocation5 + $0x4400] sm:$0xff]
    %v2373 = vld [vmem:[#allocation5 + $0x4408] sm:$0xff]
    %v2374 = vld [vmem:[#allocation5 + $0x4410] sm:$0xff]
    %v2375 = vld [vmem:[#allocation5 + $0x4418] sm:$0xff]
    %v2376 = vld [vmem:[#allocation5 + $0x4420] sm:$0xff]
    %v2377 = vld [vmem:[#allocation5 + $0x4428] sm:$0xff]
    %v2378 = vld [vmem:[#allocation5 + $0x4430] sm:$0xff]
    %v2379 = vld [vmem:[#allocation5 + $0x4438] sm:$0xff]
    %v2380 = vld [vmem:[#allocation5 + $0x4440] sm:$0xff]
    %v2381 = vld [vmem:[#allocation5 + $0x4448] sm:$0xff]
    %v2382 = vld [vmem:[#allocation5 + $0x4450] sm:$0xff]
    %v2383 = vld [vmem:[#allocation5 + $0x4458] sm:$0xff]
    %v2384 = vld [vmem:[#allocation5 + $0x4460] sm:$0xff]
    %v2385 = vld [vmem:[#allocation5 + $0x4468] sm:$0xff]
    %v2386 = vld [vmem:[#allocation5 + $0x4470] sm:$0xff]
    %v2387 = vld [vmem:[#allocation5 + $0x4478] sm:$0xff]
    %v2388 = vld [vmem:[#allocation5 + $0x4480] sm:$0xff]
    %v2389 = vld [vmem:[#allocation5 + $0x4488] sm:$0xff]
    %v2390 = vld [vmem:[#allocation5 + $0x4490] sm:$0xff]
    %v2391 = vld [vmem:[#allocation5 + $0x4498] sm:$0xff]
    %v2392 = vld [vmem:[#allocation5 + $0x44a0] sm:$0xff]
    %v2393 = vld [vmem:[#allocation5 + $0x44a8] sm:$0xff]
    %v2394 = vld [vmem:[#allocation5 + $0x44b0] sm:$0xff]
    %v2395 = vld [vmem:[#allocation5 + $0x44b8] sm:$0xff]
    %v2396 = vld [vmem:[#allocation5 + $0x44c0] sm:$0xff]
    %v2397 = vld [vmem:[#allocation5 + $0x44c8] sm:$0xff]
    %v2398 = vld [vmem:[#allocation5 + $0x44d0] sm:$0xff]
    %v2399 = vld [vmem:[#allocation5 + $0x44d8] sm:$0xff]
    %v2400 = vld [vmem:[#allocation5 + $0x44e0] sm:$0xff]
    %v2401 = vld [vmem:[#allocation5 + $0x44e8] sm:$0xff]
    %v2402 = vld [vmem:[#allocation5 + $0x44f0] sm:$0xff]
    %v2403 = vld [vmem:[#allocation5 + $0x44f8] sm:$0xff]
    %v2404 = vld [vmem:[#allocation5 + $0x4500] sm:$0xff]
    %v2405 = vld [vmem:[#allocation5 + $0x4508] sm:$0xff]
    %v2406 = vld [vmem:[#allocation5 + $0x4510] sm:$0xff]
    %v2407 = vld [vmem:[#allocation5 + $0x4518] sm:$0xff]
    %v2408 = vld [vmem:[#allocation5 + $0x4520] sm:$0xff]
    %v2409 = vld [vmem:[#allocation5 + $0x4528] sm:$0xff]
    %v2410 = vld [vmem:[#allocation5 + $0x4530] sm:$0xff]
    %v2411 = vld [vmem:[#allocation5 + $0x4538] sm:$0xff]
    %v2412 = vld [vmem:[#allocation5 + $0x4540] sm:$0xff]
    %v2413 = vld [vmem:[#allocation5 + $0x4548] sm:$0xff]
    %v2414 = vld [vmem:[#allocation5 + $0x4550] sm:$0xff]
    %v2415 = vld [vmem:[#allocation5 + $0x4558] sm:$0xff]
    %v2416 = vld [vmem:[#allocation5 + $0x4560] sm:$0xff]
    %v2417 = vld [vmem:[#allocation5 + $0x4568] sm:$0xff]
    %v2418 = vld [vmem:[#allocation5 + $0x4570] sm:$0xff]
    %v2419 = vld [vmem:[#allocation5 + $0x4578] sm:$0xff]
    %v2420 = vld [vmem:[#allocation5 + $0x4580] sm:$0xff]
    %v2421 = vld [vmem:[#allocation5 + $0x4588] sm:$0xff]
    %v2422 = vld [vmem:[#allocation5 + $0x4590] sm:$0xff]
    %v2423 = vld [vmem:[#allocation5 + $0x4598] sm:$0xff]
    %v2424 = vld [vmem:[#allocation5 + $0x45a0] sm:$0xff]
    %v2425 = vld [vmem:[#allocation5 + $0x45a8] sm:$0xff]
    %v2426 = vld [vmem:[#allocation5 + $0x45b0] sm:$0xff]
    %v2427 = vld [vmem:[#allocation5 + $0x45b8] sm:$0xff]
    %v2428 = vld [vmem:[#allocation5 + $0x45c0] sm:$0xff]
    %v2429 = vld [vmem:[#allocation5 + $0x45c8] sm:$0xff]
    %v2430 = vld [vmem:[#allocation5 + $0x45d0] sm:$0xff]
    %v2431 = vld [vmem:[#allocation5 + $0x45d8] sm:$0xff]
    %v2432 = vld [vmem:[#allocation5 + $0x45e0] sm:$0xff]
    %v2433 = vld [vmem:[#allocation5 + $0x45e8] sm:$0xff]
    %v2434 = vld [vmem:[#allocation5 + $0x45f0] sm:$0xff]
    %v2435 = vld [vmem:[#allocation5 + $0x45f8] sm:$0xff]
    %v2436 = vld [vmem:[#allocation5 + $0x4600] sm:$0xff]
    %v2437 = vld [vmem:[#allocation5 + $0x4608] sm:$0xff]
    %v2438 = vld [vmem:[#allocation5 + $0x4610] sm:$0xff]
    %v2439 = vld [vmem:[#allocation5 + $0x4618] sm:$0xff]
    %v2440 = vld [vmem:[#allocation5 + $0x4620] sm:$0xff]
    %v2441 = vld [vmem:[#allocation5 + $0x4628] sm:$0xff]
    %v2442 = vld [vmem:[#allocation5 + $0x4630] sm:$0xff]
    %v2443 = vld [vmem:[#allocation5 + $0x4638] sm:$0xff]
    %v2444 = vld [vmem:[#allocation5 + $0x4640] sm:$0xff]
    %v2445 = vld [vmem:[#allocation5 + $0x4648] sm:$0xff]
    %v2446 = vld [vmem:[#allocation5 + $0x4650] sm:$0xff]
    %v2447 = vld [vmem:[#allocation5 + $0x4658] sm:$0xff]
    %v2448 = vld [vmem:[#allocation5 + $0x4660] sm:$0xff]
    %v2449 = vld [vmem:[#allocation5 + $0x4668] sm:$0xff]
    %v2450 = vld [vmem:[#allocation5 + $0x4670] sm:$0xff]
    %v2451 = vld [vmem:[#allocation5 + $0x4678] sm:$0xff]
    %v2452 = vld [vmem:[#allocation5 + $0x4680] sm:$0xff]
    %v2453 = vld [vmem:[#allocation5 + $0x4688] sm:$0xff]
    %v2454 = vld [vmem:[#allocation5 + $0x4690] sm:$0xff]
    %v2455 = vld [vmem:[#allocation5 + $0x4698] sm:$0xff]
    %v2456 = vld [vmem:[#allocation5 + $0x46a0] sm:$0xff]
    %v2457 = vld [vmem:[#allocation5 + $0x46a8] sm:$0xff]
    %v2458 = vld [vmem:[#allocation5 + $0x46b0] sm:$0xff]
    %v2459 = vld [vmem:[#allocation5 + $0x46b8] sm:$0xff]
    %v2460 = vld [vmem:[#allocation5 + $0x46c0] sm:$0xff]
    %v2461 = vld [vmem:[#allocation5 + $0x46c8] sm:$0xff]
    %v2462 = vld [vmem:[#allocation5 + $0x46d0] sm:$0xff]
    %v2463 = vld [vmem:[#allocation5 + $0x46d8] sm:$0xff]
    %v2464 = vld [vmem:[#allocation5 + $0x46e0] sm:$0xff]
    %v2465 = vld [vmem:[#allocation5 + $0x46e8] sm:$0xff]
    %v2466 = vld [vmem:[#allocation5 + $0x46f0] sm:$0xff]
    %v2467 = vld [vmem:[#allocation5 + $0x46f8] sm:$0xff]
    %v2468 = vld [vmem:[#allocation5 + $0x4700] sm:$0xff]
    %v2469 = vld [vmem:[#allocation5 + $0x4708] sm:$0xff]
    %v2470 = vld [vmem:[#allocation5 + $0x4710] sm:$0xff]
    %v2471 = vld [vmem:[#allocation5 + $0x4718] sm:$0xff]
    %v2472 = vld [vmem:[#allocation5 + $0x4720] sm:$0xff]
    %v2473 = vld [vmem:[#allocation5 + $0x4728] sm:$0xff]
    %v2474 = vld [vmem:[#allocation5 + $0x4730] sm:$0xff]
    %v2475 = vld [vmem:[#allocation5 + $0x4738] sm:$0xff]
    %v2476 = vld [vmem:[#allocation5 + $0x4740] sm:$0xff]
    %v2477 = vld [vmem:[#allocation5 + $0x4748] sm:$0xff]
    %v2478 = vld [vmem:[#allocation5 + $0x4750] sm:$0xff]
    %v2479 = vld [vmem:[#allocation5 + $0x4758] sm:$0xff]
    %v2480 = vld [vmem:[#allocation5 + $0x4760] sm:$0xff]
    %v2481 = vld [vmem:[#allocation5 + $0x4768] sm:$0xff]
    %v2482 = vld [vmem:[#allocation5 + $0x4770] sm:$0xff]
    %v2483 = vld [vmem:[#allocation5 + $0x4778] sm:$0xff]
    %v2484 = vld [vmem:[#allocation5 + $0x4780] sm:$0xff]
    %v2485 = vld [vmem:[#allocation5 + $0x4788] sm:$0xff]
    %v2486 = vld [vmem:[#allocation5 + $0x4790] sm:$0xff]
    %v2487 = vld [vmem:[#allocation5 + $0x4798] sm:$0xff]
    %v2488 = vld [vmem:[#allocation5 + $0x47a0] sm:$0xff]
    %v2489 = vld [vmem:[#allocation5 + $0x47a8] sm:$0xff]
    %v2490 = vld [vmem:[#allocation5 + $0x47b0] sm:$0xff]
    %v2491 = vld [vmem:[#allocation5 + $0x47b8] sm:$0xff]
    %v2492 = vld [vmem:[#allocation5 + $0x47c0] sm:$0xff]
    %v2493 = vld [vmem:[#allocation5 + $0x47c8] sm:$0xff]
    %v2494 = vld [vmem:[#allocation5 + $0x47d0] sm:$0xff]
    %v2495 = vld [vmem:[#allocation5 + $0x47d8] sm:$0xff]
    %v2496 = vld [vmem:[#allocation5 + $0x47e0] sm:$0xff]
    %v2497 = vld [vmem:[#allocation5 + $0x47e8] sm:$0xff]
    %v2498 = vld [vmem:[#allocation5 + $0x47f0] sm:$0xff]
    %v2499 = vld [vmem:[#allocation5 + $0x47f8] sm:$0xff]
    %v2500 = vld [vmem:[#allocation5 + $0x4800] sm:$0xff]
    %v2501 = vld [vmem:[#allocation5 + $0x4808] sm:$0xff]
    %v2502 = vld [vmem:[#allocation5 + $0x4810] sm:$0xff]
    %v2503 = vld [vmem:[#allocation5 + $0x4818] sm:$0xff]
    %v2504 = vld [vmem:[#allocation5 + $0x4820] sm:$0xff]
    %v2505 = vld [vmem:[#allocation5 + $0x4828] sm:$0xff]
    %v2506 = vld [vmem:[#allocation5 + $0x4830] sm:$0xff]
    %v2507 = vld [vmem:[#allocation5 + $0x4838] sm:$0xff]
    %v2508 = vld [vmem:[#allocation5 + $0x4840] sm:$0xff]
    %v2509 = vld [vmem:[#allocation5 + $0x4848] sm:$0xff]
    %v2510 = vld [vmem:[#allocation5 + $0x4850] sm:$0xff]
    %v2511 = vld [vmem:[#allocation5 + $0x4858] sm:$0xff]
    %v2512 = vld [vmem:[#allocation5 + $0x4860] sm:$0xff]
    %v2513 = vld [vmem:[#allocation5 + $0x4868] sm:$0xff]
    %v2514 = vld [vmem:[#allocation5 + $0x4870] sm:$0xff]
    %v2515 = vld [vmem:[#allocation5 + $0x4878] sm:$0xff]
    %v2516 = vld [vmem:[#allocation5 + $0x4880] sm:$0xff]
    %v2517 = vld [vmem:[#allocation5 + $0x4888] sm:$0xff]
    %v2518 = vld [vmem:[#allocation5 + $0x4890] sm:$0xff]
    %v2519 = vld [vmem:[#allocation5 + $0x4898] sm:$0xff]
    %v2520 = vld [vmem:[#allocation5 + $0x48a0] sm:$0xff]
    %v2521 = vld [vmem:[#allocation5 + $0x48a8] sm:$0xff]
    %v2522 = vld [vmem:[#allocation5 + $0x48b0] sm:$0xff]
    %v2523 = vld [vmem:[#allocation5 + $0x48b8] sm:$0xff]
    %v2524 = vld [vmem:[#allocation5 + $0x48c0] sm:$0xff]
    %v2525 = vld [vmem:[#allocation5 + $0x48c8] sm:$0xff]
    %v2526 = vld [vmem:[#allocation5 + $0x48d0] sm:$0xff]
    %v2527 = vld [vmem:[#allocation5 + $0x48d8] sm:$0xff]
    %v2528 = vld [vmem:[#allocation5 + $0x48e0] sm:$0xff]
    %v2529 = vld [vmem:[#allocation5 + $0x48e8] sm:$0xff]
    %v2530 = vld [vmem:[#allocation5 + $0x48f0] sm:$0xff]
    %v2531 = vld [vmem:[#allocation5 + $0x48f8] sm:$0xff]
    %v2532 = vld [vmem:[#allocation5 + $0x4900] sm:$0xff]
    %v2533 = vld [vmem:[#allocation5 + $0x4908] sm:$0xff]
    %v2534 = vld [vmem:[#allocation5 + $0x4910] sm:$0xff]
    %v2535 = vld [vmem:[#allocation5 + $0x4918] sm:$0xff]
    %v2536 = vld [vmem:[#allocation5 + $0x4920] sm:$0xff]
    %v2537 = vld [vmem:[#allocation5 + $0x4928] sm:$0xff]
    %v2538 = vld [vmem:[#allocation5 + $0x4930] sm:$0xff]
    %v2539 = vld [vmem:[#allocation5 + $0x4938] sm:$0xff]
    %v2540 = vld [vmem:[#allocation5 + $0x4940] sm:$0xff]
    %v2541 = vld [vmem:[#allocation5 + $0x4948] sm:$0xff]
    %v2542 = vld [vmem:[#allocation5 + $0x4950] sm:$0xff]
    %v2543 = vld [vmem:[#allocation5 + $0x4958] sm:$0xff]
    %v2544 = vld [vmem:[#allocation5 + $0x4960] sm:$0xff]
    %v2545 = vld [vmem:[#allocation5 + $0x4968] sm:$0xff]
    %v2546 = vld [vmem:[#allocation5 + $0x4970] sm:$0xff]
    %v2547 = vld [vmem:[#allocation5 + $0x4978] sm:$0xff]
    %v2548 = vld [vmem:[#allocation5 + $0x4980] sm:$0xff]
    %v2549 = vld [vmem:[#allocation5 + $0x4988] sm:$0xff]
    %v2550 = vld [vmem:[#allocation5 + $0x4990] sm:$0xff]
    %v2551 = vld [vmem:[#allocation5 + $0x4998] sm:$0xff]
    %v2552 = vld [vmem:[#allocation5 + $0x49a0] sm:$0xff]
    %v2553 = vld [vmem:[#allocation5 + $0x49a8] sm:$0xff]
    %v2554 = vld [vmem:[#allocation5 + $0x49b0] sm:$0xff]
    %v2555 = vld [vmem:[#allocation5 + $0x49b8] sm:$0xff]
    %v2556 = vld [vmem:[#allocation5 + $0x49c0] sm:$0xff]
    %v2557 = vld [vmem:[#allocation5 + $0x49c8] sm:$0xff]
    %v2558 = vld [vmem:[#allocation5 + $0x49d0] sm:$0xff]
    %v2559 = vld [vmem:[#allocation5 + $0x49d8] sm:$0xff]
    %v2560 = vld [vmem:[#allocation5 + $0x49e0] sm:$0xff]
    %v2561 = vld [vmem:[#allocation5 + $0x49e8] sm:$0xff]
    %v2562 = vld [vmem:[#allocation5 + $0x49f0] sm:$0xff]
    %v2563 = vld [vmem:[#allocation5 + $0x49f8] sm:$0xff]
    %v2564 = vld [vmem:[#allocation5 + $0x4a00] sm:$0xff]
    %v2565 = vld [vmem:[#allocation5 + $0x4a08] sm:$0xff]
    %v2566 = vld [vmem:[#allocation5 + $0x4a10] sm:$0xff]
    %v2567 = vld [vmem:[#allocation5 + $0x4a18] sm:$0xff]
    %v2568 = vld [vmem:[#allocation5 + $0x4a20] sm:$0xff]
    %v2569 = vld [vmem:[#allocation5 + $0x4a28] sm:$0xff]
    %v2570 = vld [vmem:[#allocation5 + $0x4a30] sm:$0xff]
    %v2571 = vld [vmem:[#allocation5 + $0x4a38] sm:$0xff]
    %v2572 = vld [vmem:[#allocation5 + $0x4a40] sm:$0xff]
    %v2573 = vld [vmem:[#allocation5 + $0x4a48] sm:$0xff]
    %v2574 = vld [vmem:[#allocation5 + $0x4a50] sm:$0xff]
    %v2575 = vld [vmem:[#allocation5 + $0x4a58] sm:$0xff]
    %v2576 = vld [vmem:[#allocation5 + $0x4a60] sm:$0xff]
    %v2577 = vld [vmem:[#allocation5 + $0x4a68] sm:$0xff]
    %v2578 = vld [vmem:[#allocation5 + $0x4a70] sm:$0xff]
    %v2579 = vld [vmem:[#allocation5 + $0x4a78] sm:$0xff]
    %v2580 = vld [vmem:[#allocation5 + $0x4a80] sm:$0xff]
    %v2581 = vld [vmem:[#allocation5 + $0x4a88] sm:$0xff]
    %v2582 = vld [vmem:[#allocation5 + $0x4a90] sm:$0xff]
    %v2583 = vld [vmem:[#allocation5 + $0x4a98] sm:$0xff]
    %v2584 = vld [vmem:[#allocation5 + $0x4aa0] sm:$0xff]
    %v2585 = vld [vmem:[#allocation5 + $0x4aa8] sm:$0xff]
    %v2586 = vld [vmem:[#allocation5 + $0x4ab0] sm:$0xff]
    %v2587 = vld [vmem:[#allocation5 + $0x4ab8] sm:$0xff]
    %v2588 = vld [vmem:[#allocation5 + $0x4ac0] sm:$0xff]
    %v2589 = vld [vmem:[#allocation5 + $0x4ac8] sm:$0xff]
    %v2590 = vld [vmem:[#allocation5 + $0x4ad0] sm:$0xff]
    %v2591 = vld [vmem:[#allocation5 + $0x4ad8] sm:$0xff]
    %v2592 = vld [vmem:[#allocation5 + $0x4ae0] sm:$0xff]
    %v2593 = vld [vmem:[#allocation5 + $0x4ae8] sm:$0xff]
    %v2594 = vld [vmem:[#allocation5 + $0x4af0] sm:$0xff]
    %v2595 = vld [vmem:[#allocation5 + $0x4af8] sm:$0xff]
    %v2596 = vld [vmem:[#allocation5 + $0x4b00] sm:$0xff]
    %v2597 = vld [vmem:[#allocation5 + $0x4b08] sm:$0xff]
    %v2598 = vld [vmem:[#allocation5 + $0x4b10] sm:$0xff]
    %v2599 = vld [vmem:[#allocation5 + $0x4b18] sm:$0xff]
    %v2600 = vld [vmem:[#allocation5 + $0x4b20] sm:$0xff]
    %v2601 = vld [vmem:[#allocation5 + $0x4b28] sm:$0xff]
    %v2602 = vld [vmem:[#allocation5 + $0x4b30] sm:$0xff]
    %v2603 = vld [vmem:[#allocation5 + $0x4b38] sm:$0xff]
    %v2604 = vld [vmem:[#allocation5 + $0x4b40] sm:$0xff]
    %v2605 = vld [vmem:[#allocation5 + $0x4b48] sm:$0xff]
    %v2606 = vld [vmem:[#allocation5 + $0x4b50] sm:$0xff]
    %v2607 = vld [vmem:[#allocation5 + $0x4b58] sm:$0xff]
    %v2608 = vld [vmem:[#allocation5 + $0x4b60] sm:$0xff]
    %v2609 = vld [vmem:[#allocation5 + $0x4b68] sm:$0xff]
    %v2610 = vld [vmem:[#allocation5 + $0x4b70] sm:$0xff]
    %v2611 = vld [vmem:[#allocation5 + $0x4b78] sm:$0xff]
    %v2612 = vld [vmem:[#allocation5 + $0x4b80] sm:$0xff]
    %v2613 = vld [vmem:[#allocation5 + $0x4b88] sm:$0xff]
    %v2614 = vld [vmem:[#allocation5 + $0x4b90] sm:$0xff]
    %v2615 = vld [vmem:[#allocation5 + $0x4b98] sm:$0xff]
    %v2616 = vld [vmem:[#allocation5 + $0x4ba0] sm:$0xff]
    %v2617 = vld [vmem:[#allocation5 + $0x4ba8] sm:$0xff]
    %v2618 = vld [vmem:[#allocation5 + $0x4bb0] sm:$0xff]
    %v2619 = vld [vmem:[#allocation5 + $0x4bb8] sm:$0xff]
    %v2620 = vld [vmem:[#allocation5 + $0x4bc0] sm:$0xff]
    %v2621 = vld [vmem:[#allocation5 + $0x4bc8] sm:$0xff]
    %v2622 = vld [vmem:[#allocation5 + $0x4bd0] sm:$0xff]
    %v2623 = vld [vmem:[#allocation5 + $0x4bd8] sm:$0xff]
    %v2624 = vld [vmem:[#allocation5 + $0x4be0] sm:$0xff]
    %v2625 = vld [vmem:[#allocation5 + $0x4be8] sm:$0xff]
    %v2626 = vld [vmem:[#allocation5 + $0x4bf0] sm:$0xff]
    %v2627 = vld [vmem:[#allocation5 + $0x4bf8] sm:$0xff]
    %v2628 = vld [vmem:[#allocation5 + $0x4c00] sm:$0xff]
    %v2629 = vld [vmem:[#allocation5 + $0x4c08] sm:$0xff]
    %v2630 = vld [vmem:[#allocation5 + $0x4c10] sm:$0xff]
    %v2631 = vld [vmem:[#allocation5 + $0x4c18] sm:$0xff]
    %v2632 = vld [vmem:[#allocation5 + $0x4c20] sm:$0xff]
    %v2633 = vld [vmem:[#allocation5 + $0x4c28] sm:$0xff]
    %v2634 = vld [vmem:[#allocation5 + $0x4c30] sm:$0xff]
    %v2635 = vld [vmem:[#allocation5 + $0x4c38] sm:$0xff]
    %v2636 = vld [vmem:[#allocation5 + $0x4c40] sm:$0xff]
    %v2637 = vld [vmem:[#allocation5 + $0x4c48] sm:$0xff]
    %v2638 = vld [vmem:[#allocation5 + $0x4c50] sm:$0xff]
    %v2639 = vld [vmem:[#allocation5 + $0x4c58] sm:$0xff]
    %v2640 = vld [vmem:[#allocation5 + $0x4c60] sm:$0xff]
    %v2641 = vld [vmem:[#allocation5 + $0x4c68] sm:$0xff]
    %v2642 = vld [vmem:[#allocation5 + $0x4c70] sm:$0xff]
    %v2643 = vld [vmem:[#allocation5 + $0x4c78] sm:$0xff]
    %v2644 = vld [vmem:[#allocation5 + $0x4c80] sm:$0xff]
    %v2645 = vld [vmem:[#allocation5 + $0x4c88] sm:$0xff]
    %v2646 = vld [vmem:[#allocation5 + $0x4c90] sm:$0xff]
    %v2647 = vld [vmem:[#allocation5 + $0x4c98] sm:$0xff]
    %v2648 = vld [vmem:[#allocation5 + $0x4ca0] sm:$0xff]
    %v2649 = vld [vmem:[#allocation5 + $0x4ca8] sm:$0xff]
    %v2650 = vld [vmem:[#allocation5 + $0x4cb0] sm:$0xff]
    %v2651 = vld [vmem:[#allocation5 + $0x4cb8] sm:$0xff]
    %v2652 = vld [vmem:[#allocation5 + $0x4cc0] sm:$0xff]
    %v2653 = vld [vmem:[#allocation5 + $0x4cc8] sm:$0xff]
    %v2654 = vld [vmem:[#allocation5 + $0x4cd0] sm:$0xff]
    %v2655 = vld [vmem:[#allocation5 + $0x4cd8] sm:$0xff]
    %v2656 = vld [vmem:[#allocation5 + $0x4ce0] sm:$0xff]
    %v2657 = vld [vmem:[#allocation5 + $0x4ce8] sm:$0xff]
    %v2658 = vld [vmem:[#allocation5 + $0x4cf0] sm:$0xff]
    %v2659 = vld [vmem:[#allocation5 + $0x4cf8] sm:$0xff]
    %v2660 = vld [vmem:[#allocation5 + $0x4d00] sm:$0xff]
    %v2661 = vld [vmem:[#allocation5 + $0x4d08] sm:$0xff]
    %v2662 = vld [vmem:[#allocation5 + $0x4d10] sm:$0xff]
    %v2663 = vld [vmem:[#allocation5 + $0x4d18] sm:$0xff]
    %v2664 = vld [vmem:[#allocation5 + $0x4d20] sm:$0xff]
    %v2665 = vld [vmem:[#allocation5 + $0x4d28] sm:$0xff]
    %v2666 = vld [vmem:[#allocation5 + $0x4d30] sm:$0xff]
    %v2667 = vld [vmem:[#allocation5 + $0x4d38] sm:$0xff]
    %v2668 = vld [vmem:[#allocation5 + $0x4d40] sm:$0xff]
    %v2669 = vld [vmem:[#allocation5 + $0x4d48] sm:$0xff]
    %v2670 = vld [vmem:[#allocation5 + $0x4d50] sm:$0xff]
    %v2671 = vld [vmem:[#allocation5 + $0x4d58] sm:$0xff]
    %v2672 = vld [vmem:[#allocation5 + $0x4d60] sm:$0xff]
    %v2673 = vld [vmem:[#allocation5 + $0x4d68] sm:$0xff]
    %v2674 = vld [vmem:[#allocation5 + $0x4d70] sm:$0xff]
    %v2675 = vld [vmem:[#allocation5 + $0x4d78] sm:$0xff]
    %v2676 = vld [vmem:[#allocation5 + $0x4d80] sm:$0xff]
    %v2677 = vld [vmem:[#allocation5 + $0x4d88] sm:$0xff]
    %v2678 = vld [vmem:[#allocation5 + $0x4d90] sm:$0xff]
    %v2679 = vld [vmem:[#allocation5 + $0x4d98] sm:$0xff]
    %v2680 = vld [vmem:[#allocation5 + $0x4da0] sm:$0xff]
    %v2681 = vld [vmem:[#allocation5 + $0x4da8] sm:$0xff]
    %v2682 = vld [vmem:[#allocation5 + $0x4db0] sm:$0xff]
    %v2683 = vld [vmem:[#allocation5 + $0x4db8] sm:$0xff]
    %v2684 = vld [vmem:[#allocation5 + $0x4dc0] sm:$0xff]
    %v2685 = vld [vmem:[#allocation5 + $0x4dc8] sm:$0xff]
    %v2686 = vld [vmem:[#allocation5 + $0x4dd0] sm:$0xff]
    %v2687 = vld [vmem:[#allocation5 + $0x4dd8] sm:$0xff]
    %v2688 = vld [vmem:[#allocation5 + $0x4de0] sm:$0xff]
    %v2689 = vld [vmem:[#allocation5 + $0x4de8] sm:$0xff]
    %v2690 = vld [vmem:[#allocation5 + $0x4df0] sm:$0xff]
    %v2691 = vld [vmem:[#allocation5 + $0x4df8] sm:$0xff]
    %v2692 = vld [vmem:[#allocation5 + $0x4e00] sm:$0xff]
    %v2693 = vld [vmem:[#allocation5 + $0x4e08] sm:$0xff]
    %v2694 = vld [vmem:[#allocation5 + $0x4e10] sm:$0xff]
    %v2695 = vld [vmem:[#allocation5 + $0x4e18] sm:$0xff]
    %v2696 = vld [vmem:[#allocation5 + $0x4e20] sm:$0xff]
    %v2697 = vld [vmem:[#allocation5 + $0x4e28] sm:$0xff]
    %v2698 = vld [vmem:[#allocation5 + $0x4e30] sm:$0xff]
    %v2699 = vld [vmem:[#allocation5 + $0x4e38] sm:$0xff]
    %v2700 = vld [vmem:[#allocation5 + $0x4e40] sm:$0xff]
    %v2701 = vld [vmem:[#allocation5 + $0x4e48] sm:$0xff]
    %v2702 = vld [vmem:[#allocation5 + $0x4e50] sm:$0xff]
    %v2703 = vld [vmem:[#allocation5 + $0x4e58] sm:$0xff]
    %v2704 = vld [vmem:[#allocation5 + $0x4e60] sm:$0xff]
    %v2705 = vld [vmem:[#allocation5 + $0x4e68] sm:$0xff]
    %v2706 = vld [vmem:[#allocation5 + $0x4e70] sm:$0xff]
    %v2707 = vld [vmem:[#allocation5 + $0x4e78] sm:$0xff]
    %v2708 = vld [vmem:[#allocation5 + $0x4e80] sm:$0xff]
    %v2709 = vld [vmem:[#allocation5 + $0x4e88] sm:$0xff]
    %v2710 = vld [vmem:[#allocation5 + $0x4e90] sm:$0xff]
    %v2711 = vld [vmem:[#allocation5 + $0x4e98] sm:$0xff]
    %v2712 = vld [vmem:[#allocation5 + $0x4ea0] sm:$0xff]
    %v2713 = vld [vmem:[#allocation5 + $0x4ea8] sm:$0xff]
    %v2714 = vld [vmem:[#allocation5 + $0x4eb0] sm:$0xff]
    %v2715 = vld [vmem:[#allocation5 + $0x4eb8] sm:$0xff]
    %v2716 = vld [vmem:[#allocation5 + $0x4ec0] sm:$0xff]
    %v2717 = vld [vmem:[#allocation5 + $0x4ec8] sm:$0xff]
    %v2718 = vld [vmem:[#allocation5 + $0x4ed0] sm:$0xff]
    %v2719 = vld [vmem:[#allocation5 + $0x4ed8] sm:$0xff]
    %v2720 = vld [vmem:[#allocation5 + $0x4ee0] sm:$0xff]
    %v2721 = vld [vmem:[#allocation5 + $0x4ee8] sm:$0xff]
    %v2722 = vld [vmem:[#allocation5 + $0x4ef0] sm:$0xff]
    %v2723 = vld [vmem:[#allocation5 + $0x4ef8] sm:$0xff]
    %v2724 = vld [vmem:[#allocation5 + $0x4f00] sm:$0xff]
    %v2725 = vld [vmem:[#allocation5 + $0x4f08] sm:$0xff]
    %v2726 = vld [vmem:[#allocation5 + $0x4f10] sm:$0xff]
    %v2727 = vld [vmem:[#allocation5 + $0x4f18] sm:$0xff]
    %v2728 = vld [vmem:[#allocation5 + $0x4f20] sm:$0xff]
    %v2729 = vld [vmem:[#allocation5 + $0x4f28] sm:$0xff]
    %v2730 = vld [vmem:[#allocation5 + $0x4f30] sm:$0xff]
    %v2731 = vld [vmem:[#allocation5 + $0x4f38] sm:$0xff]
    %v2732 = vld [vmem:[#allocation5 + $0x4f40] sm:$0xff]
    %v2733 = vld [vmem:[#allocation5 + $0x4f48] sm:$0xff]
    %v2734 = vld [vmem:[#allocation5 + $0x4f50] sm:$0xff]
    %v2735 = vld [vmem:[#allocation5 + $0x4f58] sm:$0xff]
    %v2736 = vld [vmem:[#allocation5 + $0x4f60] sm:$0xff]
    %v2737 = vld [vmem:[#allocation5 + $0x4f68] sm:$0xff]
    %v2738 = vld [vmem:[#allocation5 + $0x4f70] sm:$0xff]
    %v2739 = vld [vmem:[#allocation5 + $0x4f78] sm:$0xff]
    %v2740 = vld [vmem:[#allocation5 + $0x4f80] sm:$0xff]
    %v2741 = vld [vmem:[#allocation5 + $0x4f88] sm:$0xff]
    %v2742 = vld [vmem:[#allocation5 + $0x4f90] sm:$0xff]
    %v2743 = vld [vmem:[#allocation5 + $0x4f98] sm:$0xff]
    %v2744 = vld [vmem:[#allocation5 + $0x4fa0] sm:$0xff]
    %v2745 = vld [vmem:[#allocation5 + $0x4fa8] sm:$0xff]
    %v2746 = vld [vmem:[#allocation5 + $0x4fb0] sm:$0xff]
    %v2747 = vld [vmem:[#allocation5 + $0x4fb8] sm:$0xff]
    %v2748 = vld [vmem:[#allocation5 + $0x4fc0] sm:$0xff]
    %v2749 = vld [vmem:[#allocation5 + $0x4fc8] sm:$0xff]
    %v2750 = vld [vmem:[#allocation5 + $0x4fd0] sm:$0xff]
    %v2751 = vld [vmem:[#allocation5 + $0x4fd8] sm:$0xff]
    %v2752 = vld [vmem:[#allocation5 + $0x4fe0] sm:$0xff]
    %v2753 = vld [vmem:[#allocation5 + $0x4fe8] sm:$0xff]
    %v2754 = vld [vmem:[#allocation5 + $0x4ff0] sm:$0xff]
    %v2755 = vld [vmem:[#allocation5 + $0x4ff8] sm:$0xff]
    %v2756 = vld [vmem:[#allocation5 + $0x5000] sm:$0xff]
    %v2757 = vld [vmem:[#allocation5 + $0x5008] sm:$0xff]
    %v2758 = vld [vmem:[#allocation5 + $0x5010] sm:$0xff]
    %v2759 = vld [vmem:[#allocation5 + $0x5018] sm:$0xff]
    %v2760 = vld [vmem:[#allocation5 + $0x5020] sm:$0xff]
    %v2761 = vld [vmem:[#allocation5 + $0x5028] sm:$0xff]
    %v2762 = vld [vmem:[#allocation5 + $0x5030] sm:$0xff]
    %v2763 = vld [vmem:[#allocation5 + $0x5038] sm:$0xff]
    %v2764 = vld [vmem:[#allocation5 + $0x5040] sm:$0xff]
    %v2765 = vld [vmem:[#allocation5 + $0x5048] sm:$0xff]
    %v2766 = vld [vmem:[#allocation5 + $0x5050] sm:$0xff]
    %v2767 = vld [vmem:[#allocation5 + $0x5058] sm:$0xff]
    %v2768 = vld [vmem:[#allocation5 + $0x5060] sm:$0xff]
    %v2769 = vld [vmem:[#allocation5 + $0x5068] sm:$0xff]
    %v2770 = vld [vmem:[#allocation5 + $0x5070] sm:$0xff]
    %v2771 = vld [vmem:[#allocation5 + $0x5078] sm:$0xff]
    %v2772 = vld [vmem:[#allocation5 + $0x5080] sm:$0xff]
    %v2773 = vld [vmem:[#allocation5 + $0x5088] sm:$0xff]
    %v2774 = vld [vmem:[#allocation5 + $0x5090] sm:$0xff]
    %v2775 = vld [vmem:[#allocation5 + $0x5098] sm:$0xff]
    %v2776 = vld [vmem:[#allocation5 + $0x50a0] sm:$0xff]
    %v2777 = vld [vmem:[#allocation5 + $0x50a8] sm:$0xff]
    %v2778 = vld [vmem:[#allocation5 + $0x50b0] sm:$0xff]
    %v2779 = vld [vmem:[#allocation5 + $0x50b8] sm:$0xff]
    %v2780 = vld [vmem:[#allocation5 + $0x50c0] sm:$0xff]
    %v2781 = vld [vmem:[#allocation5 + $0x50c8] sm:$0xff]
    %v2782 = vld [vmem:[#allocation5 + $0x50d0] sm:$0xff]
    %v2783 = vld [vmem:[#allocation5 + $0x50d8] sm:$0xff]
    %v2784 = vld [vmem:[#allocation5 + $0x50e0] sm:$0xff]
    %v2785 = vld [vmem:[#allocation5 + $0x50e8] sm:$0xff]
    %v2786 = vld [vmem:[#allocation5 + $0x50f0] sm:$0xff]
    %v2787 = vld [vmem:[#allocation5 + $0x50f8] sm:$0xff]
    %v2788 = vld [vmem:[#allocation5 + $0x5100] sm:$0xff]
    %v2789 = vld [vmem:[#allocation5 + $0x5108] sm:$0xff]
    %v2790 = vld [vmem:[#allocation5 + $0x5110] sm:$0xff]
    %v2791 = vld [vmem:[#allocation5 + $0x5118] sm:$0xff]
    %v2792 = vld [vmem:[#allocation5 + $0x5120] sm:$0xff]
    %v2793 = vld [vmem:[#allocation5 + $0x5128] sm:$0xff]
    %v2794 = vld [vmem:[#allocation5 + $0x5130] sm:$0xff]
    %v2795 = vld [vmem:[#allocation5 + $0x5138] sm:$0xff]
    %v2796 = vld [vmem:[#allocation5 + $0x5140] sm:$0xff]
    %v2797 = vld [vmem:[#allocation5 + $0x5148] sm:$0xff]
    %v2798 = vld [vmem:[#allocation5 + $0x5150] sm:$0xff]
    %v2799 = vld [vmem:[#allocation5 + $0x5158] sm:$0xff]
    %v2800 = vld [vmem:[#allocation5 + $0x5160] sm:$0xff]
    %v2801 = vld [vmem:[#allocation5 + $0x5168] sm:$0xff]
    %v2802 = vld [vmem:[#allocation5 + $0x5170] sm:$0xff]
    %v2803 = vld [vmem:[#allocation5 + $0x5178] sm:$0xff]
    %v2804 = vld [vmem:[#allocation5 + $0x5180] sm:$0xff]
    %v2805 = vld [vmem:[#allocation5 + $0x5188] sm:$0xff]
    %v2806 = vld [vmem:[#allocation5 + $0x5190] sm:$0xff]
    %v2807 = vld [vmem:[#allocation5 + $0x5198] sm:$0xff]
    %v2808 = vld [vmem:[#allocation5 + $0x51a0] sm:$0xff]
    %v2809 = vld [vmem:[#allocation5 + $0x51a8] sm:$0xff]
    %v2810 = vld [vmem:[#allocation5 + $0x51b0] sm:$0xff]
    %v2811 = vld [vmem:[#allocation5 + $0x51b8] sm:$0xff]
    %v2812 = vld [vmem:[#allocation5 + $0x51c0] sm:$0xff]
    %v2813 = vld [vmem:[#allocation5 + $0x51c8] sm:$0xff]
    %v2814 = vld [vmem:[#allocation5 + $0x51d0] sm:$0xff]
    %v2815 = vld [vmem:[#allocation5 + $0x51d8] sm:$0xff]
    %v2816 = vld [vmem:[#allocation5 + $0x51e0] sm:$0xff]
    %v2817 = vld [vmem:[#allocation5 + $0x51e8] sm:$0xff]
    %v2818 = vld [vmem:[#allocation5 + $0x51f0] sm:$0xff]
    %v2819 = vld [vmem:[#allocation5 + $0x51f8] sm:$0xff]
    %v2820 = vld [vmem:[#allocation5 + $0x5200] sm:$0xff]
    %v2821 = vld [vmem:[#allocation5 + $0x5208] sm:$0xff]
    %v2822 = vld [vmem:[#allocation5 + $0x5210] sm:$0xff]
    %v2823 = vld [vmem:[#allocation5 + $0x5218] sm:$0xff]
    %v2824 = vld [vmem:[#allocation5 + $0x5220] sm:$0xff]
    %v2825 = vld [vmem:[#allocation5 + $0x5228] sm:$0xff]
    %v2826 = vld [vmem:[#allocation5 + $0x5230] sm:$0xff]
    %v2827 = vld [vmem:[#allocation5 + $0x5238] sm:$0xff]
    %v2828 = vld [vmem:[#allocation5 + $0x5240] sm:$0xff]
    %v2829 = vld [vmem:[#allocation5 + $0x5248] sm:$0xff]
    %v2830 = vld [vmem:[#allocation5 + $0x5250] sm:$0xff]
    %v2831 = vld [vmem:[#allocation5 + $0x5258] sm:$0xff]
    %v2832 = vld [vmem:[#allocation5 + $0x5260] sm:$0xff]
    %v2833 = vld [vmem:[#allocation5 + $0x5268] sm:$0xff]
    %v2834 = vld [vmem:[#allocation5 + $0x5270] sm:$0xff]
    %v2835 = vld [vmem:[#allocation5 + $0x5278] sm:$0xff]
    %v2836 = vld [vmem:[#allocation5 + $0x5280] sm:$0xff]
    %v2837 = vld [vmem:[#allocation5 + $0x5288] sm:$0xff]
    %v2838 = vld [vmem:[#allocation5 + $0x5290] sm:$0xff]
    %v2839 = vld [vmem:[#allocation5 + $0x5298] sm:$0xff]
    %v2840 = vld [vmem:[#allocation5 + $0x52a0] sm:$0xff]
    %v2841 = vld [vmem:[#allocation5 + $0x52a8] sm:$0xff]
    %v2842 = vld [vmem:[#allocation5 + $0x52b0] sm:$0xff]
    %v2843 = vld [vmem:[#allocation5 + $0x52b8] sm:$0xff]
    %v2844 = vld [vmem:[#allocation5 + $0x52c0] sm:$0xff]
    %v2845 = vld [vmem:[#allocation5 + $0x52c8] sm:$0xff]
    %v2846 = vld [vmem:[#allocation5 + $0x52d0] sm:$0xff]
    %v2847 = vld [vmem:[#allocation5 + $0x52d8] sm:$0xff]
    %v2848 = vld [vmem:[#allocation5 + $0x52e0] sm:$0xff]
    %v2849 = vld [vmem:[#allocation5 + $0x52e8] sm:$0xff]
    %v2850 = vld [vmem:[#allocation5 + $0x52f0] sm:$0xff]
    %v2851 = vld [vmem:[#allocation5 + $0x52f8] sm:$0xff]
    %v2852 = vld [vmem:[#allocation5 + $0x5300] sm:$0xff]
    %v2853 = vld [vmem:[#allocation5 + $0x5308] sm:$0xff]
    %v2854 = vld [vmem:[#allocation5 + $0x5310] sm:$0xff]
    %v2855 = vld [vmem:[#allocation5 + $0x5318] sm:$0xff]
    %v2856 = vld [vmem:[#allocation5 + $0x5320] sm:$0xff]
    %v2857 = vld [vmem:[#allocation5 + $0x5328] sm:$0xff]
    %v2858 = vld [vmem:[#allocation5 + $0x5330] sm:$0xff]
    %v2859 = vld [vmem:[#allocation5 + $0x5338] sm:$0xff]
    %v2860 = vld [vmem:[#allocation5 + $0x5340] sm:$0xff]
    %v2861 = vld [vmem:[#allocation5 + $0x5348] sm:$0xff]
    %v2862 = vld [vmem:[#allocation5 + $0x5350] sm:$0xff]
    %v2863 = vld [vmem:[#allocation5 + $0x5358] sm:$0xff]
    %v2864 = vld [vmem:[#allocation5 + $0x5360] sm:$0xff]
    %v2865 = vld [vmem:[#allocation5 + $0x5368] sm:$0xff]
    %v2866 = vld [vmem:[#allocation5 + $0x5370] sm:$0xff]
    %v2867 = vld [vmem:[#allocation5 + $0x5378] sm:$0xff]
    %v2868 = vld [vmem:[#allocation5 + $0x5380] sm:$0xff]
    %v2869 = vld [vmem:[#allocation5 + $0x5388] sm:$0xff]
    %v2870 = vld [vmem:[#allocation5 + $0x5390] sm:$0xff]
    %v2871 = vld [vmem:[#allocation5 + $0x5398] sm:$0xff]
    %v2872 = vld [vmem:[#allocation5 + $0x53a0] sm:$0xff]
    %v2873 = vld [vmem:[#allocation5 + $0x53a8] sm:$0xff]
    %v2874 = vld [vmem:[#allocation5 + $0x53b0] sm:$0xff]
    %v2875 = vld [vmem:[#allocation5 + $0x53b8] sm:$0xff]
    %v2876 = vld [vmem:[#allocation5 + $0x53c0] sm:$0xff]
    %v2877 = vld [vmem:[#allocation5 + $0x53c8] sm:$0xff]
    %v2878 = vld [vmem:[#allocation5 + $0x53d0] sm:$0xff]
    %v2879 = vld [vmem:[#allocation5 + $0x53d8] sm:$0xff]
    %v2880 = vld [vmem:[#allocation5 + $0x53e0] sm:$0xff]
    %v2881 = vld [vmem:[#allocation5 + $0x53e8] sm:$0xff]
    %v2882 = vld [vmem:[#allocation5 + $0x53f0] sm:$0xff]
    %v2883 = vld [vmem:[#allocation5 + $0x53f8] sm:$0xff]
    %v2884 = vld [vmem:[#allocation5 + $0x5400] sm:$0xff]
    %v2885 = vld [vmem:[#allocation5 + $0x5408] sm:$0xff]
    %v2886 = vld [vmem:[#allocation5 + $0x5410] sm:$0xff]
    %v2887 = vld [vmem:[#allocation5 + $0x5418] sm:$0xff]
    %v2888 = vld [vmem:[#allocation5 + $0x5420] sm:$0xff]
    %v2889 = vld [vmem:[#allocation5 + $0x5428] sm:$0xff]
    %v2890 = vld [vmem:[#allocation5 + $0x5430] sm:$0xff]
    %v2891 = vld [vmem:[#allocation5 + $0x5438] sm:$0xff]
    %v2892 = vld [vmem:[#allocation5 + $0x5440] sm:$0xff]
    %v2893 = vld [vmem:[#allocation5 + $0x5448] sm:$0xff]
    %v2894 = vld [vmem:[#allocation5 + $0x5450] sm:$0xff]
    %v2895 = vld [vmem:[#allocation5 + $0x5458] sm:$0xff]
    %v2896 = vld [vmem:[#allocation5 + $0x5460] sm:$0xff]
    %v2897 = vld [vmem:[#allocation5 + $0x5468] sm:$0xff]
    %v2898 = vld [vmem:[#allocation5 + $0x5470] sm:$0xff]
    %v2899 = vld [vmem:[#allocation5 + $0x5478] sm:$0xff]
    %v2900 = vld [vmem:[#allocation5 + $0x5480] sm:$0xff]
    %v2901 = vld [vmem:[#allocation5 + $0x5488] sm:$0xff]
    %v2902 = vld [vmem:[#allocation5 + $0x5490] sm:$0xff]
    %v2903 = vld [vmem:[#allocation5 + $0x5498] sm:$0xff]
    %v2904 = vld [vmem:[#allocation5 + $0x54a0] sm:$0xff]
    %v2905 = vld [vmem:[#allocation5 + $0x54a8] sm:$0xff]
    %v2906 = vld [vmem:[#allocation5 + $0x54b0] sm:$0xff]
    %v2907 = vld [vmem:[#allocation5 + $0x54b8] sm:$0xff]
    %v2908 = vld [vmem:[#allocation5 + $0x54c0] sm:$0xff]
    %v2909 = vld [vmem:[#allocation5 + $0x54c8] sm:$0xff]
    %v2910 = vld [vmem:[#allocation5 + $0x54d0] sm:$0xff]
    %v2911 = vld [vmem:[#allocation5 + $0x54d8] sm:$0xff]
    %v2912 = vld [vmem:[#allocation5 + $0x54e0] sm:$0xff]
    %v2913 = vld [vmem:[#allocation5 + $0x54e8] sm:$0xff]
    %v2914 = vld [vmem:[#allocation5 + $0x54f0] sm:$0xff]
    %v2915 = vld [vmem:[#allocation5 + $0x54f8] sm:$0xff]
    %v2916 = vld [vmem:[#allocation5 + $0x5500] sm:$0xff]
    %v2917 = vld [vmem:[#allocation5 + $0x5508] sm:$0xff]
    %v2918 = vld [vmem:[#allocation5 + $0x5510] sm:$0xff]
    %v2919 = vld [vmem:[#allocation5 + $0x5518] sm:$0xff]
    %v2920 = vld [vmem:[#allocation5 + $0x5520] sm:$0xff]
    %v2921 = vld [vmem:[#allocation5 + $0x5528] sm:$0xff]
    %v2922 = vld [vmem:[#allocation5 + $0x5530] sm:$0xff]
    %v2923 = vld [vmem:[#allocation5 + $0x5538] sm:$0xff]
    %v2924 = vld [vmem:[#allocation5 + $0x5540] sm:$0xff]
    %v2925 = vld [vmem:[#allocation5 + $0x5548] sm:$0xff]
    %v2926 = vld [vmem:[#allocation5 + $0x5550] sm:$0xff]
    %v2927 = vld [vmem:[#allocation5 + $0x5558] sm:$0xff]
    %v2928 = vld [vmem:[#allocation5 + $0x5560] sm:$0xff]
    %v2929 = vld [vmem:[#allocation5 + $0x5568] sm:$0xff]
    %v2930 = vld [vmem:[#allocation5 + $0x5570] sm:$0xff]
    %v2931 = vld [vmem:[#allocation5 + $0x5578] sm:$0xff]
    %v2932 = vld [vmem:[#allocation5 + $0x5580] sm:$0xff]
    %v2933 = vld [vmem:[#allocation5 + $0x5588] sm:$0xff]
    %v2934 = vld [vmem:[#allocation5 + $0x5590] sm:$0xff]
    %v2935 = vld [vmem:[#allocation5 + $0x5598] sm:$0xff]
    %v2936 = vld [vmem:[#allocation5 + $0x55a0] sm:$0xff]
    %v2937 = vld [vmem:[#allocation5 + $0x55a8] sm:$0xff]
    %v2938 = vld [vmem:[#allocation5 + $0x55b0] sm:$0xff]
    %v2939 = vld [vmem:[#allocation5 + $0x55b8] sm:$0xff]
    %v2940 = vld [vmem:[#allocation5 + $0x55c0] sm:$0xff]
    %v2941 = vld [vmem:[#allocation5 + $0x55c8] sm:$0xff]
    %v2942 = vld [vmem:[#allocation5 + $0x55d0] sm:$0xff]
    %v2943 = vld [vmem:[#allocation5 + $0x55d8] sm:$0xff]
    %v2944 = vld [vmem:[#allocation5 + $0x55e0] sm:$0xff]
    %v2945 = vld [vmem:[#allocation5 + $0x55e8] sm:$0xff]
    %v2946 = vld [vmem:[#allocation5 + $0x55f0] sm:$0xff]
    %v2947 = vld [vmem:[#allocation5 + $0x55f8] sm:$0xff]
    %v2948 = vld [vmem:[#allocation5 + $0x5600] sm:$0xff]
    %v2949 = vld [vmem:[#allocation5 + $0x5608] sm:$0xff]
    %v2950 = vld [vmem:[#allocation5 + $0x5610] sm:$0xff]
    %v2951 = vld [vmem:[#allocation5 + $0x5618] sm:$0xff]
    %v2952 = vld [vmem:[#allocation5 + $0x5620] sm:$0xff]
    %v2953 = vld [vmem:[#allocation5 + $0x5628] sm:$0xff]
    %v2954 = vld [vmem:[#allocation5 + $0x5630] sm:$0xff]
    %v2955 = vld [vmem:[#allocation5 + $0x5638] sm:$0xff]
    %v2956 = vld [vmem:[#allocation5 + $0x5640] sm:$0xff]
    %v2957 = vld [vmem:[#allocation5 + $0x5648] sm:$0xff]
    %v2958 = vld [vmem:[#allocation5 + $0x5650] sm:$0xff]
    %v2959 = vld [vmem:[#allocation5 + $0x5658] sm:$0xff]
    %v2960 = vld [vmem:[#allocation5 + $0x5660] sm:$0xff]
    %v2961 = vld [vmem:[#allocation5 + $0x5668] sm:$0xff]
    %v2962 = vld [vmem:[#allocation5 + $0x5670] sm:$0xff]
    %v2963 = vld [vmem:[#allocation5 + $0x5678] sm:$0xff]
    %v2964 = vld [vmem:[#allocation5 + $0x5680] sm:$0xff]
    %v2965 = vld [vmem:[#allocation5 + $0x5688] sm:$0xff]
    %v2966 = vld [vmem:[#allocation5 + $0x5690] sm:$0xff]
    %v2967 = vld [vmem:[#allocation5 + $0x5698] sm:$0xff]
    %v2968 = vld [vmem:[#allocation5 + $0x56a0] sm:$0xff]
    %v2969 = vld [vmem:[#allocation5 + $0x56a8] sm:$0xff]
    %v2970 = vld [vmem:[#allocation5 + $0x56b0] sm:$0xff]
    %v2971 = vld [vmem:[#allocation5 + $0x56b8] sm:$0xff]
    %v2972 = vld [vmem:[#allocation5 + $0x56c0] sm:$0xff]
    %v2973 = vld [vmem:[#allocation5 + $0x56c8] sm:$0xff]
    %v2974 = vld [vmem:[#allocation5 + $0x56d0] sm:$0xff]
    %v2975 = vld [vmem:[#allocation5 + $0x56d8] sm:$0xff]
    %v2976 = vld [vmem:[#allocation5 + $0x56e0] sm:$0xff]
    %v2977 = vld [vmem:[#allocation5 + $0x56e8] sm:$0xff]
    %v2978 = vld [vmem:[#allocation5 + $0x56f0] sm:$0xff]
    %v2979 = vld [vmem:[#allocation5 + $0x56f8] sm:$0xff]
    %v2980 = vld [vmem:[#allocation5 + $0x5700] sm:$0xff]
    %v2981 = vld [vmem:[#allocation5 + $0x5708] sm:$0xff]
    %v2982 = vld [vmem:[#allocation5 + $0x5710] sm:$0xff]
    %v2983 = vld [vmem:[#allocation5 + $0x5718] sm:$0xff]
    %v2984 = vld [vmem:[#allocation5 + $0x5720] sm:$0xff]
    %v2985 = vld [vmem:[#allocation5 + $0x5728] sm:$0xff]
    %v2986 = vld [vmem:[#allocation5 + $0x5730] sm:$0xff]
    %v2987 = vld [vmem:[#allocation5 + $0x5738] sm:$0xff]
    %v2988 = vld [vmem:[#allocation5 + $0x5740] sm:$0xff]
    %v2989 = vld [vmem:[#allocation5 + $0x5748] sm:$0xff]
    %v2990 = vld [vmem:[#allocation5 + $0x5750] sm:$0xff]
    %v2991 = vld [vmem:[#allocation5 + $0x5758] sm:$0xff]
    %v2992 = vld [vmem:[#allocation5 + $0x5760] sm:$0xff]
    %v2993 = vld [vmem:[#allocation5 + $0x5768] sm:$0xff]
    %v2994 = vld [vmem:[#allocation5 + $0x5770] sm:$0xff]
    %v2995 = vld [vmem:[#allocation5 + $0x5778] sm:$0xff]
    %v2996 = vld [vmem:[#allocation5 + $0x5780] sm:$0xff]
    %v2997 = vld [vmem:[#allocation5 + $0x5788] sm:$0xff]
    %v2998 = vld [vmem:[#allocation5 + $0x5790] sm:$0xff]
    %v2999 = vld [vmem:[#allocation5 + $0x5798] sm:$0xff]
    %v3000 = vld [vmem:[#allocation5 + $0x57a0] sm:$0xff]
    %v3001 = vld [vmem:[#allocation5 + $0x57a8] sm:$0xff]
    %v3002 = vld [vmem:[#allocation5 + $0x57b0] sm:$0xff]
    %v3003 = vld [vmem:[#allocation5 + $0x57b8] sm:$0xff]
    %v3004 = vld [vmem:[#allocation5 + $0x57c0] sm:$0xff]
    %v3005 = vld [vmem:[#allocation5 + $0x57c8] sm:$0xff]
    %v3006 = vld [vmem:[#allocation5 + $0x57d0] sm:$0xff]
    %v3007 = vld [vmem:[#allocation5 + $0x57d8] sm:$0xff]
    %v3008 = vld [vmem:[#allocation5 + $0x57e0] sm:$0xff]
    %v3009 = vld [vmem:[#allocation5 + $0x57e8] sm:$0xff]
    %v3010 = vld [vmem:[#allocation5 + $0x57f0] sm:$0xff]
    %v3011 = vld [vmem:[#allocation5 + $0x57f8] sm:$0xff]
    %v3012 = vld [vmem:[#allocation5 + $0x5800] sm:$0xff]
    %v3013 = vld [vmem:[#allocation5 + $0x5808] sm:$0xff]
    %v3014 = vld [vmem:[#allocation5 + $0x5810] sm:$0xff]
    %v3015 = vld [vmem:[#allocation5 + $0x5818] sm:$0xff]
    %v3016 = vld [vmem:[#allocation5 + $0x5820] sm:$0xff]
    %v3017 = vld [vmem:[#allocation5 + $0x5828] sm:$0xff]
    %v3018 = vld [vmem:[#allocation5 + $0x5830] sm:$0xff]
    %v3019 = vld [vmem:[#allocation5 + $0x5838] sm:$0xff]
    %v3020 = vld [vmem:[#allocation5 + $0x5840] sm:$0xff]
    %v3021 = vld [vmem:[#allocation5 + $0x5848] sm:$0xff]
    %v3022 = vld [vmem:[#allocation5 + $0x5850] sm:$0xff]
    %v3023 = vld [vmem:[#allocation5 + $0x5858] sm:$0xff]
    %v3024 = vld [vmem:[#allocation5 + $0x5860] sm:$0xff]
    %v3025 = vld [vmem:[#allocation5 + $0x5868] sm:$0xff]
    %v3026 = vld [vmem:[#allocation5 + $0x5870] sm:$0xff]
    %v3027 = vld [vmem:[#allocation5 + $0x5878] sm:$0xff]
    %v3028 = vld [vmem:[#allocation5 + $0x5880] sm:$0xff]
    %v3029 = vld [vmem:[#allocation5 + $0x5888] sm:$0xff]
    %v3030 = vld [vmem:[#allocation5 + $0x5890] sm:$0xff]
    %v3031 = vld [vmem:[#allocation5 + $0x5898] sm:$0xff]
    %v3032 = vld [vmem:[#allocation5 + $0x58a0] sm:$0xff]
    %v3033 = vld [vmem:[#allocation5 + $0x58a8] sm:$0xff]
    %v3034 = vld [vmem:[#allocation5 + $0x58b0] sm:$0xff]
    %v3035 = vld [vmem:[#allocation5 + $0x58b8] sm:$0xff]
    %v3036 = vld [vmem:[#allocation5 + $0x58c0] sm:$0xff]
    %v3037 = vld [vmem:[#allocation5 + $0x58c8] sm:$0xff]
    %v3038 = vld [vmem:[#allocation5 + $0x58d0] sm:$0xff]
    %v3039 = vld [vmem:[#allocation5 + $0x58d8] sm:$0xff]
    %v3040 = vld [vmem:[#allocation5 + $0x58e0] sm:$0xff]
    %v3041 = vld [vmem:[#allocation5 + $0x58e8] sm:$0xff]
    %v3042 = vld [vmem:[#allocation5 + $0x58f0] sm:$0xff]
    %v3043 = vld [vmem:[#allocation5 + $0x58f8] sm:$0xff]
    %v3044 = vld [vmem:[#allocation5 + $0x5900] sm:$0xff]
    %v3045 = vld [vmem:[#allocation5 + $0x5908] sm:$0xff]
    %v3046 = vld [vmem:[#allocation5 + $0x5910] sm:$0xff]
    %v3047 = vld [vmem:[#allocation5 + $0x5918] sm:$0xff]
    %v3048 = vld [vmem:[#allocation5 + $0x5920] sm:$0xff]
    %v3049 = vld [vmem:[#allocation5 + $0x5928] sm:$0xff]
    %v3050 = vld [vmem:[#allocation5 + $0x5930] sm:$0xff]
    %v3051 = vld [vmem:[#allocation5 + $0x5938] sm:$0xff]
    %v3052 = vld [vmem:[#allocation5 + $0x5940] sm:$0xff]
    %v3053 = vld [vmem:[#allocation5 + $0x5948] sm:$0xff]
    %v3054 = vld [vmem:[#allocation5 + $0x5950] sm:$0xff]
    %v3055 = vld [vmem:[#allocation5 + $0x5958] sm:$0xff]
    %v3056 = vld [vmem:[#allocation5 + $0x5960] sm:$0xff]
    %v3057 = vld [vmem:[#allocation5 + $0x5968] sm:$0xff]
    %v3058 = vld [vmem:[#allocation5 + $0x5970] sm:$0xff]
    %v3059 = vld [vmem:[#allocation5 + $0x5978] sm:$0xff]
    %v3060 = vld [vmem:[#allocation5 + $0x5980] sm:$0xff]
    %v3061 = vld [vmem:[#allocation5 + $0x5988] sm:$0xff]
    %v3062 = vld [vmem:[#allocation5 + $0x5990] sm:$0xff]
    %v3063 = vld [vmem:[#allocation5 + $0x5998] sm:$0xff]
    %v3064 = vld [vmem:[#allocation5 + $0x59a0] sm:$0xff]
    %v3065 = vld [vmem:[#allocation5 + $0x59a8] sm:$0xff]
    %v3066 = vld [vmem:[#allocation5 + $0x59b0] sm:$0xff]
    %v3067 = vld [vmem:[#allocation5 + $0x59b8] sm:$0xff]
    %v3068 = vld [vmem:[#allocation5 + $0x59c0] sm:$0xff]
    %v3069 = vld [vmem:[#allocation5 + $0x59c8] sm:$0xff]
    %v3070 = vld [vmem:[#allocation5 + $0x59d0] sm:$0xff]
    %v3071 = vld [vmem:[#allocation5 + $0x59d8] sm:$0xff]
    %v3072 = vld [vmem:[#allocation5 + $0x59e0] sm:$0xff]
    %v3073 = vld [vmem:[#allocation5 + $0x59e8] sm:$0xff]
    %v3074 = vld [vmem:[#allocation5 + $0x59f0] sm:$0xff]
    %v3075 = vld [vmem:[#allocation5 + $0x59f8] sm:$0xff]
    %v3076 = vld [vmem:[#allocation5 + $0x5a00] sm:$0xff]
    %v3077 = vld [vmem:[#allocation5 + $0x5a08] sm:$0xff]
    %v3078 = vld [vmem:[#allocation5 + $0x5a10] sm:$0xff]
    %v3079 = vld [vmem:[#allocation5 + $0x5a18] sm:$0xff]
    %v3080 = vld [vmem:[#allocation5 + $0x5a20] sm:$0xff]
    %v3081 = vld [vmem:[#allocation5 + $0x5a28] sm:$0xff]
    %v3082 = vld [vmem:[#allocation5 + $0x5a30] sm:$0xff]
    %v3083 = vld [vmem:[#allocation5 + $0x5a38] sm:$0xff]
    %v3084 = vld [vmem:[#allocation5 + $0x5a40] sm:$0xff]
    %v3085 = vld [vmem:[#allocation5 + $0x5a48] sm:$0xff]
    %v3086 = vld [vmem:[#allocation5 + $0x5a50] sm:$0xff]
    %v3087 = vld [vmem:[#allocation5 + $0x5a58] sm:$0xff]
    %v3088 = vld [vmem:[#allocation5 + $0x5a60] sm:$0xff]
    %v3089 = vld [vmem:[#allocation5 + $0x5a68] sm:$0xff]
    %v3090 = vld [vmem:[#allocation5 + $0x5a70] sm:$0xff]
    %v3091 = vld [vmem:[#allocation5 + $0x5a78] sm:$0xff]
    %v3092 = vld [vmem:[#allocation5 + $0x5a80] sm:$0xff]
    %v3093 = vld [vmem:[#allocation5 + $0x5a88] sm:$0xff]
    %v3094 = vld [vmem:[#allocation5 + $0x5a90] sm:$0xff]
    %v3095 = vld [vmem:[#allocation5 + $0x5a98] sm:$0xff]
    %v3096 = vld [vmem:[#allocation5 + $0x5aa0] sm:$0xff]
    %v3097 = vld [vmem:[#allocation5 + $0x5aa8] sm:$0xff]
    %v3098 = vld [vmem:[#allocation5 + $0x5ab0] sm:$0xff]
    %v3099 = vld [vmem:[#allocation5 + $0x5ab8] sm:$0xff]
    %v3100 = vld [vmem:[#allocation5 + $0x5ac0] sm:$0xff]
    %v3101 = vld [vmem:[#allocation5 + $0x5ac8] sm:$0xff]
    %v3102 = vld [vmem:[#allocation5 + $0x5ad0] sm:$0xff]
    %v3103 = vld [vmem:[#allocation5 + $0x5ad8] sm:$0xff]
    %v3104 = vld [vmem:[#allocation5 + $0x5ae0] sm:$0xff]
    %v3105 = vld [vmem:[#allocation5 + $0x5ae8] sm:$0xff]
    %v3106 = vld [vmem:[#allocation5 + $0x5af0] sm:$0xff]
    %v3107 = vld [vmem:[#allocation5 + $0x5af8] sm:$0xff]
    %v3108 = vld [vmem:[#allocation5 + $0x5b00] sm:$0xff]
    %v3109 = vld [vmem:[#allocation5 + $0x5b08] sm:$0xff]
    %v3110 = vld [vmem:[#allocation5 + $0x5b10] sm:$0xff]
    %v3111 = vld [vmem:[#allocation5 + $0x5b18] sm:$0xff]
    %v3112 = vld [vmem:[#allocation5 + $0x5b20] sm:$0xff]
    %v3113 = vld [vmem:[#allocation5 + $0x5b28] sm:$0xff]
    %v3114 = vld [vmem:[#allocation5 + $0x5b30] sm:$0xff]
    %v3115 = vld [vmem:[#allocation5 + $0x5b38] sm:$0xff]
    %v3116 = vld [vmem:[#allocation5 + $0x5b40] sm:$0xff]
    %v3117 = vld [vmem:[#allocation5 + $0x5b48] sm:$0xff]
    %v3118 = vld [vmem:[#allocation5 + $0x5b50] sm:$0xff]
    %v3119 = vld [vmem:[#allocation5 + $0x5b58] sm:$0xff]
    %v3120 = vld [vmem:[#allocation5 + $0x5b60] sm:$0xff]
    %v3121 = vld [vmem:[#allocation5 + $0x5b68] sm:$0xff]
    %v3122 = vld [vmem:[#allocation5 + $0x5b70] sm:$0xff]
    %v3123 = vld [vmem:[#allocation5 + $0x5b78] sm:$0xff]
    %v3124 = vld [vmem:[#allocation5 + $0x5b80] sm:$0xff]
    %v3125 = vld [vmem:[#allocation5 + $0x5b88] sm:$0xff]
    %v3126 = vld [vmem:[#allocation5 + $0x5b90] sm:$0xff]
    %v3127 = vld [vmem:[#allocation5 + $0x5b98] sm:$0xff]
    %v3128 = vld [vmem:[#allocation5 + $0x5ba0] sm:$0xff]
    %v3129 = vld [vmem:[#allocation5 + $0x5ba8] sm:$0xff]
    %v3130 = vld [vmem:[#allocation5 + $0x5bb0] sm:$0xff]
    %v3131 = vld [vmem:[#allocation5 + $0x5bb8] sm:$0xff]
    %v3132 = vld [vmem:[#allocation5 + $0x5bc0] sm:$0xff]
    %v3133 = vld [vmem:[#allocation5 + $0x5bc8] sm:$0xff]
    %v3134 = vld [vmem:[#allocation5 + $0x5bd0] sm:$0xff]
    %v3135 = vld [vmem:[#allocation5 + $0x5bd8] sm:$0xff]
    %v3136 = vld [vmem:[#allocation5 + $0x5be0] sm:$0xff]
    %v3137 = vld [vmem:[#allocation5 + $0x5be8] sm:$0xff]
    %v3138 = vld [vmem:[#allocation5 + $0x5bf0] sm:$0xff]
    %v3139 = vld [vmem:[#allocation5 + $0x5bf8] sm:$0xff]
    %v3140 = vld [vmem:[#allocation5 + $0x5c00] sm:$0xff]
    %v3141 = vld [vmem:[#allocation5 + $0x5c08] sm:$0xff]
    %v3142 = vld [vmem:[#allocation5 + $0x5c10] sm:$0xff]
    %v3143 = vld [vmem:[#allocation5 + $0x5c18] sm:$0xff]
    %v3144 = vld [vmem:[#allocation5 + $0x5c20] sm:$0xff]
    %v3145 = vld [vmem:[#allocation5 + $0x5c28] sm:$0xff]
    %v3146 = vld [vmem:[#allocation5 + $0x5c30] sm:$0xff]
    %v3147 = vld [vmem:[#allocation5 + $0x5c38] sm:$0xff]
    %v3148 = vld [vmem:[#allocation5 + $0x5c40] sm:$0xff]
    %v3149 = vld [vmem:[#allocation5 + $0x5c48] sm:$0xff]
    %v3150 = vld [vmem:[#allocation5 + $0x5c50] sm:$0xff]
    %v3151 = vld [vmem:[#allocation5 + $0x5c58] sm:$0xff]
    %v3152 = vld [vmem:[#allocation5 + $0x5c60] sm:$0xff]
    %v3153 = vld [vmem:[#allocation5 + $0x5c68] sm:$0xff]
    %v3154 = vld [vmem:[#allocation5 + $0x5c70] sm:$0xff]
    %v3155 = vld [vmem:[#allocation5 + $0x5c78] sm:$0xff]
    %v3156 = vld [vmem:[#allocation5 + $0x5c80] sm:$0xff]
    %v3157 = vld [vmem:[#allocation5 + $0x5c88] sm:$0xff]
    %v3158 = vld [vmem:[#allocation5 + $0x5c90] sm:$0xff]
    %v3159 = vld [vmem:[#allocation5 + $0x5c98] sm:$0xff]
    %v3160 = vld [vmem:[#allocation5 + $0x5ca0] sm:$0xff]
    %v3161 = vld [vmem:[#allocation5 + $0x5ca8] sm:$0xff]
    %v3162 = vld [vmem:[#allocation5 + $0x5cb0] sm:$0xff]
    %v3163 = vld [vmem:[#allocation5 + $0x5cb8] sm:$0xff]
    %v3164 = vld [vmem:[#allocation5 + $0x5cc0] sm:$0xff]
    %v3165 = vld [vmem:[#allocation5 + $0x5cc8] sm:$0xff]
    %v3166 = vld [vmem:[#allocation5 + $0x5cd0] sm:$0xff]
    %v3167 = vld [vmem:[#allocation5 + $0x5cd8] sm:$0xff]
    %v3168 = vld [vmem:[#allocation5 + $0x5ce0] sm:$0xff]
    %v3169 = vld [vmem:[#allocation5 + $0x5ce8] sm:$0xff]
    %v3170 = vld [vmem:[#allocation5 + $0x5cf0] sm:$0xff]
    %v3171 = vld [vmem:[#allocation5 + $0x5cf8] sm:$0xff]
    %v3172 = vld [vmem:[#allocation5 + $0x5d00] sm:$0xff]
    %v3173 = vld [vmem:[#allocation5 + $0x5d08] sm:$0xff]
    %v3174 = vld [vmem:[#allocation5 + $0x5d10] sm:$0xff]
    %v3175 = vld [vmem:[#allocation5 + $0x5d18] sm:$0xff]
    %v3176 = vld [vmem:[#allocation5 + $0x5d20] sm:$0xff]
    %v3177 = vld [vmem:[#allocation5 + $0x5d28] sm:$0xff]
    %v3178 = vld [vmem:[#allocation5 + $0x5d30] sm:$0xff]
    %v3179 = vld [vmem:[#allocation5 + $0x5d38] sm:$0xff]
    %v3180 = vld [vmem:[#allocation5 + $0x5d40] sm:$0xff]
    %v3181 = vld [vmem:[#allocation5 + $0x5d48] sm:$0xff]
    %v3182 = vld [vmem:[#allocation5 + $0x5d50] sm:$0xff]
    %v3183 = vld [vmem:[#allocation5 + $0x5d58] sm:$0xff]
    %v3184 = vld [vmem:[#allocation5 + $0x5d60] sm:$0xff]
    %v3185 = vld [vmem:[#allocation5 + $0x5d68] sm:$0xff]
    %v3186 = vld [vmem:[#allocation5 + $0x5d70] sm:$0xff]
    %v3187 = vld [vmem:[#allocation5 + $0x5d78] sm:$0xff]
    %v3188 = vld [vmem:[#allocation5 + $0x5d80] sm:$0xff]
    %v3189 = vld [vmem:[#allocation5 + $0x5d88] sm:$0xff]
    %v3190 = vld [vmem:[#allocation5 + $0x5d90] sm:$0xff]
    %v3191 = vld [vmem:[#allocation5 + $0x5d98] sm:$0xff]
    %v3192 = vld [vmem:[#allocation5 + $0x5da0] sm:$0xff]
    %v3193 = vld [vmem:[#allocation5 + $0x5da8] sm:$0xff]
    %v3194 = vld [vmem:[#allocation5 + $0x5db0] sm:$0xff]
    %v3195 = vld [vmem:[#allocation5 + $0x5db8] sm:$0xff]
    %v3196 = vld [vmem:[#allocation5 + $0x5dc0] sm:$0xff]
    %v3197 = vld [vmem:[#allocation5 + $0x5dc8] sm:$0xff]
    %v3198 = vld [vmem:[#allocation5 + $0x5dd0] sm:$0xff]
    %v3199 = vld [vmem:[#allocation5 + $0x5dd8] sm:$0xff]
    %v3200 = vld [vmem:[#allocation5 + $0x5de0] sm:$0xff]
    %v3201 = vld [vmem:[#allocation5 + $0x5de8] sm:$0xff]
    %v3202 = vld [vmem:[#allocation5 + $0x5df0] sm:$0xff]
    %v3203 = vld [vmem:[#allocation5 + $0x5df8] sm:$0xff]
    %v3204 = vld [vmem:[#allocation5 + $0x5e00] sm:$0xff]
    %v3205 = vld [vmem:[#allocation5 + $0x5e08] sm:$0xff]
    %v3206 = vld [vmem:[#allocation5 + $0x5e10] sm:$0xff]
    %v3207 = vld [vmem:[#allocation5 + $0x5e18] sm:$0xff]
    %v3208 = vld [vmem:[#allocation5 + $0x5e20] sm:$0xff]
    %v3209 = vld [vmem:[#allocation5 + $0x5e28] sm:$0xff]
    %v3210 = vld [vmem:[#allocation5 + $0x5e30] sm:$0xff]
    %v3211 = vld [vmem:[#allocation5 + $0x5e38] sm:$0xff]
    %v3212 = vld [vmem:[#allocation5 + $0x5e40] sm:$0xff]
    %v3213 = vld [vmem:[#allocation5 + $0x5e48] sm:$0xff]
    %v3214 = vld [vmem:[#allocation5 + $0x5e50] sm:$0xff]
    %v3215 = vld [vmem:[#allocation5 + $0x5e58] sm:$0xff]
    %v3216 = vld [vmem:[#allocation5 + $0x5e60] sm:$0xff]
    %v3217 = vld [vmem:[#allocation5 + $0x5e68] sm:$0xff]
    %v3218 = vld [vmem:[#allocation5 + $0x5e70] sm:$0xff]
    %v3219 = vld [vmem:[#allocation5 + $0x5e78] sm:$0xff]
    %v3220 = vld [vmem:[#allocation5 + $0x5e80] sm:$0xff]
    %v3221 = vld [vmem:[#allocation5 + $0x5e88] sm:$0xff]
    %v3222 = vld [vmem:[#allocation5 + $0x5e90] sm:$0xff]
    %v3223 = vld [vmem:[#allocation5 + $0x5e98] sm:$0xff]
    %v3224 = vld [vmem:[#allocation5 + $0x5ea0] sm:$0xff]
    %v3225 = vld [vmem:[#allocation5 + $0x5ea8] sm:$0xff]
    %v3226 = vld [vmem:[#allocation5 + $0x5eb0] sm:$0xff]
    %v3227 = vld [vmem:[#allocation5 + $0x5eb8] sm:$0xff]
    %v3228 = vld [vmem:[#allocation5 + $0x5ec0] sm:$0xff]
    %v3229 = vld [vmem:[#allocation5 + $0x5ec8] sm:$0xff]
    %v3230 = vld [vmem:[#allocation5 + $0x5ed0] sm:$0xff]
    %v3231 = vld [vmem:[#allocation5 + $0x5ed8] sm:$0xff]
    %v3232 = vld [vmem:[#allocation5 + $0x5ee0] sm:$0xff]
    %v3233 = vld [vmem:[#allocation5 + $0x5ee8] sm:$0xff]
    %v3234 = vld [vmem:[#allocation5 + $0x5ef0] sm:$0xff]
    %v3235 = vld [vmem:[#allocation5 + $0x5ef8] sm:$0xff]
    %v3236 = vld [vmem:[#allocation5 + $0x5f00] sm:$0xff]
    %v3237 = vld [vmem:[#allocation5 + $0x5f08] sm:$0xff]
    %v3238 = vld [vmem:[#allocation5 + $0x5f10] sm:$0xff]
    %v3239 = vld [vmem:[#allocation5 + $0x5f18] sm:$0xff]
    %v3240 = vld [vmem:[#allocation5 + $0x5f20] sm:$0xff]
    %v3241 = vld [vmem:[#allocation5 + $0x5f28] sm:$0xff]
    %v3242 = vld [vmem:[#allocation5 + $0x5f30] sm:$0xff]
    %v3243 = vld [vmem:[#allocation5 + $0x5f38] sm:$0xff]
    %v3244 = vld [vmem:[#allocation5 + $0x5f40] sm:$0xff]
    %v3245 = vld [vmem:[#allocation5 + $0x5f48] sm:$0xff]
    %v3246 = vld [vmem:[#allocation5 + $0x5f50] sm:$0xff]
    %v3247 = vld [vmem:[#allocation5 + $0x5f58] sm:$0xff]
    %v3248 = vld [vmem:[#allocation5 + $0x5f60] sm:$0xff]
    %v3249 = vld [vmem:[#allocation5 + $0x5f68] sm:$0xff]
    %v3250 = vld [vmem:[#allocation5 + $0x5f70] sm:$0xff]
    %v3251 = vld [vmem:[#allocation5 + $0x5f78] sm:$0xff]
    %v3252 = vld [vmem:[#allocation5 + $0x5f80] sm:$0xff]
    %v3253 = vld [vmem:[#allocation5 + $0x5f88] sm:$0xff]
    %v3254 = vld [vmem:[#allocation5 + $0x5f90] sm:$0xff]
    %v3255 = vld [vmem:[#allocation5 + $0x5f98] sm:$0xff]
    %v3256 = vld [vmem:[#allocation5 + $0x5fa0] sm:$0xff]
    %v3257 = vld [vmem:[#allocation5 + $0x5fa8] sm:$0xff]
    %v3258 = vld [vmem:[#allocation5 + $0x5fb0] sm:$0xff]
    %v3259 = vld [vmem:[#allocation5 + $0x5fb8] sm:$0xff]
    %v3260 = vld [vmem:[#allocation5 + $0x5fc0] sm:$0xff]
    %v3261 = vld [vmem:[#allocation5 + $0x5fc8] sm:$0xff]
    %v3262 = vld [vmem:[#allocation5 + $0x5fd0] sm:$0xff]
    %v3263 = vld [vmem:[#allocation5 + $0x5fd8] sm:$0xff]
    %v3264 = vld [vmem:[#allocation5 + $0x5fe0] sm:$0xff]
    %v3265 = vld [vmem:[#allocation5 + $0x5fe8] sm:$0xff]
    %v3266 = vld [vmem:[#allocation5 + $0x5ff0] sm:$0xff]
    %v3267 = vld [vmem:[#allocation5 + $0x5ff8] sm:$0xff]
    %v3268 = vld [vmem:[#allocation5 + $0x6000] sm:$0xff]
    %v3269 = vld [vmem:[#allocation5 + $0x6008] sm:$0xff]
    %v3270 = vld [vmem:[#allocation5 + $0x6010] sm:$0xff]
    %v3271 = vld [vmem:[#allocation5 + $0x6018] sm:$0xff]
    %v3272 = vld [vmem:[#allocation5 + $0x6020] sm:$0xff]
    %v3273 = vld [vmem:[#allocation5 + $0x6028] sm:$0xff]
    %v3274 = vld [vmem:[#allocation5 + $0x6030] sm:$0xff]
    %v3275 = vld [vmem:[#allocation5 + $0x6038] sm:$0xff]
    %v3276 = vld [vmem:[#allocation5 + $0x6040] sm:$0xff]
    %v3277 = vld [vmem:[#allocation5 + $0x6048] sm:$0xff]
    %v3278 = vld [vmem:[#allocation5 + $0x6050] sm:$0xff]
    %v3279 = vld [vmem:[#allocation5 + $0x6058] sm:$0xff]
    %v3280 = vld [vmem:[#allocation5 + $0x6060] sm:$0xff]
    %v3281 = vld [vmem:[#allocation5 + $0x6068] sm:$0xff]
    %v3282 = vld [vmem:[#allocation5 + $0x6070] sm:$0xff]
    %v3283 = vld [vmem:[#allocation5 + $0x6078] sm:$0xff]
    %v3284 = vld [vmem:[#allocation5 + $0x6080] sm:$0xff]
    %v3285 = vld [vmem:[#allocation5 + $0x6088] sm:$0xff]
    %v3286 = vld [vmem:[#allocation5 + $0x6090] sm:$0xff]
    %v3287 = vld [vmem:[#allocation5 + $0x6098] sm:$0xff]
    %v3288 = vld [vmem:[#allocation5 + $0x60a0] sm:$0xff]
    %v3289 = vld [vmem:[#allocation5 + $0x60a8] sm:$0xff]
    %v3290 = vld [vmem:[#allocation5 + $0x60b0] sm:$0xff]
    %v3291 = vld [vmem:[#allocation5 + $0x60b8] sm:$0xff]
    %v3292 = vld [vmem:[#allocation5 + $0x60c0] sm:$0xff]
    %v3293 = vld [vmem:[#allocation5 + $0x60c8] sm:$0xff]
    %v3294 = vld [vmem:[#allocation5 + $0x60d0] sm:$0xff]
    %v3295 = vld [vmem:[#allocation5 + $0x60d8] sm:$0xff]
    %v3296 = vld [vmem:[#allocation5 + $0x60e0] sm:$0xff]
    %v3297 = vld [vmem:[#allocation5 + $0x60e8] sm:$0xff]
    %v3298 = vld [vmem:[#allocation5 + $0x60f0] sm:$0xff]
    %v3299 = vld [vmem:[#allocation5 + $0x60f8] sm:$0xff]
    %v3300 = vld [vmem:[#allocation5 + $0x6100] sm:$0xff]
    %v3301 = vld [vmem:[#allocation5 + $0x6108] sm:$0xff]
    %v3302 = vld [vmem:[#allocation5 + $0x6110] sm:$0xff]
    %v3303 = vld [vmem:[#allocation5 + $0x6118] sm:$0xff]
    %v3304 = vld [vmem:[#allocation5 + $0x6120] sm:$0xff]
    %v3305 = vld [vmem:[#allocation5 + $0x6128] sm:$0xff]
    %v3306 = vld [vmem:[#allocation5 + $0x6130] sm:$0xff]
    %v3307 = vld [vmem:[#allocation5 + $0x6138] sm:$0xff]
    %v3308 = vld [vmem:[#allocation5 + $0x6140] sm:$0xff]
    %v3309 = vld [vmem:[#allocation5 + $0x6148] sm:$0xff]
    %v3310 = vld [vmem:[#allocation5 + $0x6150] sm:$0xff]
    %v3311 = vld [vmem:[#allocation5 + $0x6158] sm:$0xff]
    %v3312 = vld [vmem:[#allocation5 + $0x6160] sm:$0xff]
    %v3313 = vld [vmem:[#allocation5 + $0x6168] sm:$0xff]
    %v3314 = vld [vmem:[#allocation5 + $0x6170] sm:$0xff]
    %v3315 = vld [vmem:[#allocation5 + $0x6178] sm:$0xff]
    %v3316 = vld [vmem:[#allocation5 + $0x6180] sm:$0xff]
    %v3317 = vld [vmem:[#allocation5 + $0x6188] sm:$0xff]
    %v3318 = vld [vmem:[#allocation5 + $0x6190] sm:$0xff]
    %v3319 = vld [vmem:[#allocation5 + $0x6198] sm:$0xff]
    %v3320 = vld [vmem:[#allocation5 + $0x61a0] sm:$0xff]
    %v3321 = vld [vmem:[#allocation5 + $0x61a8] sm:$0xff]
    %v3322 = vld [vmem:[#allocation5 + $0x61b0] sm:$0xff]
    %v3323 = vld [vmem:[#allocation5 + $0x61b8] sm:$0xff]
    %v3324 = vld [vmem:[#allocation5 + $0x61c0] sm:$0xff]
    %v3325 = vld [vmem:[#allocation5 + $0x61c8] sm:$0xff]
    %v3326 = vld [vmem:[#allocation5 + $0x61d0] sm:$0xff]
    %v3327 = vld [vmem:[#allocation5 + $0x61d8] sm:$0xff]
    %v3328 = vld [vmem:[#allocation5 + $0x61e0] sm:$0xff]
    %v3329 = vld [vmem:[#allocation5 + $0x61e8] sm:$0xff]
    %v3330 = vld [vmem:[#allocation5 + $0x61f0] sm:$0xff]
    %v3331 = vld [vmem:[#allocation5 + $0x61f8] sm:$0xff]
    %v3332 = vld [vmem:[#allocation5 + $0x6200] sm:$0xff]
    %v3333 = vld [vmem:[#allocation5 + $0x6208] sm:$0xff]
    %v3334 = vld [vmem:[#allocation5 + $0x6210] sm:$0xff]
    %v3335 = vld [vmem:[#allocation5 + $0x6218] sm:$0xff]
    %v3336 = vld [vmem:[#allocation5 + $0x6220] sm:$0xff]
    %v3337 = vld [vmem:[#allocation5 + $0x6228] sm:$0xff]
    %v3338 = vld [vmem:[#allocation5 + $0x6230] sm:$0xff]
    %v3339 = vld [vmem:[#allocation5 + $0x6238] sm:$0xff]
    %v3340 = vld [vmem:[#allocation5 + $0x6240] sm:$0xff]
    %v3341 = vld [vmem:[#allocation5 + $0x6248] sm:$0xff]
    %v3342 = vld [vmem:[#allocation5 + $0x6250] sm:$0xff]
    %v3343 = vld [vmem:[#allocation5 + $0x6258] sm:$0xff]
    %v3344 = vld [vmem:[#allocation5 + $0x6260] sm:$0xff]
    %v3345 = vld [vmem:[#allocation5 + $0x6268] sm:$0xff]
    %v3346 = vld [vmem:[#allocation5 + $0x6270] sm:$0xff]
    %v3347 = vld [vmem:[#allocation5 + $0x6278] sm:$0xff]
    %v3348 = vld [vmem:[#allocation5 + $0x6280] sm:$0xff]
    %v3349 = vld [vmem:[#allocation5 + $0x6288] sm:$0xff]
    %v3350 = vld [vmem:[#allocation5 + $0x6290] sm:$0xff]
    %v3351 = vld [vmem:[#allocation5 + $0x6298] sm:$0xff]
    %v3352 = vld [vmem:[#allocation5 + $0x62a0] sm:$0xff]
    %v3353 = vld [vmem:[#allocation5 + $0x62a8] sm:$0xff]
    %v3354 = vld [vmem:[#allocation5 + $0x62b0] sm:$0xff]
    %v3355 = vld [vmem:[#allocation5 + $0x62b8] sm:$0xff]
    %v3356 = vld [vmem:[#allocation5 + $0x62c0] sm:$0xff]
    %v3357 = vld [vmem:[#allocation5 + $0x62c8] sm:$0xff]
    %v3358 = vld [vmem:[#allocation5 + $0x62d0] sm:$0xff]
    %v3359 = vld [vmem:[#allocation5 + $0x62d8] sm:$0xff]
    %v3360 = vld [vmem:[#allocation5 + $0x62e0] sm:$0xff]
    %v3361 = vld [vmem:[#allocation5 + $0x62e8] sm:$0xff]
    %v3362 = vld [vmem:[#allocation5 + $0x62f0] sm:$0xff]
    %v3363 = vld [vmem:[#allocation5 + $0x62f8] sm:$0xff]
    %v3364 = vld [vmem:[#allocation5 + $0x6300] sm:$0xff]
    %v3365 = vld [vmem:[#allocation5 + $0x6308] sm:$0xff]
    %v3366 = vld [vmem:[#allocation5 + $0x6310] sm:$0xff]
    %v3367 = vld [vmem:[#allocation5 + $0x6318] sm:$0xff]
    %v3368 = vld [vmem:[#allocation5 + $0x6320] sm:$0xff]
    %v3369 = vld [vmem:[#allocation5 + $0x6328] sm:$0xff]
    %v3370 = vld [vmem:[#allocation5 + $0x6330] sm:$0xff]
    %v3371 = vld [vmem:[#allocation5 + $0x6338] sm:$0xff]
    %v3372 = vld [vmem:[#allocation5 + $0x6340] sm:$0xff]
    %v3373 = vld [vmem:[#allocation5 + $0x6348] sm:$0xff]
    %v3374 = vld [vmem:[#allocation5 + $0x6350] sm:$0xff]
    %v3375 = vld [vmem:[#allocation5 + $0x6358] sm:$0xff]
    %v3376 = vld [vmem:[#allocation5 + $0x6360] sm:$0xff]
    %v3377 = vld [vmem:[#allocation5 + $0x6368] sm:$0xff]
    %v3378 = vld [vmem:[#allocation5 + $0x6370] sm:$0xff]
    %v3379 = vld [vmem:[#allocation5 + $0x6378] sm:$0xff]
    %v3380 = vld [vmem:[#allocation5 + $0x6380] sm:$0xff]
    %v3381 = vld [vmem:[#allocation5 + $0x6388] sm:$0xff]
    %v3382 = vld [vmem:[#allocation5 + $0x6390] sm:$0xff]
    %v3383 = vld [vmem:[#allocation5 + $0x6398] sm:$0xff]
    %v3384 = vld [vmem:[#allocation5 + $0x63a0] sm:$0xff]
    %v3385 = vld [vmem:[#allocation5 + $0x63a8] sm:$0xff]
    %v3386 = vld [vmem:[#allocation5 + $0x63b0] sm:$0xff]
    %v3387 = vld [vmem:[#allocation5 + $0x63b8] sm:$0xff]
    %v3388 = vld [vmem:[#allocation5 + $0x63c0] sm:$0xff]
    %v3389 = vld [vmem:[#allocation5 + $0x63c8] sm:$0xff]
    %v3390 = vld [vmem:[#allocation5 + $0x63d0] sm:$0xff]
    %v3391 = vld [vmem:[#allocation5 + $0x63d8] sm:$0xff]
    %v3392 = vld [vmem:[#allocation5 + $0x63e0] sm:$0xff]
    %v3393 = vld [vmem:[#allocation5 + $0x63e8] sm:$0xff]
    %v3394 = vld [vmem:[#allocation5 + $0x63f0] sm:$0xff]
    %v3395 = vld [vmem:[#allocation5 + $0x63f8] sm:$0xff]
    %v3396 = vld [vmem:[#allocation5 + $0x6400] sm:$0xff]
    %v3397 = vld [vmem:[#allocation5 + $0x6408] sm:$0xff]
    %v3398 = vld [vmem:[#allocation5 + $0x6410] sm:$0xff]
    %v3399 = vld [vmem:[#allocation5 + $0x6418] sm:$0xff]
    %v3400 = vld [vmem:[#allocation5 + $0x6420] sm:$0xff]
    %v3401 = vld [vmem:[#allocation5 + $0x6428] sm:$0xff]
    %v3402 = vld [vmem:[#allocation5 + $0x6430] sm:$0xff]
    %v3403 = vld [vmem:[#allocation5 + $0x6438] sm:$0xff]
    %v3404 = vld [vmem:[#allocation5 + $0x6440] sm:$0xff]
    %v3405 = vld [vmem:[#allocation5 + $0x6448] sm:$0xff]
    %v3406 = vld [vmem:[#allocation5 + $0x6450] sm:$0xff]
    %v3407 = vld [vmem:[#allocation5 + $0x6458] sm:$0xff]
    %v3408 = vld [vmem:[#allocation5 + $0x6460] sm:$0xff]
    %v3409 = vld [vmem:[#allocation5 + $0x6468] sm:$0xff]
    %v3410 = vld [vmem:[#allocation5 + $0x6470] sm:$0xff]
    %v3411 = vld [vmem:[#allocation5 + $0x6478] sm:$0xff]
    %v3412 = vld [vmem:[#allocation5 + $0x6480] sm:$0xff]
    %v3413 = vld [vmem:[#allocation5 + $0x6488] sm:$0xff]
    %v3414 = vld [vmem:[#allocation5 + $0x6490] sm:$0xff]
    %v3415 = vld [vmem:[#allocation5 + $0x6498] sm:$0xff]
    %v3416 = vld [vmem:[#allocation5 + $0x64a0] sm:$0xff]
    %v3417 = vld [vmem:[#allocation5 + $0x64a8] sm:$0xff]
    %v3418 = vld [vmem:[#allocation5 + $0x64b0] sm:$0xff]
    %v3419 = vld [vmem:[#allocation5 + $0x64b8] sm:$0xff]
    %v3420 = vld [vmem:[#allocation5 + $0x64c0] sm:$0xff]
    %v3421 = vld [vmem:[#allocation5 + $0x64c8] sm:$0xff]
    %v3422 = vld [vmem:[#allocation5 + $0x64d0] sm:$0xff]
    %v3423 = vld [vmem:[#allocation5 + $0x64d8] sm:$0xff]
    %v3424 = vld [vmem:[#allocation5 + $0x64e0] sm:$0xff]
    %v3425 = vld [vmem:[#allocation5 + $0x64e8] sm:$0xff]
    %v3426 = vld [vmem:[#allocation5 + $0x64f0] sm:$0xff]
    %v3427 = vld [vmem:[#allocation5 + $0x64f8] sm:$0xff]
    %v3428 = vld [vmem:[#allocation5 + $0x6500] sm:$0xff]
    %v3429 = vld [vmem:[#allocation5 + $0x6508] sm:$0xff]
    %v3430 = vld [vmem:[#allocation5 + $0x6510] sm:$0xff]
    %v3431 = vld [vmem:[#allocation5 + $0x6518] sm:$0xff]
    %v3432 = vld [vmem:[#allocation5 + $0x6520] sm:$0xff]
    %v3433 = vld [vmem:[#allocation5 + $0x6528] sm:$0xff]
    %v3434 = vld [vmem:[#allocation5 + $0x6530] sm:$0xff]
    %v3435 = vld [vmem:[#allocation5 + $0x6538] sm:$0xff]
    %v3436 = vld [vmem:[#allocation5 + $0x6540] sm:$0xff]
    %v3437 = vld [vmem:[#allocation5 + $0x6548] sm:$0xff]
    %v3438 = vld [vmem:[#allocation5 + $0x6550] sm:$0xff]
    %v3439 = vld [vmem:[#allocation5 + $0x6558] sm:$0xff]
    %v3440 = vld [vmem:[#allocation5 + $0x6560] sm:$0xff]
    %v3441 = vld [vmem:[#allocation5 + $0x6568] sm:$0xff]
    %v3442 = vld [vmem:[#allocation5 + $0x6570] sm:$0xff]
    %v3443 = vld [vmem:[#allocation5 + $0x6578] sm:$0xff]
    %v3444 = vld [vmem:[#allocation5 + $0x6580] sm:$0xff]
    %v3445 = vld [vmem:[#allocation5 + $0x6588] sm:$0xff]
    %v3446 = vld [vmem:[#allocation5 + $0x6590] sm:$0xff]
    %v3447 = vld [vmem:[#allocation5 + $0x6598] sm:$0xff]
    %v3448 = vld [vmem:[#allocation5 + $0x65a0] sm:$0xff]
    %v3449 = vld [vmem:[#allocation5 + $0x65a8] sm:$0xff]
    %v3450 = vld [vmem:[#allocation5 + $0x65b0] sm:$0xff]
    %v3451 = vld [vmem:[#allocation5 + $0x65b8] sm:$0xff]
    %v3452 = vld [vmem:[#allocation5 + $0x65c0] sm:$0xff]
    %v3453 = vld [vmem:[#allocation5 + $0x65c8] sm:$0xff]
    %v3454 = vld [vmem:[#allocation5 + $0x65d0] sm:$0xff]
    %v3455 = vld [vmem:[#allocation5 + $0x65d8] sm:$0xff]
    %v3456 = vld [vmem:[#allocation5 + $0x65e0] sm:$0xff]
    %v3457 = vld [vmem:[#allocation5 + $0x65e8] sm:$0xff]
    %v3458 = vld [vmem:[#allocation5 + $0x65f0] sm:$0xff]
    %v3459 = vld [vmem:[#allocation5 + $0x65f8] sm:$0xff]
    %v3460 = vld [vmem:[#allocation5 + $0x6600] sm:$0xff]
    %v3461 = vld [vmem:[#allocation5 + $0x6608] sm:$0xff]
    %v3462 = vld [vmem:[#allocation5 + $0x6610] sm:$0xff]
    %v3463 = vld [vmem:[#allocation5 + $0x6618] sm:$0xff]
    %v3464 = vld [vmem:[#allocation5 + $0x6620] sm:$0xff]
    %v3465 = vld [vmem:[#allocation5 + $0x6628] sm:$0xff]
    %v3466 = vld [vmem:[#allocation5 + $0x6630] sm:$0xff]
    %v3467 = vld [vmem:[#allocation5 + $0x6638] sm:$0xff]
    %v3468 = vld [vmem:[#allocation5 + $0x6640] sm:$0xff]
    %v3469 = vld [vmem:[#allocation5 + $0x6648] sm:$0xff]
    %v3470 = vld [vmem:[#allocation5 + $0x6650] sm:$0xff]
    %v3471 = vld [vmem:[#allocation5 + $0x6658] sm:$0xff]
    %v3472 = vld [vmem:[#allocation5 + $0x6660] sm:$0xff]
    %v3473 = vld [vmem:[#allocation5 + $0x6668] sm:$0xff]
    %v3474 = vld [vmem:[#allocation5 + $0x6670] sm:$0xff]
    %v3475 = vld [vmem:[#allocation5 + $0x6678] sm:$0xff]
    %v3476 = vld [vmem:[#allocation5 + $0x6680] sm:$0xff]
    %v3477 = vld [vmem:[#allocation5 + $0x6688] sm:$0xff]
    %v3478 = vld [vmem:[#allocation5 + $0x6690] sm:$0xff]
    %v3479 = vld [vmem:[#allocation5 + $0x6698] sm:$0xff]
    %v3480 = vld [vmem:[#allocation5 + $0x66a0] sm:$0xff]
    %v3481 = vld [vmem:[#allocation5 + $0x66a8] sm:$0xff]
    %v3482 = vld [vmem:[#allocation5 + $0x66b0] sm:$0xff]
    %v3483 = vld [vmem:[#allocation5 + $0x66b8] sm:$0xff]
    %v3484 = vld [vmem:[#allocation5 + $0x66c0] sm:$0xff]
    %v3485 = vld [vmem:[#allocation5 + $0x66c8] sm:$0xff]
    %v3486 = vld [vmem:[#allocation5 + $0x66d0] sm:$0xff]
    %v3487 = vld [vmem:[#allocation5 + $0x66d8] sm:$0xff]
    %v3488 = vld [vmem:[#allocation5 + $0x66e0] sm:$0xff]
    %v3489 = vld [vmem:[#allocation5 + $0x66e8] sm:$0xff]
    %v3490 = vld [vmem:[#allocation5 + $0x66f0] sm:$0xff]
    %v3491 = vld [vmem:[#allocation5 + $0x66f8] sm:$0xff]
    %v3492 = vld [vmem:[#allocation5 + $0x6700] sm:$0xff]
    %v3493 = vld [vmem:[#allocation5 + $0x6708] sm:$0xff]
    %v3494 = vld [vmem:[#allocation5 + $0x6710] sm:$0xff]
    %v3495 = vld [vmem:[#allocation5 + $0x6718] sm:$0xff]
    %v3496 = vld [vmem:[#allocation5 + $0x6720] sm:$0xff]
    %v3497 = vld [vmem:[#allocation5 + $0x6728] sm:$0xff]
    %v3498 = vld [vmem:[#allocation5 + $0x6730] sm:$0xff]
    %v3499 = vld [vmem:[#allocation5 + $0x6738] sm:$0xff]
    %v3500 = vld [vmem:[#allocation5 + $0x6740] sm:$0xff]
    %v3501 = vld [vmem:[#allocation5 + $0x6748] sm:$0xff]
    %v3502 = vld [vmem:[#allocation5 + $0x6750] sm:$0xff]
    %v3503 = vld [vmem:[#allocation5 + $0x6758] sm:$0xff]
    %v3504 = vld [vmem:[#allocation5 + $0x6760] sm:$0xff]
    %v3505 = vld [vmem:[#allocation5 + $0x6768] sm:$0xff]
    %v3506 = vld [vmem:[#allocation5 + $0x6770] sm:$0xff]
    %v3507 = vld [vmem:[#allocation5 + $0x6778] sm:$0xff]
    %v3508 = vld [vmem:[#allocation5 + $0x6780] sm:$0xff]
    %v3509 = vld [vmem:[#allocation5 + $0x6788] sm:$0xff]
    %v3510 = vld [vmem:[#allocation5 + $0x6790] sm:$0xff]
    %v3511 = vld [vmem:[#allocation5 + $0x6798] sm:$0xff]
    %v3512 = vld [vmem:[#allocation5 + $0x67a0] sm:$0xff]
    %v3513 = vld [vmem:[#allocation5 + $0x67a8] sm:$0xff]
    %v3514 = vld [vmem:[#allocation5 + $0x67b0] sm:$0xff]
    %v3515 = vld [vmem:[#allocation5 + $0x67b8] sm:$0xff]
    %v3516 = vld [vmem:[#allocation5 + $0x67c0] sm:$0xff]
    %v3517 = vld [vmem:[#allocation5 + $0x67c8] sm:$0xff]
    %v3518 = vld [vmem:[#allocation5 + $0x67d0] sm:$0xff]
    %v3519 = vld [vmem:[#allocation5 + $0x67d8] sm:$0xff]
    %v3520 = vld [vmem:[#allocation5 + $0x67e0] sm:$0xff]
    %v3521 = vld [vmem:[#allocation5 + $0x67e8] sm:$0xff]
    %v3522 = vld [vmem:[#allocation5 + $0x67f0] sm:$0xff]
    %v3523 = vld [vmem:[#allocation5 + $0x67f8] sm:$0xff]
    %v3524 = vld [vmem:[#allocation5 + $0x6800] sm:$0xff]
    %v3525 = vld [vmem:[#allocation5 + $0x6808] sm:$0xff]
    %v3526 = vld [vmem:[#allocation5 + $0x6810] sm:$0xff]
    %v3527 = vld [vmem:[#allocation5 + $0x6818] sm:$0xff]
    %v3528 = vld [vmem:[#allocation5 + $0x6820] sm:$0xff]
    %v3529 = vld [vmem:[#allocation5 + $0x6828] sm:$0xff]
    %v3530 = vld [vmem:[#allocation5 + $0x6830] sm:$0xff]
    %v3531 = vld [vmem:[#allocation5 + $0x6838] sm:$0xff]
    %v3532 = vld [vmem:[#allocation5 + $0x6840] sm:$0xff]
    %v3533 = vld [vmem:[#allocation5 + $0x6848] sm:$0xff]
    %v3534 = vld [vmem:[#allocation5 + $0x6850] sm:$0xff]
    %v3535 = vld [vmem:[#allocation5 + $0x6858] sm:$0xff]
    %v3536 = vld [vmem:[#allocation5 + $0x6860] sm:$0xff]
    %v3537 = vld [vmem:[#allocation5 + $0x6868] sm:$0xff]
    %v3538 = vld [vmem:[#allocation5 + $0x6870] sm:$0xff]
    %v3539 = vld [vmem:[#allocation5 + $0x6878] sm:$0xff]
    %v3540 = vld [vmem:[#allocation5 + $0x6880] sm:$0xff]
    %v3541 = vld [vmem:[#allocation5 + $0x6888] sm:$0xff]
    %v3542 = vld [vmem:[#allocation5 + $0x6890] sm:$0xff]
    %v3543 = vld [vmem:[#allocation5 + $0x6898] sm:$0xff]
    %v3544 = vld [vmem:[#allocation5 + $0x68a0] sm:$0xff]
    %v3545 = vld [vmem:[#allocation5 + $0x68a8] sm:$0xff]
    %v3546 = vld [vmem:[#allocation5 + $0x68b0] sm:$0xff]
    %v3547 = vld [vmem:[#allocation5 + $0x68b8] sm:$0xff]
    %v3548 = vld [vmem:[#allocation5 + $0x68c0] sm:$0xff]
    %v3549 = vld [vmem:[#allocation5 + $0x68c8] sm:$0xff]
    %v3550 = vld [vmem:[#allocation5 + $0x68d0] sm:$0xff]
    %v3551 = vld [vmem:[#allocation5 + $0x68d8] sm:$0xff]
    %v3552 = vld [vmem:[#allocation5 + $0x68e0] sm:$0xff]
    %v3553 = vld [vmem:[#allocation5 + $0x68e8] sm:$0xff]
    %v3554 = vld [vmem:[#allocation5 + $0x68f0] sm:$0xff]
    %v3555 = vld [vmem:[#allocation5 + $0x68f8] sm:$0xff]
    %v3556 = vld [vmem:[#allocation5 + $0x6900] sm:$0xff]
    %v3557 = vld [vmem:[#allocation5 + $0x6908] sm:$0xff]
    %v3558 = vld [vmem:[#allocation5 + $0x6910] sm:$0xff]
    %v3559 = vld [vmem:[#allocation5 + $0x6918] sm:$0xff]
    %v3560 = vld [vmem:[#allocation5 + $0x6920] sm:$0xff]
    %v3561 = vld [vmem:[#allocation5 + $0x6928] sm:$0xff]
    %v3562 = vld [vmem:[#allocation5 + $0x6930] sm:$0xff]
    %v3563 = vld [vmem:[#allocation5 + $0x6938] sm:$0xff]
    %v3564 = vld [vmem:[#allocation5 + $0x6940] sm:$0xff]
    %v3565 = vld [vmem:[#allocation5 + $0x6948] sm:$0xff]
    %v3566 = vld [vmem:[#allocation5 + $0x6950] sm:$0xff]
    %v3567 = vld [vmem:[#allocation5 + $0x6958] sm:$0xff]
    %v3568 = vld [vmem:[#allocation5 + $0x6960] sm:$0xff]
    %v3569 = vld [vmem:[#allocation5 + $0x6968] sm:$0xff]
    %v3570 = vld [vmem:[#allocation5 + $0x6970] sm:$0xff]
    %v3571 = vld [vmem:[#allocation5 + $0x6978] sm:$0xff]
    %v3572 = vld [vmem:[#allocation5 + $0x6980] sm:$0xff]
    %v3573 = vld [vmem:[#allocation5 + $0x6988] sm:$0xff]
    %v3574 = vld [vmem:[#allocation5 + $0x6990] sm:$0xff]
    %v3575 = vld [vmem:[#allocation5 + $0x6998] sm:$0xff]
    %v3576 = vld [vmem:[#allocation5 + $0x69a0] sm:$0xff]
    %v3577 = vld [vmem:[#allocation5 + $0x69a8] sm:$0xff]
    %v3578 = vld [vmem:[#allocation5 + $0x69b0] sm:$0xff]
    %v3579 = vld [vmem:[#allocation5 + $0x69b8] sm:$0xff]
    %v3580 = vld [vmem:[#allocation5 + $0x69c0] sm:$0xff]
    %v3581 = vld [vmem:[#allocation5 + $0x69c8] sm:$0xff]
    %v3582 = vld [vmem:[#allocation5 + $0x69d0] sm:$0xff]
    %v3583 = vld [vmem:[#allocation5 + $0x69d8] sm:$0xff]
    %v3584 = vld [vmem:[#allocation5 + $0x69e0] sm:$0xff]
    %v3585 = vld [vmem:[#allocation5 + $0x69e8] sm:$0xff]
    %v3586 = vld [vmem:[#allocation5 + $0x69f0] sm:$0xff]
    %v3587 = vld [vmem:[#allocation5 + $0x69f8] sm:$0xff]
    %v3588 = vld [vmem:[#allocation5 + $0x6a00] sm:$0xff]
    %v3589 = vld [vmem:[#allocation5 + $0x6a08] sm:$0xff]
    %v3590 = vld [vmem:[#allocation5 + $0x6a10] sm:$0xff]
    %v3591 = vld [vmem:[#allocation5 + $0x6a18] sm:$0xff]
    %v3592 = vld [vmem:[#allocation5 + $0x6a20] sm:$0xff]
    %v3593 = vld [vmem:[#allocation5 + $0x6a28] sm:$0xff]
    %v3594 = vld [vmem:[#allocation5 + $0x6a30] sm:$0xff]
    %v3595 = vld [vmem:[#allocation5 + $0x6a38] sm:$0xff]
    %v3596 = vld [vmem:[#allocation5 + $0x6a40] sm:$0xff]
    %v3597 = vld [vmem:[#allocation5 + $0x6a48] sm:$0xff]
    %v3598 = vld [vmem:[#allocation5 + $0x6a50] sm:$0xff]
    %v3599 = vld [vmem:[#allocation5 + $0x6a58] sm:$0xff]
    %v3600 = vld [vmem:[#allocation5 + $0x6a60] sm:$0xff]
    %v3601 = vld [vmem:[#allocation5 + $0x6a68] sm:$0xff]
    %v3602 = vld [vmem:[#allocation5 + $0x6a70] sm:$0xff]
    %v3603 = vld [vmem:[#allocation5 + $0x6a78] sm:$0xff]
    %v3604 = vld [vmem:[#allocation5 + $0x6a80] sm:$0xff]
    %v3605 = vld [vmem:[#allocation5 + $0x6a88] sm:$0xff]
    %v3606 = vld [vmem:[#allocation5 + $0x6a90] sm:$0xff]
    %v3607 = vld [vmem:[#allocation5 + $0x6a98] sm:$0xff]
    %v3608 = vld [vmem:[#allocation5 + $0x6aa0] sm:$0xff]
    %v3609 = vld [vmem:[#allocation5 + $0x6aa8] sm:$0xff]
    %v3610 = vld [vmem:[#allocation5 + $0x6ab0] sm:$0xff]
    %v3611 = vld [vmem:[#allocation5 + $0x6ab8] sm:$0xff]
    %v3612 = vld [vmem:[#allocation5 + $0x6ac0] sm:$0xff]
    %v3613 = vld [vmem:[#allocation5 + $0x6ac8] sm:$0xff]
    %v3614 = vld [vmem:[#allocation5 + $0x6ad0] sm:$0xff]
    %v3615 = vld [vmem:[#allocation5 + $0x6ad8] sm:$0xff]
    %v3616 = vld [vmem:[#allocation5 + $0x6ae0] sm:$0xff]
    %v3617 = vld [vmem:[#allocation5 + $0x6ae8] sm:$0xff]
    %v3618 = vld [vmem:[#allocation5 + $0x6af0] sm:$0xff]
    %v3619 = vld [vmem:[#allocation5 + $0x6af8] sm:$0xff]
    %v3620 = vld [vmem:[#allocation5 + $0x6b00] sm:$0xff]
    %v3621 = vld [vmem:[#allocation5 + $0x6b08] sm:$0xff]
    %v3622 = vld [vmem:[#allocation5 + $0x6b10] sm:$0xff]
    %v3623 = vld [vmem:[#allocation5 + $0x6b18] sm:$0xff]
    %v3624 = vld [vmem:[#allocation5 + $0x6b20] sm:$0xff]
    %v3625 = vld [vmem:[#allocation5 + $0x6b28] sm:$0xff]
    %v3626 = vld [vmem:[#allocation5 + $0x6b30] sm:$0xff]
    %v3627 = vld [vmem:[#allocation5 + $0x6b38] sm:$0xff]
    %v3628 = vld [vmem:[#allocation5 + $0x6b40] sm:$0xff]
    %v3629 = vld [vmem:[#allocation5 + $0x6b48] sm:$0xff]
    %v3630 = vld [vmem:[#allocation5 + $0x6b50] sm:$0xff]
    %v3631 = vld [vmem:[#allocation5 + $0x6b58] sm:$0xff]
    %v3632 = vld [vmem:[#allocation5 + $0x6b60] sm:$0xff]
    %v3633 = vld [vmem:[#allocation5 + $0x6b68] sm:$0xff]
    %v3634 = vld [vmem:[#allocation5 + $0x6b70] sm:$0xff]
    %v3635 = vld [vmem:[#allocation5 + $0x6b78] sm:$0xff]
    %v3636 = vld [vmem:[#allocation5 + $0x6b80] sm:$0xff]
    %v3637 = vld [vmem:[#allocation5 + $0x6b88] sm:$0xff]
    %v3638 = vld [vmem:[#allocation5 + $0x6b90] sm:$0xff]
    %v3639 = vld [vmem:[#allocation5 + $0x6b98] sm:$0xff]
    %v3640 = vld [vmem:[#allocation5 + $0x6ba0] sm:$0xff]
    %v3641 = vld [vmem:[#allocation5 + $0x6ba8] sm:$0xff]
    %v3642 = vld [vmem:[#allocation5 + $0x6bb0] sm:$0xff]
    %v3643 = vld [vmem:[#allocation5 + $0x6bb8] sm:$0xff]
    %v3644 = vld [vmem:[#allocation5 + $0x6bc0] sm:$0xff]
    %v3645 = vld [vmem:[#allocation5 + $0x6bc8] sm:$0xff]
    %v3646 = vld [vmem:[#allocation5 + $0x6bd0] sm:$0xff]
    %v3647 = vld [vmem:[#allocation5 + $0x6bd8] sm:$0xff]
    %v3648 = vld [vmem:[#allocation5 + $0x6be0] sm:$0xff]
    %v3649 = vld [vmem:[#allocation5 + $0x6be8] sm:$0xff]
    %v3650 = vld [vmem:[#allocation5 + $0x6bf0] sm:$0xff]
    %v3651 = vld [vmem:[#allocation5 + $0x6bf8] sm:$0xff]
    %v3652 = vld [vmem:[#allocation5 + $0x6c00] sm:$0xff]
    %v3653 = vld [vmem:[#allocation5 + $0x6c08] sm:$0xff]
    %v3654 = vld [vmem:[#allocation5 + $0x6c10] sm:$0xff]
    %v3655 = vld [vmem:[#allocation5 + $0x6c18] sm:$0xff]
    %v3656 = vld [vmem:[#allocation5 + $0x6c20] sm:$0xff]
    %v3657 = vld [vmem:[#allocation5 + $0x6c28] sm:$0xff]
    %v3658 = vld [vmem:[#allocation5 + $0x6c30] sm:$0xff]
    %v3659 = vld [vmem:[#allocation5 + $0x6c38] sm:$0xff]
    %v3660 = vld [vmem:[#allocation5 + $0x6c40] sm:$0xff]
    %v3661 = vld [vmem:[#allocation5 + $0x6c48] sm:$0xff]
    %v3662 = vld [vmem:[#allocation5 + $0x6c50] sm:$0xff]
    %v3663 = vld [vmem:[#allocation5 + $0x6c58] sm:$0xff]
    %v3664 = vld [vmem:[#allocation5 + $0x6c60] sm:$0xff]
    %v3665 = vld [vmem:[#allocation5 + $0x6c68] sm:$0xff]
    %v3666 = vld [vmem:[#allocation5 + $0x6c70] sm:$0xff]
    %v3667 = vld [vmem:[#allocation5 + $0x6c78] sm:$0xff]
    %v3668 = vld [vmem:[#allocation5 + $0x6c80] sm:$0xff]
    %v3669 = vld [vmem:[#allocation5 + $0x6c88] sm:$0xff]
    %v3670 = vld [vmem:[#allocation5 + $0x6c90] sm:$0xff]
    %v3671 = vld [vmem:[#allocation5 + $0x6c98] sm:$0xff]
    %v3672 = vld [vmem:[#allocation5 + $0x6ca0] sm:$0xff]
    %v3673 = vld [vmem:[#allocation5 + $0x6ca8] sm:$0xff]
    %v3674 = vld [vmem:[#allocation5 + $0x6cb0] sm:$0xff]
    %v3675 = vld [vmem:[#allocation5 + $0x6cb8] sm:$0xff]
    %v3676 = vld [vmem:[#allocation5 + $0x6cc0] sm:$0xff]
    %v3677 = vld [vmem:[#allocation5 + $0x6cc8] sm:$0xff]
    %v3678 = vld [vmem:[#allocation5 + $0x6cd0] sm:$0xff]
    %v3679 = vld [vmem:[#allocation5 + $0x6cd8] sm:$0xff]
    %v3680 = vld [vmem:[#allocation5 + $0x6ce0] sm:$0xff]
    %v3681 = vld [vmem:[#allocation5 + $0x6ce8] sm:$0xff]
    %v3682 = vld [vmem:[#allocation5 + $0x6cf0] sm:$0xff]
    %v3683 = vld [vmem:[#allocation5 + $0x6cf8] sm:$0xff]
    %v3684 = vld [vmem:[#allocation5 + $0x6d00] sm:$0xff]
    %v3685 = vld [vmem:[#allocation5 + $0x6d08] sm:$0xff]
    %v3686 = vld [vmem:[#allocation5 + $0x6d10] sm:$0xff]
    %v3687 = vld [vmem:[#allocation5 + $0x6d18] sm:$0xff]
    %v3688 = vld [vmem:[#allocation5 + $0x6d20] sm:$0xff]
    %v3689 = vld [vmem:[#allocation5 + $0x6d28] sm:$0xff]
    %v3690 = vld [vmem:[#allocation5 + $0x6d30] sm:$0xff]
    %v3691 = vld [vmem:[#allocation5 + $0x6d38] sm:$0xff]
    %v3692 = vld [vmem:[#allocation5 + $0x6d40] sm:$0xff]
    %v3693 = vld [vmem:[#allocation5 + $0x6d48] sm:$0xff]
    %v3694 = vld [vmem:[#allocation5 + $0x6d50] sm:$0xff]
    %v3695 = vld [vmem:[#allocation5 + $0x6d58] sm:$0xff]
    %v3696 = vld [vmem:[#allocation5 + $0x6d60] sm:$0xff]
    %v3697 = vld [vmem:[#allocation5 + $0x6d68] sm:$0xff]
    %v3698 = vld [vmem:[#allocation5 + $0x6d70] sm:$0xff]
    %v3699 = vld [vmem:[#allocation5 + $0x6d78] sm:$0xff]
    %v3700 = vld [vmem:[#allocation5 + $0x6d80] sm:$0xff]
    %v3701 = vld [vmem:[#allocation5 + $0x6d88] sm:$0xff]
    %v3702 = vld [vmem:[#allocation5 + $0x6d90] sm:$0xff]
    %v3703 = vld [vmem:[#allocation5 + $0x6d98] sm:$0xff]
    %v3704 = vld [vmem:[#allocation5 + $0x6da0] sm:$0xff]
    %v3705 = vld [vmem:[#allocation5 + $0x6da8] sm:$0xff]
    %v3706 = vld [vmem:[#allocation5 + $0x6db0] sm:$0xff]
    %v3707 = vld [vmem:[#allocation5 + $0x6db8] sm:$0xff]
    %v3708 = vld [vmem:[#allocation5 + $0x6dc0] sm:$0xff]
    %v3709 = vld [vmem:[#allocation5 + $0x6dc8] sm:$0xff]
    %v3710 = vld [vmem:[#allocation5 + $0x6dd0] sm:$0xff]
    %v3711 = vld [vmem:[#allocation5 + $0x6dd8] sm:$0xff]
    %v3712 = vld [vmem:[#allocation5 + $0x6de0] sm:$0xff]
    %v3713 = vld [vmem:[#allocation5 + $0x6de8] sm:$0xff]
    %v3714 = vld [vmem:[#allocation5 + $0x6df0] sm:$0xff]
    %v3715 = vld [vmem:[#allocation5 + $0x6df8] sm:$0xff]
    %v3716 = vld [vmem:[#allocation5 + $0x6e00] sm:$0xff]
    %v3717 = vld [vmem:[#allocation5 + $0x6e08] sm:$0xff]
    %v3718 = vld [vmem:[#allocation5 + $0x6e10] sm:$0xff]
    %v3719 = vld [vmem:[#allocation5 + $0x6e18] sm:$0xff]
    %v3720 = vld [vmem:[#allocation5 + $0x6e20] sm:$0xff]
    %v3721 = vld [vmem:[#allocation5 + $0x6e28] sm:$0xff]
    %v3722 = vld [vmem:[#allocation5 + $0x6e30] sm:$0xff]
    %v3723 = vld [vmem:[#allocation5 + $0x6e38] sm:$0xff]
    %v3724 = vld [vmem:[#allocation5 + $0x6e40] sm:$0xff]
    %v3725 = vld [vmem:[#allocation5 + $0x6e48] sm:$0xff]
    %v3726 = vld [vmem:[#allocation5 + $0x6e50] sm:$0xff]
    %v3727 = vld [vmem:[#allocation5 + $0x6e58] sm:$0xff]
    %v3728 = vld [vmem:[#allocation5 + $0x6e60] sm:$0xff]
    %v3729 = vld [vmem:[#allocation5 + $0x6e68] sm:$0xff]
    %v3730 = vld [vmem:[#allocation5 + $0x6e70] sm:$0xff]
    %v3731 = vld [vmem:[#allocation5 + $0x6e78] sm:$0xff]
    %v3732 = vld [vmem:[#allocation5 + $0x6e80] sm:$0xff]
    %v3733 = vld [vmem:[#allocation5 + $0x6e88] sm:$0xff]
    %v3734 = vld [vmem:[#allocation5 + $0x6e90] sm:$0xff]
    %v3735 = vld [vmem:[#allocation5 + $0x6e98] sm:$0xff]
    %v3736 = vld [vmem:[#allocation5 + $0x6ea0] sm:$0xff]
    %v3737 = vld [vmem:[#allocation5 + $0x6ea8] sm:$0xff]
    %v3738 = vld [vmem:[#allocation5 + $0x6eb0] sm:$0xff]
    %v3739 = vld [vmem:[#allocation5 + $0x6eb8] sm:$0xff]
    %v3740 = vld [vmem:[#allocation5 + $0x6ec0] sm:$0xff]
    %v3741 = vld [vmem:[#allocation5 + $0x6ec8] sm:$0xff]
    %v3742 = vld [vmem:[#allocation5 + $0x6ed0] sm:$0xff]
    %v3743 = vld [vmem:[#allocation5 + $0x6ed8] sm:$0xff]
    %v3744 = vld [vmem:[#allocation5 + $0x6ee0] sm:$0xff]
    %v3745 = vld [vmem:[#allocation5 + $0x6ee8] sm:$0xff]
    %v3746 = vld [vmem:[#allocation5 + $0x6ef0] sm:$0xff]
    %v3747 = vld [vmem:[#allocation5 + $0x6ef8] sm:$0xff]
    %v3748 = vld [vmem:[#allocation5 + $0x6f00] sm:$0xff]
    %v3749 = vld [vmem:[#allocation5 + $0x6f08] sm:$0xff]
    %v3750 = vld [vmem:[#allocation5 + $0x6f10] sm:$0xff]
    %v3751 = vld [vmem:[#allocation5 + $0x6f18] sm:$0xff]
    %v3752 = vld [vmem:[#allocation5 + $0x6f20] sm:$0xff]
    %v3753 = vld [vmem:[#allocation5 + $0x6f28] sm:$0xff]
    %v3754 = vld [vmem:[#allocation5 + $0x6f30] sm:$0xff]
    %v3755 = vld [vmem:[#allocation5 + $0x6f38] sm:$0xff]
    %v3756 = vld [vmem:[#allocation5 + $0x6f40] sm:$0xff]
    %v3757 = vld [vmem:[#allocation5 + $0x6f48] sm:$0xff]
    %v3758 = vld [vmem:[#allocation5 + $0x6f50] sm:$0xff]
    %v3759 = vld [vmem:[#allocation5 + $0x6f58] sm:$0xff]
    %v3760 = vld [vmem:[#allocation5 + $0x6f60] sm:$0xff]
    %v3761 = vld [vmem:[#allocation5 + $0x6f68] sm:$0xff]
    %v3762 = vld [vmem:[#allocation5 + $0x6f70] sm:$0xff]
    %v3763 = vld [vmem:[#allocation5 + $0x6f78] sm:$0xff]
    %v3764 = vld [vmem:[#allocation5 + $0x6f80] sm:$0xff]
    %v3765 = vld [vmem:[#allocation5 + $0x6f88] sm:$0xff]
    %v3766 = vld [vmem:[#allocation5 + $0x6f90] sm:$0xff]
    %v3767 = vld [vmem:[#allocation5 + $0x6f98] sm:$0xff]
    %v3768 = vld [vmem:[#allocation5 + $0x6fa0] sm:$0xff]
    %v3769 = vld [vmem:[#allocation5 + $0x6fa8] sm:$0xff]
    %v3770 = vld [vmem:[#allocation5 + $0x6fb0] sm:$0xff]
    %v3771 = vld [vmem:[#allocation5 + $0x6fb8] sm:$0xff]
    %v3772 = vld [vmem:[#allocation5 + $0x6fc0] sm:$0xff]
    %v3773 = vld [vmem:[#allocation5 + $0x6fc8] sm:$0xff]
    %v3774 = vld [vmem:[#allocation5 + $0x6fd0] sm:$0xff]
    %v3775 = vld [vmem:[#allocation5 + $0x6fd8] sm:$0xff]
    %v3776 = vld [vmem:[#allocation5 + $0x6fe0] sm:$0xff]
    %v3777 = vld [vmem:[#allocation5 + $0x6fe8] sm:$0xff]
    %v3778 = vld [vmem:[#allocation5 + $0x6ff0] sm:$0xff]
    %v3779 = vld [vmem:[#allocation5 + $0x6ff8] sm:$0xff]
    %v3780 = vld [vmem:[#allocation5 + $0x7000] sm:$0xff]
    %v3781 = vld [vmem:[#allocation5 + $0x7008] sm:$0xff]
    %v3782 = vld [vmem:[#allocation5 + $0x7010] sm:$0xff]
    %v3783 = vld [vmem:[#allocation5 + $0x7018] sm:$0xff]
    %v3784 = vld [vmem:[#allocation5 + $0x7020] sm:$0xff]
    %v3785 = vld [vmem:[#allocation5 + $0x7028] sm:$0xff]
    %v3786 = vld [vmem:[#allocation5 + $0x7030] sm:$0xff]
    %v3787 = vld [vmem:[#allocation5 + $0x7038] sm:$0xff]
    %v3788 = vld [vmem:[#allocation5 + $0x7040] sm:$0xff]
    %v3789 = vld [vmem:[#allocation5 + $0x7048] sm:$0xff]
    %v3790 = vld [vmem:[#allocation5 + $0x7050] sm:$0xff]
    %v3791 = vld [vmem:[#allocation5 + $0x7058] sm:$0xff]
    %v3792 = vld [vmem:[#allocation5 + $0x7060] sm:$0xff]
    %v3793 = vld [vmem:[#allocation5 + $0x7068] sm:$0xff]
    %v3794 = vld [vmem:[#allocation5 + $0x7070] sm:$0xff]
    %v3795 = vld [vmem:[#allocation5 + $0x7078] sm:$0xff]
    %v3796 = vld [vmem:[#allocation5 + $0x7080] sm:$0xff]
    %v3797 = vld [vmem:[#allocation5 + $0x7088] sm:$0xff]
    %v3798 = vld [vmem:[#allocation5 + $0x7090] sm:$0xff]
    %v3799 = vld [vmem:[#allocation5 + $0x7098] sm:$0xff]
    %v3800 = vld [vmem:[#allocation5 + $0x70a0] sm:$0xff]
    %v3801 = vld [vmem:[#allocation5 + $0x70a8] sm:$0xff]
    %v3802 = vld [vmem:[#allocation5 + $0x70b0] sm:$0xff]
    %v3803 = vld [vmem:[#allocation5 + $0x70b8] sm:$0xff]
    %v3804 = vld [vmem:[#allocation5 + $0x70c0] sm:$0xff]
    %v3805 = vld [vmem:[#allocation5 + $0x70c8] sm:$0xff]
    %v3806 = vld [vmem:[#allocation5 + $0x70d0] sm:$0xff]
    %v3807 = vld [vmem:[#allocation5 + $0x70d8] sm:$0xff]
    %v3808 = vld [vmem:[#allocation5 + $0x70e0] sm:$0xff]
    %v3809 = vld [vmem:[#allocation5 + $0x70e8] sm:$0xff]
    %v3810 = vld [vmem:[#allocation5 + $0x70f0] sm:$0xff]
    %v3811 = vld [vmem:[#allocation5 + $0x70f8] sm:$0xff]
    %v3812 = vld [vmem:[#allocation5 + $0x7100] sm:$0xff]
    %v3813 = vld [vmem:[#allocation5 + $0x7108] sm:$0xff]
    %v3814 = vld [vmem:[#allocation5 + $0x7110] sm:$0xff]
    %v3815 = vld [vmem:[#allocation5 + $0x7118] sm:$0xff]
    %v3816 = vld [vmem:[#allocation5 + $0x7120] sm:$0xff]
    %v3817 = vld [vmem:[#allocation5 + $0x7128] sm:$0xff]
    %v3818 = vld [vmem:[#allocation5 + $0x7130] sm:$0xff]
    %v3819 = vld [vmem:[#allocation5 + $0x7138] sm:$0xff]
    %v3820 = vld [vmem:[#allocation5 + $0x7140] sm:$0xff]
    %v3821 = vld [vmem:[#allocation5 + $0x7148] sm:$0xff]
    %v3822 = vld [vmem:[#allocation5 + $0x7150] sm:$0xff]
    %v3823 = vld [vmem:[#allocation5 + $0x7158] sm:$0xff]
    %v3824 = vld [vmem:[#allocation5 + $0x7160] sm:$0xff]
    %v3825 = vld [vmem:[#allocation5 + $0x7168] sm:$0xff]
    %v3826 = vld [vmem:[#allocation5 + $0x7170] sm:$0xff]
    %v3827 = vld [vmem:[#allocation5 + $0x7178] sm:$0xff]
    %v3828 = vld [vmem:[#allocation5 + $0x7180] sm:$0xff]
    %v3829 = vld [vmem:[#allocation5 + $0x7188] sm:$0xff]
    %v3830 = vld [vmem:[#allocation5 + $0x7190] sm:$0xff]
    %v3831 = vld [vmem:[#allocation5 + $0x7198] sm:$0xff]
    %v3832 = vld [vmem:[#allocation5 + $0x71a0] sm:$0xff]
    %v3833 = vld [vmem:[#allocation5 + $0x71a8] sm:$0xff]
    %v3834 = vld [vmem:[#allocation5 + $0x71b0] sm:$0xff]
    %v3835 = vld [vmem:[#allocation5 + $0x71b8] sm:$0xff]
    %v3836 = vld [vmem:[#allocation5 + $0x71c0] sm:$0xff]
    %v3837 = vld [vmem:[#allocation5 + $0x71c8] sm:$0xff]
    %v3838 = vld [vmem:[#allocation5 + $0x71d0] sm:$0xff]
    %v3839 = vld [vmem:[#allocation5 + $0x71d8] sm:$0xff]
    %v3840 = vld [vmem:[#allocation5 + $0x71e0] sm:$0xff]
    %v3841 = vld [vmem:[#allocation5 + $0x71e8] sm:$0xff]
    %v3842 = vld [vmem:[#allocation5 + $0x71f0] sm:$0xff]
    %v3843 = vld [vmem:[#allocation5 + $0x71f8] sm:$0xff]
    %v3844 = vld [vmem:[#allocation5 + $0x7200] sm:$0xff]
    %v3845 = vld [vmem:[#allocation5 + $0x7208] sm:$0xff]
    %v3846 = vld [vmem:[#allocation5 + $0x7210] sm:$0xff]
    %v3847 = vld [vmem:[#allocation5 + $0x7218] sm:$0xff]
    %v3848 = vld [vmem:[#allocation5 + $0x7220] sm:$0xff]
    %v3849 = vld [vmem:[#allocation5 + $0x7228] sm:$0xff]
    %v3850 = vld [vmem:[#allocation5 + $0x7230] sm:$0xff]
    %v3851 = vld [vmem:[#allocation5 + $0x7238] sm:$0xff]
    %v3852 = vld [vmem:[#allocation5 + $0x7240] sm:$0xff]
    %v3853 = vld [vmem:[#allocation5 + $0x7248] sm:$0xff]
    %v3854 = vld [vmem:[#allocation5 + $0x7250] sm:$0xff]
    %v3855 = vld [vmem:[#allocation5 + $0x7258] sm:$0xff]
    %v3856 = vld [vmem:[#allocation5 + $0x7260] sm:$0xff]
    %v3857 = vld [vmem:[#allocation5 + $0x7268] sm:$0xff]
    %v3858 = vld [vmem:[#allocation5 + $0x7270] sm:$0xff]
    %v3859 = vld [vmem:[#allocation5 + $0x7278] sm:$0xff]
    %v3860 = vld [vmem:[#allocation5 + $0x7280] sm:$0xff]
    %v3861 = vld [vmem:[#allocation5 + $0x7288] sm:$0xff]
    %v3862 = vld [vmem:[#allocation5 + $0x7290] sm:$0xff]
    %v3863 = vld [vmem:[#allocation5 + $0x7298] sm:$0xff]
    %v3864 = vld [vmem:[#allocation5 + $0x72a0] sm:$0xff]
    %v3865 = vld [vmem:[#allocation5 + $0x72a8] sm:$0xff]
    %v3866 = vld [vmem:[#allocation5 + $0x72b0] sm:$0xff]
    %v3867 = vld [vmem:[#allocation5 + $0x72b8] sm:$0xff]
    %v3868 = vld [vmem:[#allocation5 + $0x72c0] sm:$0xff]
    %v3869 = vld [vmem:[#allocation5 + $0x72c8] sm:$0xff]
    %v3870 = vld [vmem:[#allocation5 + $0x72d0] sm:$0xff]
    %v3871 = vld [vmem:[#allocation5 + $0x72d8] sm:$0xff]
    %v3872 = vld [vmem:[#allocation5 + $0x72e0] sm:$0xff]
    %v3873 = vld [vmem:[#allocation5 + $0x72e8] sm:$0xff]
    %v3874 = vld [vmem:[#allocation5 + $0x72f0] sm:$0xff]
    %v3875 = vld [vmem:[#allocation5 + $0x72f8] sm:$0xff]
    %v3876 = vld [vmem:[#allocation5 + $0x7300] sm:$0xff]
    %v3877 = vld [vmem:[#allocation5 + $0x7308] sm:$0xff]
    %v3878 = vld [vmem:[#allocation5 + $0x7310] sm:$0xff]
    %v3879 = vld [vmem:[#allocation5 + $0x7318] sm:$0xff]
    %v3880 = vld [vmem:[#allocation5 + $0x7320] sm:$0xff]
    %v3881 = vld [vmem:[#allocation5 + $0x7328] sm:$0xff]
    %v3882 = vld [vmem:[#allocation5 + $0x7330] sm:$0xff]
    %v3883 = vld [vmem:[#allocation5 + $0x7338] sm:$0xff]
    %v3884 = vld [vmem:[#allocation5 + $0x7340] sm:$0xff]
    %v3885 = vld [vmem:[#allocation5 + $0x7348] sm:$0xff]
    %v3886 = vld [vmem:[#allocation5 + $0x7350] sm:$0xff]
    %v3887 = vld [vmem:[#allocation5 + $0x7358] sm:$0xff]
    %v3888 = vld [vmem:[#allocation5 + $0x7360] sm:$0xff]
    %v3889 = vld [vmem:[#allocation5 + $0x7368] sm:$0xff]
    %v3890 = vld [vmem:[#allocation5 + $0x7370] sm:$0xff]
    %v3891 = vld [vmem:[#allocation5 + $0x7378] sm:$0xff]
    %v3892 = vld [vmem:[#allocation5 + $0x7380] sm:$0xff]
    %v3893 = vld [vmem:[#allocation5 + $0x7388] sm:$0xff]
    %v3894 = vld [vmem:[#allocation5 + $0x7390] sm:$0xff]
    %v3895 = vld [vmem:[#allocation5 + $0x7398] sm:$0xff]
    %v3896 = vld [vmem:[#allocation5 + $0x73a0] sm:$0xff]
    %v3897 = vld [vmem:[#allocation5 + $0x73a8] sm:$0xff]
    %v3898 = vld [vmem:[#allocation5 + $0x73b0] sm:$0xff]
    %v3899 = vld [vmem:[#allocation5 + $0x73b8] sm:$0xff]
    %v3900 = vld [vmem:[#allocation5 + $0x73c0] sm:$0xff]
    %v3901 = vld [vmem:[#allocation5 + $0x73c8] sm:$0xff]
    %v3902 = vld [vmem:[#allocation5 + $0x73d0] sm:$0xff]
    %v3903 = vld [vmem:[#allocation5 + $0x73d8] sm:$0xff]
    %v3904 = vld [vmem:[#allocation5 + $0x73e0] sm:$0xff]
    %v3905 = vld [vmem:[#allocation5 + $0x73e8] sm:$0xff]
    %v3906 = vld [vmem:[#allocation5 + $0x73f0] sm:$0xff]
    %v3907 = vld [vmem:[#allocation5 + $0x73f8] sm:$0xff]
    %v3908 = vld [vmem:[#allocation5 + $0x7400] sm:$0xff]
    %v3909 = vld [vmem:[#allocation5 + $0x7408] sm:$0xff]
    %v3910 = vld [vmem:[#allocation5 + $0x7410] sm:$0xff]
    %v3911 = vld [vmem:[#allocation5 + $0x7418] sm:$0xff]
    %v3912 = vld [vmem:[#allocation5 + $0x7420] sm:$0xff]
    %v3913 = vld [vmem:[#allocation5 + $0x7428] sm:$0xff]
    %v3914 = vld [vmem:[#allocation5 + $0x7430] sm:$0xff]
    %v3915 = vld [vmem:[#allocation5 + $0x7438] sm:$0xff]
    %v3916 = vld [vmem:[#allocation5 + $0x7440] sm:$0xff]
    %v3917 = vld [vmem:[#allocation5 + $0x7448] sm:$0xff]
    %v3918 = vld [vmem:[#allocation5 + $0x7450] sm:$0xff]
    %v3919 = vld [vmem:[#allocation5 + $0x7458] sm:$0xff]
    %v3920 = vld [vmem:[#allocation5 + $0x7460] sm:$0xff]
    %v3921 = vld [vmem:[#allocation5 + $0x7468] sm:$0xff]
    %v3922 = vld [vmem:[#allocation5 + $0x7470] sm:$0xff]
    %v3923 = vld [vmem:[#allocation5 + $0x7478] sm:$0xff]
    %v3924 = vld [vmem:[#allocation5 + $0x7480] sm:$0xff]
    %v3925 = vld [vmem:[#allocation5 + $0x7488] sm:$0xff]
    %v3926 = vld [vmem:[#allocation5 + $0x7490] sm:$0xff]
    %v3927 = vld [vmem:[#allocation5 + $0x7498] sm:$0xff]
    %v3928 = vld [vmem:[#allocation5 + $0x74a0] sm:$0xff]
    %v3929 = vld [vmem:[#allocation5 + $0x74a8] sm:$0xff]
    %v3930 = vld [vmem:[#allocation5 + $0x74b0] sm:$0xff]
    %v3931 = vld [vmem:[#allocation5 + $0x74b8] sm:$0xff]
    %v3932 = vld [vmem:[#allocation5 + $0x74c0] sm:$0xff]
    %v3933 = vld [vmem:[#allocation5 + $0x74c8] sm:$0xff]
    %v3934 = vld [vmem:[#allocation5 + $0x74d0] sm:$0xff]
    %v3935 = vld [vmem:[#allocation5 + $0x74d8] sm:$0xff]
    %v3936 = vld [vmem:[#allocation5 + $0x74e0] sm:$0xff]
    %v3937 = vld [vmem:[#allocation5 + $0x74e8] sm:$0xff]
    %v3938 = vld [vmem:[#allocation5 + $0x74f0] sm:$0xff]
    %v3939 = vld [vmem:[#allocation5 + $0x74f8] sm:$0xff]
    %v3940 = vld [vmem:[#allocation5 + $0x7500] sm:$0xff]
    %v3941 = vld [vmem:[#allocation5 + $0x7508] sm:$0xff]
    %v3942 = vld [vmem:[#allocation5 + $0x7510] sm:$0xff]
    %v3943 = vld [vmem:[#allocation5 + $0x7518] sm:$0xff]
    %v3944 = vld [vmem:[#allocation5 + $0x7520] sm:$0xff]
    %v3945 = vld [vmem:[#allocation5 + $0x7528] sm:$0xff]
    %v3946 = vld [vmem:[#allocation5 + $0x7530] sm:$0xff]
    %v3947 = vld [vmem:[#allocation5 + $0x7538] sm:$0xff]
    %v3948 = vld [vmem:[#allocation5 + $0x7540] sm:$0xff]
    %v3949 = vld [vmem:[#allocation5 + $0x7548] sm:$0xff]
    %v3950 = vld [vmem:[#allocation5 + $0x7550] sm:$0xff]
    %v3951 = vld [vmem:[#allocation5 + $0x7558] sm:$0xff]
    %v3952 = vld [vmem:[#allocation5 + $0x7560] sm:$0xff]
    %v3953 = vld [vmem:[#allocation5 + $0x7568] sm:$0xff]
    %v3954 = vld [vmem:[#allocation5 + $0x7570] sm:$0xff]
    %v3955 = vld [vmem:[#allocation5 + $0x7578] sm:$0xff]
    %v3956 = vld [vmem:[#allocation5 + $0x7580] sm:$0xff]
    %v3957 = vld [vmem:[#allocation5 + $0x7588] sm:$0xff]
    %v3958 = vld [vmem:[#allocation5 + $0x7590] sm:$0xff]
    %v3959 = vld [vmem:[#allocation5 + $0x7598] sm:$0xff]
    %v3960 = vld [vmem:[#allocation5 + $0x75a0] sm:$0xff]
    %v3961 = vld [vmem:[#allocation5 + $0x75a8] sm:$0xff]
    %v3962 = vld [vmem:[#allocation5 + $0x75b0] sm:$0xff]
    %v3963 = vld [vmem:[#allocation5 + $0x75b8] sm:$0xff]
    %v3964 = vld [vmem:[#allocation5 + $0x75c0] sm:$0xff]
    %v3965 = vld [vmem:[#allocation5 + $0x75c8] sm:$0xff]
    %v3966 = vld [vmem:[#allocation5 + $0x75d0] sm:$0xff]
    %v3967 = vld [vmem:[#allocation5 + $0x75d8] sm:$0xff]
    %v3968 = vld [vmem:[#allocation5 + $0x75e0] sm:$0xff]
    %v3969 = vld [vmem:[#allocation5 + $0x75e8] sm:$0xff]
    %v3970 = vld [vmem:[#allocation5 + $0x75f0] sm:$0xff]
    %v3971 = vld [vmem:[#allocation5 + $0x75f8] sm:$0xff]
    %v3972 = vld [vmem:[#allocation5 + $0x7600] sm:$0xff]
    %v3973 = vld [vmem:[#allocation5 + $0x7608] sm:$0xff]
    %v3974 = vld [vmem:[#allocation5 + $0x7610] sm:$0xff]
    %v3975 = vld [vmem:[#allocation5 + $0x7618] sm:$0xff]
    %v3976 = vld [vmem:[#allocation5 + $0x7620] sm:$0xff]
    %v3977 = vld [vmem:[#allocation5 + $0x7628] sm:$0xff]
    %v3978 = vld [vmem:[#allocation5 + $0x7630] sm:$0xff]
    %v3979 = vld [vmem:[#allocation5 + $0x7638] sm:$0xff]
    %v3980 = vld [vmem:[#allocation5 + $0x7640] sm:$0xff]
    %v3981 = vld [vmem:[#allocation5 + $0x7648] sm:$0xff]
    %v3982 = vld [vmem:[#allocation5 + $0x7650] sm:$0xff]
    %v3983 = vld [vmem:[#allocation5 + $0x7658] sm:$0xff]
    %v3984 = vld [vmem:[#allocation5 + $0x7660] sm:$0xff]
    %v3985 = vld [vmem:[#allocation5 + $0x7668] sm:$0xff]
    %v3986 = vld [vmem:[#allocation5 + $0x7670] sm:$0xff]
    %v3987 = vld [vmem:[#allocation5 + $0x7678] sm:$0xff]
    %v3988 = vld [vmem:[#allocation5 + $0x7680] sm:$0xff]
    %v3989 = vld [vmem:[#allocation5 + $0x7688] sm:$0xff]
    %v3990 = vld [vmem:[#allocation5 + $0x7690] sm:$0xff]
    %v3991 = vld [vmem:[#allocation5 + $0x7698] sm:$0xff]
    %v3992 = vld [vmem:[#allocation5 + $0x76a0] sm:$0xff]
    %v3993 = vld [vmem:[#allocation5 + $0x76a8] sm:$0xff]
    %v3994 = vld [vmem:[#allocation5 + $0x76b0] sm:$0xff]
    %v3995 = vld [vmem:[#allocation5 + $0x76b8] sm:$0xff]
    %v3996 = vld [vmem:[#allocation5 + $0x76c0] sm:$0xff]
    %v3997 = vld [vmem:[#allocation5 + $0x76c8] sm:$0xff]
    %v3998 = vld [vmem:[#allocation5 + $0x76d0] sm:$0xff]
    %v3999 = vld [vmem:[#allocation5 + $0x76d8] sm:$0xff]
    %v4000 = vld [vmem:[#allocation5 + $0x76e0] sm:$0xff]
    %v4001 = vld [vmem:[#allocation5 + $0x76e8] sm:$0xff]
    %v4002 = vld [vmem:[#allocation5 + $0x76f0] sm:$0xff]
    %v4003 = vld [vmem:[#allocation5 + $0x76f8] sm:$0xff]
    %v4004 = vld [vmem:[#allocation5 + $0x7700] sm:$0xff]
    %v4005 = vld [vmem:[#allocation5 + $0x7708] sm:$0xff]
    %v4006 = vld [vmem:[#allocation5 + $0x7710] sm:$0xff]
    %v4007 = vld [vmem:[#allocation5 + $0x7718] sm:$0xff]
    %v4008 = vld [vmem:[#allocation5 + $0x7720] sm:$0xff]
    %v4009 = vld [vmem:[#allocation5 + $0x7728] sm:$0xff]
    %v4010 = vld [vmem:[#allocation5 + $0x7730] sm:$0xff]
    %v4011 = vld [vmem:[#allocation5 + $0x7738] sm:$0xff]
    %v4012 = vld [vmem:[#allocation5 + $0x7740] sm:$0xff]
    %v4013 = vld [vmem:[#allocation5 + $0x7748] sm:$0xff]
    %v4014 = vld [vmem:[#allocation5 + $0x7750] sm:$0xff]
    %v4015 = vld [vmem:[#allocation5 + $0x7758] sm:$0xff]
    %v4016 = vld [vmem:[#allocation5 + $0x7760] sm:$0xff]
    %v4017 = vld [vmem:[#allocation5 + $0x7768] sm:$0xff]
    %v4018 = vld [vmem:[#allocation5 + $0x7770] sm:$0xff]
    %v4019 = vld [vmem:[#allocation5 + $0x7778] sm:$0xff]
    %v4020 = vld [vmem:[#allocation5 + $0x7780] sm:$0xff]
    %v4021 = vld [vmem:[#allocation5 + $0x7788] sm:$0xff]
    %v4022 = vld [vmem:[#allocation5 + $0x7790] sm:$0xff]
    %v4023 = vld [vmem:[#allocation5 + $0x7798] sm:$0xff]
    %v4024 = vld [vmem:[#allocation5 + $0x77a0] sm:$0xff]
    %v4025 = vld [vmem:[#allocation5 + $0x77a8] sm:$0xff]
    %v4026 = vld [vmem:[#allocation5 + $0x77b0] sm:$0xff]
    %v4027 = vld [vmem:[#allocation5 + $0x77b8] sm:$0xff]
    %v4028 = vld [vmem:[#allocation5 + $0x77c0] sm:$0xff]
    %v4029 = vld [vmem:[#allocation5 + $0x77c8] sm:$0xff]
    %v4030 = vld [vmem:[#allocation5 + $0x77d0] sm:$0xff]
    %v4031 = vld [vmem:[#allocation5 + $0x77d8] sm:$0xff]
    %v4032 = vld [vmem:[#allocation5 + $0x77e0] sm:$0xff]
    %v4033 = vld [vmem:[#allocation5 + $0x77e8] sm:$0xff]
    %v4034 = vld [vmem:[#allocation5 + $0x77f0] sm:$0xff]
    %v4035 = vld [vmem:[#allocation5 + $0x77f8] sm:$0xff]
    %v4036 = vld [vmem:[#allocation5 + $0x7800] sm:$0xff]
    %v4037 = vld [vmem:[#allocation5 + $0x7808] sm:$0xff]
    %v4038 = vld [vmem:[#allocation5 + $0x7810] sm:$0xff]
    %v4039 = vld [vmem:[#allocation5 + $0x7818] sm:$0xff]
    %v4040 = vld [vmem:[#allocation5 + $0x7820] sm:$0xff]
    %v4041 = vld [vmem:[#allocation5 + $0x7828] sm:$0xff]
    %v4042 = vld [vmem:[#allocation5 + $0x7830] sm:$0xff]
    %v4043 = vld [vmem:[#allocation5 + $0x7838] sm:$0xff]
    %v4044 = vld [vmem:[#allocation5 + $0x7840] sm:$0xff]
    %v4045 = vld [vmem:[#allocation5 + $0x7848] sm:$0xff]
    %v4046 = vld [vmem:[#allocation5 + $0x7850] sm:$0xff]
    %v4047 = vld [vmem:[#allocation5 + $0x7858] sm:$0xff]
    %v4048 = vld [vmem:[#allocation5 + $0x7860] sm:$0xff]
    %v4049 = vld [vmem:[#allocation5 + $0x7868] sm:$0xff]
    %v4050 = vld [vmem:[#allocation5 + $0x7870] sm:$0xff]
    %v4051 = vld [vmem:[#allocation5 + $0x7878] sm:$0xff]
    %v4052 = vld [vmem:[#allocation5 + $0x7880] sm:$0xff]
    %v4053 = vld [vmem:[#allocation5 + $0x7888] sm:$0xff]
    %v4054 = vld [vmem:[#allocation5 + $0x7890] sm:$0xff]
    %v4055 = vld [vmem:[#allocation5 + $0x7898] sm:$0xff]
    %v4056 = vld [vmem:[#allocation5 + $0x78a0] sm:$0xff]
    %v4057 = vld [vmem:[#allocation5 + $0x78a8] sm:$0xff]
    %v4058 = vld [vmem:[#allocation5 + $0x78b0] sm:$0xff]
    %v4059 = vld [vmem:[#allocation5 + $0x78b8] sm:$0xff]
    %v4060 = vld [vmem:[#allocation5 + $0x78c0] sm:$0xff]
    %v4061 = vld [vmem:[#allocation5 + $0x78c8] sm:$0xff]
    %v4062 = vld [vmem:[#allocation5 + $0x78d0] sm:$0xff]
    %v4063 = vld [vmem:[#allocation5 + $0x78d8] sm:$0xff]
    %v4064 = vld [vmem:[#allocation5 + $0x78e0] sm:$0xff]
    %v4065 = vld [vmem:[#allocation5 + $0x78e8] sm:$0xff]
    %v4066 = vld [vmem:[#allocation5 + $0x78f0] sm:$0xff]
    %v4067 = vld [vmem:[#allocation5 + $0x78f8] sm:$0xff]
    %v4068 = vld [vmem:[#allocation5 + $0x7900] sm:$0xff]
    %v4069 = vld [vmem:[#allocation5 + $0x7908] sm:$0xff]
    %v4070 = vld [vmem:[#allocation5 + $0x7910] sm:$0xff]
    %v4071 = vld [vmem:[#allocation5 + $0x7918] sm:$0xff]
    %v4072 = vld [vmem:[#allocation5 + $0x7920] sm:$0xff]
    %v4073 = vld [vmem:[#allocation5 + $0x7928] sm:$0xff]
    %v4074 = vld [vmem:[#allocation5 + $0x7930] sm:$0xff]
    %v4075 = vld [vmem:[#allocation5 + $0x7938] sm:$0xff]
    %v4076 = vld [vmem:[#allocation5 + $0x7940] sm:$0xff]
    %v4077 = vld [vmem:[#allocation5 + $0x7948] sm:$0xff]
    %v4078 = vld [vmem:[#allocation5 + $0x7950] sm:$0xff]
    %v4079 = vld [vmem:[#allocation5 + $0x7958] sm:$0xff]
    %v4080 = vld [vmem:[#allocation5 + $0x7960] sm:$0xff]
    %v4081 = vld [vmem:[#allocation5 + $0x7968] sm:$0xff]
    %v4082 = vld [vmem:[#allocation5 + $0x7970] sm:$0xff]
    %v4083 = vld [vmem:[#allocation5 + $0x7978] sm:$0xff]
    %v4084 = vld [vmem:[#allocation5 + $0x7980] sm:$0xff]
    %v4085 = vld [vmem:[#allocation5 + $0x7988] sm:$0xff]
    %v4086 = vld [vmem:[#allocation5 + $0x7990] sm:$0xff]
    %v4087 = vld [vmem:[#allocation5 + $0x7998] sm:$0xff]
    %v4088 = vld [vmem:[#allocation5 + $0x79a0] sm:$0xff]
    %v4089 = vld [vmem:[#allocation5 + $0x79a8] sm:$0xff]
    %v4090 = vld [vmem:[#allocation5 + $0x79b0] sm:$0xff]
    %v4091 = vld [vmem:[#allocation5 + $0x79b8] sm:$0xff]
    %v4092 = vld [vmem:[#allocation5 + $0x79c0] sm:$0xff]
    %v4093 = vld [vmem:[#allocation5 + $0x79c8] sm:$0xff]
    %v4094 = vld [vmem:[#allocation5 + $0x79d0] sm:$0xff]
    %v4095 = vld [vmem:[#allocation5 + $0x79d8] sm:$0xff]
    %v4096 = vld [vmem:[#allocation5 + $0x79e0] sm:$0xff]
    %v4097 = vld [vmem:[#allocation5 + $0x79e8] sm:$0xff]
    %v4098 = vld [vmem:[#allocation5 + $0x79f0] sm:$0xff]
    %v4099 = vld [vmem:[#allocation5 + $0x79f8] sm:$0xff]
    %v4100 = vld [vmem:[#allocation5 + $0x7a00] sm:$0xff]
    %v4101 = vld [vmem:[#allocation5 + $0x7a08] sm:$0xff]
    %v4102 = vld [vmem:[#allocation5 + $0x7a10] sm:$0xff]
    %v4103 = vld [vmem:[#allocation5 + $0x7a18] sm:$0xff]
    %v4104 = vld [vmem:[#allocation5 + $0x7a20] sm:$0xff]
    %v4105 = vld [vmem:[#allocation5 + $0x7a28] sm:$0xff]
    %v4106 = vld [vmem:[#allocation5 + $0x7a30] sm:$0xff]
    %v4107 = vld [vmem:[#allocation5 + $0x7a38] sm:$0xff]
    %v4108 = vld [vmem:[#allocation5 + $0x7a40] sm:$0xff]
    %v4109 = vld [vmem:[#allocation5 + $0x7a48] sm:$0xff]
    %v4110 = vld [vmem:[#allocation5 + $0x7a50] sm:$0xff]
    %v4111 = vld [vmem:[#allocation5 + $0x7a58] sm:$0xff]
    %v4112 = vld [vmem:[#allocation5 + $0x7a60] sm:$0xff]
    %v4113 = vld [vmem:[#allocation5 + $0x7a68] sm:$0xff]
    %v4114 = vld [vmem:[#allocation5 + $0x7a70] sm:$0xff]
    %v4115 = vld [vmem:[#allocation5 + $0x7a78] sm:$0xff]
    %v4116 = vld [vmem:[#allocation5 + $0x7a80] sm:$0xff]
    %v4117 = vld [vmem:[#allocation5 + $0x7a88] sm:$0xff]
    %v4118 = vld [vmem:[#allocation5 + $0x7a90] sm:$0xff]
    %v4119 = vld [vmem:[#allocation5 + $0x7a98] sm:$0xff]
    %v4120 = vld [vmem:[#allocation5 + $0x7aa0] sm:$0xff]
    %v4121 = vld [vmem:[#allocation5 + $0x7aa8] sm:$0xff]
    %v4122 = vld [vmem:[#allocation5 + $0x7ab0] sm:$0xff]
    %v4123 = vld [vmem:[#allocation5 + $0x7ab8] sm:$0xff]
    %v4124 = vld [vmem:[#allocation5 + $0x7ac0] sm:$0xff]
    %v4125 = vld [vmem:[#allocation5 + $0x7ac8] sm:$0xff]
    %v4126 = vld [vmem:[#allocation5 + $0x7ad0] sm:$0xff]
    %v4127 = vld [vmem:[#allocation5 + $0x7ad8] sm:$0xff]
    %v4128 = vld [vmem:[#allocation5 + $0x7ae0] sm:$0xff]
    %v4129 = vld [vmem:[#allocation5 + $0x7ae8] sm:$0xff]
    %v4130 = vld [vmem:[#allocation5 + $0x7af0] sm:$0xff]
    %v4131 = vld [vmem:[#allocation5 + $0x7af8] sm:$0xff]
    %v4132 = vld [vmem:[#allocation5 + $0x7b00] sm:$0xff]
    %v4133 = vld [vmem:[#allocation5 + $0x7b08] sm:$0xff]
    %v4134 = vld [vmem:[#allocation5 + $0x7b10] sm:$0xff]
    %v4135 = vld [vmem:[#allocation5 + $0x7b18] sm:$0xff]
    %v4136 = vld [vmem:[#allocation5 + $0x7b20] sm:$0xff]
    %v4137 = vld [vmem:[#allocation5 + $0x7b28] sm:$0xff]
    %v4138 = vld [vmem:[#allocation5 + $0x7b30] sm:$0xff]
    %v4139 = vld [vmem:[#allocation5 + $0x7b38] sm:$0xff]
    %v4140 = vld [vmem:[#allocation5 + $0x7b40] sm:$0xff]
    %v4141 = vld [vmem:[#allocation5 + $0x7b48] sm:$0xff]
    %v4142 = vld [vmem:[#allocation5 + $0x7b50] sm:$0xff]
    %v4143 = vld [vmem:[#allocation5 + $0x7b58] sm:$0xff]
    %v4144 = vld [vmem:[#allocation5 + $0x7b60] sm:$0xff]
    %v4145 = vld [vmem:[#allocation5 + $0x7b68] sm:$0xff]
    %v4146 = vld [vmem:[#allocation5 + $0x7b70] sm:$0xff]
    %v4147 = vld [vmem:[#allocation5 + $0x7b78] sm:$0xff]
    %v4148 = vld [vmem:[#allocation5 + $0x7b80] sm:$0xff]
    %v4149 = vld [vmem:[#allocation5 + $0x7b88] sm:$0xff]
    %v4150 = vld [vmem:[#allocation5 + $0x7b90] sm:$0xff]
    %v4151 = vld [vmem:[#allocation5 + $0x7b98] sm:$0xff]
    %v4152 = vld [vmem:[#allocation5 + $0x7ba0] sm:$0xff]
    %v4153 = vld [vmem:[#allocation5 + $0x7ba8] sm:$0xff]
    %v4154 = vld [vmem:[#allocation5 + $0x7bb0] sm:$0xff]
    %v4155 = vld [vmem:[#allocation5 + $0x7bb8] sm:$0xff]
    %v4156 = vld [vmem:[#allocation5 + $0x7bc0] sm:$0xff]
    %v4157 = vld [vmem:[#allocation5 + $0x7bc8] sm:$0xff]
    %v4158 = vld [vmem:[#allocation5 + $0x7bd0] sm:$0xff]
    %v4159 = vld [vmem:[#allocation5 + $0x7bd8] sm:$0xff]
    %v4160 = vld [vmem:[#allocation5 + $0x7be0] sm:$0xff]
    %v4161 = vld [vmem:[#allocation5 + $0x7be8] sm:$0xff]
    %v4162 = vld [vmem:[#allocation5 + $0x7bf0] sm:$0xff]
    %v4163 = vld [vmem:[#allocation5 + $0x7bf8] sm:$0xff]
    %v4164 = vld [vmem:[#allocation5 + $0x7c00] sm:$0xff]
    %v4165 = vld [vmem:[#allocation5 + $0x7c08] sm:$0xff]
    %v4166 = vld [vmem:[#allocation5 + $0x7c10] sm:$0xff]
    %v4167 = vld [vmem:[#allocation5 + $0x7c18] sm:$0xff]
    %v4168 = vld [vmem:[#allocation5 + $0x7c20] sm:$0xff]
    %v4169 = vld [vmem:[#allocation5 + $0x7c28] sm:$0xff]
    %v4170 = vld [vmem:[#allocation5 + $0x7c30] sm:$0xff]
    %v4171 = vld [vmem:[#allocation5 + $0x7c38] sm:$0xff]
    %v4172 = vld [vmem:[#allocation5 + $0x7c40] sm:$0xff]
    %v4173 = vld [vmem:[#allocation5 + $0x7c48] sm:$0xff]
    %v4174 = vld [vmem:[#allocation5 + $0x7c50] sm:$0xff]
    %v4175 = vld [vmem:[#allocation5 + $0x7c58] sm:$0xff]
    %v4176 = vld [vmem:[#allocation5 + $0x7c60] sm:$0xff]
    %v4177 = vld [vmem:[#allocation5 + $0x7c68] sm:$0xff]
    %v4178 = vld [vmem:[#allocation5 + $0x7c70] sm:$0xff]
    %v4179 = vld [vmem:[#allocation5 + $0x7c78] sm:$0xff]
    %v4180 = vld [vmem:[#allocation5 + $0x7c80] sm:$0xff]
    %v4181 = vld [vmem:[#allocation5 + $0x7c88] sm:$0xff]
    %v4182 = vld [vmem:[#allocation5 + $0x7c90] sm:$0xff]
    %v4183 = vld [vmem:[#allocation5 + $0x7c98] sm:$0xff]
    %v4184 = vld [vmem:[#allocation5 + $0x7ca0] sm:$0xff]
    %v4185 = vld [vmem:[#allocation5 + $0x7ca8] sm:$0xff]
    %v4186 = vld [vmem:[#allocation5 + $0x7cb0] sm:$0xff]
    %v4187 = vld [vmem:[#allocation5 + $0x7cb8] sm:$0xff]
    %v4188 = vld [vmem:[#allocation5 + $0x7cc0] sm:$0xff]
    %v4189 = vld [vmem:[#allocation5 + $0x7cc8] sm:$0xff]
    %v4190 = vld [vmem:[#allocation5 + $0x7cd0] sm:$0xff]
    %v4191 = vld [vmem:[#allocation5 + $0x7cd8] sm:$0xff]
    %v4192 = vld [vmem:[#allocation5 + $0x7ce0] sm:$0xff]
    %v4193 = vld [vmem:[#allocation5 + $0x7ce8] sm:$0xff]
    %v4194 = vld [vmem:[#allocation5 + $0x7cf0] sm:$0xff]
    %v4195 = vld [vmem:[#allocation5 + $0x7cf8] sm:$0xff]
    %v4196 = vld [vmem:[#allocation5 + $0x7d00] sm:$0xff]
    %v4197 = vld [vmem:[#allocation5 + $0x7d08] sm:$0xff]
    %v4198 = vld [vmem:[#allocation5 + $0x7d10] sm:$0xff]
    %v4199 = vld [vmem:[#allocation5 + $0x7d18] sm:$0xff]
    %v4200 = vld [vmem:[#allocation5 + $0x7d20] sm:$0xff]
    %v4201 = vld [vmem:[#allocation5 + $0x7d28] sm:$0xff]
    %v4202 = vld [vmem:[#allocation5 + $0x7d30] sm:$0xff]
    %v4203 = vld [vmem:[#allocation5 + $0x7d38] sm:$0xff]
    %v4204 = vld [vmem:[#allocation5 + $0x7d40] sm:$0xff]
    %v4205 = vld [vmem:[#allocation5 + $0x7d48] sm:$0xff]
    %v4206 = vld [vmem:[#allocation5 + $0x7d50] sm:$0xff]
    %v4207 = vld [vmem:[#allocation5 + $0x7d58] sm:$0xff]
    %v4208 = vld [vmem:[#allocation5 + $0x7d60] sm:$0xff]
    %v4209 = vld [vmem:[#allocation5 + $0x7d68] sm:$0xff]
    %v4210 = vld [vmem:[#allocation5 + $0x7d70] sm:$0xff]
    %v4211 = vld [vmem:[#allocation5 + $0x7d78] sm:$0xff]
    %v4212 = vld [vmem:[#allocation5 + $0x7d80] sm:$0xff]
    %v4213 = vld [vmem:[#allocation5 + $0x7d88] sm:$0xff]
    %v4214 = vld [vmem:[#allocation5 + $0x7d90] sm:$0xff]
    %v4215 = vld [vmem:[#allocation5 + $0x7d98] sm:$0xff]
    %v4216 = vld [vmem:[#allocation5 + $0x7da0] sm:$0xff]
    %v4217 = vld [vmem:[#allocation5 + $0x7da8] sm:$0xff]
    %v4218 = vld [vmem:[#allocation5 + $0x7db0] sm:$0xff]
    %v4219 = vld [vmem:[#allocation5 + $0x7db8] sm:$0xff]
    %v4220 = vld [vmem:[#allocation5 + $0x7dc0] sm:$0xff]
    %v4221 = vld [vmem:[#allocation5 + $0x7dc8] sm:$0xff]
    %v4222 = vld [vmem:[#allocation5 + $0x7dd0] sm:$0xff]
    %v4223 = vld [vmem:[#allocation5 + $0x7dd8] sm:$0xff]
    %v4224 = vld [vmem:[#allocation5 + $0x7de0] sm:$0xff]
    %v4225 = vld [vmem:[#allocation5 + $0x7de8] sm:$0xff]
    %v4226 = vld [vmem:[#allocation5 + $0x7df0] sm:$0xff]
    %v4227 = vld [vmem:[#allocation5 + $0x7df8] sm:$0xff]
    %v4228 = vld [vmem:[#allocation5 + $0x7e00] sm:$0xff]
    %v4229 = vld [vmem:[#allocation5 + $0x7e08] sm:$0xff]
    %v4230 = vld [vmem:[#allocation5 + $0x7e10] sm:$0xff]
    %v4231 = vld [vmem:[#allocation5 + $0x7e18] sm:$0xff]
    %v4232 = vld [vmem:[#allocation5 + $0x7e20] sm:$0xff]
    %v4233 = vld [vmem:[#allocation5 + $0x7e28] sm:$0xff]
    %v4234 = vld [vmem:[#allocation5 + $0x7e30] sm:$0xff]
    %v4235 = vld [vmem:[#allocation5 + $0x7e38] sm:$0xff]
    %v4236 = vld [vmem:[#allocation5 + $0x7e40] sm:$0xff]
    %v4237 = vld [vmem:[#allocation5 + $0x7e48] sm:$0xff]
    %v4238 = vld [vmem:[#allocation5 + $0x7e50] sm:$0xff]
    %v4239 = vld [vmem:[#allocation5 + $0x7e58] sm:$0xff]
    %v4240 = vld [vmem:[#allocation5 + $0x7e60] sm:$0xff]
    %v4241 = vld [vmem:[#allocation5 + $0x7e68] sm:$0xff]
    %v4242 = vld [vmem:[#allocation5 + $0x7e70] sm:$0xff]
    %v4243 = vld [vmem:[#allocation5 + $0x7e78] sm:$0xff]
    %v4244 = vld [vmem:[#allocation5 + $0x7e80] sm:$0xff]
    %v4245 = vld [vmem:[#allocation5 + $0x7e88] sm:$0xff]
    %v4246 = vld [vmem:[#allocation5 + $0x7e90] sm:$0xff]
    %v4247 = vld [vmem:[#allocation5 + $0x7e98] sm:$0xff]
    %v4248 = vld [vmem:[#allocation5 + $0x7ea0] sm:$0xff]
    %v4249 = vld [vmem:[#allocation5 + $0x7ea8] sm:$0xff]
    %v4250 = vld [vmem:[#allocation5 + $0x7eb0] sm:$0xff]
    %v4251 = vld [vmem:[#allocation5 + $0x7eb8] sm:$0xff]
    %v4252 = vld [vmem:[#allocation5 + $0x7ec0] sm:$0xff]
    %v4253 = vld [vmem:[#allocation5 + $0x7ec8] sm:$0xff]
    %v4254 = vld [vmem:[#allocation5 + $0x7ed0] sm:$0xff]
    %v4255 = vld [vmem:[#allocation5 + $0x7ed8] sm:$0xff]
    %v4256 = vld [vmem:[#allocation5 + $0x7ee0] sm:$0xff]
    %v4257 = vld [vmem:[#allocation5 + $0x7ee8] sm:$0xff]
    %v4258 = vld [vmem:[#allocation5 + $0x7ef0] sm:$0xff]
    %v4259 = vld [vmem:[#allocation5 + $0x7ef8] sm:$0xff]
    %v4260 = vld [vmem:[#allocation5 + $0x7f00] sm:$0xff]
    %v4261 = vld [vmem:[#allocation5 + $0x7f08] sm:$0xff]
    %v4262 = vld [vmem:[#allocation5 + $0x7f10] sm:$0xff]
    %v4263 = vld [vmem:[#allocation5 + $0x7f18] sm:$0xff]
    %v4264 = vld [vmem:[#allocation5 + $0x7f20] sm:$0xff]
    %v4265 = vld [vmem:[#allocation5 + $0x7f28] sm:$0xff]
    %v4266 = vld [vmem:[#allocation5 + $0x7f30] sm:$0xff]
    %v4267 = vld [vmem:[#allocation5 + $0x7f38] sm:$0xff]
    %v4268 = vld [vmem:[#allocation5 + $0x7f40] sm:$0xff]
    %v4269 = vld [vmem:[#allocation5 + $0x7f48] sm:$0xff]
    %v4270 = vld [vmem:[#allocation5 + $0x7f50] sm:$0xff]
    %v4271 = vld [vmem:[#allocation5 + $0x7f58] sm:$0xff]
    %v4272 = vld [vmem:[#allocation5 + $0x7f60] sm:$0xff]
    %v4273 = vld [vmem:[#allocation5 + $0x7f68] sm:$0xff]
    %v4274 = vld [vmem:[#allocation5 + $0x7f70] sm:$0xff]
    %v4275 = vld [vmem:[#allocation5 + $0x7f78] sm:$0xff]
    %v4276 = vld [vmem:[#allocation5 + $0x7f80] sm:$0xff]
    %v4277 = vld [vmem:[#allocation5 + $0x7f88] sm:$0xff]
    %v4278 = vld [vmem:[#allocation5 + $0x7f90] sm:$0xff]
    %v4279 = vld [vmem:[#allocation5 + $0x7f98] sm:$0xff]
    %v4280 = vld [vmem:[#allocation5 + $0x7fa0] sm:$0xff]
    %v4281 = vld [vmem:[#allocation5 + $0x7fa8] sm:$0xff]
    %v4282 = vld [vmem:[#allocation5 + $0x7fb0] sm:$0xff]
    %v4283 = vld [vmem:[#allocation5 + $0x7fb8] sm:$0xff]
    %v4284 = vld [vmem:[#allocation5 + $0x7fc0] sm:$0xff]
    %v4285 = vld [vmem:[#allocation5 + $0x7fc8] sm:$0xff]
    %v4286 = vld [vmem:[#allocation5 + $0x7fd0] sm:$0xff]
    %v4287 = vld [vmem:[#allocation5 + $0x7fd8] sm:$0xff]
    %v4288 = vld [vmem:[#allocation5 + $0x7fe0] sm:$0xff]
    %v4289 = vld [vmem:[#allocation5 + $0x7fe8] sm:$0xff]
    %v4290 = vld [vmem:[#allocation5 + $0x7ff0] sm:$0xff]
    %v4291 = vld [vmem:[#allocation5 + $0x7ff8] sm:$0xff]
    %4420 = vst [vmem:[#allocation1] ss:$2 sm:$0xff] %v68
    %s4421 = scalar_lea.vmem [#allocation1], 16
    %4422 = vst [vmem:[%s4421] ss:$2 sm:$0xff] %v69
    %s4423 = scalar_lea.vmem [#allocation1], 32
    %4424 = vst [vmem:[%s4423] ss:$2 sm:$0xff] %v70
    %s4425 = scalar_lea.vmem [#allocation1], 48
    %4426 = vst [vmem:[%s4425] ss:$2 sm:$0xff] %v71
    %v4427 = vld.sshfl [vmem:[#allocation1] sm:$0xff pattern:$0x75316420]
    %v4428 = vld.sshfl [vmem:[#allocation1 + $0x8] sm:$0xff pattern:$0x75316420]
    %v4429 = vld.sshfl [vmem:[#allocation1 + $0x10] sm:$0xff pattern:$0x75316420]
    %v4430 = vld.sshfl [vmem:[#allocation1 + $0x18] sm:$0xff pattern:$0x75316420]
    %v4431 = vld.sshfl [vmem:[#allocation1 + $0x20] sm:$0xff pattern:$0x75316420]
    %v4432 = vld.sshfl [vmem:[#allocation1 + $0x28] sm:$0xff pattern:$0x75316420]
    %v4433 = vld.sshfl [vmem:[#allocation1 + $0x30] sm:$0xff pattern:$0x75316420]
    %v4434 = vld.sshfl [vmem:[#allocation1 + $0x38] sm:$0xff pattern:$0x75316420]
    %4435 = vst [vmem:[#allocation1] ss:$2 sm:$0xff] %v72
    %4436 = vst [vmem:[%s4421] ss:$2 sm:$0xff] %v73
    %4437 = vst [vmem:[%s4423] ss:$2 sm:$0xff] %v74
    %4438 = vst [vmem:[%s4425] ss:$2 sm:$0xff] %v75
    %v4439 = vld.sshfl [vmem:[#allocation1] sm:$0xff pattern:$0x75316420]
    %v4440 = vld.sshfl [vmem:[#allocation1 + $0x8] sm:$0xff pattern:$0x75316420]
    %v4441 = vld.sshfl [vmem:[#allocation1 + $0x10] sm:$0xff pattern:$0x75316420]
    %v4442 = vld.sshfl [vmem:[#allocation1 + $0x18] sm:$0xff pattern:$0x75316420]
    %v4443 = vld.sshfl [vmem:[#allocation1 + $0x20] sm:$0xff pattern:$0x75316420]
    %v4444 = vld.sshfl [vmem:[#allocation1 + $0x28] sm:$0xff pattern:$0x75316420]
    %v4445 = vld.sshfl [vmem:[#allocation1 + $0x30] sm:$0xff pattern:$0x75316420]
    %v4446 = vld.sshfl [vmem:[#allocation1 + $0x38] sm:$0xff pattern:$0x75316420]
    %4447 = vst [vmem:[#allocation1] ss:$2 sm:$0xff] %v76
    %4448 = vst [vmem:[%s4421] ss:$2 sm:$0xff] %v77
    %4449 = vst [vmem:[%s4423] ss:$2 sm:$0xff] %v78
    %4450 = vst [vmem:[%s4425] ss:$2 sm:$0xff] %v79
    %v4451 = vld.sshfl [vmem:[#allocation1] sm:$0xff pattern:$0x75316420]
    %v4452 = vld.sshfl [vmem:[#allocation1 + $0x8] sm:$0xff pattern:$0x75316420]
    %v4453 = vld.sshfl [vmem:[#allocation1 + $0x10] sm:$0xff pattern:$0x75316420]
    %v4454 = vld.sshfl [vmem:[#allocation1 + $0x18] sm:$0xff pattern:$0x75316420]
    %v4455 = vld.sshfl [vmem:[#allocation1 + $0x20] sm:$0xff pattern:$0x75316420]
    %v4456 = vld.sshfl [vmem:[#allocation1 + $0x28] sm:$0xff pattern:$0x75316420]
    %v4457 = vld.sshfl [vmem:[#allocation1 + $0x30] sm:$0xff pattern:$0x75316420]
    %v4458 = vld.sshfl [vmem:[#allocation1 + $0x38] sm:$0xff pattern:$0x75316420]
    %4459 = vst [vmem:[#allocation1] ss:$2 sm:$0xff] %v80
    %4460 = vst [vmem:[%s4421] ss:$2 sm:$0xff] %v81
    %4461 = vst [vmem:[%s4423] ss:$2 sm:$0xff] %v82
    %4462 = vst [vmem:[%s4425] ss:$2 sm:$0xff] %v83
    %v4463 = vld.sshfl [vmem:[#allocation1] sm:$0xff pattern:$0x75316420]
    %v4464 = vld.sshfl [vmem:[#allocation1 + $0x8] sm:$0xff pattern:$0x75316420]
    %v4465 = vld.sshfl [vmem:[#allocation1 + $0x10] sm:$0xff pattern:$0x75316420]
    %v4466 = vld.sshfl [vmem:[#allocation1 + $0x18] sm:$0xff pattern:$0x75316420]
    %v4467 = vld.sshfl [vmem:[#allocation1 + $0x20] sm:$0xff pattern:$0x75316420]
    %v4468 = vld.sshfl [vmem:[#allocation1 + $0x28] sm:$0xff pattern:$0x75316420]
    %v4469 = vld.sshfl [vmem:[#allocation1 + $0x30] sm:$0xff pattern:$0x75316420]
    %v4470 = vld.sshfl [vmem:[#allocation1 + $0x38] sm:$0xff pattern:$0x75316420]
    %4471 = vst [vmem:[#allocation1] ss:$2 sm:$0xff] %v84
    %4472 = vst [vmem:[%s4421] ss:$2 sm:$0xff] %v85
    %4473 = vst [vmem:[%s4423] ss:$2 sm:$0xff] %v86
    %4474 = vst [vmem:[%s4425] ss:$2 sm:$0xff] %v87
    %v4475 = vld.sshfl [vmem:[#allocation1] sm:$0xff pattern:$0x75316420]
    %v4476 = vld.sshfl [vmem:[#allocation1 + $0x8] sm:$0xff pattern:$0x75316420]
    %v4477 = vld.sshfl [vmem:[#allocation1 + $0x10] sm:$0xff pattern:$0x75316420]
    %v4478 = vld.sshfl [vmem:[#allocation1 + $0x18] sm:$0xff pattern:$0x75316420]
    %v4479 = vld.sshfl [vmem:[#allocation1 + $0x20] sm:$0xff pattern:$0x75316420]
    %v4480 = vld.sshfl [vmem:[#allocation1 + $0x28] sm:$0xff pattern:$0x75316420]
    %v4481 = vld.sshfl [vmem:[#allocation1 + $0x30] sm:$0xff pattern:$0x75316420]
    %v4482 = vld.sshfl [vmem:[#allocation1 + $0x38] sm:$0xff pattern:$0x75316420]
    %4483 = vst [vmem:[#allocation1] ss:$2 sm:$0xff] %v88
    %4484 = vst [vmem:[%s4421] ss:$2 sm:$0xff] %v89
    %4485 = vst [vmem:[%s4423] ss:$2 sm:$0xff] %v90
    %4486 = vst [vmem:[%s4425] ss:$2 sm:$0xff] %v91
    %v4487 = vld.sshfl [vmem:[#allocation1] sm:$0xff pattern:$0x75316420]
    %v4488 = vld.sshfl [vmem:[#allocation1 + $0x8] sm:$0xff pattern:$0x75316420]
    %v4489 = vld.sshfl [vmem:[#allocation1 + $0x10] sm:$0xff pattern:$0x75316420]
    %v4490 = vld.sshfl [vmem:[#allocation1 + $0x18] sm:$0xff pattern:$0x75316420]
    %v4491 = vld.sshfl [vmem:[#allocation1 + $0x20] sm:$0xff pattern:$0x75316420]
    %v4492 = vld.sshfl [vmem:[#allocation1 + $0x28] sm:$0xff pattern:$0x75316420]
    %v4493 = vld.sshfl [vmem:[#allocation1 + $0x30] sm:$0xff pattern:$0x75316420]
    %v4494 = vld.sshfl [vmem:[#allocation1 + $0x38] sm:$0xff pattern:$0x75316420]
    %4495 = vst [vmem:[#allocation1] ss:$2 sm:$0xff] %v92
    %4496 = vst [vmem:[%s4421] ss:$2 sm:$0xff] %v93
    %4497 = vst [vmem:[%s4423] ss:$2 sm:$0xff] %v94
    %4498 = vst [vmem:[%s4425] ss:$2 sm:$0xff] %v95
    %v4499 = vld.sshfl [vmem:[#allocation1] sm:$0xff pattern:$0x75316420]
    %v4500 = vld.sshfl [vmem:[#allocation1 + $0x8] sm:$0xff pattern:$0x75316420]
    %v4501 = vld.sshfl [vmem:[#allocation1 + $0x10] sm:$0xff pattern:$0x75316420]
    %v4502 = vld.sshfl [vmem:[#allocation1 + $0x18] sm:$0xff pattern:$0x75316420]
    %v4503 = vld.sshfl [vmem:[#allocation1 + $0x20] sm:$0xff pattern:$0x75316420]
    %v4504 = vld.sshfl [vmem:[#allocation1 + $0x28] sm:$0xff pattern:$0x75316420]
    %v4505 = vld.sshfl [vmem:[#allocation1 + $0x30] sm:$0xff pattern:$0x75316420]
    %v4506 = vld.sshfl [vmem:[#allocation1 + $0x38] sm:$0xff pattern:$0x75316420]
    %4507 = vst [vmem:[#allocation1] ss:$2 sm:$0xff] %v96
    %4508 = vst [vmem:[%s4421] ss:$2 sm:$0xff] %v97
    %4509 = vst [vmem:[%s4423] ss:$2 sm:$0xff] %v98
    %4510 = vst [vmem:[%s4425] ss:$2 sm:$0xff] %v99
    %v4511 = vld.sshfl [vmem:[#allocation1] sm:$0xff pattern:$0x75316420]
    %v4512 = vld.sshfl [vmem:[#allocation1 + $0x8] sm:$0xff pattern:$0x75316420]
    %v4513 = vld.sshfl [vmem:[#allocation1 + $0x10] sm:$0xff pattern:$0x75316420]
    %v4514 = vld.sshfl [vmem:[#allocation1 + $0x18] sm:$0xff pattern:$0x75316420]
    %v4515 = vld.sshfl [vmem:[#allocation1 + $0x20] sm:$0xff pattern:$0x75316420]
    %v4516 = vld.sshfl [vmem:[#allocation1 + $0x28] sm:$0xff pattern:$0x75316420]
    %v4517 = vld.sshfl [vmem:[#allocation1 + $0x30] sm:$0xff pattern:$0x75316420]
    %v4518 = vld.sshfl [vmem:[#allocation1 + $0x38] sm:$0xff pattern:$0x75316420]
    %4519 = vst [vmem:[#allocation1] ss:$2 sm:$0xff] %v100
    %4520 = vst [vmem:[%s4421] ss:$2 sm:$0xff] %v101
    %4521 = vst [vmem:[%s4423] ss:$2 sm:$0xff] %v102
    %4522 = vst [vmem:[%s4425] ss:$2 sm:$0xff] %v103
    %v4523 = vld.sshfl [vmem:[#allocation1] sm:$0xff pattern:$0x75316420]
    %v4524 = vld.sshfl [vmem:[#allocation1 + $0x8] sm:$0xff pattern:$0x75316420]
    %v4525 = vld.sshfl [vmem:[#allocation1 + $0x10] sm:$0xff pattern:$0x75316420]
    %v4526 = vld.sshfl [vmem:[#allocation1 + $0x18] sm:$0xff pattern:$0x75316420]
    %v4527 = vld.sshfl [vmem:[#allocation1 + $0x20] sm:$0xff pattern:$0x75316420]
    %v4528 = vld.sshfl [vmem:[#allocation1 + $0x28] sm:$0xff pattern:$0x75316420]
    %v4529 = vld.sshfl [vmem:[#allocation1 + $0x30] sm:$0xff pattern:$0x75316420]
    %v4530 = vld.sshfl [vmem:[#allocation1 + $0x38] sm:$0xff pattern:$0x75316420]
    %4531 = vst [vmem:[#allocation1] ss:$2 sm:$0xff] %v104
    %4532 = vst [vmem:[%s4421] ss:$2 sm:$0xff] %v105
    %4533 = vst [vmem:[%s4423] ss:$2 sm:$0xff] %v106
    %4534 = vst [vmem:[%s4425] ss:$2 sm:$0xff] %v107
    %v4535 = vld.sshfl [vmem:[#allocation1] sm:$0xff pattern:$0x75316420]
    %v4536 = vld.sshfl [vmem:[#allocation1 + $0x8] sm:$0xff pattern:$0x75316420]
    %v4537 = vld.sshfl [vmem:[#allocation1 + $0x10] sm:$0xff pattern:$0x75316420]
    %v4538 = vld.sshfl [vmem:[#allocation1 + $0x18] sm:$0xff pattern:$0x75316420]
    %v4539 = vld.sshfl [vmem:[#allocation1 + $0x20] sm:$0xff pattern:$0x75316420]
    %v4540 = vld.sshfl [vmem:[#allocation1 + $0x28] sm:$0xff pattern:$0x75316420]
    %v4541 = vld.sshfl [vmem:[#allocation1 + $0x30] sm:$0xff pattern:$0x75316420]
    %v4542 = vld.sshfl [vmem:[#allocation1 + $0x38] sm:$0xff pattern:$0x75316420]
    %4543 = vst [vmem:[#allocation1] ss:$2 sm:$0xff] %v108
    %4544 = vst [vmem:[%s4421] ss:$2 sm:$0xff] %v109
    %4545 = vst [vmem:[%s4423] ss:$2 sm:$0xff] %v110
    %4546 = vst [vmem:[%s4425] ss:$2 sm:$0xff] %v111
    %v4547 = vld.sshfl [vmem:[#allocation1] sm:$0xff pattern:$0x75316420]
    %v4548 = vld.sshfl [vmem:[#allocation1 + $0x8] sm:$0xff pattern:$0x75316420]
    %v4549 = vld.sshfl [vmem:[#allocation1 + $0x10] sm:$0xff pattern:$0x75316420]
    %v4550 = vld.sshfl [vmem:[#allocation1 + $0x18] sm:$0xff pattern:$0x75316420]
    %v4551 = vld.sshfl [vmem:[#allocation1 + $0x20] sm:$0xff pattern:$0x75316420]
    %v4552 = vld.sshfl [vmem:[#allocation1 + $0x28] sm:$0xff pattern:$0x75316420]
    %v4553 = vld.sshfl [vmem:[#allocation1 + $0x30] sm:$0xff pattern:$0x75316420]
    %v4554 = vld.sshfl [vmem:[#allocation1 + $0x38] sm:$0xff pattern:$0x75316420]
    %4555 = vst [vmem:[#allocation1] ss:$2 sm:$0xff] %v112
    %4556 = vst [vmem:[%s4421] ss:$2 sm:$0xff] %v113
    %4557 = vst [vmem:[%s4423] ss:$2 sm:$0xff] %v114
    %4558 = vst [vmem:[%s4425] ss:$2 sm:$0xff] %v115
    %v4559 = vld.sshfl [vmem:[#allocation1] sm:$0xff pattern:$0x75316420]
    %v4560 = vld.sshfl [vmem:[#allocation1 + $0x8] sm:$0xff pattern:$0x75316420]
    %v4561 = vld.sshfl [vmem:[#allocation1 + $0x10] sm:$0xff pattern:$0x75316420]
    %v4562 = vld.sshfl [vmem:[#allocation1 + $0x18] sm:$0xff pattern:$0x75316420]
    %v4563 = vld.sshfl [vmem:[#allocation1 + $0x20] sm:$0xff pattern:$0x75316420]
    %v4564 = vld.sshfl [vmem:[#allocation1 + $0x28] sm:$0xff pattern:$0x75316420]
    %v4565 = vld.sshfl [vmem:[#allocation1 + $0x30] sm:$0xff pattern:$0x75316420]
    %v4566 = vld.sshfl [vmem:[#allocation1 + $0x38] sm:$0xff pattern:$0x75316420]
    %4567 = vst [vmem:[#allocation1] ss:$2 sm:$0xff] %v116
    %4568 = vst [vmem:[%s4421] ss:$2 sm:$0xff] %v117
    %4569 = vst [vmem:[%s4423] ss:$2 sm:$0xff] %v118
    %4570 = vst [vmem:[%s4425] ss:$2 sm:$0xff] %v119
    %v4571 = vld.sshfl [vmem:[#allocation1] sm:$0xff pattern:$0x75316420]
    %v4572 = vld.sshfl [vmem:[#allocation1 + $0x8] sm:$0xff pattern:$0x75316420]
    %v4573 = vld.sshfl [vmem:[#allocation1 + $0x10] sm:$0xff pattern:$0x75316420]
    %v4574 = vld.sshfl [vmem:[#allocation1 + $0x18] sm:$0xff pattern:$0x75316420]
    %v4575 = vld.sshfl [vmem:[#allocation1 + $0x20] sm:$0xff pattern:$0x75316420]
    %v4576 = vld.sshfl [vmem:[#allocation1 + $0x28] sm:$0xff pattern:$0x75316420]
    %v4577 = vld.sshfl [vmem:[#allocation1 + $0x30] sm:$0xff pattern:$0x75316420]
    %v4578 = vld.sshfl [vmem:[#allocation1 + $0x38] sm:$0xff pattern:$0x75316420]
    %4579 = vst [vmem:[#allocation1] ss:$2 sm:$0xff] %v120
    %4580 = vst [vmem:[%s4421] ss:$2 sm:$0xff] %v121
    %4581 = vst [vmem:[%s4423] ss:$2 sm:$0xff] %v122
    %4582 = vst [vmem:[%s4425] ss:$2 sm:$0xff] %v123
    %v4583 = vld.sshfl [vmem:[#allocation1] sm:$0xff pattern:$0x75316420]
    %v4584 = vld.sshfl [vmem:[#allocation1 + $0x8] sm:$0xff pattern:$0x75316420]
    %v4585 = vld.sshfl [vmem:[#allocation1 + $0x10] sm:$0xff pattern:$0x75316420]
    %v4586 = vld.sshfl [vmem:[#allocation1 + $0x18] sm:$0xff pattern:$0x75316420]
    %v4587 = vld.sshfl [vmem:[#allocation1 + $0x20] sm:$0xff pattern:$0x75316420]
    %v4588 = vld.sshfl [vmem:[#allocation1 + $0x28] sm:$0xff pattern:$0x75316420]
    %v4589 = vld.sshfl [vmem:[#allocation1 + $0x30] sm:$0xff pattern:$0x75316420]
    %v4590 = vld.sshfl [vmem:[#allocation1 + $0x38] sm:$0xff pattern:$0x75316420]
    %4591 = vst [vmem:[#allocation1] ss:$2 sm:$0xff] %v124
    %4592 = vst [vmem:[%s4421] ss:$2 sm:$0xff] %v125
    %4593 = vst [vmem:[%s4423] ss:$2 sm:$0xff] %v126
    %4594 = vst [vmem:[%s4425] ss:$2 sm:$0xff] %v127
    %v4595 = vld.sshfl [vmem:[#allocation1] sm:$0xff pattern:$0x75316420]
    %v4596 = vld.sshfl [vmem:[#allocation1 + $0x8] sm:$0xff pattern:$0x75316420]
    %v4597 = vld.sshfl [vmem:[#allocation1 + $0x10] sm:$0xff pattern:$0x75316420]
    %v4598 = vld.sshfl [vmem:[#allocation1 + $0x18] sm:$0xff pattern:$0x75316420]
    %v4599 = vld.sshfl [vmem:[#allocation1 + $0x20] sm:$0xff pattern:$0x75316420]
    %v4600 = vld.sshfl [vmem:[#allocation1 + $0x28] sm:$0xff pattern:$0x75316420]
    %v4601 = vld.sshfl [vmem:[#allocation1 + $0x30] sm:$0xff pattern:$0x75316420]
    %v4602 = vld.sshfl [vmem:[#allocation1 + $0x38] sm:$0xff pattern:$0x75316420]
    %4603 = vst [vmem:[#allocation1] ss:$2 sm:$0xff] %v128
    %4604 = vst [vmem:[%s4421] ss:$2 sm:$0xff] %v129
    %4605 = vst [vmem:[%s4423] ss:$2 sm:$0xff] %v130
    %4606 = vst [vmem:[%s4425] ss:$2 sm:$0xff] %v131
    %v4607 = vld.sshfl [vmem:[#allocation1] sm:$0xff pattern:$0x75316420]
    %v4608 = vld.sshfl [vmem:[#allocation1 + $0x8] sm:$0xff pattern:$0x75316420]
    %v4609 = vld.sshfl [vmem:[#allocation1 + $0x10] sm:$0xff pattern:$0x75316420]
    %v4610 = vld.sshfl [vmem:[#allocation1 + $0x18] sm:$0xff pattern:$0x75316420]
    %v4611 = vld.sshfl [vmem:[#allocation1 + $0x20] sm:$0xff pattern:$0x75316420]
    %v4612 = vld.sshfl [vmem:[#allocation1 + $0x28] sm:$0xff pattern:$0x75316420]
    %v4613 = vld.sshfl [vmem:[#allocation1 + $0x30] sm:$0xff pattern:$0x75316420]
    %v4614 = vld.sshfl [vmem:[#allocation1 + $0x38] sm:$0xff pattern:$0x75316420]
    %4615 = vst [vmem:[#allocation1] ss:$2 sm:$0xff] %v132
    %4616 = vst [vmem:[%s4421] ss:$2 sm:$0xff] %v133
    %4617 = vst [vmem:[%s4423] ss:$2 sm:$0xff] %v134
    %4618 = vst [vmem:[%s4425] ss:$2 sm:$0xff] %v135
    %v4619 = vld.sshfl [vmem:[#allocation1] sm:$0xff pattern:$0x75316420]
    %v4620 = vld.sshfl [vmem:[#allocation1 + $0x8] sm:$0xff pattern:$0x75316420]
    %v4621 = vld.sshfl [vmem:[#allocation1 + $0x10] sm:$0xff pattern:$0x75316420]
    %v4622 = vld.sshfl [vmem:[#allocation1 + $0x18] sm:$0xff pattern:$0x75316420]
    %v4623 = vld.sshfl [vmem:[#allocation1 + $0x20] sm:$0xff pattern:$0x75316420]
    %v4624 = vld.sshfl [vmem:[#allocation1 + $0x28] sm:$0xff pattern:$0x75316420]
    %v4625 = vld.sshfl [vmem:[#allocation1 + $0x30] sm:$0xff pattern:$0x75316420]
    %v4626 = vld.sshfl [vmem:[#allocation1 + $0x38] sm:$0xff pattern:$0x75316420]
    %4627 = vst [vmem:[#allocation1] ss:$2 sm:$0xff] %v136
    %4628 = vst [vmem:[%s4421] ss:$2 sm:$0xff] %v137
    %4629 = vst [vmem:[%s4423] ss:$2 sm:$0xff] %v138
    %4630 = vst [vmem:[%s4425] ss:$2 sm:$0xff] %v139
    %v4631 = vld.sshfl [vmem:[#allocation1] sm:$0xff pattern:$0x75316420]
    %v4632 = vld.sshfl [vmem:[#allocation1 + $0x8] sm:$0xff pattern:$0x75316420]
    %v4633 = vld.sshfl [vmem:[#allocation1 + $0x10] sm:$0xff pattern:$0x75316420]
    %v4634 = vld.sshfl [vmem:[#allocation1 + $0x18] sm:$0xff pattern:$0x75316420]
    %v4635 = vld.sshfl [vmem:[#allocation1 + $0x20] sm:$0xff pattern:$0x75316420]
    %v4636 = vld.sshfl [vmem:[#allocation1 + $0x28] sm:$0xff pattern:$0x75316420]
    %v4637 = vld.sshfl [vmem:[#allocation1 + $0x30] sm:$0xff pattern:$0x75316420]
    %v4638 = vld.sshfl [vmem:[#allocation1 + $0x38] sm:$0xff pattern:$0x75316420]
    %4639 = vst [vmem:[#allocation1] ss:$2 sm:$0xff] %v140
    %4640 = vst [vmem:[%s4421] ss:$2 sm:$0xff] %v141
    %4641 = vst [vmem:[%s4423] ss:$2 sm:$0xff] %v142
    %4642 = vst [vmem:[%s4425] ss:$2 sm:$0xff] %v143
    %v4643 = vld.sshfl [vmem:[#allocation1] sm:$0xff pattern:$0x75316420]
    %v4644 = vld.sshfl [vmem:[#allocation1 + $0x8] sm:$0xff pattern:$0x75316420]
    %v4645 = vld.sshfl [vmem:[#allocation1 + $0x10] sm:$0xff pattern:$0x75316420]
    %v4646 = vld.sshfl [vmem:[#allocation1 + $0x18] sm:$0xff pattern:$0x75316420]
    %v4647 = vld.sshfl [vmem:[#allocation1 + $0x20] sm:$0xff pattern:$0x75316420]
    %v4648 = vld.sshfl [vmem:[#allocation1 + $0x28] sm:$0xff pattern:$0x75316420]
    %v4649 = vld.sshfl [vmem:[#allocation1 + $0x30] sm:$0xff pattern:$0x75316420]
    %v4650 = vld.sshfl [vmem:[#allocation1 + $0x38] sm:$0xff pattern:$0x75316420]
    %4651 = vst [vmem:[#allocation1] ss:$2 sm:$0xff] %v144
    %4652 = vst [vmem:[%s4421] ss:$2 sm:$0xff] %v145
    %4653 = vst [vmem:[%s4423] ss:$2 sm:$0xff] %v146
    %4654 = vst [vmem:[%s4425] ss:$2 sm:$0xff] %v147
    %v4655 = vld.sshfl [vmem:[#allocation1] sm:$0xff pattern:$0x75316420]
    %v4656 = vld.sshfl [vmem:[#allocation1 + $0x8] sm:$0xff pattern:$0x75316420]
    %v4657 = vld.sshfl [vmem:[#allocation1 + $0x10] sm:$0xff pattern:$0x75316420]
    %v4658 = vld.sshfl [vmem:[#allocation1 + $0x18] sm:$0xff pattern:$0x75316420]
    %v4659 = vld.sshfl [vmem:[#allocation1 + $0x20] sm:$0xff pattern:$0x75316420]
    %v4660 = vld.sshfl [vmem:[#allocation1 + $0x28] sm:$0xff pattern:$0x75316420]
    %v4661 = vld.sshfl [vmem:[#allocation1 + $0x30] sm:$0xff pattern:$0x75316420]
    %v4662 = vld.sshfl [vmem:[#allocation1 + $0x38] sm:$0xff pattern:$0x75316420]
    %4663 = vst [vmem:[#allocation1] ss:$2 sm:$0xff] %v148
    %4664 = vst [vmem:[%s4421] ss:$2 sm:$0xff] %v149
    %4665 = vst [vmem:[%s4423] ss:$2 sm:$0xff] %v150
    %4666 = vst [vmem:[%s4425] ss:$2 sm:$0xff] %v151
    %v4667 = vld.sshfl [vmem:[#allocation1] sm:$0xff pattern:$0x75316420]
    %v4668 = vld.sshfl [vmem:[#allocation1 + $0x8] sm:$0xff pattern:$0x75316420]
    %v4669 = vld.sshfl [vmem:[#allocation1 + $0x10] sm:$0xff pattern:$0x75316420]
    %v4670 = vld.sshfl [vmem:[#allocation1 + $0x18] sm:$0xff pattern:$0x75316420]
    %v4671 = vld.sshfl [vmem:[#allocation1 + $0x20] sm:$0xff pattern:$0x75316420]
    %v4672 = vld.sshfl [vmem:[#allocation1 + $0x28] sm:$0xff pattern:$0x75316420]
    %v4673 = vld.sshfl [vmem:[#allocation1 + $0x30] sm:$0xff pattern:$0x75316420]
    %v4674 = vld.sshfl [vmem:[#allocation1 + $0x38] sm:$0xff pattern:$0x75316420]
    %4675 = vst [vmem:[#allocation1] ss:$2 sm:$0xff] %v152
    %4676 = vst [vmem:[%s4421] ss:$2 sm:$0xff] %v153
    %4677 = vst [vmem:[%s4423] ss:$2 sm:$0xff] %v154
    %4678 = vst [vmem:[%s4425] ss:$2 sm:$0xff] %v155
    %v4679 = vld.sshfl [vmem:[#allocation1] sm:$0xff pattern:$0x75316420]
    %v4680 = vld.sshfl [vmem:[#allocation1 + $0x8] sm:$0xff pattern:$0x75316420]
    %v4681 = vld.sshfl [vmem:[#allocation1 + $0x10] sm:$0xff pattern:$0x75316420]
    %v4682 = vld.sshfl [vmem:[#allocation1 + $0x18] sm:$0xff pattern:$0x75316420]
    %v4683 = vld.sshfl [vmem:[#allocation1 + $0x20] sm:$0xff pattern:$0x75316420]
    %v4684 = vld.sshfl [vmem:[#allocation1 + $0x28] sm:$0xff pattern:$0x75316420]
    %v4685 = vld.sshfl [vmem:[#allocation1 + $0x30] sm:$0xff pattern:$0x75316420]
    %v4686 = vld.sshfl [vmem:[#allocation1 + $0x38] sm:$0xff pattern:$0x75316420]
    %4687 = vst [vmem:[#allocation1] ss:$2 sm:$0xff] %v156
    %4688 = vst [vmem:[%s4421] ss:$2 sm:$0xff] %v157
    %4689 = vst [vmem:[%s4423] ss:$2 sm:$0xff] %v158
    %4690 = vst [vmem:[%s4425] ss:$2 sm:$0xff] %v159
    %v4691 = vld.sshfl [vmem:[#allocation1] sm:$0xff pattern:$0x75316420]
    %v4692 = vld.sshfl [vmem:[#allocation1 + $0x8] sm:$0xff pattern:$0x75316420]
    %v4693 = vld.sshfl [vmem:[#allocation1 + $0x10] sm:$0xff pattern:$0x75316420]
    %v4694 = vld.sshfl [vmem:[#allocation1 + $0x18] sm:$0xff pattern:$0x75316420]
    %v4695 = vld.sshfl [vmem:[#allocation1 + $0x20] sm:$0xff pattern:$0x75316420]
    %v4696 = vld.sshfl [vmem:[#allocation1 + $0x28] sm:$0xff pattern:$0x75316420]
    %v4697 = vld.sshfl [vmem:[#allocation1 + $0x30] sm:$0xff pattern:$0x75316420]
    %v4698 = vld.sshfl [vmem:[#allocation1 + $0x38] sm:$0xff pattern:$0x75316420]
    %4699 = vst [vmem:[#allocation1] ss:$2 sm:$0xff] %v160
    %4700 = vst [vmem:[%s4421] ss:$2 sm:$0xff] %v161
    %4701 = vst [vmem:[%s4423] ss:$2 sm:$0xff] %v162
    %4702 = vst [vmem:[%s4425] ss:$2 sm:$0xff] %v163
    %v4703 = vld.sshfl [vmem:[#allocation1] sm:$0xff pattern:$0x75316420]
    %v4704 = vld.sshfl [vmem:[#allocation1 + $0x8] sm:$0xff pattern:$0x75316420]
    %v4705 = vld.sshfl [vmem:[#allocation1 + $0x10] sm:$0xff pattern:$0x75316420]
    %v4706 = vld.sshfl [vmem:[#allocation1 + $0x18] sm:$0xff pattern:$0x75316420]
    %v4707 = vld.sshfl [vmem:[#allocation1 + $0x20] sm:$0xff pattern:$0x75316420]
    %v4708 = vld.sshfl [vmem:[#allocation1 + $0x28] sm:$0xff pattern:$0x75316420]
    %v4709 = vld.sshfl [vmem:[#allocation1 + $0x30] sm:$0xff pattern:$0x75316420]
    %v4710 = vld.sshfl [vmem:[#allocation1 + $0x38] sm:$0xff pattern:$0x75316420]
    %4711 = vst [vmem:[#allocation1] ss:$2 sm:$0xff] %v164
    %4712 = vst [vmem:[%s4421] ss:$2 sm:$0xff] %v165
    %4713 = vst [vmem:[%s4423] ss:$2 sm:$0xff] %v166
    %4714 = vst [vmem:[%s4425] ss:$2 sm:$0xff] %v167
    %v4715 = vld.sshfl [vmem:[#allocation1] sm:$0xff pattern:$0x75316420]
    %v4716 = vld.sshfl [vmem:[#allocation1 + $0x8] sm:$0xff pattern:$0x75316420]
    %v4717 = vld.sshfl [vmem:[#allocation1 + $0x10] sm:$0xff pattern:$0x75316420]
    %v4718 = vld.sshfl [vmem:[#allocation1 + $0x18] sm:$0xff pattern:$0x75316420]
    %v4719 = vld.sshfl [vmem:[#allocation1 + $0x20] sm:$0xff pattern:$0x75316420]
    %v4720 = vld.sshfl [vmem:[#allocation1 + $0x28] sm:$0xff pattern:$0x75316420]
    %v4721 = vld.sshfl [vmem:[#allocation1 + $0x30] sm:$0xff pattern:$0x75316420]
    %v4722 = vld.sshfl [vmem:[#allocation1 + $0x38] sm:$0xff pattern:$0x75316420]
    %4723 = vst [vmem:[#allocation1] ss:$2 sm:$0xff] %v168
    %4724 = vst [vmem:[%s4421] ss:$2 sm:$0xff] %v169
    %4725 = vst [vmem:[%s4423] ss:$2 sm:$0xff] %v170
    %4726 = vst [vmem:[%s4425] ss:$2 sm:$0xff] %v171
    %v4727 = vld.sshfl [vmem:[#allocation1] sm:$0xff pattern:$0x75316420]
    %v4728 = vld.sshfl [vmem:[#allocation1 + $0x8] sm:$0xff pattern:$0x75316420]
    %v4729 = vld.sshfl [vmem:[#allocation1 + $0x10] sm:$0xff pattern:$0x75316420]
    %v4730 = vld.sshfl [vmem:[#allocation1 + $0x18] sm:$0xff pattern:$0x75316420]
    %v4731 = vld.sshfl [vmem:[#allocation1 + $0x20] sm:$0xff pattern:$0x75316420]
    %v4732 = vld.sshfl [vmem:[#allocation1 + $0x28] sm:$0xff pattern:$0x75316420]
    %v4733 = vld.sshfl [vmem:[#allocation1 + $0x30] sm:$0xff pattern:$0x75316420]
    %v4734 = vld.sshfl [vmem:[#allocation1 + $0x38] sm:$0xff pattern:$0x75316420]
    %4735 = vst [vmem:[#allocation1] ss:$2 sm:$0xff] %v172
    %4736 = vst [vmem:[%s4421] ss:$2 sm:$0xff] %v173
    %4737 = vst [vmem:[%s4423] ss:$2 sm:$0xff] %v174
    %4738 = vst [vmem:[%s4425] ss:$2 sm:$0xff] %v175
    %v4739 = vld.sshfl [vmem:[#allocation1] sm:$0xff pattern:$0x75316420]
    %v4740 = vld.sshfl [vmem:[#allocation1 + $0x8] sm:$0xff pattern:$0x75316420]
    %v4741 = vld.sshfl [vmem:[#allocation1 + $0x10] sm:$0xff pattern:$0x75316420]
    %v4742 = vld.sshfl [vmem:[#allocation1 + $0x18] sm:$0xff pattern:$0x75316420]
    %v4743 = vld.sshfl [vmem:[#allocation1 + $0x20] sm:$0xff pattern:$0x75316420]
    %v4744 = vld.sshfl [vmem:[#allocation1 + $0x28] sm:$0xff pattern:$0x75316420]
    %v4745 = vld.sshfl [vmem:[#allocation1 + $0x30] sm:$0xff pattern:$0x75316420]
    %v4746 = vld.sshfl [vmem:[#allocation1 + $0x38] sm:$0xff pattern:$0x75316420]
    %4747 = vst [vmem:[#allocation1] ss:$2 sm:$0xff] %v176
    %4748 = vst [vmem:[%s4421] ss:$2 sm:$0xff] %v177
    %4749 = vst [vmem:[%s4423] ss:$2 sm:$0xff] %v178
    %4750 = vst [vmem:[%s4425] ss:$2 sm:$0xff] %v179
    %v4751 = vld.sshfl [vmem:[#allocation1] sm:$0xff pattern:$0x75316420]
    %v4752 = vld.sshfl [vmem:[#allocation1 + $0x8] sm:$0xff pattern:$0x75316420]
    %v4753 = vld.sshfl [vmem:[#allocation1 + $0x10] sm:$0xff pattern:$0x75316420]
    %v4754 = vld.sshfl [vmem:[#allocation1 + $0x18] sm:$0xff pattern:$0x75316420]
    %v4755 = vld.sshfl [vmem:[#allocation1 + $0x20] sm:$0xff pattern:$0x75316420]
    %v4756 = vld.sshfl [vmem:[#allocation1 + $0x28] sm:$0xff pattern:$0x75316420]
    %v4757 = vld.sshfl [vmem:[#allocation1 + $0x30] sm:$0xff pattern:$0x75316420]
    %v4758 = vld.sshfl [vmem:[#allocation1 + $0x38] sm:$0xff pattern:$0x75316420]
    %4759 = vst [vmem:[#allocation1] ss:$2 sm:$0xff] %v180
    %4760 = vst [vmem:[%s4421] ss:$2 sm:$0xff] %v181
    %4761 = vst [vmem:[%s4423] ss:$2 sm:$0xff] %v182
    %4762 = vst [vmem:[%s4425] ss:$2 sm:$0xff] %v183
    %v4763 = vld.sshfl [vmem:[#allocation1] sm:$0xff pattern:$0x75316420]
    %v4764 = vld.sshfl [vmem:[#allocation1 + $0x8] sm:$0xff pattern:$0x75316420]
    %v4765 = vld.sshfl [vmem:[#allocation1 + $0x10] sm:$0xff pattern:$0x75316420]
    %v4766 = vld.sshfl [vmem:[#allocation1 + $0x18] sm:$0xff pattern:$0x75316420]
    %v4767 = vld.sshfl [vmem:[#allocation1 + $0x20] sm:$0xff pattern:$0x75316420]
    %v4768 = vld.sshfl [vmem:[#allocation1 + $0x28] sm:$0xff pattern:$0x75316420]
    %v4769 = vld.sshfl [vmem:[#allocation1 + $0x30] sm:$0xff pattern:$0x75316420]
    %v4770 = vld.sshfl [vmem:[#allocation1 + $0x38] sm:$0xff pattern:$0x75316420]
    %4771 = vst [vmem:[#allocation1] ss:$2 sm:$0xff] %v184
    %4772 = vst [vmem:[%s4421] ss:$2 sm:$0xff] %v185
    %4773 = vst [vmem:[%s4423] ss:$2 sm:$0xff] %v186
    %4774 = vst [vmem:[%s4425] ss:$2 sm:$0xff] %v187
    %v4775 = vld.sshfl [vmem:[#allocation1] sm:$0xff pattern:$0x75316420]
    %v4776 = vld.sshfl [vmem:[#allocation1 + $0x8] sm:$0xff pattern:$0x75316420]
    %v4777 = vld.sshfl [vmem:[#allocation1 + $0x10] sm:$0xff pattern:$0x75316420]
    %v4778 = vld.sshfl [vmem:[#allocation1 + $0x18] sm:$0xff pattern:$0x75316420]
    %v4779 = vld.sshfl [vmem:[#allocation1 + $0x20] sm:$0xff pattern:$0x75316420]
    %v4780 = vld.sshfl [vmem:[#allocation1 + $0x28] sm:$0xff pattern:$0x75316420]
    %v4781 = vld.sshfl [vmem:[#allocation1 + $0x30] sm:$0xff pattern:$0x75316420]
    %v4782 = vld.sshfl [vmem:[#allocation1 + $0x38] sm:$0xff pattern:$0x75316420]
    %4783 = vst [vmem:[#allocation1] ss:$2 sm:$0xff] %v188
    %4784 = vst [vmem:[%s4421] ss:$2 sm:$0xff] %v189
    %4785 = vst [vmem:[%s4423] ss:$2 sm:$0xff] %v190
    %4786 = vst [vmem:[%s4425] ss:$2 sm:$0xff] %v191
    %v4787 = vld.sshfl [vmem:[#allocation1] sm:$0xff pattern:$0x75316420]
    %v4788 = vld.sshfl [vmem:[#allocation1 + $0x8] sm:$0xff pattern:$0x75316420]
    %v4789 = vld.sshfl [vmem:[#allocation1 + $0x10] sm:$0xff pattern:$0x75316420]
    %v4790 = vld.sshfl [vmem:[#allocation1 + $0x18] sm:$0xff pattern:$0x75316420]
    %v4791 = vld.sshfl [vmem:[#allocation1 + $0x20] sm:$0xff pattern:$0x75316420]
    %v4792 = vld.sshfl [vmem:[#allocation1 + $0x28] sm:$0xff pattern:$0x75316420]
    %v4793 = vld.sshfl [vmem:[#allocation1 + $0x30] sm:$0xff pattern:$0x75316420]
    %v4794 = vld.sshfl [vmem:[#allocation1 + $0x38] sm:$0xff pattern:$0x75316420]
    %4795 = vst [vmem:[#allocation1] ss:$2 sm:$0xff] %v192
    %4796 = vst [vmem:[%s4421] ss:$2 sm:$0xff] %v193
    %4797 = vst [vmem:[%s4423] ss:$2 sm:$0xff] %v194
    %4798 = vst [vmem:[%s4425] ss:$2 sm:$0xff] %v195
    %v4799 = vld.sshfl [vmem:[#allocation1] sm:$0xff pattern:$0x75316420]
    %v4800 = vld.sshfl [vmem:[#allocation1 + $0x8] sm:$0xff pattern:$0x75316420]
    %v4801 = vld.sshfl [vmem:[#allocation1 + $0x10] sm:$0xff pattern:$0x75316420]
    %v4802 = vld.sshfl [vmem:[#allocation1 + $0x18] sm:$0xff pattern:$0x75316420]
    %v4803 = vld.sshfl [vmem:[#allocation1 + $0x20] sm:$0xff pattern:$0x75316420]
    %v4804 = vld.sshfl [vmem:[#allocation1 + $0x28] sm:$0xff pattern:$0x75316420]
    %v4805 = vld.sshfl [vmem:[#allocation1 + $0x30] sm:$0xff pattern:$0x75316420]
    %v4806 = vld.sshfl [vmem:[#allocation1 + $0x38] sm:$0xff pattern:$0x75316420]
    %5063 = vmatpush.msra.mxu0 %v211
    %5064 = vmatpush.msra.mxu0 %v210
    %5065 = vmatpush.msra.mxu0 %v209
    %5066 = vmatpush.msra.mxu0 %v208
    %5067 = vmatpush.msra.mxu0 %v207
    %5068 = vmatpush.msra.mxu0 %v206
    %5069 = vmatpush.msra.mxu0 %v205
    %5070 = vmatpush.msra.mxu0 %v204
    %5071 = vmatpush.msra.mxu0 %v203
    %5072 = vmatpush.msra.mxu0 %v202
    %5073 = vmatpush.msra.mxu0 %v201
    %5074 = vmatpush.msra.mxu0 %v200
    %5075 = vmatpush.msra.mxu0 %v199
    %5076 = vmatpush.msra.mxu0 %v198
    %5077 = vmatpush.msra.mxu0 %v197
    %5078 = vmatpush.msra.mxu0 %v196
    %5079 = vmatmul.f32.gmra.mxu0 %v4427
    %v5080 = vpop.f32.mrf.mxu0
    %v5081 = vadd.f32 0.0, %v5080
    %5082 = vdwg.mxu0
    %5083 = vmatpush.msra.mxu0 %v227
    %5084 = vmatpush.msra.mxu0 %v226
    %5085 = vmatpush.msra.mxu0 %v225
    %5086 = vmatpush.msra.mxu0 %v224
    %5087 = vmatpush.msra.mxu0 %v223
    %5088 = vmatpush.msra.mxu0 %v222
    %5089 = vmatpush.msra.mxu0 %v221
    %5090 = vmatpush.msra.mxu0 %v220
    %5091 = vmatpush.msra.mxu0 %v219
    %5092 = vmatpush.msra.mxu0 %v218
    %5093 = vmatpush.msra.mxu0 %v217
    %5094 = vmatpush.msra.mxu0 %v216
    %5095 = vmatpush.msra.mxu0 %v215
    %5096 = vmatpush.msra.mxu0 %v214
    %5097 = vmatpush.msra.mxu0 %v213
    %5098 = vmatpush.msra.mxu0 %v212
    %5099 = vmatmul.f32.gmra.mxu0 %v4428
    %v5100 = vpop.f32.mrf.mxu0
    %v5101 = vadd.f32 %v5081, %v5100
    %5102 = vdwg.mxu0
    %5103 = vmatpush.msra.mxu0 %v243
    %5104 = vmatpush.msra.mxu0 %v242
    %5105 = vmatpush.msra.mxu0 %v241
    %5106 = vmatpush.msra.mxu0 %v240
    %5107 = vmatpush.msra.mxu0 %v239
    %5108 = vmatpush.msra.mxu0 %v238
    %5109 = vmatpush.msra.mxu0 %v237
    %5110 = vmatpush.msra.mxu0 %v236
    %5111 = vmatpush.msra.mxu0 %v235
    %5112 = vmatpush.msra.mxu0 %v234
    %5113 = vmatpush.msra.mxu0 %v233
    %5114 = vmatpush.msra.mxu0 %v232
    %5115 = vmatpush.msra.mxu0 %v231
    %5116 = vmatpush.msra.mxu0 %v230
    %5117 = vmatpush.msra.mxu0 %v229
    %5118 = vmatpush.msra.mxu0 %v228
    %5119 = vmatmul.f32.gmra.mxu0 %v4429
    %v5120 = vpop.f32.mrf.mxu0
    %v5121 = vadd.f32 %v5101, %v5120
    %5122 = vdwg.mxu0
    %5123 = vmatpush.msra.mxu0 %v259
    %5124 = vmatpush.msra.mxu0 %v258
    %5125 = vmatpush.msra.mxu0 %v257
    %5126 = vmatpush.msra.mxu0 %v256
    %5127 = vmatpush.msra.mxu0 %v255
    %5128 = vmatpush.msra.mxu0 %v254
    %5129 = vmatpush.msra.mxu0 %v253
    %5130 = vmatpush.msra.mxu0 %v252
    %5131 = vmatpush.msra.mxu0 %v251
    %5132 = vmatpush.msra.mxu0 %v250
    %5133 = vmatpush.msra.mxu0 %v249
    %5134 = vmatpush.msra.mxu0 %v248
    %5135 = vmatpush.msra.mxu0 %v247
    %5136 = vmatpush.msra.mxu0 %v246
    %5137 = vmatpush.msra.mxu0 %v245
    %5138 = vmatpush.msra.mxu0 %v244
    %5139 = vmatmul.f32.gmra.mxu0 %v4430
    %v5140 = vpop.f32.mrf.mxu0
    %v5141 = vadd.f32 %v5121, %v5140
    %5142 = vdwg.mxu0
    %5143 = vmatpush.msra.mxu0 %v275
    %5144 = vmatpush.msra.mxu0 %v274
    %5145 = vmatpush.msra.mxu0 %v273
    %5146 = vmatpush.msra.mxu0 %v272
    %5147 = vmatpush.msra.mxu0 %v271
    %5148 = vmatpush.msra.mxu0 %v270
    %5149 = vmatpush.msra.mxu0 %v269
    %5150 = vmatpush.msra.mxu0 %v268
    %5151 = vmatpush.msra.mxu0 %v267
    %5152 = vmatpush.msra.mxu0 %v266
    %5153 = vmatpush.msra.mxu0 %v265
    %5154 = vmatpush.msra.mxu0 %v264
    %5155 = vmatpush.msra.mxu0 %v263
    %5156 = vmatpush.msra.mxu0 %v262
    %5157 = vmatpush.msra.mxu0 %v261
    %5158 = vmatpush.msra.mxu0 %v260
    %5159 = vmatmul.f32.gmra.mxu0 %v4431
    %v5160 = vpop.f32.mrf.mxu0
    %v5161 = vadd.f32 %v5141, %v5160
    %5162 = vdwg.mxu0
    %5163 = vmatpush.msra.mxu0 %v291
    %5164 = vmatpush.msra.mxu0 %v290
    %5165 = vmatpush.msra.mxu0 %v289
    %5166 = vmatpush.msra.mxu0 %v288
    %5167 = vmatpush.msra.mxu0 %v287
    %5168 = vmatpush.msra.mxu0 %v286
    %5169 = vmatpush.msra.mxu0 %v285
    %5170 = vmatpush.msra.mxu0 %v284
    %5171 = vmatpush.msra.mxu0 %v283
    %5172 = vmatpush.msra.mxu0 %v282
    %5173 = vmatpush.msra.mxu0 %v281
    %5174 = vmatpush.msra.mxu0 %v280
    %5175 = vmatpush.msra.mxu0 %v279
    %5176 = vmatpush.msra.mxu0 %v278
    %5177 = vmatpush.msra.mxu0 %v277
    %5178 = vmatpush.msra.mxu0 %v276
    %5179 = vmatmul.f32.gmra.mxu0 %v4432
    %v5180 = vpop.f32.mrf.mxu0
    %v5181 = vadd.f32 %v5161, %v5180
    %5182 = vdwg.mxu0
    %5183 = vmatpush.msra.mxu0 %v307
    %5184 = vmatpush.msra.mxu0 %v306
    %5185 = vmatpush.msra.mxu0 %v305
    %5186 = vmatpush.msra.mxu0 %v304
    %5187 = vmatpush.msra.mxu0 %v303
    %5188 = vmatpush.msra.mxu0 %v302
    %5189 = vmatpush.msra.mxu0 %v301
    %5190 = vmatpush.msra.mxu0 %v300
    %5191 = vmatpush.msra.mxu0 %v299
    %5192 = vmatpush.msra.mxu0 %v298
    %5193 = vmatpush.msra.mxu0 %v297
    %5194 = vmatpush.msra.mxu0 %v296
    %5195 = vmatpush.msra.mxu0 %v295
    %5196 = vmatpush.msra.mxu0 %v294
    %5197 = vmatpush.msra.mxu0 %v293
    %5198 = vmatpush.msra.mxu0 %v292
    %5199 = vmatmul.f32.gmra.mxu0 %v4433
    %v5200 = vpop.f32.mrf.mxu0
    %v5201 = vadd.f32 %v5181, %v5200
    %5202 = vdwg.mxu0
    %5203 = vmatpush.msra.mxu0 %v323
    %5204 = vmatpush.msra.mxu0 %v322
    %5205 = vmatpush.msra.mxu0 %v321
    %5206 = vmatpush.msra.mxu0 %v320
    %5207 = vmatpush.msra.mxu0 %v319
    %5208 = vmatpush.msra.mxu0 %v318
    %5209 = vmatpush.msra.mxu0 %v317
    %5210 = vmatpush.msra.mxu0 %v316
    %5211 = vmatpush.msra.mxu0 %v315
    %5212 = vmatpush.msra.mxu0 %v314
    %5213 = vmatpush.msra.mxu0 %v313
    %5214 = vmatpush.msra.mxu0 %v312
    %5215 = vmatpush.msra.mxu0 %v311
    %5216 = vmatpush.msra.mxu0 %v310
    %5217 = vmatpush.msra.mxu0 %v309
    %5218 = vmatpush.msra.mxu0 %v308
    %5219 = vmatmul.f32.gmra.mxu0 %v4434
    %v5220 = vpop.f32.mrf.mxu0
    %v5221 = vadd.f32 %v5201, %v5220
    %5222 = vdwg.mxu0
    %5223 = vmatpush.msra.mxu0 %v339
    %5224 = vmatpush.msra.mxu0 %v338
    %5225 = vmatpush.msra.mxu0 %v337
    %5226 = vmatpush.msra.mxu0 %v336
    %5227 = vmatpush.msra.mxu0 %v335
    %5228 = vmatpush.msra.mxu0 %v334
    %5229 = vmatpush.msra.mxu0 %v333
    %5230 = vmatpush.msra.mxu0 %v332
    %5231 = vmatpush.msra.mxu0 %v331
    %5232 = vmatpush.msra.mxu0 %v330
    %5233 = vmatpush.msra.mxu0 %v329
    %5234 = vmatpush.msra.mxu0 %v328
    %5235 = vmatpush.msra.mxu0 %v327
    %5236 = vmatpush.msra.mxu0 %v326
    %5237 = vmatpush.msra.mxu0 %v325
    %5238 = vmatpush.msra.mxu0 %v324
    %5239 = vmatmul.f32.gmra.mxu0 %v4439
    %v5240 = vpop.f32.mrf.mxu0
    %v5241 = vadd.f32 %v5221, %v5240
    %5242 = vdwg.mxu0
    %5243 = vmatpush.msra.mxu0 %v355
    %5244 = vmatpush.msra.mxu0 %v354
    %5245 = vmatpush.msra.mxu0 %v353
    %5246 = vmatpush.msra.mxu0 %v352
    %5247 = vmatpush.msra.mxu0 %v351
    %5248 = vmatpush.msra.mxu0 %v350
    %5249 = vmatpush.msra.mxu0 %v349
    %5250 = vmatpush.msra.mxu0 %v348
    %5251 = vmatpush.msra.mxu0 %v347
    %5252 = vmatpush.msra.mxu0 %v346
    %5253 = vmatpush.msra.mxu0 %v345
    %5254 = vmatpush.msra.mxu0 %v344
    %5255 = vmatpush.msra.mxu0 %v343
    %5256 = vmatpush.msra.mxu0 %v342
    %5257 = vmatpush.msra.mxu0 %v341
    %5258 = vmatpush.msra.mxu0 %v340
    %5259 = vmatmul.f32.gmra.mxu0 %v4440
    %v5260 = vpop.f32.mrf.mxu0
    %v5261 = vadd.f32 %v5241, %v5260
    %5262 = vdwg.mxu0
    %5263 = vmatpush.msra.mxu0 %v371
    %5264 = vmatpush.msra.mxu0 %v370
    %5265 = vmatpush.msra.mxu0 %v369
    %5266 = vmatpush.msra.mxu0 %v368
    %5267 = vmatpush.msra.mxu0 %v367
    %5268 = vmatpush.msra.mxu0 %v366
    %5269 = vmatpush.msra.mxu0 %v365
    %5270 = vmatpush.msra.mxu0 %v364
    %5271 = vmatpush.msra.mxu0 %v363
    %5272 = vmatpush.msra.mxu0 %v362
    %5273 = vmatpush.msra.mxu0 %v361
    %5274 = vmatpush.msra.mxu0 %v360
    %5275 = vmatpush.msra.mxu0 %v359
    %5276 = vmatpush.msra.mxu0 %v358
    %5277 = vmatpush.msra.mxu0 %v357
    %5278 = vmatpush.msra.mxu0 %v356
    %5279 = vmatmul.f32.gmra.mxu0 %v4441
    %v5280 = vpop.f32.mrf.mxu0
    %v5281 = vadd.f32 %v5261, %v5280
    %5282 = vdwg.mxu0
    %5283 = vmatpush.msra.mxu0 %v387
    %5284 = vmatpush.msra.mxu0 %v386
    %5285 = vmatpush.msra.mxu0 %v385
    %5286 = vmatpush.msra.mxu0 %v384
    %5287 = vmatpush.msra.mxu0 %v383
    %5288 = vmatpush.msra.mxu0 %v382
    %5289 = vmatpush.msra.mxu0 %v381
    %5290 = vmatpush.msra.mxu0 %v380
    %5291 = vmatpush.msra.mxu0 %v379
    %5292 = vmatpush.msra.mxu0 %v378
    %5293 = vmatpush.msra.mxu0 %v377
    %5294 = vmatpush.msra.mxu0 %v376
    %5295 = vmatpush.msra.mxu0 %v375
    %5296 = vmatpush.msra.mxu0 %v374
    %5297 = vmatpush.msra.mxu0 %v373
    %5298 = vmatpush.msra.mxu0 %v372
    %5299 = vmatmul.f32.gmra.mxu0 %v4442
    %v5300 = vpop.f32.mrf.mxu0
    %v5301 = vadd.f32 %v5281, %v5300
    %5302 = vdwg.mxu0
    %5303 = vmatpush.msra.mxu0 %v403
    %5304 = vmatpush.msra.mxu0 %v402
    %5305 = vmatpush.msra.mxu0 %v401
    %5306 = vmatpush.msra.mxu0 %v400
    %5307 = vmatpush.msra.mxu0 %v399
    %5308 = vmatpush.msra.mxu0 %v398
    %5309 = vmatpush.msra.mxu0 %v397
    %5310 = vmatpush.msra.mxu0 %v396
    %5311 = vmatpush.msra.mxu0 %v395
    %5312 = vmatpush.msra.mxu0 %v394
    %5313 = vmatpush.msra.mxu0 %v393
    %5314 = vmatpush.msra.mxu0 %v392
    %5315 = vmatpush.msra.mxu0 %v391
    %5316 = vmatpush.msra.mxu0 %v390
    %5317 = vmatpush.msra.mxu0 %v389
    %5318 = vmatpush.msra.mxu0 %v388
    %5319 = vmatmul.f32.gmra.mxu0 %v4443
    %v5320 = vpop.f32.mrf.mxu0
    %v5321 = vadd.f32 %v5301, %v5320
    %5322 = vdwg.mxu0
    %5323 = vmatpush.msra.mxu0 %v419
    %5324 = vmatpush.msra.mxu0 %v418
    %5325 = vmatpush.msra.mxu0 %v417
    %5326 = vmatpush.msra.mxu0 %v416
    %5327 = vmatpush.msra.mxu0 %v415
    %5328 = vmatpush.msra.mxu0 %v414
    %5329 = vmatpush.msra.mxu0 %v413
    %5330 = vmatpush.msra.mxu0 %v412
    %5331 = vmatpush.msra.mxu0 %v411
    %5332 = vmatpush.msra.mxu0 %v410
    %5333 = vmatpush.msra.mxu0 %v409
    %5334 = vmatpush.msra.mxu0 %v408
    %5335 = vmatpush.msra.mxu0 %v407
    %5336 = vmatpush.msra.mxu0 %v406
    %5337 = vmatpush.msra.mxu0 %v405
    %5338 = vmatpush.msra.mxu0 %v404
    %5339 = vmatmul.f32.gmra.mxu0 %v4444
    %v5340 = vpop.f32.mrf.mxu0
    %v5341 = vadd.f32 %v5321, %v5340
    %5342 = vdwg.mxu0
    %5343 = vmatpush.msra.mxu0 %v435
    %5344 = vmatpush.msra.mxu0 %v434
    %5345 = vmatpush.msra.mxu0 %v433
    %5346 = vmatpush.msra.mxu0 %v432
    %5347 = vmatpush.msra.mxu0 %v431
    %5348 = vmatpush.msra.mxu0 %v430
    %5349 = vmatpush.msra.mxu0 %v429
    %5350 = vmatpush.msra.mxu0 %v428
    %5351 = vmatpush.msra.mxu0 %v427
    %5352 = vmatpush.msra.mxu0 %v426
    %5353 = vmatpush.msra.mxu0 %v425
    %5354 = vmatpush.msra.mxu0 %v424
    %5355 = vmatpush.msra.mxu0 %v423
    %5356 = vmatpush.msra.mxu0 %v422
    %5357 = vmatpush.msra.mxu0 %v421
    %5358 = vmatpush.msra.mxu0 %v420
    %5359 = vmatmul.f32.gmra.mxu0 %v4445
    %v5360 = vpop.f32.mrf.mxu0
    %v5361 = vadd.f32 %v5341, %v5360
    %5362 = vdwg.mxu0
    %5363 = vmatpush.msra.mxu0 %v451
    %5364 = vmatpush.msra.mxu0 %v450
    %5365 = vmatpush.msra.mxu0 %v449
    %5366 = vmatpush.msra.mxu0 %v448
    %5367 = vmatpush.msra.mxu0 %v447
    %5368 = vmatpush.msra.mxu0 %v446
    %5369 = vmatpush.msra.mxu0 %v445
    %5370 = vmatpush.msra.mxu0 %v444
    %5371 = vmatpush.msra.mxu0 %v443
    %5372 = vmatpush.msra.mxu0 %v442
    %5373 = vmatpush.msra.mxu0 %v441
    %5374 = vmatpush.msra.mxu0 %v440
    %5375 = vmatpush.msra.mxu0 %v439
    %5376 = vmatpush.msra.mxu0 %v438
    %5377 = vmatpush.msra.mxu0 %v437
    %5378 = vmatpush.msra.mxu0 %v436
    %5379 = vmatmul.f32.gmra.mxu0 %v4446
    %v5380 = vpop.f32.mrf.mxu0
    %v5381 = vadd.f32 %v5361, %v5380
    %5382 = vdwg.mxu0
    %5383 = vmatpush.msra.mxu0 %v467
    %5384 = vmatpush.msra.mxu0 %v466
    %5385 = vmatpush.msra.mxu0 %v465
    %5386 = vmatpush.msra.mxu0 %v464
    %5387 = vmatpush.msra.mxu0 %v463
    %5388 = vmatpush.msra.mxu0 %v462
    %5389 = vmatpush.msra.mxu0 %v461
    %5390 = vmatpush.msra.mxu0 %v460
    %5391 = vmatpush.msra.mxu0 %v459
    %5392 = vmatpush.msra.mxu0 %v458
    %5393 = vmatpush.msra.mxu0 %v457
    %5394 = vmatpush.msra.mxu0 %v456
    %5395 = vmatpush.msra.mxu0 %v455
    %5396 = vmatpush.msra.mxu0 %v454
    %5397 = vmatpush.msra.mxu0 %v453
    %5398 = vmatpush.msra.mxu0 %v452
    %5399 = vmatmul.f32.gmra.mxu0 %v4451
    %v5400 = vpop.f32.mrf.mxu0
    %v5401 = vadd.f32 %v5381, %v5400
    %5402 = vdwg.mxu0
    %5403 = vmatpush.msra.mxu0 %v483
    %5404 = vmatpush.msra.mxu0 %v482
    %5405 = vmatpush.msra.mxu0 %v481
    %5406 = vmatpush.msra.mxu0 %v480
    %5407 = vmatpush.msra.mxu0 %v479
    %5408 = vmatpush.msra.mxu0 %v478
    %5409 = vmatpush.msra.mxu0 %v477
    %5410 = vmatpush.msra.mxu0 %v476
    %5411 = vmatpush.msra.mxu0 %v475
    %5412 = vmatpush.msra.mxu0 %v474
    %5413 = vmatpush.msra.mxu0 %v473
    %5414 = vmatpush.msra.mxu0 %v472
    %5415 = vmatpush.msra.mxu0 %v471
    %5416 = vmatpush.msra.mxu0 %v470
    %5417 = vmatpush.msra.mxu0 %v469
    %5418 = vmatpush.msra.mxu0 %v468
    %5419 = vmatmul.f32.gmra.mxu0 %v4452
    %v5420 = vpop.f32.mrf.mxu0
    %v5421 = vadd.f32 %v5401, %v5420
    %5422 = vdwg.mxu0
    %5423 = vmatpush.msra.mxu0 %v499
    %5424 = vmatpush.msra.mxu0 %v498
    %5425 = vmatpush.msra.mxu0 %v497
    %5426 = vmatpush.msra.mxu0 %v496
    %5427 = vmatpush.msra.mxu0 %v495
    %5428 = vmatpush.msra.mxu0 %v494
    %5429 = vmatpush.msra.mxu0 %v493
    %5430 = vmatpush.msra.mxu0 %v492
    %5431 = vmatpush.msra.mxu0 %v491
    %5432 = vmatpush.msra.mxu0 %v490
    %5433 = vmatpush.msra.mxu0 %v489
    %5434 = vmatpush.msra.mxu0 %v488
    %5435 = vmatpush.msra.mxu0 %v487
    %5436 = vmatpush.msra.mxu0 %v486
    %5437 = vmatpush.msra.mxu0 %v485
    %5438 = vmatpush.msra.mxu0 %v484
    %5439 = vmatmul.f32.gmra.mxu0 %v4453
    %v5440 = vpop.f32.mrf.mxu0
    %v5441 = vadd.f32 %v5421, %v5440
    %5442 = vdwg.mxu0
    %5443 = vmatpush.msra.mxu0 %v515
    %5444 = vmatpush.msra.mxu0 %v514
    %5445 = vmatpush.msra.mxu0 %v513
    %5446 = vmatpush.msra.mxu0 %v512
    %5447 = vmatpush.msra.mxu0 %v511
    %5448 = vmatpush.msra.mxu0 %v510
    %5449 = vmatpush.msra.mxu0 %v509
    %5450 = vmatpush.msra.mxu0 %v508
    %5451 = vmatpush.msra.mxu0 %v507
    %5452 = vmatpush.msra.mxu0 %v506
    %5453 = vmatpush.msra.mxu0 %v505
    %5454 = vmatpush.msra.mxu0 %v504
    %5455 = vmatpush.msra.mxu0 %v503
    %5456 = vmatpush.msra.mxu0 %v502
    %5457 = vmatpush.msra.mxu0 %v501
    %5458 = vmatpush.msra.mxu0 %v500
    %5459 = vmatmul.f32.gmra.mxu0 %v4454
    %v5460 = vpop.f32.mrf.mxu0
    %v5461 = vadd.f32 %v5441, %v5460
    %5462 = vdwg.mxu0
    %5463 = vmatpush.msra.mxu0 %v531
    %5464 = vmatpush.msra.mxu0 %v530
    %5465 = vmatpush.msra.mxu0 %v529
    %5466 = vmatpush.msra.mxu0 %v528
    %5467 = vmatpush.msra.mxu0 %v527
    %5468 = vmatpush.msra.mxu0 %v526
    %5469 = vmatpush.msra.mxu0 %v525
    %5470 = vmatpush.msra.mxu0 %v524
    %5471 = vmatpush.msra.mxu0 %v523
    %5472 = vmatpush.msra.mxu0 %v522
    %5473 = vmatpush.msra.mxu0 %v521
    %5474 = vmatpush.msra.mxu0 %v520
    %5475 = vmatpush.msra.mxu0 %v519
    %5476 = vmatpush.msra.mxu0 %v518
    %5477 = vmatpush.msra.mxu0 %v517
    %5478 = vmatpush.msra.mxu0 %v516
    %5479 = vmatmul.f32.gmra.mxu0 %v4455
    %v5480 = vpop.f32.mrf.mxu0
    %v5481 = vadd.f32 %v5461, %v5480
    %5482 = vdwg.mxu0
    %5483 = vmatpush.msra.mxu0 %v547
    %5484 = vmatpush.msra.mxu0 %v546
    %5485 = vmatpush.msra.mxu0 %v545
    %5486 = vmatpush.msra.mxu0 %v544
    %5487 = vmatpush.msra.mxu0 %v543
    %5488 = vmatpush.msra.mxu0 %v542
    %5489 = vmatpush.msra.mxu0 %v541
    %5490 = vmatpush.msra.mxu0 %v540
    %5491 = vmatpush.msra.mxu0 %v539
    %5492 = vmatpush.msra.mxu0 %v538
    %5493 = vmatpush.msra.mxu0 %v537
    %5494 = vmatpush.msra.mxu0 %v536
    %5495 = vmatpush.msra.mxu0 %v535
    %5496 = vmatpush.msra.mxu0 %v534
    %5497 = vmatpush.msra.mxu0 %v533
    %5498 = vmatpush.msra.mxu0 %v532
    %5499 = vmatmul.f32.gmra.mxu0 %v4456
    %v5500 = vpop.f32.mrf.mxu0
    %v5501 = vadd.f32 %v5481, %v5500
    %5502 = vdwg.mxu0
    %5503 = vmatpush.msra.mxu0 %v563
    %5504 = vmatpush.msra.mxu0 %v562
    %5505 = vmatpush.msra.mxu0 %v561
    %5506 = vmatpush.msra.mxu0 %v560
    %5507 = vmatpush.msra.mxu0 %v559
    %5508 = vmatpush.msra.mxu0 %v558
    %5509 = vmatpush.msra.mxu0 %v557
    %5510 = vmatpush.msra.mxu0 %v556
    %5511 = vmatpush.msra.mxu0 %v555
    %5512 = vmatpush.msra.mxu0 %v554
    %5513 = vmatpush.msra.mxu0 %v553
    %5514 = vmatpush.msra.mxu0 %v552
    %5515 = vmatpush.msra.mxu0 %v551
    %5516 = vmatpush.msra.mxu0 %v550
    %5517 = vmatpush.msra.mxu0 %v549
    %5518 = vmatpush.msra.mxu0 %v548
    %5519 = vmatmul.f32.gmra.mxu0 %v4457
    %v5520 = vpop.f32.mrf.mxu0
    %v5521 = vadd.f32 %v5501, %v5520
    %5522 = vdwg.mxu0
    %5523 = vmatpush.msra.mxu0 %v579
    %5524 = vmatpush.msra.mxu0 %v578
    %5525 = vmatpush.msra.mxu0 %v577
    %5526 = vmatpush.msra.mxu0 %v576
    %5527 = vmatpush.msra.mxu0 %v575
    %5528 = vmatpush.msra.mxu0 %v574
    %5529 = vmatpush.msra.mxu0 %v573
    %5530 = vmatpush.msra.mxu0 %v572
    %5531 = vmatpush.msra.mxu0 %v571
    %5532 = vmatpush.msra.mxu0 %v570
    %5533 = vmatpush.msra.mxu0 %v569
    %5534 = vmatpush.msra.mxu0 %v568
    %5535 = vmatpush.msra.mxu0 %v567
    %5536 = vmatpush.msra.mxu0 %v566
    %5537 = vmatpush.msra.mxu0 %v565
    %5538 = vmatpush.msra.mxu0 %v564
    %5539 = vmatmul.f32.gmra.mxu0 %v4458
    %v5540 = vpop.f32.mrf.mxu0
    %v5541 = vadd.f32 %v5521, %v5540
    %5542 = vdwg.mxu0
    %5543 = vmatpush.msra.mxu0 %v595
    %5544 = vmatpush.msra.mxu0 %v594
    %5545 = vmatpush.msra.mxu0 %v593
    %5546 = vmatpush.msra.mxu0 %v592
    %5547 = vmatpush.msra.mxu0 %v591
    %5548 = vmatpush.msra.mxu0 %v590
    %5549 = vmatpush.msra.mxu0 %v589
    %5550 = vmatpush.msra.mxu0 %v588
    %5551 = vmatpush.msra.mxu0 %v587
    %5552 = vmatpush.msra.mxu0 %v586
    %5553 = vmatpush.msra.mxu0 %v585
    %5554 = vmatpush.msra.mxu0 %v584
    %5555 = vmatpush.msra.mxu0 %v583
    %5556 = vmatpush.msra.mxu0 %v582
    %5557 = vmatpush.msra.mxu0 %v581
    %5558 = vmatpush.msra.mxu0 %v580
    %5559 = vmatmul.f32.gmra.mxu0 %v4463
    %v5560 = vpop.f32.mrf.mxu0
    %v5561 = vadd.f32 %v5541, %v5560
    %5562 = vdwg.mxu0
    %5563 = vmatpush.msra.mxu0 %v611
    %5564 = vmatpush.msra.mxu0 %v610
    %5565 = vmatpush.msra.mxu0 %v609
    %5566 = vmatpush.msra.mxu0 %v608
    %5567 = vmatpush.msra.mxu0 %v607
    %5568 = vmatpush.msra.mxu0 %v606
    %5569 = vmatpush.msra.mxu0 %v605
    %5570 = vmatpush.msra.mxu0 %v604
    %5571 = vmatpush.msra.mxu0 %v603
    %5572 = vmatpush.msra.mxu0 %v602
    %5573 = vmatpush.msra.mxu0 %v601
    %5574 = vmatpush.msra.mxu0 %v600
    %5575 = vmatpush.msra.mxu0 %v599
    %5576 = vmatpush.msra.mxu0 %v598
    %5577 = vmatpush.msra.mxu0 %v597
    %5578 = vmatpush.msra.mxu0 %v596
    %5579 = vmatmul.f32.gmra.mxu0 %v4464
    %v5580 = vpop.f32.mrf.mxu0
    %v5581 = vadd.f32 %v5561, %v5580
    %5582 = vdwg.mxu0
    %5583 = vmatpush.msra.mxu0 %v627
    %5584 = vmatpush.msra.mxu0 %v626
    %5585 = vmatpush.msra.mxu0 %v625
    %5586 = vmatpush.msra.mxu0 %v624
    %5587 = vmatpush.msra.mxu0 %v623
    %5588 = vmatpush.msra.mxu0 %v622
    %5589 = vmatpush.msra.mxu0 %v621
    %5590 = vmatpush.msra.mxu0 %v620
    %5591 = vmatpush.msra.mxu0 %v619
    %5592 = vmatpush.msra.mxu0 %v618
    %5593 = vmatpush.msra.mxu0 %v617
    %5594 = vmatpush.msra.mxu0 %v616
    %5595 = vmatpush.msra.mxu0 %v615
    %5596 = vmatpush.msra.mxu0 %v614
    %5597 = vmatpush.msra.mxu0 %v613
    %5598 = vmatpush.msra.mxu0 %v612
    %5599 = vmatmul.f32.gmra.mxu0 %v4465
    %v5600 = vpop.f32.mrf.mxu0
    %v5601 = vadd.f32 %v5581, %v5600
    %5602 = vdwg.mxu0
    %5603 = vmatpush.msra.mxu0 %v643
    %5604 = vmatpush.msra.mxu0 %v642
    %5605 = vmatpush.msra.mxu0 %v641
    %5606 = vmatpush.msra.mxu0 %v640
    %5607 = vmatpush.msra.mxu0 %v639
    %5608 = vmatpush.msra.mxu0 %v638
    %5609 = vmatpush.msra.mxu0 %v637
    %5610 = vmatpush.msra.mxu0 %v636
    %5611 = vmatpush.msra.mxu0 %v635
    %5612 = vmatpush.msra.mxu0 %v634
    %5613 = vmatpush.msra.mxu0 %v633
    %5614 = vmatpush.msra.mxu0 %v632
    %5615 = vmatpush.msra.mxu0 %v631
    %5616 = vmatpush.msra.mxu0 %v630
    %5617 = vmatpush.msra.mxu0 %v629
    %5618 = vmatpush.msra.mxu0 %v628
    %5619 = vmatmul.f32.gmra.mxu0 %v4466
    %v5620 = vpop.f32.mrf.mxu0
    %v5621 = vadd.f32 %v5601, %v5620
    %5622 = vdwg.mxu0
    %5623 = vmatpush.msra.mxu0 %v659
    %5624 = vmatpush.msra.mxu0 %v658
    %5625 = vmatpush.msra.mxu0 %v657
    %5626 = vmatpush.msra.mxu0 %v656
    %5627 = vmatpush.msra.mxu0 %v655
    %5628 = vmatpush.msra.mxu0 %v654
    %5629 = vmatpush.msra.mxu0 %v653
    %5630 = vmatpush.msra.mxu0 %v652
    %5631 = vmatpush.msra.mxu0 %v651
    %5632 = vmatpush.msra.mxu0 %v650
    %5633 = vmatpush.msra.mxu0 %v649
    %5634 = vmatpush.msra.mxu0 %v648
    %5635 = vmatpush.msra.mxu0 %v647
    %5636 = vmatpush.msra.mxu0 %v646
    %5637 = vmatpush.msra.mxu0 %v645
    %5638 = vmatpush.msra.mxu0 %v644
    %5639 = vmatmul.f32.gmra.mxu0 %v4467
    %v5640 = vpop.f32.mrf.mxu0
    %v5641 = vadd.f32 %v5621, %v5640
    %5642 = vdwg.mxu0
    %5643 = vmatpush.msra.mxu0 %v675
    %5644 = vmatpush.msra.mxu0 %v674
    %5645 = vmatpush.msra.mxu0 %v673
    %5646 = vmatpush.msra.mxu0 %v672
    %5647 = vmatpush.msra.mxu0 %v671
    %5648 = vmatpush.msra.mxu0 %v670
    %5649 = vmatpush.msra.mxu0 %v669
    %5650 = vmatpush.msra.mxu0 %v668
    %5651 = vmatpush.msra.mxu0 %v667
    %5652 = vmatpush.msra.mxu0 %v666
    %5653 = vmatpush.msra.mxu0 %v665
    %5654 = vmatpush.msra.mxu0 %v664
    %5655 = vmatpush.msra.mxu0 %v663
    %5656 = vmatpush.msra.mxu0 %v662
    %5657 = vmatpush.msra.mxu0 %v661
    %5658 = vmatpush.msra.mxu0 %v660
    %5659 = vmatmul.f32.gmra.mxu0 %v4468
    %v5660 = vpop.f32.mrf.mxu0
    %v5661 = vadd.f32 %v5641, %v5660
    %5662 = vdwg.mxu0
    %5663 = vmatpush.msra.mxu0 %v691
    %5664 = vmatpush.msra.mxu0 %v690
    %5665 = vmatpush.msra.mxu0 %v689
    %5666 = vmatpush.msra.mxu0 %v688
    %5667 = vmatpush.msra.mxu0 %v687
    %5668 = vmatpush.msra.mxu0 %v686
    %5669 = vmatpush.msra.mxu0 %v685
    %5670 = vmatpush.msra.mxu0 %v684
    %5671 = vmatpush.msra.mxu0 %v683
    %5672 = vmatpush.msra.mxu0 %v682
    %5673 = vmatpush.msra.mxu0 %v681
    %5674 = vmatpush.msra.mxu0 %v680
    %5675 = vmatpush.msra.mxu0 %v679
    %5676 = vmatpush.msra.mxu0 %v678
    %5677 = vmatpush.msra.mxu0 %v677
    %5678 = vmatpush.msra.mxu0 %v676
    %5679 = vmatmul.f32.gmra.mxu0 %v4469
    %v5680 = vpop.f32.mrf.mxu0
    %v5681 = vadd.f32 %v5661, %v5680
    %5682 = vdwg.mxu0
    %5683 = vmatpush.msra.mxu0 %v707
    %5684 = vmatpush.msra.mxu0 %v706
    %5685 = vmatpush.msra.mxu0 %v705
    %5686 = vmatpush.msra.mxu0 %v704
    %5687 = vmatpush.msra.mxu0 %v703
    %5688 = vmatpush.msra.mxu0 %v702
    %5689 = vmatpush.msra.mxu0 %v701
    %5690 = vmatpush.msra.mxu0 %v700
    %5691 = vmatpush.msra.mxu0 %v699
    %5692 = vmatpush.msra.mxu0 %v698
    %5693 = vmatpush.msra.mxu0 %v697
    %5694 = vmatpush.msra.mxu0 %v696
    %5695 = vmatpush.msra.mxu0 %v695
    %5696 = vmatpush.msra.mxu0 %v694
    %5697 = vmatpush.msra.mxu0 %v693
    %5698 = vmatpush.msra.mxu0 %v692
    %5699 = vmatmul.f32.gmra.mxu0 %v4470
    %v5700 = vpop.f32.mrf.mxu0
    %v5701 = vadd.f32 %v5681, %v5700
    %5702 = vdwg.mxu0
    %5703 = vmatpush.msra.mxu0 %v723
    %5704 = vmatpush.msra.mxu0 %v722
    %5705 = vmatpush.msra.mxu0 %v721
    %5706 = vmatpush.msra.mxu0 %v720
    %5707 = vmatpush.msra.mxu0 %v719
    %5708 = vmatpush.msra.mxu0 %v718
    %5709 = vmatpush.msra.mxu0 %v717
    %5710 = vmatpush.msra.mxu0 %v716
    %5711 = vmatpush.msra.mxu0 %v715
    %5712 = vmatpush.msra.mxu0 %v714
    %5713 = vmatpush.msra.mxu0 %v713
    %5714 = vmatpush.msra.mxu0 %v712
    %5715 = vmatpush.msra.mxu0 %v711
    %5716 = vmatpush.msra.mxu0 %v710
    %5717 = vmatpush.msra.mxu0 %v709
    %5718 = vmatpush.msra.mxu0 %v708
    %5719 = vmatmul.f32.gmra.mxu0 %v4475
    %v5720 = vpop.f32.mrf.mxu0
    %v5721 = vadd.f32 %v5701, %v5720
    %5722 = vdwg.mxu0
    %5723 = vmatpush.msra.mxu0 %v739
    %5724 = vmatpush.msra.mxu0 %v738
    %5725 = vmatpush.msra.mxu0 %v737
    %5726 = vmatpush.msra.mxu0 %v736
    %5727 = vmatpush.msra.mxu0 %v735
    %5728 = vmatpush.msra.mxu0 %v734
    %5729 = vmatpush.msra.mxu0 %v733
    %5730 = vmatpush.msra.mxu0 %v732
    %5731 = vmatpush.msra.mxu0 %v731
    %5732 = vmatpush.msra.mxu0 %v730
    %5733 = vmatpush.msra.mxu0 %v729
    %5734 = vmatpush.msra.mxu0 %v728
    %5735 = vmatpush.msra.mxu0 %v727
    %5736 = vmatpush.msra.mxu0 %v726
    %5737 = vmatpush.msra.mxu0 %v725
    %5738 = vmatpush.msra.mxu0 %v724
    %5739 = vmatmul.f32.gmra.mxu0 %v4476
    %v5740 = vpop.f32.mrf.mxu0
    %v5741 = vadd.f32 %v5721, %v5740
    %5742 = vdwg.mxu0
    %5743 = vmatpush.msra.mxu0 %v755
    %5744 = vmatpush.msra.mxu0 %v754
    %5745 = vmatpush.msra.mxu0 %v753
    %5746 = vmatpush.msra.mxu0 %v752
    %5747 = vmatpush.msra.mxu0 %v751
    %5748 = vmatpush.msra.mxu0 %v750
    %5749 = vmatpush.msra.mxu0 %v749
    %5750 = vmatpush.msra.mxu0 %v748
    %5751 = vmatpush.msra.mxu0 %v747
    %5752 = vmatpush.msra.mxu0 %v746
    %5753 = vmatpush.msra.mxu0 %v745
    %5754 = vmatpush.msra.mxu0 %v744
    %5755 = vmatpush.msra.mxu0 %v743
    %5756 = vmatpush.msra.mxu0 %v742
    %5757 = vmatpush.msra.mxu0 %v741
    %5758 = vmatpush.msra.mxu0 %v740
    %5759 = vmatmul.f32.gmra.mxu0 %v4477
    %v5760 = vpop.f32.mrf.mxu0
    %v5761 = vadd.f32 %v5741, %v5760
    %5762 = vdwg.mxu0
    %5763 = vmatpush.msra.mxu0 %v771
    %5764 = vmatpush.msra.mxu0 %v770
    %5765 = vmatpush.msra.mxu0 %v769
    %5766 = vmatpush.msra.mxu0 %v768
    %5767 = vmatpush.msra.mxu0 %v767
    %5768 = vmatpush.msra.mxu0 %v766
    %5769 = vmatpush.msra.mxu0 %v765
    %5770 = vmatpush.msra.mxu0 %v764
    %5771 = vmatpush.msra.mxu0 %v763
    %5772 = vmatpush.msra.mxu0 %v762
    %5773 = vmatpush.msra.mxu0 %v761
    %5774 = vmatpush.msra.mxu0 %v760
    %5775 = vmatpush.msra.mxu0 %v759
    %5776 = vmatpush.msra.mxu0 %v758
    %5777 = vmatpush.msra.mxu0 %v757
    %5778 = vmatpush.msra.mxu0 %v756
    %5779 = vmatmul.f32.gmra.mxu0 %v4478
    %v5780 = vpop.f32.mrf.mxu0
    %v5781 = vadd.f32 %v5761, %v5780
    %5782 = vdwg.mxu0
    %5783 = vmatpush.msra.mxu0 %v787
    %5784 = vmatpush.msra.mxu0 %v786
    %5785 = vmatpush.msra.mxu0 %v785
    %5786 = vmatpush.msra.mxu0 %v784
    %5787 = vmatpush.msra.mxu0 %v783
    %5788 = vmatpush.msra.mxu0 %v782
    %5789 = vmatpush.msra.mxu0 %v781
    %5790 = vmatpush.msra.mxu0 %v780
    %5791 = vmatpush.msra.mxu0 %v779
    %5792 = vmatpush.msra.mxu0 %v778
    %5793 = vmatpush.msra.mxu0 %v777
    %5794 = vmatpush.msra.mxu0 %v776
    %5795 = vmatpush.msra.mxu0 %v775
    %5796 = vmatpush.msra.mxu0 %v774
    %5797 = vmatpush.msra.mxu0 %v773
    %5798 = vmatpush.msra.mxu0 %v772
    %5799 = vmatmul.f32.gmra.mxu0 %v4479
    %v5800 = vpop.f32.mrf.mxu0
    %v5801 = vadd.f32 %v5781, %v5800
    %5802 = vdwg.mxu0
    %5803 = vmatpush.msra.mxu0 %v803
    %5804 = vmatpush.msra.mxu0 %v802
    %5805 = vmatpush.msra.mxu0 %v801
    %5806 = vmatpush.msra.mxu0 %v800
    %5807 = vmatpush.msra.mxu0 %v799
    %5808 = vmatpush.msra.mxu0 %v798
    %5809 = vmatpush.msra.mxu0 %v797
    %5810 = vmatpush.msra.mxu0 %v796
    %5811 = vmatpush.msra.mxu0 %v795
    %5812 = vmatpush.msra.mxu0 %v794
    %5813 = vmatpush.msra.mxu0 %v793
    %5814 = vmatpush.msra.mxu0 %v792
    %5815 = vmatpush.msra.mxu0 %v791
    %5816 = vmatpush.msra.mxu0 %v790
    %5817 = vmatpush.msra.mxu0 %v789
    %5818 = vmatpush.msra.mxu0 %v788
    %5819 = vmatmul.f32.gmra.mxu0 %v4480
    %v5820 = vpop.f32.mrf.mxu0
    %v5821 = vadd.f32 %v5801, %v5820
    %5822 = vdwg.mxu0
    %5823 = vmatpush.msra.mxu0 %v819
    %5824 = vmatpush.msra.mxu0 %v818
    %5825 = vmatpush.msra.mxu0 %v817
    %5826 = vmatpush.msra.mxu0 %v816
    %5827 = vmatpush.msra.mxu0 %v815
    %5828 = vmatpush.msra.mxu0 %v814
    %5829 = vmatpush.msra.mxu0 %v813
    %5830 = vmatpush.msra.mxu0 %v812
    %5831 = vmatpush.msra.mxu0 %v811
    %5832 = vmatpush.msra.mxu0 %v810
    %5833 = vmatpush.msra.mxu0 %v809
    %5834 = vmatpush.msra.mxu0 %v808
    %5835 = vmatpush.msra.mxu0 %v807
    %5836 = vmatpush.msra.mxu0 %v806
    %5837 = vmatpush.msra.mxu0 %v805
    %5838 = vmatpush.msra.mxu0 %v804
    %5839 = vmatmul.f32.gmra.mxu0 %v4481
    %v5840 = vpop.f32.mrf.mxu0
    %v5841 = vadd.f32 %v5821, %v5840
    %5842 = vdwg.mxu0
    %5843 = vmatpush.msra.mxu0 %v835
    %5844 = vmatpush.msra.mxu0 %v834
    %5845 = vmatpush.msra.mxu0 %v833
    %5846 = vmatpush.msra.mxu0 %v832
    %5847 = vmatpush.msra.mxu0 %v831
    %5848 = vmatpush.msra.mxu0 %v830
    %5849 = vmatpush.msra.mxu0 %v829
    %5850 = vmatpush.msra.mxu0 %v828
    %5851 = vmatpush.msra.mxu0 %v827
    %5852 = vmatpush.msra.mxu0 %v826
    %5853 = vmatpush.msra.mxu0 %v825
    %5854 = vmatpush.msra.mxu0 %v824
    %5855 = vmatpush.msra.mxu0 %v823
    %5856 = vmatpush.msra.mxu0 %v822
    %5857 = vmatpush.msra.mxu0 %v821
    %5858 = vmatpush.msra.mxu0 %v820
    %5859 = vmatmul.f32.gmra.mxu0 %v4482
    %v5860 = vpop.f32.mrf.mxu0
    %v5861 = vadd.f32 %v5841, %v5860
    %5862 = vdwg.mxu0
    %5863 = vmatpush.msra.mxu0 %v851
    %5864 = vmatpush.msra.mxu0 %v850
    %5865 = vmatpush.msra.mxu0 %v849
    %5866 = vmatpush.msra.mxu0 %v848
    %5867 = vmatpush.msra.mxu0 %v847
    %5868 = vmatpush.msra.mxu0 %v846
    %5869 = vmatpush.msra.mxu0 %v845
    %5870 = vmatpush.msra.mxu0 %v844
    %5871 = vmatpush.msra.mxu0 %v843
    %5872 = vmatpush.msra.mxu0 %v842
    %5873 = vmatpush.msra.mxu0 %v841
    %5874 = vmatpush.msra.mxu0 %v840
    %5875 = vmatpush.msra.mxu0 %v839
    %5876 = vmatpush.msra.mxu0 %v838
    %5877 = vmatpush.msra.mxu0 %v837
    %5878 = vmatpush.msra.mxu0 %v836
    %5879 = vmatmul.f32.gmra.mxu0 %v4487
    %v5880 = vpop.f32.mrf.mxu0
    %v5881 = vadd.f32 %v5861, %v5880
    %5882 = vdwg.mxu0
    %5883 = vmatpush.msra.mxu0 %v867
    %5884 = vmatpush.msra.mxu0 %v866
    %5885 = vmatpush.msra.mxu0 %v865
    %5886 = vmatpush.msra.mxu0 %v864
    %5887 = vmatpush.msra.mxu0 %v863
    %5888 = vmatpush.msra.mxu0 %v862
    %5889 = vmatpush.msra.mxu0 %v861
    %5890 = vmatpush.msra.mxu0 %v860
    %5891 = vmatpush.msra.mxu0 %v859
    %5892 = vmatpush.msra.mxu0 %v858
    %5893 = vmatpush.msra.mxu0 %v857
    %5894 = vmatpush.msra.mxu0 %v856
    %5895 = vmatpush.msra.mxu0 %v855
    %5896 = vmatpush.msra.mxu0 %v854
    %5897 = vmatpush.msra.mxu0 %v853
    %5898 = vmatpush.msra.mxu0 %v852
    %5899 = vmatmul.f32.gmra.mxu0 %v4488
    %v5900 = vpop.f32.mrf.mxu0
    %v5901 = vadd.f32 %v5881, %v5900
    %5902 = vdwg.mxu0
    %5903 = vmatpush.msra.mxu0 %v883
    %5904 = vmatpush.msra.mxu0 %v882
    %5905 = vmatpush.msra.mxu0 %v881
    %5906 = vmatpush.msra.mxu0 %v880
    %5907 = vmatpush.msra.mxu0 %v879
    %5908 = vmatpush.msra.mxu0 %v878
    %5909 = vmatpush.msra.mxu0 %v877
    %5910 = vmatpush.msra.mxu0 %v876
    %5911 = vmatpush.msra.mxu0 %v875
    %5912 = vmatpush.msra.mxu0 %v874
    %5913 = vmatpush.msra.mxu0 %v873
    %5914 = vmatpush.msra.mxu0 %v872
    %5915 = vmatpush.msra.mxu0 %v871
    %5916 = vmatpush.msra.mxu0 %v870
    %5917 = vmatpush.msra.mxu0 %v869
    %5918 = vmatpush.msra.mxu0 %v868
    %5919 = vmatmul.f32.gmra.mxu0 %v4489
    %v5920 = vpop.f32.mrf.mxu0
    %v5921 = vadd.f32 %v5901, %v5920
    %5922 = vdwg.mxu0
    %5923 = vmatpush.msra.mxu0 %v899
    %5924 = vmatpush.msra.mxu0 %v898
    %5925 = vmatpush.msra.mxu0 %v897
    %5926 = vmatpush.msra.mxu0 %v896
    %5927 = vmatpush.msra.mxu0 %v895
    %5928 = vmatpush.msra.mxu0 %v894
    %5929 = vmatpush.msra.mxu0 %v893
    %5930 = vmatpush.msra.mxu0 %v892
    %5931 = vmatpush.msra.mxu0 %v891
    %5932 = vmatpush.msra.mxu0 %v890
    %5933 = vmatpush.msra.mxu0 %v889
    %5934 = vmatpush.msra.mxu0 %v888
    %5935 = vmatpush.msra.mxu0 %v887
    %5936 = vmatpush.msra.mxu0 %v886
    %5937 = vmatpush.msra.mxu0 %v885
    %5938 = vmatpush.msra.mxu0 %v884
    %5939 = vmatmul.f32.gmra.mxu0 %v4490
    %v5940 = vpop.f32.mrf.mxu0
    %v5941 = vadd.f32 %v5921, %v5940
    %5942 = vdwg.mxu0
    %5943 = vmatpush.msra.mxu0 %v915
    %5944 = vmatpush.msra.mxu0 %v914
    %5945 = vmatpush.msra.mxu0 %v913
    %5946 = vmatpush.msra.mxu0 %v912
    %5947 = vmatpush.msra.mxu0 %v911
    %5948 = vmatpush.msra.mxu0 %v910
    %5949 = vmatpush.msra.mxu0 %v909
    %5950 = vmatpush.msra.mxu0 %v908
    %5951 = vmatpush.msra.mxu0 %v907
    %5952 = vmatpush.msra.mxu0 %v906
    %5953 = vmatpush.msra.mxu0 %v905
    %5954 = vmatpush.msra.mxu0 %v904
    %5955 = vmatpush.msra.mxu0 %v903
    %5956 = vmatpush.msra.mxu0 %v902
    %5957 = vmatpush.msra.mxu0 %v901
    %5958 = vmatpush.msra.mxu0 %v900
    %5959 = vmatmul.f32.gmra.mxu0 %v4491
    %v5960 = vpop.f32.mrf.mxu0
    %v5961 = vadd.f32 %v5941, %v5960
    %5962 = vdwg.mxu0
    %5963 = vmatpush.msra.mxu0 %v931
    %5964 = vmatpush.msra.mxu0 %v930
    %5965 = vmatpush.msra.mxu0 %v929
    %5966 = vmatpush.msra.mxu0 %v928
    %5967 = vmatpush.msra.mxu0 %v927
    %5968 = vmatpush.msra.mxu0 %v926
    %5969 = vmatpush.msra.mxu0 %v925
    %5970 = vmatpush.msra.mxu0 %v924
    %5971 = vmatpush.msra.mxu0 %v923
    %5972 = vmatpush.msra.mxu0 %v922
    %5973 = vmatpush.msra.mxu0 %v921
    %5974 = vmatpush.msra.mxu0 %v920
    %5975 = vmatpush.msra.mxu0 %v919
    %5976 = vmatpush.msra.mxu0 %v918
    %5977 = vmatpush.msra.mxu0 %v917
    %5978 = vmatpush.msra.mxu0 %v916
    %5979 = vmatmul.f32.gmra.mxu0 %v4492
    %v5980 = vpop.f32.mrf.mxu0
    %v5981 = vadd.f32 %v5961, %v5980
    %5982 = vdwg.mxu0
    %5983 = vmatpush.msra.mxu0 %v947
    %5984 = vmatpush.msra.mxu0 %v946
    %5985 = vmatpush.msra.mxu0 %v945
    %5986 = vmatpush.msra.mxu0 %v944
    %5987 = vmatpush.msra.mxu0 %v943
    %5988 = vmatpush.msra.mxu0 %v942
    %5989 = vmatpush.msra.mxu0 %v941
    %5990 = vmatpush.msra.mxu0 %v940
    %5991 = vmatpush.msra.mxu0 %v939
    %5992 = vmatpush.msra.mxu0 %v938
    %5993 = vmatpush.msra.mxu0 %v937
    %5994 = vmatpush.msra.mxu0 %v936
    %5995 = vmatpush.msra.mxu0 %v935
    %5996 = vmatpush.msra.mxu0 %v934
    %5997 = vmatpush.msra.mxu0 %v933
    %5998 = vmatpush.msra.mxu0 %v932
    %5999 = vmatmul.f32.gmra.mxu0 %v4493
    %v6000 = vpop.f32.mrf.mxu0
    %v6001 = vadd.f32 %v5981, %v6000
    %6002 = vdwg.mxu0
    %6003 = vmatpush.msra.mxu0 %v963
    %6004 = vmatpush.msra.mxu0 %v962
    %6005 = vmatpush.msra.mxu0 %v961
    %6006 = vmatpush.msra.mxu0 %v960
    %6007 = vmatpush.msra.mxu0 %v959
    %6008 = vmatpush.msra.mxu0 %v958
    %6009 = vmatpush.msra.mxu0 %v957
    %6010 = vmatpush.msra.mxu0 %v956
    %6011 = vmatpush.msra.mxu0 %v955
    %6012 = vmatpush.msra.mxu0 %v954
    %6013 = vmatpush.msra.mxu0 %v953
    %6014 = vmatpush.msra.mxu0 %v952
    %6015 = vmatpush.msra.mxu0 %v951
    %6016 = vmatpush.msra.mxu0 %v950
    %6017 = vmatpush.msra.mxu0 %v949
    %6018 = vmatpush.msra.mxu0 %v948
    %6019 = vmatmul.f32.gmra.mxu0 %v4494
    %v6020 = vpop.f32.mrf.mxu0
    %v6021 = vadd.f32 %v6001, %v6020
    %6022 = vdwg.mxu0
    %6023 = vmatpush.msra.mxu0 %v979
    %6024 = vmatpush.msra.mxu0 %v978
    %6025 = vmatpush.msra.mxu0 %v977
    %6026 = vmatpush.msra.mxu0 %v976
    %6027 = vmatpush.msra.mxu0 %v975
    %6028 = vmatpush.msra.mxu0 %v974
    %6029 = vmatpush.msra.mxu0 %v973
    %6030 = vmatpush.msra.mxu0 %v972
    %6031 = vmatpush.msra.mxu0 %v971
    %6032 = vmatpush.msra.mxu0 %v970
    %6033 = vmatpush.msra.mxu0 %v969
    %6034 = vmatpush.msra.mxu0 %v968
    %6035 = vmatpush.msra.mxu0 %v967
    %6036 = vmatpush.msra.mxu0 %v966
    %6037 = vmatpush.msra.mxu0 %v965
    %6038 = vmatpush.msra.mxu0 %v964
    %6039 = vmatmul.f32.gmra.mxu0 %v4499
    %v6040 = vpop.f32.mrf.mxu0
    %v6041 = vadd.f32 %v6021, %v6040
    %6042 = vdwg.mxu0
    %6043 = vmatpush.msra.mxu0 %v995
    %6044 = vmatpush.msra.mxu0 %v994
    %6045 = vmatpush.msra.mxu0 %v993
    %6046 = vmatpush.msra.mxu0 %v992
    %6047 = vmatpush.msra.mxu0 %v991
    %6048 = vmatpush.msra.mxu0 %v990
    %6049 = vmatpush.msra.mxu0 %v989
    %6050 = vmatpush.msra.mxu0 %v988
    %6051 = vmatpush.msra.mxu0 %v987
    %6052 = vmatpush.msra.mxu0 %v986
    %6053 = vmatpush.msra.mxu0 %v985
    %6054 = vmatpush.msra.mxu0 %v984
    %6055 = vmatpush.msra.mxu0 %v983
    %6056 = vmatpush.msra.mxu0 %v982
    %6057 = vmatpush.msra.mxu0 %v981
    %6058 = vmatpush.msra.mxu0 %v980
    %6059 = vmatmul.f32.gmra.mxu0 %v4500
    %v6060 = vpop.f32.mrf.mxu0
    %v6061 = vadd.f32 %v6041, %v6060
    %6062 = vdwg.mxu0
    %6063 = vmatpush.msra.mxu0 %v1011
    %6064 = vmatpush.msra.mxu0 %v1010
    %6065 = vmatpush.msra.mxu0 %v1009
    %6066 = vmatpush.msra.mxu0 %v1008
    %6067 = vmatpush.msra.mxu0 %v1007
    %6068 = vmatpush.msra.mxu0 %v1006
    %6069 = vmatpush.msra.mxu0 %v1005
    %6070 = vmatpush.msra.mxu0 %v1004
    %6071 = vmatpush.msra.mxu0 %v1003
    %6072 = vmatpush.msra.mxu0 %v1002
    %6073 = vmatpush.msra.mxu0 %v1001
    %6074 = vmatpush.msra.mxu0 %v1000
    %6075 = vmatpush.msra.mxu0 %v999
    %6076 = vmatpush.msra.mxu0 %v998
    %6077 = vmatpush.msra.mxu0 %v997
    %6078 = vmatpush.msra.mxu0 %v996
    %6079 = vmatmul.f32.gmra.mxu0 %v4501
    %v6080 = vpop.f32.mrf.mxu0
    %v6081 = vadd.f32 %v6061, %v6080
    %6082 = vdwg.mxu0
    %6083 = vmatpush.msra.mxu0 %v1027
    %6084 = vmatpush.msra.mxu0 %v1026
    %6085 = vmatpush.msra.mxu0 %v1025
    %6086 = vmatpush.msra.mxu0 %v1024
    %6087 = vmatpush.msra.mxu0 %v1023
    %6088 = vmatpush.msra.mxu0 %v1022
    %6089 = vmatpush.msra.mxu0 %v1021
    %6090 = vmatpush.msra.mxu0 %v1020
    %6091 = vmatpush.msra.mxu0 %v1019
    %6092 = vmatpush.msra.mxu0 %v1018
    %6093 = vmatpush.msra.mxu0 %v1017
    %6094 = vmatpush.msra.mxu0 %v1016
    %6095 = vmatpush.msra.mxu0 %v1015
    %6096 = vmatpush.msra.mxu0 %v1014
    %6097 = vmatpush.msra.mxu0 %v1013
    %6098 = vmatpush.msra.mxu0 %v1012
    %6099 = vmatmul.f32.gmra.mxu0 %v4502
    %v6100 = vpop.f32.mrf.mxu0
    %v6101 = vadd.f32 %v6081, %v6100
    %6102 = vdwg.mxu0
    %6103 = vmatpush.msra.mxu0 %v1043
    %6104 = vmatpush.msra.mxu0 %v1042
    %6105 = vmatpush.msra.mxu0 %v1041
    %6106 = vmatpush.msra.mxu0 %v1040
    %6107 = vmatpush.msra.mxu0 %v1039
    %6108 = vmatpush.msra.mxu0 %v1038
    %6109 = vmatpush.msra.mxu0 %v1037
    %6110 = vmatpush.msra.mxu0 %v1036
    %6111 = vmatpush.msra.mxu0 %v1035
    %6112 = vmatpush.msra.mxu0 %v1034
    %6113 = vmatpush.msra.mxu0 %v1033
    %6114 = vmatpush.msra.mxu0 %v1032
    %6115 = vmatpush.msra.mxu0 %v1031
    %6116 = vmatpush.msra.mxu0 %v1030
    %6117 = vmatpush.msra.mxu0 %v1029
    %6118 = vmatpush.msra.mxu0 %v1028
    %6119 = vmatmul.f32.gmra.mxu0 %v4503
    %v6120 = vpop.f32.mrf.mxu0
    %v6121 = vadd.f32 %v6101, %v6120
    %6122 = vdwg.mxu0
    %6123 = vmatpush.msra.mxu0 %v1059
    %6124 = vmatpush.msra.mxu0 %v1058
    %6125 = vmatpush.msra.mxu0 %v1057
    %6126 = vmatpush.msra.mxu0 %v1056
    %6127 = vmatpush.msra.mxu0 %v1055
    %6128 = vmatpush.msra.mxu0 %v1054
    %6129 = vmatpush.msra.mxu0 %v1053
    %6130 = vmatpush.msra.mxu0 %v1052
    %6131 = vmatpush.msra.mxu0 %v1051
    %6132 = vmatpush.msra.mxu0 %v1050
    %6133 = vmatpush.msra.mxu0 %v1049
    %6134 = vmatpush.msra.mxu0 %v1048
    %6135 = vmatpush.msra.mxu0 %v1047
    %6136 = vmatpush.msra.mxu0 %v1046
    %6137 = vmatpush.msra.mxu0 %v1045
    %6138 = vmatpush.msra.mxu0 %v1044
    %6139 = vmatmul.f32.gmra.mxu0 %v4504
    %v6140 = vpop.f32.mrf.mxu0
    %v6141 = vadd.f32 %v6121, %v6140
    %6142 = vdwg.mxu0
    %6143 = vmatpush.msra.mxu0 %v1075
    %6144 = vmatpush.msra.mxu0 %v1074
    %6145 = vmatpush.msra.mxu0 %v1073
    %6146 = vmatpush.msra.mxu0 %v1072
    %6147 = vmatpush.msra.mxu0 %v1071
    %6148 = vmatpush.msra.mxu0 %v1070
    %6149 = vmatpush.msra.mxu0 %v1069
    %6150 = vmatpush.msra.mxu0 %v1068
    %6151 = vmatpush.msra.mxu0 %v1067
    %6152 = vmatpush.msra.mxu0 %v1066
    %6153 = vmatpush.msra.mxu0 %v1065
    %6154 = vmatpush.msra.mxu0 %v1064
    %6155 = vmatpush.msra.mxu0 %v1063
    %6156 = vmatpush.msra.mxu0 %v1062
    %6157 = vmatpush.msra.mxu0 %v1061
    %6158 = vmatpush.msra.mxu0 %v1060
    %6159 = vmatmul.f32.gmra.mxu0 %v4505
    %v6160 = vpop.f32.mrf.mxu0
    %v6161 = vadd.f32 %v6141, %v6160
    %6162 = vdwg.mxu0
    %6163 = vmatpush.msra.mxu0 %v1091
    %6164 = vmatpush.msra.mxu0 %v1090
    %6165 = vmatpush.msra.mxu0 %v1089
    %6166 = vmatpush.msra.mxu0 %v1088
    %6167 = vmatpush.msra.mxu0 %v1087
    %6168 = vmatpush.msra.mxu0 %v1086
    %6169 = vmatpush.msra.mxu0 %v1085
    %6170 = vmatpush.msra.mxu0 %v1084
    %6171 = vmatpush.msra.mxu0 %v1083
    %6172 = vmatpush.msra.mxu0 %v1082
    %6173 = vmatpush.msra.mxu0 %v1081
    %6174 = vmatpush.msra.mxu0 %v1080
    %6175 = vmatpush.msra.mxu0 %v1079
    %6176 = vmatpush.msra.mxu0 %v1078
    %6177 = vmatpush.msra.mxu0 %v1077
    %6178 = vmatpush.msra.mxu0 %v1076
    %6179 = vmatmul.f32.gmra.mxu0 %v4506
    %v6180 = vpop.f32.mrf.mxu0
    %v6181 = vadd.f32 %v6161, %v6180
    %6182 = vdwg.mxu0
    %6183 = vmatpush.msra.mxu0 %v1107
    %6184 = vmatpush.msra.mxu0 %v1106
    %6185 = vmatpush.msra.mxu0 %v1105
    %6186 = vmatpush.msra.mxu0 %v1104
    %6187 = vmatpush.msra.mxu0 %v1103
    %6188 = vmatpush.msra.mxu0 %v1102
    %6189 = vmatpush.msra.mxu0 %v1101
    %6190 = vmatpush.msra.mxu0 %v1100
    %6191 = vmatpush.msra.mxu0 %v1099
    %6192 = vmatpush.msra.mxu0 %v1098
    %6193 = vmatpush.msra.mxu0 %v1097
    %6194 = vmatpush.msra.mxu0 %v1096
    %6195 = vmatpush.msra.mxu0 %v1095
    %6196 = vmatpush.msra.mxu0 %v1094
    %6197 = vmatpush.msra.mxu0 %v1093
    %6198 = vmatpush.msra.mxu0 %v1092
    %6199 = vmatmul.f32.gmra.mxu0 %v4511
    %v6200 = vpop.f32.mrf.mxu0
    %v6201 = vadd.f32 %v6181, %v6200
    %6202 = vdwg.mxu0
    %6203 = vmatpush.msra.mxu0 %v1123
    %6204 = vmatpush.msra.mxu0 %v1122
    %6205 = vmatpush.msra.mxu0 %v1121
    %6206 = vmatpush.msra.mxu0 %v1120
    %6207 = vmatpush.msra.mxu0 %v1119
    %6208 = vmatpush.msra.mxu0 %v1118
    %6209 = vmatpush.msra.mxu0 %v1117
    %6210 = vmatpush.msra.mxu0 %v1116
    %6211 = vmatpush.msra.mxu0 %v1115
    %6212 = vmatpush.msra.mxu0 %v1114
    %6213 = vmatpush.msra.mxu0 %v1113
    %6214 = vmatpush.msra.mxu0 %v1112
    %6215 = vmatpush.msra.mxu0 %v1111
    %6216 = vmatpush.msra.mxu0 %v1110
    %6217 = vmatpush.msra.mxu0 %v1109
    %6218 = vmatpush.msra.mxu0 %v1108
    %6219 = vmatmul.f32.gmra.mxu0 %v4512
    %v6220 = vpop.f32.mrf.mxu0
    %v6221 = vadd.f32 %v6201, %v6220
    %6222 = vdwg.mxu0
    %6223 = vmatpush.msra.mxu0 %v1139
    %6224 = vmatpush.msra.mxu0 %v1138
    %6225 = vmatpush.msra.mxu0 %v1137
    %6226 = vmatpush.msra.mxu0 %v1136
    %6227 = vmatpush.msra.mxu0 %v1135
    %6228 = vmatpush.msra.mxu0 %v1134
    %6229 = vmatpush.msra.mxu0 %v1133
    %6230 = vmatpush.msra.mxu0 %v1132
    %6231 = vmatpush.msra.mxu0 %v1131
    %6232 = vmatpush.msra.mxu0 %v1130
    %6233 = vmatpush.msra.mxu0 %v1129
    %6234 = vmatpush.msra.mxu0 %v1128
    %6235 = vmatpush.msra.mxu0 %v1127
    %6236 = vmatpush.msra.mxu0 %v1126
    %6237 = vmatpush.msra.mxu0 %v1125
    %6238 = vmatpush.msra.mxu0 %v1124
    %6239 = vmatmul.f32.gmra.mxu0 %v4513
    %v6240 = vpop.f32.mrf.mxu0
    %v6241 = vadd.f32 %v6221, %v6240
    %6242 = vdwg.mxu0
    %6243 = vmatpush.msra.mxu0 %v1155
    %6244 = vmatpush.msra.mxu0 %v1154
    %6245 = vmatpush.msra.mxu0 %v1153
    %6246 = vmatpush.msra.mxu0 %v1152
    %6247 = vmatpush.msra.mxu0 %v1151
    %6248 = vmatpush.msra.mxu0 %v1150
    %6249 = vmatpush.msra.mxu0 %v1149
    %6250 = vmatpush.msra.mxu0 %v1148
    %6251 = vmatpush.msra.mxu0 %v1147
    %6252 = vmatpush.msra.mxu0 %v1146
    %6253 = vmatpush.msra.mxu0 %v1145
    %6254 = vmatpush.msra.mxu0 %v1144
    %6255 = vmatpush.msra.mxu0 %v1143
    %6256 = vmatpush.msra.mxu0 %v1142
    %6257 = vmatpush.msra.mxu0 %v1141
    %6258 = vmatpush.msra.mxu0 %v1140
    %6259 = vmatmul.f32.gmra.mxu0 %v4514
    %v6260 = vpop.f32.mrf.mxu0
    %v6261 = vadd.f32 %v6241, %v6260
    %6262 = vdwg.mxu0
    %6263 = vmatpush.msra.mxu0 %v1171
    %6264 = vmatpush.msra.mxu0 %v1170
    %6265 = vmatpush.msra.mxu0 %v1169
    %6266 = vmatpush.msra.mxu0 %v1168
    %6267 = vmatpush.msra.mxu0 %v1167
    %6268 = vmatpush.msra.mxu0 %v1166
    %6269 = vmatpush.msra.mxu0 %v1165
    %6270 = vmatpush.msra.mxu0 %v1164
    %6271 = vmatpush.msra.mxu0 %v1163
    %6272 = vmatpush.msra.mxu0 %v1162
    %6273 = vmatpush.msra.mxu0 %v1161
    %6274 = vmatpush.msra.mxu0 %v1160
    %6275 = vmatpush.msra.mxu0 %v1159
    %6276 = vmatpush.msra.mxu0 %v1158
    %6277 = vmatpush.msra.mxu0 %v1157
    %6278 = vmatpush.msra.mxu0 %v1156
    %6279 = vmatmul.f32.gmra.mxu0 %v4515
    %v6280 = vpop.f32.mrf.mxu0
    %v6281 = vadd.f32 %v6261, %v6280
    %6282 = vdwg.mxu0
    %6283 = vmatpush.msra.mxu0 %v1187
    %6284 = vmatpush.msra.mxu0 %v1186
    %6285 = vmatpush.msra.mxu0 %v1185
    %6286 = vmatpush.msra.mxu0 %v1184
    %6287 = vmatpush.msra.mxu0 %v1183
    %6288 = vmatpush.msra.mxu0 %v1182
    %6289 = vmatpush.msra.mxu0 %v1181
    %6290 = vmatpush.msra.mxu0 %v1180
    %6291 = vmatpush.msra.mxu0 %v1179
    %6292 = vmatpush.msra.mxu0 %v1178
    %6293 = vmatpush.msra.mxu0 %v1177
    %6294 = vmatpush.msra.mxu0 %v1176
    %6295 = vmatpush.msra.mxu0 %v1175
    %6296 = vmatpush.msra.mxu0 %v1174
    %6297 = vmatpush.msra.mxu0 %v1173
    %6298 = vmatpush.msra.mxu0 %v1172
    %6299 = vmatmul.f32.gmra.mxu0 %v4516
    %v6300 = vpop.f32.mrf.mxu0
    %v6301 = vadd.f32 %v6281, %v6300
    %6302 = vdwg.mxu0
    %6303 = vmatpush.msra.mxu0 %v1203
    %6304 = vmatpush.msra.mxu0 %v1202
    %6305 = vmatpush.msra.mxu0 %v1201
    %6306 = vmatpush.msra.mxu0 %v1200
    %6307 = vmatpush.msra.mxu0 %v1199
    %6308 = vmatpush.msra.mxu0 %v1198
    %6309 = vmatpush.msra.mxu0 %v1197
    %6310 = vmatpush.msra.mxu0 %v1196
    %6311 = vmatpush.msra.mxu0 %v1195
    %6312 = vmatpush.msra.mxu0 %v1194
    %6313 = vmatpush.msra.mxu0 %v1193
    %6314 = vmatpush.msra.mxu0 %v1192
    %6315 = vmatpush.msra.mxu0 %v1191
    %6316 = vmatpush.msra.mxu0 %v1190
    %6317 = vmatpush.msra.mxu0 %v1189
    %6318 = vmatpush.msra.mxu0 %v1188
    %6319 = vmatmul.f32.gmra.mxu0 %v4517
    %v6320 = vpop.f32.mrf.mxu0
    %v6321 = vadd.f32 %v6301, %v6320
    %6322 = vdwg.mxu0
    %6323 = vmatpush.msra.mxu0 %v1219
    %6324 = vmatpush.msra.mxu0 %v1218
    %6325 = vmatpush.msra.mxu0 %v1217
    %6326 = vmatpush.msra.mxu0 %v1216
    %6327 = vmatpush.msra.mxu0 %v1215
    %6328 = vmatpush.msra.mxu0 %v1214
    %6329 = vmatpush.msra.mxu0 %v1213
    %6330 = vmatpush.msra.mxu0 %v1212
    %6331 = vmatpush.msra.mxu0 %v1211
    %6332 = vmatpush.msra.mxu0 %v1210
    %6333 = vmatpush.msra.mxu0 %v1209
    %6334 = vmatpush.msra.mxu0 %v1208
    %6335 = vmatpush.msra.mxu0 %v1207
    %6336 = vmatpush.msra.mxu0 %v1206
    %6337 = vmatpush.msra.mxu0 %v1205
    %6338 = vmatpush.msra.mxu0 %v1204
    %6339 = vmatmul.f32.gmra.mxu0 %v4518
    %v6340 = vpop.f32.mrf.mxu0
    %v6341 = vadd.f32 %v6321, %v6340
    %6342 = vdwg.mxu0
    %6343 = vmatpush.msra.mxu0 %v1235
    %6344 = vmatpush.msra.mxu0 %v1234
    %6345 = vmatpush.msra.mxu0 %v1233
    %6346 = vmatpush.msra.mxu0 %v1232
    %6347 = vmatpush.msra.mxu0 %v1231
    %6348 = vmatpush.msra.mxu0 %v1230
    %6349 = vmatpush.msra.mxu0 %v1229
    %6350 = vmatpush.msra.mxu0 %v1228
    %6351 = vmatpush.msra.mxu0 %v1227
    %6352 = vmatpush.msra.mxu0 %v1226
    %6353 = vmatpush.msra.mxu0 %v1225
    %6354 = vmatpush.msra.mxu0 %v1224
    %6355 = vmatpush.msra.mxu0 %v1223
    %6356 = vmatpush.msra.mxu0 %v1222
    %6357 = vmatpush.msra.mxu0 %v1221
    %6358 = vmatpush.msra.mxu0 %v1220
    %6359 = vmatmul.f32.gmra.mxu0 %v4523
    %v6360 = vpop.f32.mrf.mxu0
    %v6361 = vadd.f32 %v6341, %v6360
    %6362 = vdwg.mxu0
    %6363 = vmatpush.msra.mxu0 %v1251
    %6364 = vmatpush.msra.mxu0 %v1250
    %6365 = vmatpush.msra.mxu0 %v1249
    %6366 = vmatpush.msra.mxu0 %v1248
    %6367 = vmatpush.msra.mxu0 %v1247
    %6368 = vmatpush.msra.mxu0 %v1246
    %6369 = vmatpush.msra.mxu0 %v1245
    %6370 = vmatpush.msra.mxu0 %v1244
    %6371 = vmatpush.msra.mxu0 %v1243
    %6372 = vmatpush.msra.mxu0 %v1242
    %6373 = vmatpush.msra.mxu0 %v1241
    %6374 = vmatpush.msra.mxu0 %v1240
    %6375 = vmatpush.msra.mxu0 %v1239
    %6376 = vmatpush.msra.mxu0 %v1238
    %6377 = vmatpush.msra.mxu0 %v1237
    %6378 = vmatpush.msra.mxu0 %v1236
    %6379 = vmatmul.f32.gmra.mxu0 %v4524
    %v6380 = vpop.f32.mrf.mxu0
    %v6381 = vadd.f32 %v6361, %v6380
    %6382 = vdwg.mxu0
    %6383 = vmatpush.msra.mxu0 %v1267
    %6384 = vmatpush.msra.mxu0 %v1266
    %6385 = vmatpush.msra.mxu0 %v1265
    %6386 = vmatpush.msra.mxu0 %v1264
    %6387 = vmatpush.msra.mxu0 %v1263
    %6388 = vmatpush.msra.mxu0 %v1262
    %6389 = vmatpush.msra.mxu0 %v1261
    %6390 = vmatpush.msra.mxu0 %v1260
    %6391 = vmatpush.msra.mxu0 %v1259
    %6392 = vmatpush.msra.mxu0 %v1258
    %6393 = vmatpush.msra.mxu0 %v1257
    %6394 = vmatpush.msra.mxu0 %v1256
    %6395 = vmatpush.msra.mxu0 %v1255
    %6396 = vmatpush.msra.mxu0 %v1254
    %6397 = vmatpush.msra.mxu0 %v1253
    %6398 = vmatpush.msra.mxu0 %v1252
    %6399 = vmatmul.f32.gmra.mxu0 %v4525
    %v6400 = vpop.f32.mrf.mxu0
    %v6401 = vadd.f32 %v6381, %v6400
    %6402 = vdwg.mxu0
    %6403 = vmatpush.msra.mxu0 %v1283
    %6404 = vmatpush.msra.mxu0 %v1282
    %6405 = vmatpush.msra.mxu0 %v1281
    %6406 = vmatpush.msra.mxu0 %v1280
    %6407 = vmatpush.msra.mxu0 %v1279
    %6408 = vmatpush.msra.mxu0 %v1278
    %6409 = vmatpush.msra.mxu0 %v1277
    %6410 = vmatpush.msra.mxu0 %v1276
    %6411 = vmatpush.msra.mxu0 %v1275
    %6412 = vmatpush.msra.mxu0 %v1274
    %6413 = vmatpush.msra.mxu0 %v1273
    %6414 = vmatpush.msra.mxu0 %v1272
    %6415 = vmatpush.msra.mxu0 %v1271
    %6416 = vmatpush.msra.mxu0 %v1270
    %6417 = vmatpush.msra.mxu0 %v1269
    %6418 = vmatpush.msra.mxu0 %v1268
    %6419 = vmatmul.f32.gmra.mxu0 %v4526
    %v6420 = vpop.f32.mrf.mxu0
    %v6421 = vadd.f32 %v6401, %v6420
    %6422 = vdwg.mxu0
    %6423 = vmatpush.msra.mxu0 %v1299
    %6424 = vmatpush.msra.mxu0 %v1298
    %6425 = vmatpush.msra.mxu0 %v1297
    %6426 = vmatpush.msra.mxu0 %v1296
    %6427 = vmatpush.msra.mxu0 %v1295
    %6428 = vmatpush.msra.mxu0 %v1294
    %6429 = vmatpush.msra.mxu0 %v1293
    %6430 = vmatpush.msra.mxu0 %v1292
    %6431 = vmatpush.msra.mxu0 %v1291
    %6432 = vmatpush.msra.mxu0 %v1290
    %6433 = vmatpush.msra.mxu0 %v1289
    %6434 = vmatpush.msra.mxu0 %v1288
    %6435 = vmatpush.msra.mxu0 %v1287
    %6436 = vmatpush.msra.mxu0 %v1286
    %6437 = vmatpush.msra.mxu0 %v1285
    %6438 = vmatpush.msra.mxu0 %v1284
    %6439 = vmatmul.f32.gmra.mxu0 %v4527
    %v6440 = vpop.f32.mrf.mxu0
    %v6441 = vadd.f32 %v6421, %v6440
    %6442 = vdwg.mxu0
    %6443 = vmatpush.msra.mxu0 %v1315
    %6444 = vmatpush.msra.mxu0 %v1314
    %6445 = vmatpush.msra.mxu0 %v1313
    %6446 = vmatpush.msra.mxu0 %v1312
    %6447 = vmatpush.msra.mxu0 %v1311
    %6448 = vmatpush.msra.mxu0 %v1310
    %6449 = vmatpush.msra.mxu0 %v1309
    %6450 = vmatpush.msra.mxu0 %v1308
    %6451 = vmatpush.msra.mxu0 %v1307
    %6452 = vmatpush.msra.mxu0 %v1306
    %6453 = vmatpush.msra.mxu0 %v1305
    %6454 = vmatpush.msra.mxu0 %v1304
    %6455 = vmatpush.msra.mxu0 %v1303
    %6456 = vmatpush.msra.mxu0 %v1302
    %6457 = vmatpush.msra.mxu0 %v1301
    %6458 = vmatpush.msra.mxu0 %v1300
    %6459 = vmatmul.f32.gmra.mxu0 %v4528
    %v6460 = vpop.f32.mrf.mxu0
    %v6461 = vadd.f32 %v6441, %v6460
    %6462 = vdwg.mxu0
    %6463 = vmatpush.msra.mxu0 %v1331
    %6464 = vmatpush.msra.mxu0 %v1330
    %6465 = vmatpush.msra.mxu0 %v1329
    %6466 = vmatpush.msra.mxu0 %v1328
    %6467 = vmatpush.msra.mxu0 %v1327
    %6468 = vmatpush.msra.mxu0 %v1326
    %6469 = vmatpush.msra.mxu0 %v1325
    %6470 = vmatpush.msra.mxu0 %v1324
    %6471 = vmatpush.msra.mxu0 %v1323
    %6472 = vmatpush.msra.mxu0 %v1322
    %6473 = vmatpush.msra.mxu0 %v1321
    %6474 = vmatpush.msra.mxu0 %v1320
    %6475 = vmatpush.msra.mxu0 %v1319
    %6476 = vmatpush.msra.mxu0 %v1318
    %6477 = vmatpush.msra.mxu0 %v1317
    %6478 = vmatpush.msra.mxu0 %v1316
    %6479 = vmatmul.f32.gmra.mxu0 %v4529
    %v6480 = vpop.f32.mrf.mxu0
    %v6481 = vadd.f32 %v6461, %v6480
    %6482 = vdwg.mxu0
    %6483 = vmatpush.msra.mxu0 %v1347
    %6484 = vmatpush.msra.mxu0 %v1346
    %6485 = vmatpush.msra.mxu0 %v1345
    %6486 = vmatpush.msra.mxu0 %v1344
    %6487 = vmatpush.msra.mxu0 %v1343
    %6488 = vmatpush.msra.mxu0 %v1342
    %6489 = vmatpush.msra.mxu0 %v1341
    %6490 = vmatpush.msra.mxu0 %v1340
    %6491 = vmatpush.msra.mxu0 %v1339
    %6492 = vmatpush.msra.mxu0 %v1338
    %6493 = vmatpush.msra.mxu0 %v1337
    %6494 = vmatpush.msra.mxu0 %v1336
    %6495 = vmatpush.msra.mxu0 %v1335
    %6496 = vmatpush.msra.mxu0 %v1334
    %6497 = vmatpush.msra.mxu0 %v1333
    %6498 = vmatpush.msra.mxu0 %v1332
    %6499 = vmatmul.f32.gmra.mxu0 %v4530
    %v6500 = vpop.f32.mrf.mxu0
    %v6501 = vadd.f32 %v6481, %v6500
    %6502 = vdwg.mxu0
    %6503 = vmatpush.msra.mxu0 %v1363
    %6504 = vmatpush.msra.mxu0 %v1362
    %6505 = vmatpush.msra.mxu0 %v1361
    %6506 = vmatpush.msra.mxu0 %v1360
    %6507 = vmatpush.msra.mxu0 %v1359
    %6508 = vmatpush.msra.mxu0 %v1358
    %6509 = vmatpush.msra.mxu0 %v1357
    %6510 = vmatpush.msra.mxu0 %v1356
    %6511 = vmatpush.msra.mxu0 %v1355
    %6512 = vmatpush.msra.mxu0 %v1354
    %6513 = vmatpush.msra.mxu0 %v1353
    %6514 = vmatpush.msra.mxu0 %v1352
    %6515 = vmatpush.msra.mxu0 %v1351
    %6516 = vmatpush.msra.mxu0 %v1350
    %6517 = vmatpush.msra.mxu0 %v1349
    %6518 = vmatpush.msra.mxu0 %v1348
    %6519 = vmatmul.f32.gmra.mxu0 %v4535
    %v6520 = vpop.f32.mrf.mxu0
    %v6521 = vadd.f32 %v6501, %v6520
    %6522 = vdwg.mxu0
    %6523 = vmatpush.msra.mxu0 %v1379
    %6524 = vmatpush.msra.mxu0 %v1378
    %6525 = vmatpush.msra.mxu0 %v1377
    %6526 = vmatpush.msra.mxu0 %v1376
    %6527 = vmatpush.msra.mxu0 %v1375
    %6528 = vmatpush.msra.mxu0 %v1374
    %6529 = vmatpush.msra.mxu0 %v1373
    %6530 = vmatpush.msra.mxu0 %v1372
    %6531 = vmatpush.msra.mxu0 %v1371
    %6532 = vmatpush.msra.mxu0 %v1370
    %6533 = vmatpush.msra.mxu0 %v1369
    %6534 = vmatpush.msra.mxu0 %v1368
    %6535 = vmatpush.msra.mxu0 %v1367
    %6536 = vmatpush.msra.mxu0 %v1366
    %6537 = vmatpush.msra.mxu0 %v1365
    %6538 = vmatpush.msra.mxu0 %v1364
    %6539 = vmatmul.f32.gmra.mxu0 %v4536
    %v6540 = vpop.f32.mrf.mxu0
    %v6541 = vadd.f32 %v6521, %v6540
    %6542 = vdwg.mxu0
    %6543 = vmatpush.msra.mxu0 %v1395
    %6544 = vmatpush.msra.mxu0 %v1394
    %6545 = vmatpush.msra.mxu0 %v1393
    %6546 = vmatpush.msra.mxu0 %v1392
    %6547 = vmatpush.msra.mxu0 %v1391
    %6548 = vmatpush.msra.mxu0 %v1390
    %6549 = vmatpush.msra.mxu0 %v1389
    %6550 = vmatpush.msra.mxu0 %v1388
    %6551 = vmatpush.msra.mxu0 %v1387
    %6552 = vmatpush.msra.mxu0 %v1386
    %6553 = vmatpush.msra.mxu0 %v1385
    %6554 = vmatpush.msra.mxu0 %v1384
    %6555 = vmatpush.msra.mxu0 %v1383
    %6556 = vmatpush.msra.mxu0 %v1382
    %6557 = vmatpush.msra.mxu0 %v1381
    %6558 = vmatpush.msra.mxu0 %v1380
    %6559 = vmatmul.f32.gmra.mxu0 %v4537
    %v6560 = vpop.f32.mrf.mxu0
    %v6561 = vadd.f32 %v6541, %v6560
    %6562 = vdwg.mxu0
    %6563 = vmatpush.msra.mxu0 %v1411
    %6564 = vmatpush.msra.mxu0 %v1410
    %6565 = vmatpush.msra.mxu0 %v1409
    %6566 = vmatpush.msra.mxu0 %v1408
    %6567 = vmatpush.msra.mxu0 %v1407
    %6568 = vmatpush.msra.mxu0 %v1406
    %6569 = vmatpush.msra.mxu0 %v1405
    %6570 = vmatpush.msra.mxu0 %v1404
    %6571 = vmatpush.msra.mxu0 %v1403
    %6572 = vmatpush.msra.mxu0 %v1402
    %6573 = vmatpush.msra.mxu0 %v1401
    %6574 = vmatpush.msra.mxu0 %v1400
    %6575 = vmatpush.msra.mxu0 %v1399
    %6576 = vmatpush.msra.mxu0 %v1398
    %6577 = vmatpush.msra.mxu0 %v1397
    %6578 = vmatpush.msra.mxu0 %v1396
    %6579 = vmatmul.f32.gmra.mxu0 %v4538
    %v6580 = vpop.f32.mrf.mxu0
    %v6581 = vadd.f32 %v6561, %v6580
    %6582 = vdwg.mxu0
    %6583 = vmatpush.msra.mxu0 %v1427
    %6584 = vmatpush.msra.mxu0 %v1426
    %6585 = vmatpush.msra.mxu0 %v1425
    %6586 = vmatpush.msra.mxu0 %v1424
    %6587 = vmatpush.msra.mxu0 %v1423
    %6588 = vmatpush.msra.mxu0 %v1422
    %6589 = vmatpush.msra.mxu0 %v1421
    %6590 = vmatpush.msra.mxu0 %v1420
    %6591 = vmatpush.msra.mxu0 %v1419
    %6592 = vmatpush.msra.mxu0 %v1418
    %6593 = vmatpush.msra.mxu0 %v1417
    %6594 = vmatpush.msra.mxu0 %v1416
    %6595 = vmatpush.msra.mxu0 %v1415
    %6596 = vmatpush.msra.mxu0 %v1414
    %6597 = vmatpush.msra.mxu0 %v1413
    %6598 = vmatpush.msra.mxu0 %v1412
    %6599 = vmatmul.f32.gmra.mxu0 %v4539
    %v6600 = vpop.f32.mrf.mxu0
    %v6601 = vadd.f32 %v6581, %v6600
    %6602 = vdwg.mxu0
    %6603 = vmatpush.msra.mxu0 %v1443
    %6604 = vmatpush.msra.mxu0 %v1442
    %6605 = vmatpush.msra.mxu0 %v1441
    %6606 = vmatpush.msra.mxu0 %v1440
    %6607 = vmatpush.msra.mxu0 %v1439
    %6608 = vmatpush.msra.mxu0 %v1438
    %6609 = vmatpush.msra.mxu0 %v1437
    %6610 = vmatpush.msra.mxu0 %v1436
    %6611 = vmatpush.msra.mxu0 %v1435
    %6612 = vmatpush.msra.mxu0 %v1434
    %6613 = vmatpush.msra.mxu0 %v1433
    %6614 = vmatpush.msra.mxu0 %v1432
    %6615 = vmatpush.msra.mxu0 %v1431
    %6616 = vmatpush.msra.mxu0 %v1430
    %6617 = vmatpush.msra.mxu0 %v1429
    %6618 = vmatpush.msra.mxu0 %v1428
    %6619 = vmatmul.f32.gmra.mxu0 %v4540
    %v6620 = vpop.f32.mrf.mxu0
    %v6621 = vadd.f32 %v6601, %v6620
    %6622 = vdwg.mxu0
    %6623 = vmatpush.msra.mxu0 %v1459
    %6624 = vmatpush.msra.mxu0 %v1458
    %6625 = vmatpush.msra.mxu0 %v1457
    %6626 = vmatpush.msra.mxu0 %v1456
    %6627 = vmatpush.msra.mxu0 %v1455
    %6628 = vmatpush.msra.mxu0 %v1454
    %6629 = vmatpush.msra.mxu0 %v1453
    %6630 = vmatpush.msra.mxu0 %v1452
    %6631 = vmatpush.msra.mxu0 %v1451
    %6632 = vmatpush.msra.mxu0 %v1450
    %6633 = vmatpush.msra.mxu0 %v1449
    %6634 = vmatpush.msra.mxu0 %v1448
    %6635 = vmatpush.msra.mxu0 %v1447
    %6636 = vmatpush.msra.mxu0 %v1446
    %6637 = vmatpush.msra.mxu0 %v1445
    %6638 = vmatpush.msra.mxu0 %v1444
    %6639 = vmatmul.f32.gmra.mxu0 %v4541
    %v6640 = vpop.f32.mrf.mxu0
    %v6641 = vadd.f32 %v6621, %v6640
    %6642 = vdwg.mxu0
    %6643 = vmatpush.msra.mxu0 %v1475
    %6644 = vmatpush.msra.mxu0 %v1474
    %6645 = vmatpush.msra.mxu0 %v1473
    %6646 = vmatpush.msra.mxu0 %v1472
    %6647 = vmatpush.msra.mxu0 %v1471
    %6648 = vmatpush.msra.mxu0 %v1470
    %6649 = vmatpush.msra.mxu0 %v1469
    %6650 = vmatpush.msra.mxu0 %v1468
    %6651 = vmatpush.msra.mxu0 %v1467
    %6652 = vmatpush.msra.mxu0 %v1466
    %6653 = vmatpush.msra.mxu0 %v1465
    %6654 = vmatpush.msra.mxu0 %v1464
    %6655 = vmatpush.msra.mxu0 %v1463
    %6656 = vmatpush.msra.mxu0 %v1462
    %6657 = vmatpush.msra.mxu0 %v1461
    %6658 = vmatpush.msra.mxu0 %v1460
    %6659 = vmatmul.f32.gmra.mxu0 %v4542
    %v6660 = vpop.f32.mrf.mxu0
    %v6661 = vadd.f32 %v6641, %v6660
    %6662 = vdwg.mxu0
    %6663 = vmatpush.msra.mxu0 %v1491
    %6664 = vmatpush.msra.mxu0 %v1490
    %6665 = vmatpush.msra.mxu0 %v1489
    %6666 = vmatpush.msra.mxu0 %v1488
    %6667 = vmatpush.msra.mxu0 %v1487
    %6668 = vmatpush.msra.mxu0 %v1486
    %6669 = vmatpush.msra.mxu0 %v1485
    %6670 = vmatpush.msra.mxu0 %v1484
    %6671 = vmatpush.msra.mxu0 %v1483
    %6672 = vmatpush.msra.mxu0 %v1482
    %6673 = vmatpush.msra.mxu0 %v1481
    %6674 = vmatpush.msra.mxu0 %v1480
    %6675 = vmatpush.msra.mxu0 %v1479
    %6676 = vmatpush.msra.mxu0 %v1478
    %6677 = vmatpush.msra.mxu0 %v1477
    %6678 = vmatpush.msra.mxu0 %v1476
    %6679 = vmatmul.f32.gmra.mxu0 %v4547
    %v6680 = vpop.f32.mrf.mxu0
    %v6681 = vadd.f32 %v6661, %v6680
    %6682 = vdwg.mxu0
    %6683 = vmatpush.msra.mxu0 %v1507
    %6684 = vmatpush.msra.mxu0 %v1506
    %6685 = vmatpush.msra.mxu0 %v1505
    %6686 = vmatpush.msra.mxu0 %v1504
    %6687 = vmatpush.msra.mxu0 %v1503
    %6688 = vmatpush.msra.mxu0 %v1502
    %6689 = vmatpush.msra.mxu0 %v1501
    %6690 = vmatpush.msra.mxu0 %v1500
    %6691 = vmatpush.msra.mxu0 %v1499
    %6692 = vmatpush.msra.mxu0 %v1498
    %6693 = vmatpush.msra.mxu0 %v1497
    %6694 = vmatpush.msra.mxu0 %v1496
    %6695 = vmatpush.msra.mxu0 %v1495
    %6696 = vmatpush.msra.mxu0 %v1494
    %6697 = vmatpush.msra.mxu0 %v1493
    %6698 = vmatpush.msra.mxu0 %v1492
    %6699 = vmatmul.f32.gmra.mxu0 %v4548
    %v6700 = vpop.f32.mrf.mxu0
    %v6701 = vadd.f32 %v6681, %v6700
    %6702 = vdwg.mxu0
    %6703 = vmatpush.msra.mxu0 %v1523
    %6704 = vmatpush.msra.mxu0 %v1522
    %6705 = vmatpush.msra.mxu0 %v1521
    %6706 = vmatpush.msra.mxu0 %v1520
    %6707 = vmatpush.msra.mxu0 %v1519
    %6708 = vmatpush.msra.mxu0 %v1518
    %6709 = vmatpush.msra.mxu0 %v1517
    %6710 = vmatpush.msra.mxu0 %v1516
    %6711 = vmatpush.msra.mxu0 %v1515
    %6712 = vmatpush.msra.mxu0 %v1514
    %6713 = vmatpush.msra.mxu0 %v1513
    %6714 = vmatpush.msra.mxu0 %v1512
    %6715 = vmatpush.msra.mxu0 %v1511
    %6716 = vmatpush.msra.mxu0 %v1510
    %6717 = vmatpush.msra.mxu0 %v1509
    %6718 = vmatpush.msra.mxu0 %v1508
    %6719 = vmatmul.f32.gmra.mxu0 %v4549
    %v6720 = vpop.f32.mrf.mxu0
    %v6721 = vadd.f32 %v6701, %v6720
    %6722 = vdwg.mxu0
    %6723 = vmatpush.msra.mxu0 %v1539
    %6724 = vmatpush.msra.mxu0 %v1538
    %6725 = vmatpush.msra.mxu0 %v1537
    %6726 = vmatpush.msra.mxu0 %v1536
    %6727 = vmatpush.msra.mxu0 %v1535
    %6728 = vmatpush.msra.mxu0 %v1534
    %6729 = vmatpush.msra.mxu0 %v1533
    %6730 = vmatpush.msra.mxu0 %v1532
    %6731 = vmatpush.msra.mxu0 %v1531
    %6732 = vmatpush.msra.mxu0 %v1530
    %6733 = vmatpush.msra.mxu0 %v1529
    %6734 = vmatpush.msra.mxu0 %v1528
    %6735 = vmatpush.msra.mxu0 %v1527
    %6736 = vmatpush.msra.mxu0 %v1526
    %6737 = vmatpush.msra.mxu0 %v1525
    %6738 = vmatpush.msra.mxu0 %v1524
    %6739 = vmatmul.f32.gmra.mxu0 %v4550
    %v6740 = vpop.f32.mrf.mxu0
    %v6741 = vadd.f32 %v6721, %v6740
    %6742 = vdwg.mxu0
    %6743 = vmatpush.msra.mxu0 %v1555
    %6744 = vmatpush.msra.mxu0 %v1554
    %6745 = vmatpush.msra.mxu0 %v1553
    %6746 = vmatpush.msra.mxu0 %v1552
    %6747 = vmatpush.msra.mxu0 %v1551
    %6748 = vmatpush.msra.mxu0 %v1550
    %6749 = vmatpush.msra.mxu0 %v1549
    %6750 = vmatpush.msra.mxu0 %v1548
    %6751 = vmatpush.msra.mxu0 %v1547
    %6752 = vmatpush.msra.mxu0 %v1546
    %6753 = vmatpush.msra.mxu0 %v1545
    %6754 = vmatpush.msra.mxu0 %v1544
    %6755 = vmatpush.msra.mxu0 %v1543
    %6756 = vmatpush.msra.mxu0 %v1542
    %6757 = vmatpush.msra.mxu0 %v1541
    %6758 = vmatpush.msra.mxu0 %v1540
    %6759 = vmatmul.f32.gmra.mxu0 %v4551
    %v6760 = vpop.f32.mrf.mxu0
    %v6761 = vadd.f32 %v6741, %v6760
    %6762 = vdwg.mxu0
    %6763 = vmatpush.msra.mxu0 %v1571
    %6764 = vmatpush.msra.mxu0 %v1570
    %6765 = vmatpush.msra.mxu0 %v1569
    %6766 = vmatpush.msra.mxu0 %v1568
    %6767 = vmatpush.msra.mxu0 %v1567
    %6768 = vmatpush.msra.mxu0 %v1566
    %6769 = vmatpush.msra.mxu0 %v1565
    %6770 = vmatpush.msra.mxu0 %v1564
    %6771 = vmatpush.msra.mxu0 %v1563
    %6772 = vmatpush.msra.mxu0 %v1562
    %6773 = vmatpush.msra.mxu0 %v1561
    %6774 = vmatpush.msra.mxu0 %v1560
    %6775 = vmatpush.msra.mxu0 %v1559
    %6776 = vmatpush.msra.mxu0 %v1558
    %6777 = vmatpush.msra.mxu0 %v1557
    %6778 = vmatpush.msra.mxu0 %v1556
    %6779 = vmatmul.f32.gmra.mxu0 %v4552
    %v6780 = vpop.f32.mrf.mxu0
    %v6781 = vadd.f32 %v6761, %v6780
    %6782 = vdwg.mxu0
    %6783 = vmatpush.msra.mxu0 %v1587
    %6784 = vmatpush.msra.mxu0 %v1586
    %6785 = vmatpush.msra.mxu0 %v1585
    %6786 = vmatpush.msra.mxu0 %v1584
    %6787 = vmatpush.msra.mxu0 %v1583
    %6788 = vmatpush.msra.mxu0 %v1582
    %6789 = vmatpush.msra.mxu0 %v1581
    %6790 = vmatpush.msra.mxu0 %v1580
    %6791 = vmatpush.msra.mxu0 %v1579
    %6792 = vmatpush.msra.mxu0 %v1578
    %6793 = vmatpush.msra.mxu0 %v1577
    %6794 = vmatpush.msra.mxu0 %v1576
    %6795 = vmatpush.msra.mxu0 %v1575
    %6796 = vmatpush.msra.mxu0 %v1574
    %6797 = vmatpush.msra.mxu0 %v1573
    %6798 = vmatpush.msra.mxu0 %v1572
    %6799 = vmatmul.f32.gmra.mxu0 %v4553
    %v6800 = vpop.f32.mrf.mxu0
    %v6801 = vadd.f32 %v6781, %v6800
    %6802 = vdwg.mxu0
    %6803 = vmatpush.msra.mxu0 %v1603
    %6804 = vmatpush.msra.mxu0 %v1602
    %6805 = vmatpush.msra.mxu0 %v1601
    %6806 = vmatpush.msra.mxu0 %v1600
    %6807 = vmatpush.msra.mxu0 %v1599
    %6808 = vmatpush.msra.mxu0 %v1598
    %6809 = vmatpush.msra.mxu0 %v1597
    %6810 = vmatpush.msra.mxu0 %v1596
    %6811 = vmatpush.msra.mxu0 %v1595
    %6812 = vmatpush.msra.mxu0 %v1594
    %6813 = vmatpush.msra.mxu0 %v1593
    %6814 = vmatpush.msra.mxu0 %v1592
    %6815 = vmatpush.msra.mxu0 %v1591
    %6816 = vmatpush.msra.mxu0 %v1590
    %6817 = vmatpush.msra.mxu0 %v1589
    %6818 = vmatpush.msra.mxu0 %v1588
    %6819 = vmatmul.f32.gmra.mxu0 %v4554
    %v6820 = vpop.f32.mrf.mxu0
    %v6821 = vadd.f32 %v6801, %v6820
    %6822 = vdwg.mxu0
    %6823 = vmatpush.msra.mxu0 %v1619
    %6824 = vmatpush.msra.mxu0 %v1618
    %6825 = vmatpush.msra.mxu0 %v1617
    %6826 = vmatpush.msra.mxu0 %v1616
    %6827 = vmatpush.msra.mxu0 %v1615
    %6828 = vmatpush.msra.mxu0 %v1614
    %6829 = vmatpush.msra.mxu0 %v1613
    %6830 = vmatpush.msra.mxu0 %v1612
    %6831 = vmatpush.msra.mxu0 %v1611
    %6832 = vmatpush.msra.mxu0 %v1610
    %6833 = vmatpush.msra.mxu0 %v1609
    %6834 = vmatpush.msra.mxu0 %v1608
    %6835 = vmatpush.msra.mxu0 %v1607
    %6836 = vmatpush.msra.mxu0 %v1606
    %6837 = vmatpush.msra.mxu0 %v1605
    %6838 = vmatpush.msra.mxu0 %v1604
    %6839 = vmatmul.f32.gmra.mxu0 %v4559
    %v6840 = vpop.f32.mrf.mxu0
    %v6841 = vadd.f32 %v6821, %v6840
    %6842 = vdwg.mxu0
    %6843 = vmatpush.msra.mxu0 %v1635
    %6844 = vmatpush.msra.mxu0 %v1634
    %6845 = vmatpush.msra.mxu0 %v1633
    %6846 = vmatpush.msra.mxu0 %v1632
    %6847 = vmatpush.msra.mxu0 %v1631
    %6848 = vmatpush.msra.mxu0 %v1630
    %6849 = vmatpush.msra.mxu0 %v1629
    %6850 = vmatpush.msra.mxu0 %v1628
    %6851 = vmatpush.msra.mxu0 %v1627
    %6852 = vmatpush.msra.mxu0 %v1626
    %6853 = vmatpush.msra.mxu0 %v1625
    %6854 = vmatpush.msra.mxu0 %v1624
    %6855 = vmatpush.msra.mxu0 %v1623
    %6856 = vmatpush.msra.mxu0 %v1622
    %6857 = vmatpush.msra.mxu0 %v1621
    %6858 = vmatpush.msra.mxu0 %v1620
    %6859 = vmatmul.f32.gmra.mxu0 %v4560
    %v6860 = vpop.f32.mrf.mxu0
    %v6861 = vadd.f32 %v6841, %v6860
    %6862 = vdwg.mxu0
    %6863 = vmatpush.msra.mxu0 %v1651
    %6864 = vmatpush.msra.mxu0 %v1650
    %6865 = vmatpush.msra.mxu0 %v1649
    %6866 = vmatpush.msra.mxu0 %v1648
    %6867 = vmatpush.msra.mxu0 %v1647
    %6868 = vmatpush.msra.mxu0 %v1646
    %6869 = vmatpush.msra.mxu0 %v1645
    %6870 = vmatpush.msra.mxu0 %v1644
    %6871 = vmatpush.msra.mxu0 %v1643
    %6872 = vmatpush.msra.mxu0 %v1642
    %6873 = vmatpush.msra.mxu0 %v1641
    %6874 = vmatpush.msra.mxu0 %v1640
    %6875 = vmatpush.msra.mxu0 %v1639
    %6876 = vmatpush.msra.mxu0 %v1638
    %6877 = vmatpush.msra.mxu0 %v1637
    %6878 = vmatpush.msra.mxu0 %v1636
    %6879 = vmatmul.f32.gmra.mxu0 %v4561
    %v6880 = vpop.f32.mrf.mxu0
    %v6881 = vadd.f32 %v6861, %v6880
    %6882 = vdwg.mxu0
    %6883 = vmatpush.msra.mxu0 %v1667
    %6884 = vmatpush.msra.mxu0 %v1666
    %6885 = vmatpush.msra.mxu0 %v1665
    %6886 = vmatpush.msra.mxu0 %v1664
    %6887 = vmatpush.msra.mxu0 %v1663
    %6888 = vmatpush.msra.mxu0 %v1662
    %6889 = vmatpush.msra.mxu0 %v1661
    %6890 = vmatpush.msra.mxu0 %v1660
    %6891 = vmatpush.msra.mxu0 %v1659
    %6892 = vmatpush.msra.mxu0 %v1658
    %6893 = vmatpush.msra.mxu0 %v1657
    %6894 = vmatpush.msra.mxu0 %v1656
    %6895 = vmatpush.msra.mxu0 %v1655
    %6896 = vmatpush.msra.mxu0 %v1654
    %6897 = vmatpush.msra.mxu0 %v1653
    %6898 = vmatpush.msra.mxu0 %v1652
    %6899 = vmatmul.f32.gmra.mxu0 %v4562
    %v6900 = vpop.f32.mrf.mxu0
    %v6901 = vadd.f32 %v6881, %v6900
    %6902 = vdwg.mxu0
    %6903 = vmatpush.msra.mxu0 %v1683
    %6904 = vmatpush.msra.mxu0 %v1682
    %6905 = vmatpush.msra.mxu0 %v1681
    %6906 = vmatpush.msra.mxu0 %v1680
    %6907 = vmatpush.msra.mxu0 %v1679
    %6908 = vmatpush.msra.mxu0 %v1678
    %6909 = vmatpush.msra.mxu0 %v1677
    %6910 = vmatpush.msra.mxu0 %v1676
    %6911 = vmatpush.msra.mxu0 %v1675
    %6912 = vmatpush.msra.mxu0 %v1674
    %6913 = vmatpush.msra.mxu0 %v1673
    %6914 = vmatpush.msra.mxu0 %v1672
    %6915 = vmatpush.msra.mxu0 %v1671
    %6916 = vmatpush.msra.mxu0 %v1670
    %6917 = vmatpush.msra.mxu0 %v1669
    %6918 = vmatpush.msra.mxu0 %v1668
    %6919 = vmatmul.f32.gmra.mxu0 %v4563
    %v6920 = vpop.f32.mrf.mxu0
    %v6921 = vadd.f32 %v6901, %v6920
    %6922 = vdwg.mxu0
    %6923 = vmatpush.msra.mxu0 %v1699
    %6924 = vmatpush.msra.mxu0 %v1698
    %6925 = vmatpush.msra.mxu0 %v1697
    %6926 = vmatpush.msra.mxu0 %v1696
    %6927 = vmatpush.msra.mxu0 %v1695
    %6928 = vmatpush.msra.mxu0 %v1694
    %6929 = vmatpush.msra.mxu0 %v1693
    %6930 = vmatpush.msra.mxu0 %v1692
    %6931 = vmatpush.msra.mxu0 %v1691
    %6932 = vmatpush.msra.mxu0 %v1690
    %6933 = vmatpush.msra.mxu0 %v1689
    %6934 = vmatpush.msra.mxu0 %v1688
    %6935 = vmatpush.msra.mxu0 %v1687
    %6936 = vmatpush.msra.mxu0 %v1686
    %6937 = vmatpush.msra.mxu0 %v1685
    %6938 = vmatpush.msra.mxu0 %v1684
    %6939 = vmatmul.f32.gmra.mxu0 %v4564
    %v6940 = vpop.f32.mrf.mxu0
    %v6941 = vadd.f32 %v6921, %v6940
    %6942 = vdwg.mxu0
    %6943 = vmatpush.msra.mxu0 %v1715
    %6944 = vmatpush.msra.mxu0 %v1714
    %6945 = vmatpush.msra.mxu0 %v1713
    %6946 = vmatpush.msra.mxu0 %v1712
    %6947 = vmatpush.msra.mxu0 %v1711
    %6948 = vmatpush.msra.mxu0 %v1710
    %6949 = vmatpush.msra.mxu0 %v1709
    %6950 = vmatpush.msra.mxu0 %v1708
    %6951 = vmatpush.msra.mxu0 %v1707
    %6952 = vmatpush.msra.mxu0 %v1706
    %6953 = vmatpush.msra.mxu0 %v1705
    %6954 = vmatpush.msra.mxu0 %v1704
    %6955 = vmatpush.msra.mxu0 %v1703
    %6956 = vmatpush.msra.mxu0 %v1702
    %6957 = vmatpush.msra.mxu0 %v1701
    %6958 = vmatpush.msra.mxu0 %v1700
    %6959 = vmatmul.f32.gmra.mxu0 %v4565
    %v6960 = vpop.f32.mrf.mxu0
    %v6961 = vadd.f32 %v6941, %v6960
    %6962 = vdwg.mxu0
    %6963 = vmatpush.msra.mxu0 %v1731
    %6964 = vmatpush.msra.mxu0 %v1730
    %6965 = vmatpush.msra.mxu0 %v1729
    %6966 = vmatpush.msra.mxu0 %v1728
    %6967 = vmatpush.msra.mxu0 %v1727
    %6968 = vmatpush.msra.mxu0 %v1726
    %6969 = vmatpush.msra.mxu0 %v1725
    %6970 = vmatpush.msra.mxu0 %v1724
    %6971 = vmatpush.msra.mxu0 %v1723
    %6972 = vmatpush.msra.mxu0 %v1722
    %6973 = vmatpush.msra.mxu0 %v1721
    %6974 = vmatpush.msra.mxu0 %v1720
    %6975 = vmatpush.msra.mxu0 %v1719
    %6976 = vmatpush.msra.mxu0 %v1718
    %6977 = vmatpush.msra.mxu0 %v1717
    %6978 = vmatpush.msra.mxu0 %v1716
    %6979 = vmatmul.f32.gmra.mxu0 %v4566
    %v6980 = vpop.f32.mrf.mxu0
    %v6981 = vadd.f32 %v6961, %v6980
    %6982 = vdwg.mxu0
    %6983 = vmatpush.msra.mxu0 %v1747
    %6984 = vmatpush.msra.mxu0 %v1746
    %6985 = vmatpush.msra.mxu0 %v1745
    %6986 = vmatpush.msra.mxu0 %v1744
    %6987 = vmatpush.msra.mxu0 %v1743
    %6988 = vmatpush.msra.mxu0 %v1742
    %6989 = vmatpush.msra.mxu0 %v1741
    %6990 = vmatpush.msra.mxu0 %v1740
    %6991 = vmatpush.msra.mxu0 %v1739
    %6992 = vmatpush.msra.mxu0 %v1738
    %6993 = vmatpush.msra.mxu0 %v1737
    %6994 = vmatpush.msra.mxu0 %v1736
    %6995 = vmatpush.msra.mxu0 %v1735
    %6996 = vmatpush.msra.mxu0 %v1734
    %6997 = vmatpush.msra.mxu0 %v1733
    %6998 = vmatpush.msra.mxu0 %v1732
    %6999 = vmatmul.f32.gmra.mxu0 %v4571
    %v7000 = vpop.f32.mrf.mxu0
    %v7001 = vadd.f32 %v6981, %v7000
    %7002 = vdwg.mxu0
    %7003 = vmatpush.msra.mxu0 %v1763
    %7004 = vmatpush.msra.mxu0 %v1762
    %7005 = vmatpush.msra.mxu0 %v1761
    %7006 = vmatpush.msra.mxu0 %v1760
    %7007 = vmatpush.msra.mxu0 %v1759
    %7008 = vmatpush.msra.mxu0 %v1758
    %7009 = vmatpush.msra.mxu0 %v1757
    %7010 = vmatpush.msra.mxu0 %v1756
    %7011 = vmatpush.msra.mxu0 %v1755
    %7012 = vmatpush.msra.mxu0 %v1754
    %7013 = vmatpush.msra.mxu0 %v1753
    %7014 = vmatpush.msra.mxu0 %v1752
    %7015 = vmatpush.msra.mxu0 %v1751
    %7016 = vmatpush.msra.mxu0 %v1750
    %7017 = vmatpush.msra.mxu0 %v1749
    %7018 = vmatpush.msra.mxu0 %v1748
    %7019 = vmatmul.f32.gmra.mxu0 %v4572
    %v7020 = vpop.f32.mrf.mxu0
    %v7021 = vadd.f32 %v7001, %v7020
    %7022 = vdwg.mxu0
    %7023 = vmatpush.msra.mxu0 %v1779
    %7024 = vmatpush.msra.mxu0 %v1778
    %7025 = vmatpush.msra.mxu0 %v1777
    %7026 = vmatpush.msra.mxu0 %v1776
    %7027 = vmatpush.msra.mxu0 %v1775
    %7028 = vmatpush.msra.mxu0 %v1774
    %7029 = vmatpush.msra.mxu0 %v1773
    %7030 = vmatpush.msra.mxu0 %v1772
    %7031 = vmatpush.msra.mxu0 %v1771
    %7032 = vmatpush.msra.mxu0 %v1770
    %7033 = vmatpush.msra.mxu0 %v1769
    %7034 = vmatpush.msra.mxu0 %v1768
    %7035 = vmatpush.msra.mxu0 %v1767
    %7036 = vmatpush.msra.mxu0 %v1766
    %7037 = vmatpush.msra.mxu0 %v1765
    %7038 = vmatpush.msra.mxu0 %v1764
    %7039 = vmatmul.f32.gmra.mxu0 %v4573
    %v7040 = vpop.f32.mrf.mxu0
    %v7041 = vadd.f32 %v7021, %v7040
    %7042 = vdwg.mxu0
    %7043 = vmatpush.msra.mxu0 %v1795
    %7044 = vmatpush.msra.mxu0 %v1794
    %7045 = vmatpush.msra.mxu0 %v1793
    %7046 = vmatpush.msra.mxu0 %v1792
    %7047 = vmatpush.msra.mxu0 %v1791
    %7048 = vmatpush.msra.mxu0 %v1790
    %7049 = vmatpush.msra.mxu0 %v1789
    %7050 = vmatpush.msra.mxu0 %v1788
    %7051 = vmatpush.msra.mxu0 %v1787
    %7052 = vmatpush.msra.mxu0 %v1786
    %7053 = vmatpush.msra.mxu0 %v1785
    %7054 = vmatpush.msra.mxu0 %v1784
    %7055 = vmatpush.msra.mxu0 %v1783
    %7056 = vmatpush.msra.mxu0 %v1782
    %7057 = vmatpush.msra.mxu0 %v1781
    %7058 = vmatpush.msra.mxu0 %v1780
    %7059 = vmatmul.f32.gmra.mxu0 %v4574
    %v7060 = vpop.f32.mrf.mxu0
    %v7061 = vadd.f32 %v7041, %v7060
    %7062 = vdwg.mxu0
    %7063 = vmatpush.msra.mxu0 %v1811
    %7064 = vmatpush.msra.mxu0 %v1810
    %7065 = vmatpush.msra.mxu0 %v1809
    %7066 = vmatpush.msra.mxu0 %v1808
    %7067 = vmatpush.msra.mxu0 %v1807
    %7068 = vmatpush.msra.mxu0 %v1806
    %7069 = vmatpush.msra.mxu0 %v1805
    %7070 = vmatpush.msra.mxu0 %v1804
    %7071 = vmatpush.msra.mxu0 %v1803
    %7072 = vmatpush.msra.mxu0 %v1802
    %7073 = vmatpush.msra.mxu0 %v1801
    %7074 = vmatpush.msra.mxu0 %v1800
    %7075 = vmatpush.msra.mxu0 %v1799
    %7076 = vmatpush.msra.mxu0 %v1798
    %7077 = vmatpush.msra.mxu0 %v1797
    %7078 = vmatpush.msra.mxu0 %v1796
    %7079 = vmatmul.f32.gmra.mxu0 %v4575
    %v7080 = vpop.f32.mrf.mxu0
    %v7081 = vadd.f32 %v7061, %v7080
    %7082 = vdwg.mxu0
    %7083 = vmatpush.msra.mxu0 %v1827
    %7084 = vmatpush.msra.mxu0 %v1826
    %7085 = vmatpush.msra.mxu0 %v1825
    %7086 = vmatpush.msra.mxu0 %v1824
    %7087 = vmatpush.msra.mxu0 %v1823
    %7088 = vmatpush.msra.mxu0 %v1822
    %7089 = vmatpush.msra.mxu0 %v1821
    %7090 = vmatpush.msra.mxu0 %v1820
    %7091 = vmatpush.msra.mxu0 %v1819
    %7092 = vmatpush.msra.mxu0 %v1818
    %7093 = vmatpush.msra.mxu0 %v1817
    %7094 = vmatpush.msra.mxu0 %v1816
    %7095 = vmatpush.msra.mxu0 %v1815
    %7096 = vmatpush.msra.mxu0 %v1814
    %7097 = vmatpush.msra.mxu0 %v1813
    %7098 = vmatpush.msra.mxu0 %v1812
    %7099 = vmatmul.f32.gmra.mxu0 %v4576
    %v7100 = vpop.f32.mrf.mxu0
    %v7101 = vadd.f32 %v7081, %v7100
    %7102 = vdwg.mxu0
    %7103 = vmatpush.msra.mxu0 %v1843
    %7104 = vmatpush.msra.mxu0 %v1842
    %7105 = vmatpush.msra.mxu0 %v1841
    %7106 = vmatpush.msra.mxu0 %v1840
    %7107 = vmatpush.msra.mxu0 %v1839
    %7108 = vmatpush.msra.mxu0 %v1838
    %7109 = vmatpush.msra.mxu0 %v1837
    %7110 = vmatpush.msra.mxu0 %v1836
    %7111 = vmatpush.msra.mxu0 %v1835
    %7112 = vmatpush.msra.mxu0 %v1834
    %7113 = vmatpush.msra.mxu0 %v1833
    %7114 = vmatpush.msra.mxu0 %v1832
    %7115 = vmatpush.msra.mxu0 %v1831
    %7116 = vmatpush.msra.mxu0 %v1830
    %7117 = vmatpush.msra.mxu0 %v1829
    %7118 = vmatpush.msra.mxu0 %v1828
    %7119 = vmatmul.f32.gmra.mxu0 %v4577
    %v7120 = vpop.f32.mrf.mxu0
    %v7121 = vadd.f32 %v7101, %v7120
    %7122 = vdwg.mxu0
    %7123 = vmatpush.msra.mxu0 %v1859
    %7124 = vmatpush.msra.mxu0 %v1858
    %7125 = vmatpush.msra.mxu0 %v1857
    %7126 = vmatpush.msra.mxu0 %v1856
    %7127 = vmatpush.msra.mxu0 %v1855
    %7128 = vmatpush.msra.mxu0 %v1854
    %7129 = vmatpush.msra.mxu0 %v1853
    %7130 = vmatpush.msra.mxu0 %v1852
    %7131 = vmatpush.msra.mxu0 %v1851
    %7132 = vmatpush.msra.mxu0 %v1850
    %7133 = vmatpush.msra.mxu0 %v1849
    %7134 = vmatpush.msra.mxu0 %v1848
    %7135 = vmatpush.msra.mxu0 %v1847
    %7136 = vmatpush.msra.mxu0 %v1846
    %7137 = vmatpush.msra.mxu0 %v1845
    %7138 = vmatpush.msra.mxu0 %v1844
    %7139 = vmatmul.f32.gmra.mxu0 %v4578
    %v7140 = vpop.f32.mrf.mxu0
    %v7141 = vadd.f32 %v7121, %v7140
    %7142 = vdwg.mxu0
    %7143 = vmatpush.msra.mxu0 %v1875
    %7144 = vmatpush.msra.mxu0 %v1874
    %7145 = vmatpush.msra.mxu0 %v1873
    %7146 = vmatpush.msra.mxu0 %v1872
    %7147 = vmatpush.msra.mxu0 %v1871
    %7148 = vmatpush.msra.mxu0 %v1870
    %7149 = vmatpush.msra.mxu0 %v1869
    %7150 = vmatpush.msra.mxu0 %v1868
    %7151 = vmatpush.msra.mxu0 %v1867
    %7152 = vmatpush.msra.mxu0 %v1866
    %7153 = vmatpush.msra.mxu0 %v1865
    %7154 = vmatpush.msra.mxu0 %v1864
    %7155 = vmatpush.msra.mxu0 %v1863
    %7156 = vmatpush.msra.mxu0 %v1862
    %7157 = vmatpush.msra.mxu0 %v1861
    %7158 = vmatpush.msra.mxu0 %v1860
    %7159 = vmatmul.f32.gmra.mxu0 %v4583
    %v7160 = vpop.f32.mrf.mxu0
    %v7161 = vadd.f32 %v7141, %v7160
    %7162 = vdwg.mxu0
    %7163 = vmatpush.msra.mxu0 %v1891
    %7164 = vmatpush.msra.mxu0 %v1890
    %7165 = vmatpush.msra.mxu0 %v1889
    %7166 = vmatpush.msra.mxu0 %v1888
    %7167 = vmatpush.msra.mxu0 %v1887
    %7168 = vmatpush.msra.mxu0 %v1886
    %7169 = vmatpush.msra.mxu0 %v1885
    %7170 = vmatpush.msra.mxu0 %v1884
    %7171 = vmatpush.msra.mxu0 %v1883
    %7172 = vmatpush.msra.mxu0 %v1882
    %7173 = vmatpush.msra.mxu0 %v1881
    %7174 = vmatpush.msra.mxu0 %v1880
    %7175 = vmatpush.msra.mxu0 %v1879
    %7176 = vmatpush.msra.mxu0 %v1878
    %7177 = vmatpush.msra.mxu0 %v1877
    %7178 = vmatpush.msra.mxu0 %v1876
    %7179 = vmatmul.f32.gmra.mxu0 %v4584
    %v7180 = vpop.f32.mrf.mxu0
    %v7181 = vadd.f32 %v7161, %v7180
    %7182 = vdwg.mxu0
    %7183 = vmatpush.msra.mxu0 %v1907
    %7184 = vmatpush.msra.mxu0 %v1906
    %7185 = vmatpush.msra.mxu0 %v1905
    %7186 = vmatpush.msra.mxu0 %v1904
    %7187 = vmatpush.msra.mxu0 %v1903
    %7188 = vmatpush.msra.mxu0 %v1902
    %7189 = vmatpush.msra.mxu0 %v1901
    %7190 = vmatpush.msra.mxu0 %v1900
    %7191 = vmatpush.msra.mxu0 %v1899
    %7192 = vmatpush.msra.mxu0 %v1898
    %7193 = vmatpush.msra.mxu0 %v1897
    %7194 = vmatpush.msra.mxu0 %v1896
    %7195 = vmatpush.msra.mxu0 %v1895
    %7196 = vmatpush.msra.mxu0 %v1894
    %7197 = vmatpush.msra.mxu0 %v1893
    %7198 = vmatpush.msra.mxu0 %v1892
    %7199 = vmatmul.f32.gmra.mxu0 %v4585
    %v7200 = vpop.f32.mrf.mxu0
    %v7201 = vadd.f32 %v7181, %v7200
    %7202 = vdwg.mxu0
    %7203 = vmatpush.msra.mxu0 %v1923
    %7204 = vmatpush.msra.mxu0 %v1922
    %7205 = vmatpush.msra.mxu0 %v1921
    %7206 = vmatpush.msra.mxu0 %v1920
    %7207 = vmatpush.msra.mxu0 %v1919
    %7208 = vmatpush.msra.mxu0 %v1918
    %7209 = vmatpush.msra.mxu0 %v1917
    %7210 = vmatpush.msra.mxu0 %v1916
    %7211 = vmatpush.msra.mxu0 %v1915
    %7212 = vmatpush.msra.mxu0 %v1914
    %7213 = vmatpush.msra.mxu0 %v1913
    %7214 = vmatpush.msra.mxu0 %v1912
    %7215 = vmatpush.msra.mxu0 %v1911
    %7216 = vmatpush.msra.mxu0 %v1910
    %7217 = vmatpush.msra.mxu0 %v1909
    %7218 = vmatpush.msra.mxu0 %v1908
    %7219 = vmatmul.f32.gmra.mxu0 %v4586
    %v7220 = vpop.f32.mrf.mxu0
    %v7221 = vadd.f32 %v7201, %v7220
    %7222 = vdwg.mxu0
    %7223 = vmatpush.msra.mxu0 %v1939
    %7224 = vmatpush.msra.mxu0 %v1938
    %7225 = vmatpush.msra.mxu0 %v1937
    %7226 = vmatpush.msra.mxu0 %v1936
    %7227 = vmatpush.msra.mxu0 %v1935
    %7228 = vmatpush.msra.mxu0 %v1934
    %7229 = vmatpush.msra.mxu0 %v1933
    %7230 = vmatpush.msra.mxu0 %v1932
    %7231 = vmatpush.msra.mxu0 %v1931
    %7232 = vmatpush.msra.mxu0 %v1930
    %7233 = vmatpush.msra.mxu0 %v1929
    %7234 = vmatpush.msra.mxu0 %v1928
    %7235 = vmatpush.msra.mxu0 %v1927
    %7236 = vmatpush.msra.mxu0 %v1926
    %7237 = vmatpush.msra.mxu0 %v1925
    %7238 = vmatpush.msra.mxu0 %v1924
    %7239 = vmatmul.f32.gmra.mxu0 %v4587
    %v7240 = vpop.f32.mrf.mxu0
    %v7241 = vadd.f32 %v7221, %v7240
    %7242 = vdwg.mxu0
    %7243 = vmatpush.msra.mxu0 %v1955
    %7244 = vmatpush.msra.mxu0 %v1954
    %7245 = vmatpush.msra.mxu0 %v1953
    %7246 = vmatpush.msra.mxu0 %v1952
    %7247 = vmatpush.msra.mxu0 %v1951
    %7248 = vmatpush.msra.mxu0 %v1950
    %7249 = vmatpush.msra.mxu0 %v1949
    %7250 = vmatpush.msra.mxu0 %v1948
    %7251 = vmatpush.msra.mxu0 %v1947
    %7252 = vmatpush.msra.mxu0 %v1946
    %7253 = vmatpush.msra.mxu0 %v1945
    %7254 = vmatpush.msra.mxu0 %v1944
    %7255 = vmatpush.msra.mxu0 %v1943
    %7256 = vmatpush.msra.mxu0 %v1942
    %7257 = vmatpush.msra.mxu0 %v1941
    %7258 = vmatpush.msra.mxu0 %v1940
    %7259 = vmatmul.f32.gmra.mxu0 %v4588
    %v7260 = vpop.f32.mrf.mxu0
    %v7261 = vadd.f32 %v7241, %v7260
    %7262 = vdwg.mxu0
    %7263 = vmatpush.msra.mxu0 %v1971
    %7264 = vmatpush.msra.mxu0 %v1970
    %7265 = vmatpush.msra.mxu0 %v1969
    %7266 = vmatpush.msra.mxu0 %v1968
    %7267 = vmatpush.msra.mxu0 %v1967
    %7268 = vmatpush.msra.mxu0 %v1966
    %7269 = vmatpush.msra.mxu0 %v1965
    %7270 = vmatpush.msra.mxu0 %v1964
    %7271 = vmatpush.msra.mxu0 %v1963
    %7272 = vmatpush.msra.mxu0 %v1962
    %7273 = vmatpush.msra.mxu0 %v1961
    %7274 = vmatpush.msra.mxu0 %v1960
    %7275 = vmatpush.msra.mxu0 %v1959
    %7276 = vmatpush.msra.mxu0 %v1958
    %7277 = vmatpush.msra.mxu0 %v1957
    %7278 = vmatpush.msra.mxu0 %v1956
    %7279 = vmatmul.f32.gmra.mxu0 %v4589
    %v7280 = vpop.f32.mrf.mxu0
    %v7281 = vadd.f32 %v7261, %v7280
    %7282 = vdwg.mxu0
    %7283 = vmatpush.msra.mxu0 %v1987
    %7284 = vmatpush.msra.mxu0 %v1986
    %7285 = vmatpush.msra.mxu0 %v1985
    %7286 = vmatpush.msra.mxu0 %v1984
    %7287 = vmatpush.msra.mxu0 %v1983
    %7288 = vmatpush.msra.mxu0 %v1982
    %7289 = vmatpush.msra.mxu0 %v1981
    %7290 = vmatpush.msra.mxu0 %v1980
    %7291 = vmatpush.msra.mxu0 %v1979
    %7292 = vmatpush.msra.mxu0 %v1978
    %7293 = vmatpush.msra.mxu0 %v1977
    %7294 = vmatpush.msra.mxu0 %v1976
    %7295 = vmatpush.msra.mxu0 %v1975
    %7296 = vmatpush.msra.mxu0 %v1974
    %7297 = vmatpush.msra.mxu0 %v1973
    %7298 = vmatpush.msra.mxu0 %v1972
    %7299 = vmatmul.f32.gmra.mxu0 %v4590
    %v7300 = vpop.f32.mrf.mxu0
    %v7301 = vadd.f32 %v7281, %v7300
    %7302 = vdwg.mxu0
    %7303 = vmatpush.msra.mxu0 %v2003
    %7304 = vmatpush.msra.mxu0 %v2002
    %7305 = vmatpush.msra.mxu0 %v2001
    %7306 = vmatpush.msra.mxu0 %v2000
    %7307 = vmatpush.msra.mxu0 %v1999
    %7308 = vmatpush.msra.mxu0 %v1998
    %7309 = vmatpush.msra.mxu0 %v1997
    %7310 = vmatpush.msra.mxu0 %v1996
    %7311 = vmatpush.msra.mxu0 %v1995
    %7312 = vmatpush.msra.mxu0 %v1994
    %7313 = vmatpush.msra.mxu0 %v1993
    %7314 = vmatpush.msra.mxu0 %v1992
    %7315 = vmatpush.msra.mxu0 %v1991
    %7316 = vmatpush.msra.mxu0 %v1990
    %7317 = vmatpush.msra.mxu0 %v1989
    %7318 = vmatpush.msra.mxu0 %v1988
    %7319 = vmatmul.f32.gmra.mxu0 %v4595
    %v7320 = vpop.f32.mrf.mxu0
    %v7321 = vadd.f32 %v7301, %v7320
    %7322 = vdwg.mxu0
    %7323 = vmatpush.msra.mxu0 %v2019
    %7324 = vmatpush.msra.mxu0 %v2018
    %7325 = vmatpush.msra.mxu0 %v2017
    %7326 = vmatpush.msra.mxu0 %v2016
    %7327 = vmatpush.msra.mxu0 %v2015
    %7328 = vmatpush.msra.mxu0 %v2014
    %7329 = vmatpush.msra.mxu0 %v2013
    %7330 = vmatpush.msra.mxu0 %v2012
    %7331 = vmatpush.msra.mxu0 %v2011
    %7332 = vmatpush.msra.mxu0 %v2010
    %7333 = vmatpush.msra.mxu0 %v2009
    %7334 = vmatpush.msra.mxu0 %v2008
    %7335 = vmatpush.msra.mxu0 %v2007
    %7336 = vmatpush.msra.mxu0 %v2006
    %7337 = vmatpush.msra.mxu0 %v2005
    %7338 = vmatpush.msra.mxu0 %v2004
    %7339 = vmatmul.f32.gmra.mxu0 %v4596
    %v7340 = vpop.f32.mrf.mxu0
    %v7341 = vadd.f32 %v7321, %v7340
    %7342 = vdwg.mxu0
    %7343 = vmatpush.msra.mxu0 %v2035
    %7344 = vmatpush.msra.mxu0 %v2034
    %7345 = vmatpush.msra.mxu0 %v2033
    %7346 = vmatpush.msra.mxu0 %v2032
    %7347 = vmatpush.msra.mxu0 %v2031
    %7348 = vmatpush.msra.mxu0 %v2030
    %7349 = vmatpush.msra.mxu0 %v2029
    %7350 = vmatpush.msra.mxu0 %v2028
    %7351 = vmatpush.msra.mxu0 %v2027
    %7352 = vmatpush.msra.mxu0 %v2026
    %7353 = vmatpush.msra.mxu0 %v2025
    %7354 = vmatpush.msra.mxu0 %v2024
    %7355 = vmatpush.msra.mxu0 %v2023
    %7356 = vmatpush.msra.mxu0 %v2022
    %7357 = vmatpush.msra.mxu0 %v2021
    %7358 = vmatpush.msra.mxu0 %v2020
    %7359 = vmatmul.f32.gmra.mxu0 %v4597
    %v7360 = vpop.f32.mrf.mxu0
    %v7361 = vadd.f32 %v7341, %v7360
    %7362 = vdwg.mxu0
    %7363 = vmatpush.msra.mxu0 %v2051
    %7364 = vmatpush.msra.mxu0 %v2050
    %7365 = vmatpush.msra.mxu0 %v2049
    %7366 = vmatpush.msra.mxu0 %v2048
    %7367 = vmatpush.msra.mxu0 %v2047
    %7368 = vmatpush.msra.mxu0 %v2046
    %7369 = vmatpush.msra.mxu0 %v2045
    %7370 = vmatpush.msra.mxu0 %v2044
    %7371 = vmatpush.msra.mxu0 %v2043
    %7372 = vmatpush.msra.mxu0 %v2042
    %7373 = vmatpush.msra.mxu0 %v2041
    %7374 = vmatpush.msra.mxu0 %v2040
    %7375 = vmatpush.msra.mxu0 %v2039
    %7376 = vmatpush.msra.mxu0 %v2038
    %7377 = vmatpush.msra.mxu0 %v2037
    %7378 = vmatpush.msra.mxu0 %v2036
    %7379 = vmatmul.f32.gmra.mxu0 %v4598
    %v7380 = vpop.f32.mrf.mxu0
    %v7381 = vadd.f32 %v7361, %v7380
    %7382 = vdwg.mxu0
    %7383 = vmatpush.msra.mxu0 %v2067
    %7384 = vmatpush.msra.mxu0 %v2066
    %7385 = vmatpush.msra.mxu0 %v2065
    %7386 = vmatpush.msra.mxu0 %v2064
    %7387 = vmatpush.msra.mxu0 %v2063
    %7388 = vmatpush.msra.mxu0 %v2062
    %7389 = vmatpush.msra.mxu0 %v2061
    %7390 = vmatpush.msra.mxu0 %v2060
    %7391 = vmatpush.msra.mxu0 %v2059
    %7392 = vmatpush.msra.mxu0 %v2058
    %7393 = vmatpush.msra.mxu0 %v2057
    %7394 = vmatpush.msra.mxu0 %v2056
    %7395 = vmatpush.msra.mxu0 %v2055
    %7396 = vmatpush.msra.mxu0 %v2054
    %7397 = vmatpush.msra.mxu0 %v2053
    %7398 = vmatpush.msra.mxu0 %v2052
    %7399 = vmatmul.f32.gmra.mxu0 %v4599
    %v7400 = vpop.f32.mrf.mxu0
    %v7401 = vadd.f32 %v7381, %v7400
    %7402 = vdwg.mxu0
    %7403 = vmatpush.msra.mxu0 %v2083
    %7404 = vmatpush.msra.mxu0 %v2082
    %7405 = vmatpush.msra.mxu0 %v2081
    %7406 = vmatpush.msra.mxu0 %v2080
    %7407 = vmatpush.msra.mxu0 %v2079
    %7408 = vmatpush.msra.mxu0 %v2078
    %7409 = vmatpush.msra.mxu0 %v2077
    %7410 = vmatpush.msra.mxu0 %v2076
    %7411 = vmatpush.msra.mxu0 %v2075
    %7412 = vmatpush.msra.mxu0 %v2074
    %7413 = vmatpush.msra.mxu0 %v2073
    %7414 = vmatpush.msra.mxu0 %v2072
    %7415 = vmatpush.msra.mxu0 %v2071
    %7416 = vmatpush.msra.mxu0 %v2070
    %7417 = vmatpush.msra.mxu0 %v2069
    %7418 = vmatpush.msra.mxu0 %v2068
    %7419 = vmatmul.f32.gmra.mxu0 %v4600
    %v7420 = vpop.f32.mrf.mxu0
    %v7421 = vadd.f32 %v7401, %v7420
    %7422 = vdwg.mxu0
    %7423 = vmatpush.msra.mxu0 %v2099
    %7424 = vmatpush.msra.mxu0 %v2098
    %7425 = vmatpush.msra.mxu0 %v2097
    %7426 = vmatpush.msra.mxu0 %v2096
    %7427 = vmatpush.msra.mxu0 %v2095
    %7428 = vmatpush.msra.mxu0 %v2094
    %7429 = vmatpush.msra.mxu0 %v2093
    %7430 = vmatpush.msra.mxu0 %v2092
    %7431 = vmatpush.msra.mxu0 %v2091
    %7432 = vmatpush.msra.mxu0 %v2090
    %7433 = vmatpush.msra.mxu0 %v2089
    %7434 = vmatpush.msra.mxu0 %v2088
    %7435 = vmatpush.msra.mxu0 %v2087
    %7436 = vmatpush.msra.mxu0 %v2086
    %7437 = vmatpush.msra.mxu0 %v2085
    %7438 = vmatpush.msra.mxu0 %v2084
    %7439 = vmatmul.f32.gmra.mxu0 %v4601
    %v7440 = vpop.f32.mrf.mxu0
    %v7441 = vadd.f32 %v7421, %v7440
    %7442 = vdwg.mxu0
    %7443 = vmatpush.msra.mxu0 %v2115
    %7444 = vmatpush.msra.mxu0 %v2114
    %7445 = vmatpush.msra.mxu0 %v2113
    %7446 = vmatpush.msra.mxu0 %v2112
    %7447 = vmatpush.msra.mxu0 %v2111
    %7448 = vmatpush.msra.mxu0 %v2110
    %7449 = vmatpush.msra.mxu0 %v2109
    %7450 = vmatpush.msra.mxu0 %v2108
    %7451 = vmatpush.msra.mxu0 %v2107
    %7452 = vmatpush.msra.mxu0 %v2106
    %7453 = vmatpush.msra.mxu0 %v2105
    %7454 = vmatpush.msra.mxu0 %v2104
    %7455 = vmatpush.msra.mxu0 %v2103
    %7456 = vmatpush.msra.mxu0 %v2102
    %7457 = vmatpush.msra.mxu0 %v2101
    %7458 = vmatpush.msra.mxu0 %v2100
    %7459 = vmatmul.f32.gmra.mxu0 %v4602
    %v7460 = vpop.f32.mrf.mxu0
    %v7461 = vadd.f32 %v7441, %v7460
    %7462 = vdwg.mxu0
    %7463 = vmatpush.msra.mxu0 %v2131
    %7464 = vmatpush.msra.mxu0 %v2130
    %7465 = vmatpush.msra.mxu0 %v2129
    %7466 = vmatpush.msra.mxu0 %v2128
    %7467 = vmatpush.msra.mxu0 %v2127
    %7468 = vmatpush.msra.mxu0 %v2126
    %7469 = vmatpush.msra.mxu0 %v2125
    %7470 = vmatpush.msra.mxu0 %v2124
    %7471 = vmatpush.msra.mxu0 %v2123
    %7472 = vmatpush.msra.mxu0 %v2122
    %7473 = vmatpush.msra.mxu0 %v2121
    %7474 = vmatpush.msra.mxu0 %v2120
    %7475 = vmatpush.msra.mxu0 %v2119
    %7476 = vmatpush.msra.mxu0 %v2118
    %7477 = vmatpush.msra.mxu0 %v2117
    %7478 = vmatpush.msra.mxu0 %v2116
    %7479 = vmatmul.f32.gmra.mxu0 %v4607
    %v7480 = vpop.f32.mrf.mxu0
    %v7481 = vadd.f32 %v7461, %v7480
    %7482 = vdwg.mxu0
    %7483 = vmatpush.msra.mxu0 %v2147
    %7484 = vmatpush.msra.mxu0 %v2146
    %7485 = vmatpush.msra.mxu0 %v2145
    %7486 = vmatpush.msra.mxu0 %v2144
    %7487 = vmatpush.msra.mxu0 %v2143
    %7488 = vmatpush.msra.mxu0 %v2142
    %7489 = vmatpush.msra.mxu0 %v2141
    %7490 = vmatpush.msra.mxu0 %v2140
    %7491 = vmatpush.msra.mxu0 %v2139
    %7492 = vmatpush.msra.mxu0 %v2138
    %7493 = vmatpush.msra.mxu0 %v2137
    %7494 = vmatpush.msra.mxu0 %v2136
    %7495 = vmatpush.msra.mxu0 %v2135
    %7496 = vmatpush.msra.mxu0 %v2134
    %7497 = vmatpush.msra.mxu0 %v2133
    %7498 = vmatpush.msra.mxu0 %v2132
    %7499 = vmatmul.f32.gmra.mxu0 %v4608
    %v7500 = vpop.f32.mrf.mxu0
    %v7501 = vadd.f32 %v7481, %v7500
    %7502 = vdwg.mxu0
    %7503 = vmatpush.msra.mxu0 %v2163
    %7504 = vmatpush.msra.mxu0 %v2162
    %7505 = vmatpush.msra.mxu0 %v2161
    %7506 = vmatpush.msra.mxu0 %v2160
    %7507 = vmatpush.msra.mxu0 %v2159
    %7508 = vmatpush.msra.mxu0 %v2158
    %7509 = vmatpush.msra.mxu0 %v2157
    %7510 = vmatpush.msra.mxu0 %v2156
    %7511 = vmatpush.msra.mxu0 %v2155
    %7512 = vmatpush.msra.mxu0 %v2154
    %7513 = vmatpush.msra.mxu0 %v2153
    %7514 = vmatpush.msra.mxu0 %v2152
    %7515 = vmatpush.msra.mxu0 %v2151
    %7516 = vmatpush.msra.mxu0 %v2150
    %7517 = vmatpush.msra.mxu0 %v2149
    %7518 = vmatpush.msra.mxu0 %v2148
    %7519 = vmatmul.f32.gmra.mxu0 %v4609
    %v7520 = vpop.f32.mrf.mxu0
    %v7521 = vadd.f32 %v7501, %v7520
    %7522 = vdwg.mxu0
    %7523 = vmatpush.msra.mxu0 %v2179
    %7524 = vmatpush.msra.mxu0 %v2178
    %7525 = vmatpush.msra.mxu0 %v2177
    %7526 = vmatpush.msra.mxu0 %v2176
    %7527 = vmatpush.msra.mxu0 %v2175
    %7528 = vmatpush.msra.mxu0 %v2174
    %7529 = vmatpush.msra.mxu0 %v2173
    %7530 = vmatpush.msra.mxu0 %v2172
    %7531 = vmatpush.msra.mxu0 %v2171
    %7532 = vmatpush.msra.mxu0 %v2170
    %7533 = vmatpush.msra.mxu0 %v2169
    %7534 = vmatpush.msra.mxu0 %v2168
    %7535 = vmatpush.msra.mxu0 %v2167
    %7536 = vmatpush.msra.mxu0 %v2166
    %7537 = vmatpush.msra.mxu0 %v2165
    %7538 = vmatpush.msra.mxu0 %v2164
    %7539 = vmatmul.f32.gmra.mxu0 %v4610
    %v7540 = vpop.f32.mrf.mxu0
    %v7541 = vadd.f32 %v7521, %v7540
    %7542 = vdwg.mxu0
    %7543 = vmatpush.msra.mxu0 %v2195
    %7544 = vmatpush.msra.mxu0 %v2194
    %7545 = vmatpush.msra.mxu0 %v2193
    %7546 = vmatpush.msra.mxu0 %v2192
    %7547 = vmatpush.msra.mxu0 %v2191
    %7548 = vmatpush.msra.mxu0 %v2190
    %7549 = vmatpush.msra.mxu0 %v2189
    %7550 = vmatpush.msra.mxu0 %v2188
    %7551 = vmatpush.msra.mxu0 %v2187
    %7552 = vmatpush.msra.mxu0 %v2186
    %7553 = vmatpush.msra.mxu0 %v2185
    %7554 = vmatpush.msra.mxu0 %v2184
    %7555 = vmatpush.msra.mxu0 %v2183
    %7556 = vmatpush.msra.mxu0 %v2182
    %7557 = vmatpush.msra.mxu0 %v2181
    %7558 = vmatpush.msra.mxu0 %v2180
    %7559 = vmatmul.f32.gmra.mxu0 %v4611
    %v7560 = vpop.f32.mrf.mxu0
    %v7561 = vadd.f32 %v7541, %v7560
    %7562 = vdwg.mxu0
    %7563 = vmatpush.msra.mxu0 %v2211
    %7564 = vmatpush.msra.mxu0 %v2210
    %7565 = vmatpush.msra.mxu0 %v2209
    %7566 = vmatpush.msra.mxu0 %v2208
    %7567 = vmatpush.msra.mxu0 %v2207
    %7568 = vmatpush.msra.mxu0 %v2206
    %7569 = vmatpush.msra.mxu0 %v2205
    %7570 = vmatpush.msra.mxu0 %v2204
    %7571 = vmatpush.msra.mxu0 %v2203
    %7572 = vmatpush.msra.mxu0 %v2202
    %7573 = vmatpush.msra.mxu0 %v2201
    %7574 = vmatpush.msra.mxu0 %v2200
    %7575 = vmatpush.msra.mxu0 %v2199
    %7576 = vmatpush.msra.mxu0 %v2198
    %7577 = vmatpush.msra.mxu0 %v2197
    %7578 = vmatpush.msra.mxu0 %v2196
    %7579 = vmatmul.f32.gmra.mxu0 %v4612
    %v7580 = vpop.f32.mrf.mxu0
    %v7581 = vadd.f32 %v7561, %v7580
    %7582 = vdwg.mxu0
    %7583 = vmatpush.msra.mxu0 %v2227
    %7584 = vmatpush.msra.mxu0 %v2226
    %7585 = vmatpush.msra.mxu0 %v2225
    %7586 = vmatpush.msra.mxu0 %v2224
    %7587 = vmatpush.msra.mxu0 %v2223
    %7588 = vmatpush.msra.mxu0 %v2222
    %7589 = vmatpush.msra.mxu0 %v2221
    %7590 = vmatpush.msra.mxu0 %v2220
    %7591 = vmatpush.msra.mxu0 %v2219
    %7592 = vmatpush.msra.mxu0 %v2218
    %7593 = vmatpush.msra.mxu0 %v2217
    %7594 = vmatpush.msra.mxu0 %v2216
    %7595 = vmatpush.msra.mxu0 %v2215
    %7596 = vmatpush.msra.mxu0 %v2214
    %7597 = vmatpush.msra.mxu0 %v2213
    %7598 = vmatpush.msra.mxu0 %v2212
    %7599 = vmatmul.f32.gmra.mxu0 %v4613
    %v7600 = vpop.f32.mrf.mxu0
    %v7601 = vadd.f32 %v7581, %v7600
    %7602 = vdwg.mxu0
    %7603 = vmatpush.msra.mxu0 %v2243
    %7604 = vmatpush.msra.mxu0 %v2242
    %7605 = vmatpush.msra.mxu0 %v2241
    %7606 = vmatpush.msra.mxu0 %v2240
    %7607 = vmatpush.msra.mxu0 %v2239
    %7608 = vmatpush.msra.mxu0 %v2238
    %7609 = vmatpush.msra.mxu0 %v2237
    %7610 = vmatpush.msra.mxu0 %v2236
    %7611 = vmatpush.msra.mxu0 %v2235
    %7612 = vmatpush.msra.mxu0 %v2234
    %7613 = vmatpush.msra.mxu0 %v2233
    %7614 = vmatpush.msra.mxu0 %v2232
    %7615 = vmatpush.msra.mxu0 %v2231
    %7616 = vmatpush.msra.mxu0 %v2230
    %7617 = vmatpush.msra.mxu0 %v2229
    %7618 = vmatpush.msra.mxu0 %v2228
    %7619 = vmatmul.f32.gmra.mxu0 %v4614
    %v7620 = vpop.f32.mrf.mxu0
    %v7621 = vadd.f32 %v7601, %v7620
    %7622 = vdwg.mxu0
    %7623 = vmatpush.msra.mxu0 %v2259
    %7624 = vmatpush.msra.mxu0 %v2258
    %7625 = vmatpush.msra.mxu0 %v2257
    %7626 = vmatpush.msra.mxu0 %v2256
    %7627 = vmatpush.msra.mxu0 %v2255
    %7628 = vmatpush.msra.mxu0 %v2254
    %7629 = vmatpush.msra.mxu0 %v2253
    %7630 = vmatpush.msra.mxu0 %v2252
    %7631 = vmatpush.msra.mxu0 %v2251
    %7632 = vmatpush.msra.mxu0 %v2250
    %7633 = vmatpush.msra.mxu0 %v2249
    %7634 = vmatpush.msra.mxu0 %v2248
    %7635 = vmatpush.msra.mxu0 %v2247
    %7636 = vmatpush.msra.mxu0 %v2246
    %7637 = vmatpush.msra.mxu0 %v2245
    %7638 = vmatpush.msra.mxu0 %v2244
    %7639 = vmatmul.f32.gmra.mxu0 %v4619
    %v7640 = vpop.f32.mrf.mxu0
    %v7641 = vadd.f32 %v7621, %v7640
    %7642 = vdwg.mxu0
    %7643 = vmatpush.msra.mxu0 %v2275
    %7644 = vmatpush.msra.mxu0 %v2274
    %7645 = vmatpush.msra.mxu0 %v2273
    %7646 = vmatpush.msra.mxu0 %v2272
    %7647 = vmatpush.msra.mxu0 %v2271
    %7648 = vmatpush.msra.mxu0 %v2270
    %7649 = vmatpush.msra.mxu0 %v2269
    %7650 = vmatpush.msra.mxu0 %v2268
    %7651 = vmatpush.msra.mxu0 %v2267
    %7652 = vmatpush.msra.mxu0 %v2266
    %7653 = vmatpush.msra.mxu0 %v2265
    %7654 = vmatpush.msra.mxu0 %v2264
    %7655 = vmatpush.msra.mxu0 %v2263
    %7656 = vmatpush.msra.mxu0 %v2262
    %7657 = vmatpush.msra.mxu0 %v2261
    %7658 = vmatpush.msra.mxu0 %v2260
    %7659 = vmatmul.f32.gmra.mxu0 %v4620
    %v7660 = vpop.f32.mrf.mxu0
    %v7661 = vadd.f32 %v7641, %v7660
    %7662 = vdwg.mxu0
    %7663 = vmatpush.msra.mxu0 %v2291
    %7664 = vmatpush.msra.mxu0 %v2290
    %7665 = vmatpush.msra.mxu0 %v2289
    %7666 = vmatpush.msra.mxu0 %v2288
    %7667 = vmatpush.msra.mxu0 %v2287
    %7668 = vmatpush.msra.mxu0 %v2286
    %7669 = vmatpush.msra.mxu0 %v2285
    %7670 = vmatpush.msra.mxu0 %v2284
    %7671 = vmatpush.msra.mxu0 %v2283
    %7672 = vmatpush.msra.mxu0 %v2282
    %7673 = vmatpush.msra.mxu0 %v2281
    %7674 = vmatpush.msra.mxu0 %v2280
    %7675 = vmatpush.msra.mxu0 %v2279
    %7676 = vmatpush.msra.mxu0 %v2278
    %7677 = vmatpush.msra.mxu0 %v2277
    %7678 = vmatpush.msra.mxu0 %v2276
    %7679 = vmatmul.f32.gmra.mxu0 %v4621
    %v7680 = vpop.f32.mrf.mxu0
    %v7681 = vadd.f32 %v7661, %v7680
    %7682 = vdwg.mxu0
    %7683 = vmatpush.msra.mxu0 %v2307
    %7684 = vmatpush.msra.mxu0 %v2306
    %7685 = vmatpush.msra.mxu0 %v2305
    %7686 = vmatpush.msra.mxu0 %v2304
    %7687 = vmatpush.msra.mxu0 %v2303
    %7688 = vmatpush.msra.mxu0 %v2302
    %7689 = vmatpush.msra.mxu0 %v2301
    %7690 = vmatpush.msra.mxu0 %v2300
    %7691 = vmatpush.msra.mxu0 %v2299
    %7692 = vmatpush.msra.mxu0 %v2298
    %7693 = vmatpush.msra.mxu0 %v2297
    %7694 = vmatpush.msra.mxu0 %v2296
    %7695 = vmatpush.msra.mxu0 %v2295
    %7696 = vmatpush.msra.mxu0 %v2294
    %7697 = vmatpush.msra.mxu0 %v2293
    %7698 = vmatpush.msra.mxu0 %v2292
    %7699 = vmatmul.f32.gmra.mxu0 %v4622
    %v7700 = vpop.f32.mrf.mxu0
    %v7701 = vadd.f32 %v7681, %v7700
    %7702 = vdwg.mxu0
    %7703 = vmatpush.msra.mxu0 %v2323
    %7704 = vmatpush.msra.mxu0 %v2322
    %7705 = vmatpush.msra.mxu0 %v2321
    %7706 = vmatpush.msra.mxu0 %v2320
    %7707 = vmatpush.msra.mxu0 %v2319
    %7708 = vmatpush.msra.mxu0 %v2318
    %7709 = vmatpush.msra.mxu0 %v2317
    %7710 = vmatpush.msra.mxu0 %v2316
    %7711 = vmatpush.msra.mxu0 %v2315
    %7712 = vmatpush.msra.mxu0 %v2314
    %7713 = vmatpush.msra.mxu0 %v2313
    %7714 = vmatpush.msra.mxu0 %v2312
    %7715 = vmatpush.msra.mxu0 %v2311
    %7716 = vmatpush.msra.mxu0 %v2310
    %7717 = vmatpush.msra.mxu0 %v2309
    %7718 = vmatpush.msra.mxu0 %v2308
    %7719 = vmatmul.f32.gmra.mxu0 %v4623
    %v7720 = vpop.f32.mrf.mxu0
    %v7721 = vadd.f32 %v7701, %v7720
    %7722 = vdwg.mxu0
    %7723 = vmatpush.msra.mxu0 %v2339
    %7724 = vmatpush.msra.mxu0 %v2338
    %7725 = vmatpush.msra.mxu0 %v2337
    %7726 = vmatpush.msra.mxu0 %v2336
    %7727 = vmatpush.msra.mxu0 %v2335
    %7728 = vmatpush.msra.mxu0 %v2334
    %7729 = vmatpush.msra.mxu0 %v2333
    %7730 = vmatpush.msra.mxu0 %v2332
    %7731 = vmatpush.msra.mxu0 %v2331
    %7732 = vmatpush.msra.mxu0 %v2330
    %7733 = vmatpush.msra.mxu0 %v2329
    %7734 = vmatpush.msra.mxu0 %v2328
    %7735 = vmatpush.msra.mxu0 %v2327
    %7736 = vmatpush.msra.mxu0 %v2326
    %7737 = vmatpush.msra.mxu0 %v2325
    %7738 = vmatpush.msra.mxu0 %v2324
    %7739 = vmatmul.f32.gmra.mxu0 %v4624
    %v7740 = vpop.f32.mrf.mxu0
    %v7741 = vadd.f32 %v7721, %v7740
    %7742 = vdwg.mxu0
    %7743 = vmatpush.msra.mxu0 %v2355
    %7744 = vmatpush.msra.mxu0 %v2354
    %7745 = vmatpush.msra.mxu0 %v2353
    %7746 = vmatpush.msra.mxu0 %v2352
    %7747 = vmatpush.msra.mxu0 %v2351
    %7748 = vmatpush.msra.mxu0 %v2350
    %7749 = vmatpush.msra.mxu0 %v2349
    %7750 = vmatpush.msra.mxu0 %v2348
    %7751 = vmatpush.msra.mxu0 %v2347
    %7752 = vmatpush.msra.mxu0 %v2346
    %7753 = vmatpush.msra.mxu0 %v2345
    %7754 = vmatpush.msra.mxu0 %v2344
    %7755 = vmatpush.msra.mxu0 %v2343
    %7756 = vmatpush.msra.mxu0 %v2342
    %7757 = vmatpush.msra.mxu0 %v2341
    %7758 = vmatpush.msra.mxu0 %v2340
    %7759 = vmatmul.f32.gmra.mxu0 %v4625
    %v7760 = vpop.f32.mrf.mxu0
    %v7761 = vadd.f32 %v7741, %v7760
    %7762 = vdwg.mxu0
    %7763 = vmatpush.msra.mxu0 %v2371
    %7764 = vmatpush.msra.mxu0 %v2370
    %7765 = vmatpush.msra.mxu0 %v2369
    %7766 = vmatpush.msra.mxu0 %v2368
    %7767 = vmatpush.msra.mxu0 %v2367
    %7768 = vmatpush.msra.mxu0 %v2366
    %7769 = vmatpush.msra.mxu0 %v2365
    %7770 = vmatpush.msra.mxu0 %v2364
    %7771 = vmatpush.msra.mxu0 %v2363
    %7772 = vmatpush.msra.mxu0 %v2362
    %7773 = vmatpush.msra.mxu0 %v2361
    %7774 = vmatpush.msra.mxu0 %v2360
    %7775 = vmatpush.msra.mxu0 %v2359
    %7776 = vmatpush.msra.mxu0 %v2358
    %7777 = vmatpush.msra.mxu0 %v2357
    %7778 = vmatpush.msra.mxu0 %v2356
    %7779 = vmatmul.f32.gmra.mxu0 %v4626
    %v7780 = vpop.f32.mrf.mxu0
    %v7781 = vadd.f32 %v7761, %v7780
    %7782 = vdwg.mxu0
    %7783 = vmatpush.msra.mxu0 %v2387
    %7784 = vmatpush.msra.mxu0 %v2386
    %7785 = vmatpush.msra.mxu0 %v2385
    %7786 = vmatpush.msra.mxu0 %v2384
    %7787 = vmatpush.msra.mxu0 %v2383
    %7788 = vmatpush.msra.mxu0 %v2382
    %7789 = vmatpush.msra.mxu0 %v2381
    %7790 = vmatpush.msra.mxu0 %v2380
    %7791 = vmatpush.msra.mxu0 %v2379
    %7792 = vmatpush.msra.mxu0 %v2378
    %7793 = vmatpush.msra.mxu0 %v2377
    %7794 = vmatpush.msra.mxu0 %v2376
    %7795 = vmatpush.msra.mxu0 %v2375
    %7796 = vmatpush.msra.mxu0 %v2374
    %7797 = vmatpush.msra.mxu0 %v2373
    %7798 = vmatpush.msra.mxu0 %v2372
    %7799 = vmatmul.f32.gmra.mxu0 %v4631
    %v7800 = vpop.f32.mrf.mxu0
    %v7801 = vadd.f32 %v7781, %v7800
    %7802 = vdwg.mxu0
    %7803 = vmatpush.msra.mxu0 %v2403
    %7804 = vmatpush.msra.mxu0 %v2402
    %7805 = vmatpush.msra.mxu0 %v2401
    %7806 = vmatpush.msra.mxu0 %v2400
    %7807 = vmatpush.msra.mxu0 %v2399
    %7808 = vmatpush.msra.mxu0 %v2398
    %7809 = vmatpush.msra.mxu0 %v2397
    %7810 = vmatpush.msra.mxu0 %v2396
    %7811 = vmatpush.msra.mxu0 %v2395
    %7812 = vmatpush.msra.mxu0 %v2394
    %7813 = vmatpush.msra.mxu0 %v2393
    %7814 = vmatpush.msra.mxu0 %v2392
    %7815 = vmatpush.msra.mxu0 %v2391
    %7816 = vmatpush.msra.mxu0 %v2390
    %7817 = vmatpush.msra.mxu0 %v2389
    %7818 = vmatpush.msra.mxu0 %v2388
    %7819 = vmatmul.f32.gmra.mxu0 %v4632
    %v7820 = vpop.f32.mrf.mxu0
    %v7821 = vadd.f32 %v7801, %v7820
    %7822 = vdwg.mxu0
    %7823 = vmatpush.msra.mxu0 %v2419
    %7824 = vmatpush.msra.mxu0 %v2418
    %7825 = vmatpush.msra.mxu0 %v2417
    %7826 = vmatpush.msra.mxu0 %v2416
    %7827 = vmatpush.msra.mxu0 %v2415
    %7828 = vmatpush.msra.mxu0 %v2414
    %7829 = vmatpush.msra.mxu0 %v2413
    %7830 = vmatpush.msra.mxu0 %v2412
    %7831 = vmatpush.msra.mxu0 %v2411
    %7832 = vmatpush.msra.mxu0 %v2410
    %7833 = vmatpush.msra.mxu0 %v2409
    %7834 = vmatpush.msra.mxu0 %v2408
    %7835 = vmatpush.msra.mxu0 %v2407
    %7836 = vmatpush.msra.mxu0 %v2406
    %7837 = vmatpush.msra.mxu0 %v2405
    %7838 = vmatpush.msra.mxu0 %v2404
    %7839 = vmatmul.f32.gmra.mxu0 %v4633
    %v7840 = vpop.f32.mrf.mxu0
    %v7841 = vadd.f32 %v7821, %v7840
    %7842 = vdwg.mxu0
    %7843 = vmatpush.msra.mxu0 %v2435
    %7844 = vmatpush.msra.mxu0 %v2434
    %7845 = vmatpush.msra.mxu0 %v2433
    %7846 = vmatpush.msra.mxu0 %v2432
    %7847 = vmatpush.msra.mxu0 %v2431
    %7848 = vmatpush.msra.mxu0 %v2430
    %7849 = vmatpush.msra.mxu0 %v2429
    %7850 = vmatpush.msra.mxu0 %v2428
    %7851 = vmatpush.msra.mxu0 %v2427
    %7852 = vmatpush.msra.mxu0 %v2426
    %7853 = vmatpush.msra.mxu0 %v2425
    %7854 = vmatpush.msra.mxu0 %v2424
    %7855 = vmatpush.msra.mxu0 %v2423
    %7856 = vmatpush.msra.mxu0 %v2422
    %7857 = vmatpush.msra.mxu0 %v2421
    %7858 = vmatpush.msra.mxu0 %v2420
    %7859 = vmatmul.f32.gmra.mxu0 %v4634
    %v7860 = vpop.f32.mrf.mxu0
    %v7861 = vadd.f32 %v7841, %v7860
    %7862 = vdwg.mxu0
    %7863 = vmatpush.msra.mxu0 %v2451
    %7864 = vmatpush.msra.mxu0 %v2450
    %7865 = vmatpush.msra.mxu0 %v2449
    %7866 = vmatpush.msra.mxu0 %v2448
    %7867 = vmatpush.msra.mxu0 %v2447
    %7868 = vmatpush.msra.mxu0 %v2446
    %7869 = vmatpush.msra.mxu0 %v2445
    %7870 = vmatpush.msra.mxu0 %v2444
    %7871 = vmatpush.msra.mxu0 %v2443
    %7872 = vmatpush.msra.mxu0 %v2442
    %7873 = vmatpush.msra.mxu0 %v2441
    %7874 = vmatpush.msra.mxu0 %v2440
    %7875 = vmatpush.msra.mxu0 %v2439
    %7876 = vmatpush.msra.mxu0 %v2438
    %7877 = vmatpush.msra.mxu0 %v2437
    %7878 = vmatpush.msra.mxu0 %v2436
    %7879 = vmatmul.f32.gmra.mxu0 %v4635
    %v7880 = vpop.f32.mrf.mxu0
    %v7881 = vadd.f32 %v7861, %v7880
    %7882 = vdwg.mxu0
    %7883 = vmatpush.msra.mxu0 %v2467
    %7884 = vmatpush.msra.mxu0 %v2466
    %7885 = vmatpush.msra.mxu0 %v2465
    %7886 = vmatpush.msra.mxu0 %v2464
    %7887 = vmatpush.msra.mxu0 %v2463
    %7888 = vmatpush.msra.mxu0 %v2462
    %7889 = vmatpush.msra.mxu0 %v2461
    %7890 = vmatpush.msra.mxu0 %v2460
    %7891 = vmatpush.msra.mxu0 %v2459
    %7892 = vmatpush.msra.mxu0 %v2458
    %7893 = vmatpush.msra.mxu0 %v2457
    %7894 = vmatpush.msra.mxu0 %v2456
    %7895 = vmatpush.msra.mxu0 %v2455
    %7896 = vmatpush.msra.mxu0 %v2454
    %7897 = vmatpush.msra.mxu0 %v2453
    %7898 = vmatpush.msra.mxu0 %v2452
    %7899 = vmatmul.f32.gmra.mxu0 %v4636
    %v7900 = vpop.f32.mrf.mxu0
    %v7901 = vadd.f32 %v7881, %v7900
    %7902 = vdwg.mxu0
    %7903 = vmatpush.msra.mxu0 %v2483
    %7904 = vmatpush.msra.mxu0 %v2482
    %7905 = vmatpush.msra.mxu0 %v2481
    %7906 = vmatpush.msra.mxu0 %v2480
    %7907 = vmatpush.msra.mxu0 %v2479
    %7908 = vmatpush.msra.mxu0 %v2478
    %7909 = vmatpush.msra.mxu0 %v2477
    %7910 = vmatpush.msra.mxu0 %v2476
    %7911 = vmatpush.msra.mxu0 %v2475
    %7912 = vmatpush.msra.mxu0 %v2474
    %7913 = vmatpush.msra.mxu0 %v2473
    %7914 = vmatpush.msra.mxu0 %v2472
    %7915 = vmatpush.msra.mxu0 %v2471
    %7916 = vmatpush.msra.mxu0 %v2470
    %7917 = vmatpush.msra.mxu0 %v2469
    %7918 = vmatpush.msra.mxu0 %v2468
    %7919 = vmatmul.f32.gmra.mxu0 %v4637
    %v7920 = vpop.f32.mrf.mxu0
    %v7921 = vadd.f32 %v7901, %v7920
    %7922 = vdwg.mxu0
    %7923 = vmatpush.msra.mxu0 %v2499
    %7924 = vmatpush.msra.mxu0 %v2498
    %7925 = vmatpush.msra.mxu0 %v2497
    %7926 = vmatpush.msra.mxu0 %v2496
    %7927 = vmatpush.msra.mxu0 %v2495
    %7928 = vmatpush.msra.mxu0 %v2494
    %7929 = vmatpush.msra.mxu0 %v2493
    %7930 = vmatpush.msra.mxu0 %v2492
    %7931 = vmatpush.msra.mxu0 %v2491
    %7932 = vmatpush.msra.mxu0 %v2490
    %7933 = vmatpush.msra.mxu0 %v2489
    %7934 = vmatpush.msra.mxu0 %v2488
    %7935 = vmatpush.msra.mxu0 %v2487
    %7936 = vmatpush.msra.mxu0 %v2486
    %7937 = vmatpush.msra.mxu0 %v2485
    %7938 = vmatpush.msra.mxu0 %v2484
    %7939 = vmatmul.f32.gmra.mxu0 %v4638
    %v7940 = vpop.f32.mrf.mxu0
    %v7941 = vadd.f32 %v7921, %v7940
    %7942 = vdwg.mxu0
    %7943 = vmatpush.msra.mxu0 %v2515
    %7944 = vmatpush.msra.mxu0 %v2514
    %7945 = vmatpush.msra.mxu0 %v2513
    %7946 = vmatpush.msra.mxu0 %v2512
    %7947 = vmatpush.msra.mxu0 %v2511
    %7948 = vmatpush.msra.mxu0 %v2510
    %7949 = vmatpush.msra.mxu0 %v2509
    %7950 = vmatpush.msra.mxu0 %v2508
    %7951 = vmatpush.msra.mxu0 %v2507
    %7952 = vmatpush.msra.mxu0 %v2506
    %7953 = vmatpush.msra.mxu0 %v2505
    %7954 = vmatpush.msra.mxu0 %v2504
    %7955 = vmatpush.msra.mxu0 %v2503
    %7956 = vmatpush.msra.mxu0 %v2502
    %7957 = vmatpush.msra.mxu0 %v2501
    %7958 = vmatpush.msra.mxu0 %v2500
    %7959 = vmatmul.f32.gmra.mxu0 %v4643
    %v7960 = vpop.f32.mrf.mxu0
    %v7961 = vadd.f32 %v7941, %v7960
    %7962 = vdwg.mxu0
    %7963 = vmatpush.msra.mxu0 %v2531
    %7964 = vmatpush.msra.mxu0 %v2530
    %7965 = vmatpush.msra.mxu0 %v2529
    %7966 = vmatpush.msra.mxu0 %v2528
    %7967 = vmatpush.msra.mxu0 %v2527
    %7968 = vmatpush.msra.mxu0 %v2526
    %7969 = vmatpush.msra.mxu0 %v2525
    %7970 = vmatpush.msra.mxu0 %v2524
    %7971 = vmatpush.msra.mxu0 %v2523
    %7972 = vmatpush.msra.mxu0 %v2522
    %7973 = vmatpush.msra.mxu0 %v2521
    %7974 = vmatpush.msra.mxu0 %v2520
    %7975 = vmatpush.msra.mxu0 %v2519
    %7976 = vmatpush.msra.mxu0 %v2518
    %7977 = vmatpush.msra.mxu0 %v2517
    %7978 = vmatpush.msra.mxu0 %v2516
    %7979 = vmatmul.f32.gmra.mxu0 %v4644
    %v7980 = vpop.f32.mrf.mxu0
    %v7981 = vadd.f32 %v7961, %v7980
    %7982 = vdwg.mxu0
    %7983 = vmatpush.msra.mxu0 %v2547
    %7984 = vmatpush.msra.mxu0 %v2546
    %7985 = vmatpush.msra.mxu0 %v2545
    %7986 = vmatpush.msra.mxu0 %v2544
    %7987 = vmatpush.msra.mxu0 %v2543
    %7988 = vmatpush.msra.mxu0 %v2542
    %7989 = vmatpush.msra.mxu0 %v2541
    %7990 = vmatpush.msra.mxu0 %v2540
    %7991 = vmatpush.msra.mxu0 %v2539
    %7992 = vmatpush.msra.mxu0 %v2538
    %7993 = vmatpush.msra.mxu0 %v2537
    %7994 = vmatpush.msra.mxu0 %v2536
    %7995 = vmatpush.msra.mxu0 %v2535
    %7996 = vmatpush.msra.mxu0 %v2534
    %7997 = vmatpush.msra.mxu0 %v2533
    %7998 = vmatpush.msra.mxu0 %v2532
    %7999 = vmatmul.f32.gmra.mxu0 %v4645
    %v8000 = vpop.f32.mrf.mxu0
    %v8001 = vadd.f32 %v7981, %v8000
    %8002 = vdwg.mxu0
    %8003 = vmatpush.msra.mxu0 %v2563
    %8004 = vmatpush.msra.mxu0 %v2562
    %8005 = vmatpush.msra.mxu0 %v2561
    %8006 = vmatpush.msra.mxu0 %v2560
    %8007 = vmatpush.msra.mxu0 %v2559
    %8008 = vmatpush.msra.mxu0 %v2558
    %8009 = vmatpush.msra.mxu0 %v2557
    %8010 = vmatpush.msra.mxu0 %v2556
    %8011 = vmatpush.msra.mxu0 %v2555
    %8012 = vmatpush.msra.mxu0 %v2554
    %8013 = vmatpush.msra.mxu0 %v2553
    %8014 = vmatpush.msra.mxu0 %v2552
    %8015 = vmatpush.msra.mxu0 %v2551
    %8016 = vmatpush.msra.mxu0 %v2550
    %8017 = vmatpush.msra.mxu0 %v2549
    %8018 = vmatpush.msra.mxu0 %v2548
    %8019 = vmatmul.f32.gmra.mxu0 %v4646
    %v8020 = vpop.f32.mrf.mxu0
    %v8021 = vadd.f32 %v8001, %v8020
    %8022 = vdwg.mxu0
    %8023 = vmatpush.msra.mxu0 %v2579
    %8024 = vmatpush.msra.mxu0 %v2578
    %8025 = vmatpush.msra.mxu0 %v2577
    %8026 = vmatpush.msra.mxu0 %v2576
    %8027 = vmatpush.msra.mxu0 %v2575
    %8028 = vmatpush.msra.mxu0 %v2574
    %8029 = vmatpush.msra.mxu0 %v2573
    %8030 = vmatpush.msra.mxu0 %v2572
    %8031 = vmatpush.msra.mxu0 %v2571
    %8032 = vmatpush.msra.mxu0 %v2570
    %8033 = vmatpush.msra.mxu0 %v2569
    %8034 = vmatpush.msra.mxu0 %v2568
    %8035 = vmatpush.msra.mxu0 %v2567
    %8036 = vmatpush.msra.mxu0 %v2566
    %8037 = vmatpush.msra.mxu0 %v2565
    %8038 = vmatpush.msra.mxu0 %v2564
    %8039 = vmatmul.f32.gmra.mxu0 %v4647
    %v8040 = vpop.f32.mrf.mxu0
    %v8041 = vadd.f32 %v8021, %v8040
    %8042 = vdwg.mxu0
    %8043 = vmatpush.msra.mxu0 %v2595
    %8044 = vmatpush.msra.mxu0 %v2594
    %8045 = vmatpush.msra.mxu0 %v2593
    %8046 = vmatpush.msra.mxu0 %v2592
    %8047 = vmatpush.msra.mxu0 %v2591
    %8048 = vmatpush.msra.mxu0 %v2590
    %8049 = vmatpush.msra.mxu0 %v2589
    %8050 = vmatpush.msra.mxu0 %v2588
    %8051 = vmatpush.msra.mxu0 %v2587
    %8052 = vmatpush.msra.mxu0 %v2586
    %8053 = vmatpush.msra.mxu0 %v2585
    %8054 = vmatpush.msra.mxu0 %v2584
    %8055 = vmatpush.msra.mxu0 %v2583
    %8056 = vmatpush.msra.mxu0 %v2582
    %8057 = vmatpush.msra.mxu0 %v2581
    %8058 = vmatpush.msra.mxu0 %v2580
    %8059 = vmatmul.f32.gmra.mxu0 %v4648
    %v8060 = vpop.f32.mrf.mxu0
    %v8061 = vadd.f32 %v8041, %v8060
    %8062 = vdwg.mxu0
    %8063 = vmatpush.msra.mxu0 %v2611
    %8064 = vmatpush.msra.mxu0 %v2610
    %8065 = vmatpush.msra.mxu0 %v2609
    %8066 = vmatpush.msra.mxu0 %v2608
    %8067 = vmatpush.msra.mxu0 %v2607
    %8068 = vmatpush.msra.mxu0 %v2606
    %8069 = vmatpush.msra.mxu0 %v2605
    %8070 = vmatpush.msra.mxu0 %v2604
    %8071 = vmatpush.msra.mxu0 %v2603
    %8072 = vmatpush.msra.mxu0 %v2602
    %8073 = vmatpush.msra.mxu0 %v2601
    %8074 = vmatpush.msra.mxu0 %v2600
    %8075 = vmatpush.msra.mxu0 %v2599
    %8076 = vmatpush.msra.mxu0 %v2598
    %8077 = vmatpush.msra.mxu0 %v2597
    %8078 = vmatpush.msra.mxu0 %v2596
    %8079 = vmatmul.f32.gmra.mxu0 %v4649
    %v8080 = vpop.f32.mrf.mxu0
    %v8081 = vadd.f32 %v8061, %v8080
    %8082 = vdwg.mxu0
    %8083 = vmatpush.msra.mxu0 %v2627
    %8084 = vmatpush.msra.mxu0 %v2626
    %8085 = vmatpush.msra.mxu0 %v2625
    %8086 = vmatpush.msra.mxu0 %v2624
    %8087 = vmatpush.msra.mxu0 %v2623
    %8088 = vmatpush.msra.mxu0 %v2622
    %8089 = vmatpush.msra.mxu0 %v2621
    %8090 = vmatpush.msra.mxu0 %v2620
    %8091 = vmatpush.msra.mxu0 %v2619
    %8092 = vmatpush.msra.mxu0 %v2618
    %8093 = vmatpush.msra.mxu0 %v2617
    %8094 = vmatpush.msra.mxu0 %v2616
    %8095 = vmatpush.msra.mxu0 %v2615
    %8096 = vmatpush.msra.mxu0 %v2614
    %8097 = vmatpush.msra.mxu0 %v2613
    %8098 = vmatpush.msra.mxu0 %v2612
    %8099 = vmatmul.f32.gmra.mxu0 %v4650
    %v8100 = vpop.f32.mrf.mxu0
    %v8101 = vadd.f32 %v8081, %v8100
    %8102 = vdwg.mxu0
    %8103 = vmatpush.msra.mxu0 %v2643
    %8104 = vmatpush.msra.mxu0 %v2642
    %8105 = vmatpush.msra.mxu0 %v2641
    %8106 = vmatpush.msra.mxu0 %v2640
    %8107 = vmatpush.msra.mxu0 %v2639
    %8108 = vmatpush.msra.mxu0 %v2638
    %8109 = vmatpush.msra.mxu0 %v2637
    %8110 = vmatpush.msra.mxu0 %v2636
    %8111 = vmatpush.msra.mxu0 %v2635
    %8112 = vmatpush.msra.mxu0 %v2634
    %8113 = vmatpush.msra.mxu0 %v2633
    %8114 = vmatpush.msra.mxu0 %v2632
    %8115 = vmatpush.msra.mxu0 %v2631
    %8116 = vmatpush.msra.mxu0 %v2630
    %8117 = vmatpush.msra.mxu0 %v2629
    %8118 = vmatpush.msra.mxu0 %v2628
    %8119 = vmatmul.f32.gmra.mxu0 %v4655
    %v8120 = vpop.f32.mrf.mxu0
    %v8121 = vadd.f32 %v8101, %v8120
    %8122 = vdwg.mxu0
    %8123 = vmatpush.msra.mxu0 %v2659
    %8124 = vmatpush.msra.mxu0 %v2658
    %8125 = vmatpush.msra.mxu0 %v2657
    %8126 = vmatpush.msra.mxu0 %v2656
    %8127 = vmatpush.msra.mxu0 %v2655
    %8128 = vmatpush.msra.mxu0 %v2654
    %8129 = vmatpush.msra.mxu0 %v2653
    %8130 = vmatpush.msra.mxu0 %v2652
    %8131 = vmatpush.msra.mxu0 %v2651
    %8132 = vmatpush.msra.mxu0 %v2650
    %8133 = vmatpush.msra.mxu0 %v2649
    %8134 = vmatpush.msra.mxu0 %v2648
    %8135 = vmatpush.msra.mxu0 %v2647
    %8136 = vmatpush.msra.mxu0 %v2646
    %8137 = vmatpush.msra.mxu0 %v2645
    %8138 = vmatpush.msra.mxu0 %v2644
    %8139 = vmatmul.f32.gmra.mxu0 %v4656
    %v8140 = vpop.f32.mrf.mxu0
    %v8141 = vadd.f32 %v8121, %v8140
    %8142 = vdwg.mxu0
    %8143 = vmatpush.msra.mxu0 %v2675
    %8144 = vmatpush.msra.mxu0 %v2674
    %8145 = vmatpush.msra.mxu0 %v2673
    %8146 = vmatpush.msra.mxu0 %v2672
    %8147 = vmatpush.msra.mxu0 %v2671
    %8148 = vmatpush.msra.mxu0 %v2670
    %8149 = vmatpush.msra.mxu0 %v2669
    %8150 = vmatpush.msra.mxu0 %v2668
    %8151 = vmatpush.msra.mxu0 %v2667
    %8152 = vmatpush.msra.mxu0 %v2666
    %8153 = vmatpush.msra.mxu0 %v2665
    %8154 = vmatpush.msra.mxu0 %v2664
    %8155 = vmatpush.msra.mxu0 %v2663
    %8156 = vmatpush.msra.mxu0 %v2662
    %8157 = vmatpush.msra.mxu0 %v2661
    %8158 = vmatpush.msra.mxu0 %v2660
    %8159 = vmatmul.f32.gmra.mxu0 %v4657
    %v8160 = vpop.f32.mrf.mxu0
    %v8161 = vadd.f32 %v8141, %v8160
    %8162 = vdwg.mxu0
    %8163 = vmatpush.msra.mxu0 %v2691
    %8164 = vmatpush.msra.mxu0 %v2690
    %8165 = vmatpush.msra.mxu0 %v2689
    %8166 = vmatpush.msra.mxu0 %v2688
    %8167 = vmatpush.msra.mxu0 %v2687
    %8168 = vmatpush.msra.mxu0 %v2686
    %8169 = vmatpush.msra.mxu0 %v2685
    %8170 = vmatpush.msra.mxu0 %v2684
    %8171 = vmatpush.msra.mxu0 %v2683
    %8172 = vmatpush.msra.mxu0 %v2682
    %8173 = vmatpush.msra.mxu0 %v2681
    %8174 = vmatpush.msra.mxu0 %v2680
    %8175 = vmatpush.msra.mxu0 %v2679
    %8176 = vmatpush.msra.mxu0 %v2678
    %8177 = vmatpush.msra.mxu0 %v2677
    %8178 = vmatpush.msra.mxu0 %v2676
    %8179 = vmatmul.f32.gmra.mxu0 %v4658
    %v8180 = vpop.f32.mrf.mxu0
    %v8181 = vadd.f32 %v8161, %v8180
    %8182 = vdwg.mxu0
    %8183 = vmatpush.msra.mxu0 %v2707
    %8184 = vmatpush.msra.mxu0 %v2706
    %8185 = vmatpush.msra.mxu0 %v2705
    %8186 = vmatpush.msra.mxu0 %v2704
    %8187 = vmatpush.msra.mxu0 %v2703
    %8188 = vmatpush.msra.mxu0 %v2702
    %8189 = vmatpush.msra.mxu0 %v2701
    %8190 = vmatpush.msra.mxu0 %v2700
    %8191 = vmatpush.msra.mxu0 %v2699
    %8192 = vmatpush.msra.mxu0 %v2698
    %8193 = vmatpush.msra.mxu0 %v2697
    %8194 = vmatpush.msra.mxu0 %v2696
    %8195 = vmatpush.msra.mxu0 %v2695
    %8196 = vmatpush.msra.mxu0 %v2694
    %8197 = vmatpush.msra.mxu0 %v2693
    %8198 = vmatpush.msra.mxu0 %v2692
    %8199 = vmatmul.f32.gmra.mxu0 %v4659
    %v8200 = vpop.f32.mrf.mxu0
    %v8201 = vadd.f32 %v8181, %v8200
    %8202 = vdwg.mxu0
    %8203 = vmatpush.msra.mxu0 %v2723
    %8204 = vmatpush.msra.mxu0 %v2722
    %8205 = vmatpush.msra.mxu0 %v2721
    %8206 = vmatpush.msra.mxu0 %v2720
    %8207 = vmatpush.msra.mxu0 %v2719
    %8208 = vmatpush.msra.mxu0 %v2718
    %8209 = vmatpush.msra.mxu0 %v2717
    %8210 = vmatpush.msra.mxu0 %v2716
    %8211 = vmatpush.msra.mxu0 %v2715
    %8212 = vmatpush.msra.mxu0 %v2714
    %8213 = vmatpush.msra.mxu0 %v2713
    %8214 = vmatpush.msra.mxu0 %v2712
    %8215 = vmatpush.msra.mxu0 %v2711
    %8216 = vmatpush.msra.mxu0 %v2710
    %8217 = vmatpush.msra.mxu0 %v2709
    %8218 = vmatpush.msra.mxu0 %v2708
    %8219 = vmatmul.f32.gmra.mxu0 %v4660
    %v8220 = vpop.f32.mrf.mxu0
    %v8221 = vadd.f32 %v8201, %v8220
    %8222 = vdwg.mxu0
    %8223 = vmatpush.msra.mxu0 %v2739
    %8224 = vmatpush.msra.mxu0 %v2738
    %8225 = vmatpush.msra.mxu0 %v2737
    %8226 = vmatpush.msra.mxu0 %v2736
    %8227 = vmatpush.msra.mxu0 %v2735
    %8228 = vmatpush.msra.mxu0 %v2734
    %8229 = vmatpush.msra.mxu0 %v2733
    %8230 = vmatpush.msra.mxu0 %v2732
    %8231 = vmatpush.msra.mxu0 %v2731
    %8232 = vmatpush.msra.mxu0 %v2730
    %8233 = vmatpush.msra.mxu0 %v2729
    %8234 = vmatpush.msra.mxu0 %v2728
    %8235 = vmatpush.msra.mxu0 %v2727
    %8236 = vmatpush.msra.mxu0 %v2726
    %8237 = vmatpush.msra.mxu0 %v2725
    %8238 = vmatpush.msra.mxu0 %v2724
    %8239 = vmatmul.f32.gmra.mxu0 %v4661
    %v8240 = vpop.f32.mrf.mxu0
    %v8241 = vadd.f32 %v8221, %v8240
    %8242 = vdwg.mxu0
    %8243 = vmatpush.msra.mxu0 %v2755
    %8244 = vmatpush.msra.mxu0 %v2754
    %8245 = vmatpush.msra.mxu0 %v2753
    %8246 = vmatpush.msra.mxu0 %v2752
    %8247 = vmatpush.msra.mxu0 %v2751
    %8248 = vmatpush.msra.mxu0 %v2750
    %8249 = vmatpush.msra.mxu0 %v2749
    %8250 = vmatpush.msra.mxu0 %v2748
    %8251 = vmatpush.msra.mxu0 %v2747
    %8252 = vmatpush.msra.mxu0 %v2746
    %8253 = vmatpush.msra.mxu0 %v2745
    %8254 = vmatpush.msra.mxu0 %v2744
    %8255 = vmatpush.msra.mxu0 %v2743
    %8256 = vmatpush.msra.mxu0 %v2742
    %8257 = vmatpush.msra.mxu0 %v2741
    %8258 = vmatpush.msra.mxu0 %v2740
    %8259 = vmatmul.f32.gmra.mxu0 %v4662
    %v8260 = vpop.f32.mrf.mxu0
    %v8261 = vadd.f32 %v8241, %v8260
    %8262 = vdwg.mxu0
    %8263 = vmatpush.msra.mxu0 %v2771
    %8264 = vmatpush.msra.mxu0 %v2770
    %8265 = vmatpush.msra.mxu0 %v2769
    %8266 = vmatpush.msra.mxu0 %v2768
    %8267 = vmatpush.msra.mxu0 %v2767
    %8268 = vmatpush.msra.mxu0 %v2766
    %8269 = vmatpush.msra.mxu0 %v2765
    %8270 = vmatpush.msra.mxu0 %v2764
    %8271 = vmatpush.msra.mxu0 %v2763
    %8272 = vmatpush.msra.mxu0 %v2762
    %8273 = vmatpush.msra.mxu0 %v2761
    %8274 = vmatpush.msra.mxu0 %v2760
    %8275 = vmatpush.msra.mxu0 %v2759
    %8276 = vmatpush.msra.mxu0 %v2758
    %8277 = vmatpush.msra.mxu0 %v2757
    %8278 = vmatpush.msra.mxu0 %v2756
    %8279 = vmatmul.f32.gmra.mxu0 %v4667
    %v8280 = vpop.f32.mrf.mxu0
    %v8281 = vadd.f32 %v8261, %v8280
    %8282 = vdwg.mxu0
    %8283 = vmatpush.msra.mxu0 %v2787
    %8284 = vmatpush.msra.mxu0 %v2786
    %8285 = vmatpush.msra.mxu0 %v2785
    %8286 = vmatpush.msra.mxu0 %v2784
    %8287 = vmatpush.msra.mxu0 %v2783
    %8288 = vmatpush.msra.mxu0 %v2782
    %8289 = vmatpush.msra.mxu0 %v2781
    %8290 = vmatpush.msra.mxu0 %v2780
    %8291 = vmatpush.msra.mxu0 %v2779
    %8292 = vmatpush.msra.mxu0 %v2778
    %8293 = vmatpush.msra.mxu0 %v2777
    %8294 = vmatpush.msra.mxu0 %v2776
    %8295 = vmatpush.msra.mxu0 %v2775
    %8296 = vmatpush.msra.mxu0 %v2774
    %8297 = vmatpush.msra.mxu0 %v2773
    %8298 = vmatpush.msra.mxu0 %v2772
    %8299 = vmatmul.f32.gmra.mxu0 %v4668
    %v8300 = vpop.f32.mrf.mxu0
    %v8301 = vadd.f32 %v8281, %v8300
    %8302 = vdwg.mxu0
    %8303 = vmatpush.msra.mxu0 %v2803
    %8304 = vmatpush.msra.mxu0 %v2802
    %8305 = vmatpush.msra.mxu0 %v2801
    %8306 = vmatpush.msra.mxu0 %v2800
    %8307 = vmatpush.msra.mxu0 %v2799
    %8308 = vmatpush.msra.mxu0 %v2798
    %8309 = vmatpush.msra.mxu0 %v2797
    %8310 = vmatpush.msra.mxu0 %v2796
    %8311 = vmatpush.msra.mxu0 %v2795
    %8312 = vmatpush.msra.mxu0 %v2794
    %8313 = vmatpush.msra.mxu0 %v2793
    %8314 = vmatpush.msra.mxu0 %v2792
    %8315 = vmatpush.msra.mxu0 %v2791
    %8316 = vmatpush.msra.mxu0 %v2790
    %8317 = vmatpush.msra.mxu0 %v2789
    %8318 = vmatpush.msra.mxu0 %v2788
    %8319 = vmatmul.f32.gmra.mxu0 %v4669
    %v8320 = vpop.f32.mrf.mxu0
    %v8321 = vadd.f32 %v8301, %v8320
    %8322 = vdwg.mxu0
    %8323 = vmatpush.msra.mxu0 %v2819
    %8324 = vmatpush.msra.mxu0 %v2818
    %8325 = vmatpush.msra.mxu0 %v2817
    %8326 = vmatpush.msra.mxu0 %v2816
    %8327 = vmatpush.msra.mxu0 %v2815
    %8328 = vmatpush.msra.mxu0 %v2814
    %8329 = vmatpush.msra.mxu0 %v2813
    %8330 = vmatpush.msra.mxu0 %v2812
    %8331 = vmatpush.msra.mxu0 %v2811
    %8332 = vmatpush.msra.mxu0 %v2810
    %8333 = vmatpush.msra.mxu0 %v2809
    %8334 = vmatpush.msra.mxu0 %v2808
    %8335 = vmatpush.msra.mxu0 %v2807
    %8336 = vmatpush.msra.mxu0 %v2806
    %8337 = vmatpush.msra.mxu0 %v2805
    %8338 = vmatpush.msra.mxu0 %v2804
    %8339 = vmatmul.f32.gmra.mxu0 %v4670
    %v8340 = vpop.f32.mrf.mxu0
    %v8341 = vadd.f32 %v8321, %v8340
    %8342 = vdwg.mxu0
    %8343 = vmatpush.msra.mxu0 %v2835
    %8344 = vmatpush.msra.mxu0 %v2834
    %8345 = vmatpush.msra.mxu0 %v2833
    %8346 = vmatpush.msra.mxu0 %v2832
    %8347 = vmatpush.msra.mxu0 %v2831
    %8348 = vmatpush.msra.mxu0 %v2830
    %8349 = vmatpush.msra.mxu0 %v2829
    %8350 = vmatpush.msra.mxu0 %v2828
    %8351 = vmatpush.msra.mxu0 %v2827
    %8352 = vmatpush.msra.mxu0 %v2826
    %8353 = vmatpush.msra.mxu0 %v2825
    %8354 = vmatpush.msra.mxu0 %v2824
    %8355 = vmatpush.msra.mxu0 %v2823
    %8356 = vmatpush.msra.mxu0 %v2822
    %8357 = vmatpush.msra.mxu0 %v2821
    %8358 = vmatpush.msra.mxu0 %v2820
    %8359 = vmatmul.f32.gmra.mxu0 %v4671
    %v8360 = vpop.f32.mrf.mxu0
    %v8361 = vadd.f32 %v8341, %v8360
    %8362 = vdwg.mxu0
    %8363 = vmatpush.msra.mxu0 %v2851
    %8364 = vmatpush.msra.mxu0 %v2850
    %8365 = vmatpush.msra.mxu0 %v2849
    %8366 = vmatpush.msra.mxu0 %v2848
    %8367 = vmatpush.msra.mxu0 %v2847
    %8368 = vmatpush.msra.mxu0 %v2846
    %8369 = vmatpush.msra.mxu0 %v2845
    %8370 = vmatpush.msra.mxu0 %v2844
    %8371 = vmatpush.msra.mxu0 %v2843
    %8372 = vmatpush.msra.mxu0 %v2842
    %8373 = vmatpush.msra.mxu0 %v2841
    %8374 = vmatpush.msra.mxu0 %v2840
    %8375 = vmatpush.msra.mxu0 %v2839
    %8376 = vmatpush.msra.mxu0 %v2838
    %8377 = vmatpush.msra.mxu0 %v2837
    %8378 = vmatpush.msra.mxu0 %v2836
    %8379 = vmatmul.f32.gmra.mxu0 %v4672
    %v8380 = vpop.f32.mrf.mxu0
    %v8381 = vadd.f32 %v8361, %v8380
    %8382 = vdwg.mxu0
    %8383 = vmatpush.msra.mxu0 %v2867
    %8384 = vmatpush.msra.mxu0 %v2866
    %8385 = vmatpush.msra.mxu0 %v2865
    %8386 = vmatpush.msra.mxu0 %v2864
    %8387 = vmatpush.msra.mxu0 %v2863
    %8388 = vmatpush.msra.mxu0 %v2862
    %8389 = vmatpush.msra.mxu0 %v2861
    %8390 = vmatpush.msra.mxu0 %v2860
    %8391 = vmatpush.msra.mxu0 %v2859
    %8392 = vmatpush.msra.mxu0 %v2858
    %8393 = vmatpush.msra.mxu0 %v2857
    %8394 = vmatpush.msra.mxu0 %v2856
    %8395 = vmatpush.msra.mxu0 %v2855
    %8396 = vmatpush.msra.mxu0 %v2854
    %8397 = vmatpush.msra.mxu0 %v2853
    %8398 = vmatpush.msra.mxu0 %v2852
    %8399 = vmatmul.f32.gmra.mxu0 %v4673
    %v8400 = vpop.f32.mrf.mxu0
    %v8401 = vadd.f32 %v8381, %v8400
    %8402 = vdwg.mxu0
    %8403 = vmatpush.msra.mxu0 %v2883
    %8404 = vmatpush.msra.mxu0 %v2882
    %8405 = vmatpush.msra.mxu0 %v2881
    %8406 = vmatpush.msra.mxu0 %v2880
    %8407 = vmatpush.msra.mxu0 %v2879
    %8408 = vmatpush.msra.mxu0 %v2878
    %8409 = vmatpush.msra.mxu0 %v2877
    %8410 = vmatpush.msra.mxu0 %v2876
    %8411 = vmatpush.msra.mxu0 %v2875
    %8412 = vmatpush.msra.mxu0 %v2874
    %8413 = vmatpush.msra.mxu0 %v2873
    %8414 = vmatpush.msra.mxu0 %v2872
    %8415 = vmatpush.msra.mxu0 %v2871
    %8416 = vmatpush.msra.mxu0 %v2870
    %8417 = vmatpush.msra.mxu0 %v2869
    %8418 = vmatpush.msra.mxu0 %v2868
    %8419 = vmatmul.f32.gmra.mxu0 %v4674
    %v8420 = vpop.f32.mrf.mxu0
    %v8421 = vadd.f32 %v8401, %v8420
    %8422 = vdwg.mxu0
    %8423 = vmatpush.msra.mxu0 %v2899
    %8424 = vmatpush.msra.mxu0 %v2898
    %8425 = vmatpush.msra.mxu0 %v2897
    %8426 = vmatpush.msra.mxu0 %v2896
    %8427 = vmatpush.msra.mxu0 %v2895
    %8428 = vmatpush.msra.mxu0 %v2894
    %8429 = vmatpush.msra.mxu0 %v2893
    %8430 = vmatpush.msra.mxu0 %v2892
    %8431 = vmatpush.msra.mxu0 %v2891
    %8432 = vmatpush.msra.mxu0 %v2890
    %8433 = vmatpush.msra.mxu0 %v2889
    %8434 = vmatpush.msra.mxu0 %v2888
    %8435 = vmatpush.msra.mxu0 %v2887
    %8436 = vmatpush.msra.mxu0 %v2886
    %8437 = vmatpush.msra.mxu0 %v2885
    %8438 = vmatpush.msra.mxu0 %v2884
    %8439 = vmatmul.f32.gmra.mxu0 %v4679
    %v8440 = vpop.f32.mrf.mxu0
    %v8441 = vadd.f32 %v8421, %v8440
    %8442 = vdwg.mxu0
    %8443 = vmatpush.msra.mxu0 %v2915
    %8444 = vmatpush.msra.mxu0 %v2914
    %8445 = vmatpush.msra.mxu0 %v2913
    %8446 = vmatpush.msra.mxu0 %v2912
    %8447 = vmatpush.msra.mxu0 %v2911
    %8448 = vmatpush.msra.mxu0 %v2910
    %8449 = vmatpush.msra.mxu0 %v2909
    %8450 = vmatpush.msra.mxu0 %v2908
    %8451 = vmatpush.msra.mxu0 %v2907
    %8452 = vmatpush.msra.mxu0 %v2906
    %8453 = vmatpush.msra.mxu0 %v2905
    %8454 = vmatpush.msra.mxu0 %v2904
    %8455 = vmatpush.msra.mxu0 %v2903
    %8456 = vmatpush.msra.mxu0 %v2902
    %8457 = vmatpush.msra.mxu0 %v2901
    %8458 = vmatpush.msra.mxu0 %v2900
    %8459 = vmatmul.f32.gmra.mxu0 %v4680
    %v8460 = vpop.f32.mrf.mxu0
    %v8461 = vadd.f32 %v8441, %v8460
    %8462 = vdwg.mxu0
    %8463 = vmatpush.msra.mxu0 %v2931
    %8464 = vmatpush.msra.mxu0 %v2930
    %8465 = vmatpush.msra.mxu0 %v2929
    %8466 = vmatpush.msra.mxu0 %v2928
    %8467 = vmatpush.msra.mxu0 %v2927
    %8468 = vmatpush.msra.mxu0 %v2926
    %8469 = vmatpush.msra.mxu0 %v2925
    %8470 = vmatpush.msra.mxu0 %v2924
    %8471 = vmatpush.msra.mxu0 %v2923
    %8472 = vmatpush.msra.mxu0 %v2922
    %8473 = vmatpush.msra.mxu0 %v2921
    %8474 = vmatpush.msra.mxu0 %v2920
    %8475 = vmatpush.msra.mxu0 %v2919
    %8476 = vmatpush.msra.mxu0 %v2918
    %8477 = vmatpush.msra.mxu0 %v2917
    %8478 = vmatpush.msra.mxu0 %v2916
    %8479 = vmatmul.f32.gmra.mxu0 %v4681
    %v8480 = vpop.f32.mrf.mxu0
    %v8481 = vadd.f32 %v8461, %v8480
    %8482 = vdwg.mxu0
    %8483 = vmatpush.msra.mxu0 %v2947
    %8484 = vmatpush.msra.mxu0 %v2946
    %8485 = vmatpush.msra.mxu0 %v2945
    %8486 = vmatpush.msra.mxu0 %v2944
    %8487 = vmatpush.msra.mxu0 %v2943
    %8488 = vmatpush.msra.mxu0 %v2942
    %8489 = vmatpush.msra.mxu0 %v2941
    %8490 = vmatpush.msra.mxu0 %v2940
    %8491 = vmatpush.msra.mxu0 %v2939
    %8492 = vmatpush.msra.mxu0 %v2938
    %8493 = vmatpush.msra.mxu0 %v2937
    %8494 = vmatpush.msra.mxu0 %v2936
    %8495 = vmatpush.msra.mxu0 %v2935
    %8496 = vmatpush.msra.mxu0 %v2934
    %8497 = vmatpush.msra.mxu0 %v2933
    %8498 = vmatpush.msra.mxu0 %v2932
    %8499 = vmatmul.f32.gmra.mxu0 %v4682
    %v8500 = vpop.f32.mrf.mxu0
    %v8501 = vadd.f32 %v8481, %v8500
    %8502 = vdwg.mxu0
    %8503 = vmatpush.msra.mxu0 %v2963
    %8504 = vmatpush.msra.mxu0 %v2962
    %8505 = vmatpush.msra.mxu0 %v2961
    %8506 = vmatpush.msra.mxu0 %v2960
    %8507 = vmatpush.msra.mxu0 %v2959
    %8508 = vmatpush.msra.mxu0 %v2958
    %8509 = vmatpush.msra.mxu0 %v2957
    %8510 = vmatpush.msra.mxu0 %v2956
    %8511 = vmatpush.msra.mxu0 %v2955
    %8512 = vmatpush.msra.mxu0 %v2954
    %8513 = vmatpush.msra.mxu0 %v2953
    %8514 = vmatpush.msra.mxu0 %v2952
    %8515 = vmatpush.msra.mxu0 %v2951
    %8516 = vmatpush.msra.mxu0 %v2950
    %8517 = vmatpush.msra.mxu0 %v2949
    %8518 = vmatpush.msra.mxu0 %v2948
    %8519 = vmatmul.f32.gmra.mxu0 %v4683
    %v8520 = vpop.f32.mrf.mxu0
    %v8521 = vadd.f32 %v8501, %v8520
    %8522 = vdwg.mxu0
    %8523 = vmatpush.msra.mxu0 %v2979
    %8524 = vmatpush.msra.mxu0 %v2978
    %8525 = vmatpush.msra.mxu0 %v2977
    %8526 = vmatpush.msra.mxu0 %v2976
    %8527 = vmatpush.msra.mxu0 %v2975
    %8528 = vmatpush.msra.mxu0 %v2974
    %8529 = vmatpush.msra.mxu0 %v2973
    %8530 = vmatpush.msra.mxu0 %v2972
    %8531 = vmatpush.msra.mxu0 %v2971
    %8532 = vmatpush.msra.mxu0 %v2970
    %8533 = vmatpush.msra.mxu0 %v2969
    %8534 = vmatpush.msra.mxu0 %v2968
    %8535 = vmatpush.msra.mxu0 %v2967
    %8536 = vmatpush.msra.mxu0 %v2966
    %8537 = vmatpush.msra.mxu0 %v2965
    %8538 = vmatpush.msra.mxu0 %v2964
    %8539 = vmatmul.f32.gmra.mxu0 %v4684
    %v8540 = vpop.f32.mrf.mxu0
    %v8541 = vadd.f32 %v8521, %v8540
    %8542 = vdwg.mxu0
    %8543 = vmatpush.msra.mxu0 %v2995
    %8544 = vmatpush.msra.mxu0 %v2994
    %8545 = vmatpush.msra.mxu0 %v2993
    %8546 = vmatpush.msra.mxu0 %v2992
    %8547 = vmatpush.msra.mxu0 %v2991
    %8548 = vmatpush.msra.mxu0 %v2990
    %8549 = vmatpush.msra.mxu0 %v2989
    %8550 = vmatpush.msra.mxu0 %v2988
    %8551 = vmatpush.msra.mxu0 %v2987
    %8552 = vmatpush.msra.mxu0 %v2986
    %8553 = vmatpush.msra.mxu0 %v2985
    %8554 = vmatpush.msra.mxu0 %v2984
    %8555 = vmatpush.msra.mxu0 %v2983
    %8556 = vmatpush.msra.mxu0 %v2982
    %8557 = vmatpush.msra.mxu0 %v2981
    %8558 = vmatpush.msra.mxu0 %v2980
    %8559 = vmatmul.f32.gmra.mxu0 %v4685
    %v8560 = vpop.f32.mrf.mxu0
    %v8561 = vadd.f32 %v8541, %v8560
    %8562 = vdwg.mxu0
    %8563 = vmatpush.msra.mxu0 %v3011
    %8564 = vmatpush.msra.mxu0 %v3010
    %8565 = vmatpush.msra.mxu0 %v3009
    %8566 = vmatpush.msra.mxu0 %v3008
    %8567 = vmatpush.msra.mxu0 %v3007
    %8568 = vmatpush.msra.mxu0 %v3006
    %8569 = vmatpush.msra.mxu0 %v3005
    %8570 = vmatpush.msra.mxu0 %v3004
    %8571 = vmatpush.msra.mxu0 %v3003
    %8572 = vmatpush.msra.mxu0 %v3002
    %8573 = vmatpush.msra.mxu0 %v3001
    %8574 = vmatpush.msra.mxu0 %v3000
    %8575 = vmatpush.msra.mxu0 %v2999
    %8576 = vmatpush.msra.mxu0 %v2998
    %8577 = vmatpush.msra.mxu0 %v2997
    %8578 = vmatpush.msra.mxu0 %v2996
    %8579 = vmatmul.f32.gmra.mxu0 %v4686
    %v8580 = vpop.f32.mrf.mxu0
    %v8581 = vadd.f32 %v8561, %v8580
    %8582 = vdwg.mxu0
    %8583 = vmatpush.msra.mxu0 %v3027
    %8584 = vmatpush.msra.mxu0 %v3026
    %8585 = vmatpush.msra.mxu0 %v3025
    %8586 = vmatpush.msra.mxu0 %v3024
    %8587 = vmatpush.msra.mxu0 %v3023
    %8588 = vmatpush.msra.mxu0 %v3022
    %8589 = vmatpush.msra.mxu0 %v3021
    %8590 = vmatpush.msra.mxu0 %v3020
    %8591 = vmatpush.msra.mxu0 %v3019
    %8592 = vmatpush.msra.mxu0 %v3018
    %8593 = vmatpush.msra.mxu0 %v3017
    %8594 = vmatpush.msra.mxu0 %v3016
    %8595 = vmatpush.msra.mxu0 %v3015
    %8596 = vmatpush.msra.mxu0 %v3014
    %8597 = vmatpush.msra.mxu0 %v3013
    %8598 = vmatpush.msra.mxu0 %v3012
    %8599 = vmatmul.f32.gmra.mxu0 %v4691
    %v8600 = vpop.f32.mrf.mxu0
    %v8601 = vadd.f32 %v8581, %v8600
    %8602 = vdwg.mxu0
    %8603 = vmatpush.msra.mxu0 %v3043
    %8604 = vmatpush.msra.mxu0 %v3042
    %8605 = vmatpush.msra.mxu0 %v3041
    %8606 = vmatpush.msra.mxu0 %v3040
    %8607 = vmatpush.msra.mxu0 %v3039
    %8608 = vmatpush.msra.mxu0 %v3038
    %8609 = vmatpush.msra.mxu0 %v3037
    %8610 = vmatpush.msra.mxu0 %v3036
    %8611 = vmatpush.msra.mxu0 %v3035
    %8612 = vmatpush.msra.mxu0 %v3034
    %8613 = vmatpush.msra.mxu0 %v3033
    %8614 = vmatpush.msra.mxu0 %v3032
    %8615 = vmatpush.msra.mxu0 %v3031
    %8616 = vmatpush.msra.mxu0 %v3030
    %8617 = vmatpush.msra.mxu0 %v3029
    %8618 = vmatpush.msra.mxu0 %v3028
    %8619 = vmatmul.f32.gmra.mxu0 %v4692
    %v8620 = vpop.f32.mrf.mxu0
    %v8621 = vadd.f32 %v8601, %v8620
    %8622 = vdwg.mxu0
    %8623 = vmatpush.msra.mxu0 %v3059
    %8624 = vmatpush.msra.mxu0 %v3058
    %8625 = vmatpush.msra.mxu0 %v3057
    %8626 = vmatpush.msra.mxu0 %v3056
    %8627 = vmatpush.msra.mxu0 %v3055
    %8628 = vmatpush.msra.mxu0 %v3054
    %8629 = vmatpush.msra.mxu0 %v3053
    %8630 = vmatpush.msra.mxu0 %v3052
    %8631 = vmatpush.msra.mxu0 %v3051
    %8632 = vmatpush.msra.mxu0 %v3050
    %8633 = vmatpush.msra.mxu0 %v3049
    %8634 = vmatpush.msra.mxu0 %v3048
    %8635 = vmatpush.msra.mxu0 %v3047
    %8636 = vmatpush.msra.mxu0 %v3046
    %8637 = vmatpush.msra.mxu0 %v3045
    %8638 = vmatpush.msra.mxu0 %v3044
    %8639 = vmatmul.f32.gmra.mxu0 %v4693
    %v8640 = vpop.f32.mrf.mxu0
    %v8641 = vadd.f32 %v8621, %v8640
    %8642 = vdwg.mxu0
    %8643 = vmatpush.msra.mxu0 %v3075
    %8644 = vmatpush.msra.mxu0 %v3074
    %8645 = vmatpush.msra.mxu0 %v3073
    %8646 = vmatpush.msra.mxu0 %v3072
    %8647 = vmatpush.msra.mxu0 %v3071
    %8648 = vmatpush.msra.mxu0 %v3070
    %8649 = vmatpush.msra.mxu0 %v3069
    %8650 = vmatpush.msra.mxu0 %v3068
    %8651 = vmatpush.msra.mxu0 %v3067
    %8652 = vmatpush.msra.mxu0 %v3066
    %8653 = vmatpush.msra.mxu0 %v3065
    %8654 = vmatpush.msra.mxu0 %v3064
    %8655 = vmatpush.msra.mxu0 %v3063
    %8656 = vmatpush.msra.mxu0 %v3062
    %8657 = vmatpush.msra.mxu0 %v3061
    %8658 = vmatpush.msra.mxu0 %v3060
    %8659 = vmatmul.f32.gmra.mxu0 %v4694
    %v8660 = vpop.f32.mrf.mxu0
    %v8661 = vadd.f32 %v8641, %v8660
    %8662 = vdwg.mxu0
    %8663 = vmatpush.msra.mxu0 %v3091
    %8664 = vmatpush.msra.mxu0 %v3090
    %8665 = vmatpush.msra.mxu0 %v3089
    %8666 = vmatpush.msra.mxu0 %v3088
    %8667 = vmatpush.msra.mxu0 %v3087
    %8668 = vmatpush.msra.mxu0 %v3086
    %8669 = vmatpush.msra.mxu0 %v3085
    %8670 = vmatpush.msra.mxu0 %v3084
    %8671 = vmatpush.msra.mxu0 %v3083
    %8672 = vmatpush.msra.mxu0 %v3082
    %8673 = vmatpush.msra.mxu0 %v3081
    %8674 = vmatpush.msra.mxu0 %v3080
    %8675 = vmatpush.msra.mxu0 %v3079
    %8676 = vmatpush.msra.mxu0 %v3078
    %8677 = vmatpush.msra.mxu0 %v3077
    %8678 = vmatpush.msra.mxu0 %v3076
    %8679 = vmatmul.f32.gmra.mxu0 %v4695
    %v8680 = vpop.f32.mrf.mxu0
    %v8681 = vadd.f32 %v8661, %v8680
    %8682 = vdwg.mxu0
    %8683 = vmatpush.msra.mxu0 %v3107
    %8684 = vmatpush.msra.mxu0 %v3106
    %8685 = vmatpush.msra.mxu0 %v3105
    %8686 = vmatpush.msra.mxu0 %v3104
    %8687 = vmatpush.msra.mxu0 %v3103
    %8688 = vmatpush.msra.mxu0 %v3102
    %8689 = vmatpush.msra.mxu0 %v3101
    %8690 = vmatpush.msra.mxu0 %v3100
    %8691 = vmatpush.msra.mxu0 %v3099
    %8692 = vmatpush.msra.mxu0 %v3098
    %8693 = vmatpush.msra.mxu0 %v3097
    %8694 = vmatpush.msra.mxu0 %v3096
    %8695 = vmatpush.msra.mxu0 %v3095
    %8696 = vmatpush.msra.mxu0 %v3094
    %8697 = vmatpush.msra.mxu0 %v3093
    %8698 = vmatpush.msra.mxu0 %v3092
    %8699 = vmatmul.f32.gmra.mxu0 %v4696
    %v8700 = vpop.f32.mrf.mxu0
    %v8701 = vadd.f32 %v8681, %v8700
    %8702 = vdwg.mxu0
    %8703 = vmatpush.msra.mxu0 %v3123
    %8704 = vmatpush.msra.mxu0 %v3122
    %8705 = vmatpush.msra.mxu0 %v3121
    %8706 = vmatpush.msra.mxu0 %v3120
    %8707 = vmatpush.msra.mxu0 %v3119
    %8708 = vmatpush.msra.mxu0 %v3118
    %8709 = vmatpush.msra.mxu0 %v3117
    %8710 = vmatpush.msra.mxu0 %v3116
    %8711 = vmatpush.msra.mxu0 %v3115
    %8712 = vmatpush.msra.mxu0 %v3114
    %8713 = vmatpush.msra.mxu0 %v3113
    %8714 = vmatpush.msra.mxu0 %v3112
    %8715 = vmatpush.msra.mxu0 %v3111
    %8716 = vmatpush.msra.mxu0 %v3110
    %8717 = vmatpush.msra.mxu0 %v3109
    %8718 = vmatpush.msra.mxu0 %v3108
    %8719 = vmatmul.f32.gmra.mxu0 %v4697
    %v8720 = vpop.f32.mrf.mxu0
    %v8721 = vadd.f32 %v8701, %v8720
    %8722 = vdwg.mxu0
    %8723 = vmatpush.msra.mxu0 %v3139
    %8724 = vmatpush.msra.mxu0 %v3138
    %8725 = vmatpush.msra.mxu0 %v3137
    %8726 = vmatpush.msra.mxu0 %v3136
    %8727 = vmatpush.msra.mxu0 %v3135
    %8728 = vmatpush.msra.mxu0 %v3134
    %8729 = vmatpush.msra.mxu0 %v3133
    %8730 = vmatpush.msra.mxu0 %v3132
    %8731 = vmatpush.msra.mxu0 %v3131
    %8732 = vmatpush.msra.mxu0 %v3130
    %8733 = vmatpush.msra.mxu0 %v3129
    %8734 = vmatpush.msra.mxu0 %v3128
    %8735 = vmatpush.msra.mxu0 %v3127
    %8736 = vmatpush.msra.mxu0 %v3126
    %8737 = vmatpush.msra.mxu0 %v3125
    %8738 = vmatpush.msra.mxu0 %v3124
    %8739 = vmatmul.f32.gmra.mxu0 %v4698
    %v8740 = vpop.f32.mrf.mxu0
    %v8741 = vadd.f32 %v8721, %v8740
    %8742 = vdwg.mxu0
    %8743 = vmatpush.msra.mxu0 %v3155
    %8744 = vmatpush.msra.mxu0 %v3154
    %8745 = vmatpush.msra.mxu0 %v3153
    %8746 = vmatpush.msra.mxu0 %v3152
    %8747 = vmatpush.msra.mxu0 %v3151
    %8748 = vmatpush.msra.mxu0 %v3150
    %8749 = vmatpush.msra.mxu0 %v3149
    %8750 = vmatpush.msra.mxu0 %v3148
    %8751 = vmatpush.msra.mxu0 %v3147
    %8752 = vmatpush.msra.mxu0 %v3146
    %8753 = vmatpush.msra.mxu0 %v3145
    %8754 = vmatpush.msra.mxu0 %v3144
    %8755 = vmatpush.msra.mxu0 %v3143
    %8756 = vmatpush.msra.mxu0 %v3142
    %8757 = vmatpush.msra.mxu0 %v3141
    %8758 = vmatpush.msra.mxu0 %v3140
    %8759 = vmatmul.f32.gmra.mxu0 %v4703
    %v8760 = vpop.f32.mrf.mxu0
    %v8761 = vadd.f32 %v8741, %v8760
    %8762 = vdwg.mxu0
    %8763 = vmatpush.msra.mxu0 %v3171
    %8764 = vmatpush.msra.mxu0 %v3170
    %8765 = vmatpush.msra.mxu0 %v3169
    %8766 = vmatpush.msra.mxu0 %v3168
    %8767 = vmatpush.msra.mxu0 %v3167
    %8768 = vmatpush.msra.mxu0 %v3166
    %8769 = vmatpush.msra.mxu0 %v3165
    %8770 = vmatpush.msra.mxu0 %v3164
    %8771 = vmatpush.msra.mxu0 %v3163
    %8772 = vmatpush.msra.mxu0 %v3162
    %8773 = vmatpush.msra.mxu0 %v3161
    %8774 = vmatpush.msra.mxu0 %v3160
    %8775 = vmatpush.msra.mxu0 %v3159
    %8776 = vmatpush.msra.mxu0 %v3158
    %8777 = vmatpush.msra.mxu0 %v3157
    %8778 = vmatpush.msra.mxu0 %v3156
    %8779 = vmatmul.f32.gmra.mxu0 %v4704
    %v8780 = vpop.f32.mrf.mxu0
    %v8781 = vadd.f32 %v8761, %v8780
    %8782 = vdwg.mxu0
    %8783 = vmatpush.msra.mxu0 %v3187
    %8784 = vmatpush.msra.mxu0 %v3186
    %8785 = vmatpush.msra.mxu0 %v3185
    %8786 = vmatpush.msra.mxu0 %v3184
    %8787 = vmatpush.msra.mxu0 %v3183
    %8788 = vmatpush.msra.mxu0 %v3182
    %8789 = vmatpush.msra.mxu0 %v3181
    %8790 = vmatpush.msra.mxu0 %v3180
    %8791 = vmatpush.msra.mxu0 %v3179
    %8792 = vmatpush.msra.mxu0 %v3178
    %8793 = vmatpush.msra.mxu0 %v3177
    %8794 = vmatpush.msra.mxu0 %v3176
    %8795 = vmatpush.msra.mxu0 %v3175
    %8796 = vmatpush.msra.mxu0 %v3174
    %8797 = vmatpush.msra.mxu0 %v3173
    %8798 = vmatpush.msra.mxu0 %v3172
    %8799 = vmatmul.f32.gmra.mxu0 %v4705
    %v8800 = vpop.f32.mrf.mxu0
    %v8801 = vadd.f32 %v8781, %v8800
    %8802 = vdwg.mxu0
    %8803 = vmatpush.msra.mxu0 %v3203
    %8804 = vmatpush.msra.mxu0 %v3202
    %8805 = vmatpush.msra.mxu0 %v3201
    %8806 = vmatpush.msra.mxu0 %v3200
    %8807 = vmatpush.msra.mxu0 %v3199
    %8808 = vmatpush.msra.mxu0 %v3198
    %8809 = vmatpush.msra.mxu0 %v3197
    %8810 = vmatpush.msra.mxu0 %v3196
    %8811 = vmatpush.msra.mxu0 %v3195
    %8812 = vmatpush.msra.mxu0 %v3194
    %8813 = vmatpush.msra.mxu0 %v3193
    %8814 = vmatpush.msra.mxu0 %v3192
    %8815 = vmatpush.msra.mxu0 %v3191
    %8816 = vmatpush.msra.mxu0 %v3190
    %8817 = vmatpush.msra.mxu0 %v3189
    %8818 = vmatpush.msra.mxu0 %v3188
    %8819 = vmatmul.f32.gmra.mxu0 %v4706
    %v8820 = vpop.f32.mrf.mxu0
    %v8821 = vadd.f32 %v8801, %v8820
    %8822 = vdwg.mxu0
    %8823 = vmatpush.msra.mxu0 %v3219
    %8824 = vmatpush.msra.mxu0 %v3218
    %8825 = vmatpush.msra.mxu0 %v3217
    %8826 = vmatpush.msra.mxu0 %v3216
    %8827 = vmatpush.msra.mxu0 %v3215
    %8828 = vmatpush.msra.mxu0 %v3214
    %8829 = vmatpush.msra.mxu0 %v3213
    %8830 = vmatpush.msra.mxu0 %v3212
    %8831 = vmatpush.msra.mxu0 %v3211
    %8832 = vmatpush.msra.mxu0 %v3210
    %8833 = vmatpush.msra.mxu0 %v3209
    %8834 = vmatpush.msra.mxu0 %v3208
    %8835 = vmatpush.msra.mxu0 %v3207
    %8836 = vmatpush.msra.mxu0 %v3206
    %8837 = vmatpush.msra.mxu0 %v3205
    %8838 = vmatpush.msra.mxu0 %v3204
    %8839 = vmatmul.f32.gmra.mxu0 %v4707
    %v8840 = vpop.f32.mrf.mxu0
    %v8841 = vadd.f32 %v8821, %v8840
    %8842 = vdwg.mxu0
    %8843 = vmatpush.msra.mxu0 %v3235
    %8844 = vmatpush.msra.mxu0 %v3234
    %8845 = vmatpush.msra.mxu0 %v3233
    %8846 = vmatpush.msra.mxu0 %v3232
    %8847 = vmatpush.msra.mxu0 %v3231
    %8848 = vmatpush.msra.mxu0 %v3230
    %8849 = vmatpush.msra.mxu0 %v3229
    %8850 = vmatpush.msra.mxu0 %v3228
    %8851 = vmatpush.msra.mxu0 %v3227
    %8852 = vmatpush.msra.mxu0 %v3226
    %8853 = vmatpush.msra.mxu0 %v3225
    %8854 = vmatpush.msra.mxu0 %v3224
    %8855 = vmatpush.msra.mxu0 %v3223
    %8856 = vmatpush.msra.mxu0 %v3222
    %8857 = vmatpush.msra.mxu0 %v3221
    %8858 = vmatpush.msra.mxu0 %v3220
    %8859 = vmatmul.f32.gmra.mxu0 %v4708
    %v8860 = vpop.f32.mrf.mxu0
    %v8861 = vadd.f32 %v8841, %v8860
    %8862 = vdwg.mxu0
    %8863 = vmatpush.msra.mxu0 %v3251
    %8864 = vmatpush.msra.mxu0 %v3250
    %8865 = vmatpush.msra.mxu0 %v3249
    %8866 = vmatpush.msra.mxu0 %v3248
    %8867 = vmatpush.msra.mxu0 %v3247
    %8868 = vmatpush.msra.mxu0 %v3246
    %8869 = vmatpush.msra.mxu0 %v3245
    %8870 = vmatpush.msra.mxu0 %v3244
    %8871 = vmatpush.msra.mxu0 %v3243
    %8872 = vmatpush.msra.mxu0 %v3242
    %8873 = vmatpush.msra.mxu0 %v3241
    %8874 = vmatpush.msra.mxu0 %v3240
    %8875 = vmatpush.msra.mxu0 %v3239
    %8876 = vmatpush.msra.mxu0 %v3238
    %8877 = vmatpush.msra.mxu0 %v3237
    %8878 = vmatpush.msra.mxu0 %v3236
    %8879 = vmatmul.f32.gmra.mxu0 %v4709
    %v8880 = vpop.f32.mrf.mxu0
    %v8881 = vadd.f32 %v8861, %v8880
    %8882 = vdwg.mxu0
    %8883 = vmatpush.msra.mxu0 %v3267
    %8884 = vmatpush.msra.mxu0 %v3266
    %8885 = vmatpush.msra.mxu0 %v3265
    %8886 = vmatpush.msra.mxu0 %v3264
    %8887 = vmatpush.msra.mxu0 %v3263
    %8888 = vmatpush.msra.mxu0 %v3262
    %8889 = vmatpush.msra.mxu0 %v3261
    %8890 = vmatpush.msra.mxu0 %v3260
    %8891 = vmatpush.msra.mxu0 %v3259
    %8892 = vmatpush.msra.mxu0 %v3258
    %8893 = vmatpush.msra.mxu0 %v3257
    %8894 = vmatpush.msra.mxu0 %v3256
    %8895 = vmatpush.msra.mxu0 %v3255
    %8896 = vmatpush.msra.mxu0 %v3254
    %8897 = vmatpush.msra.mxu0 %v3253
    %8898 = vmatpush.msra.mxu0 %v3252
    %8899 = vmatmul.f32.gmra.mxu0 %v4710
    %v8900 = vpop.f32.mrf.mxu0
    %v8901 = vadd.f32 %v8881, %v8900
    %8902 = vdwg.mxu0
    %8903 = vmatpush.msra.mxu0 %v3283
    %8904 = vmatpush.msra.mxu0 %v3282
    %8905 = vmatpush.msra.mxu0 %v3281
    %8906 = vmatpush.msra.mxu0 %v3280
    %8907 = vmatpush.msra.mxu0 %v3279
    %8908 = vmatpush.msra.mxu0 %v3278
    %8909 = vmatpush.msra.mxu0 %v3277
    %8910 = vmatpush.msra.mxu0 %v3276
    %8911 = vmatpush.msra.mxu0 %v3275
    %8912 = vmatpush.msra.mxu0 %v3274
    %8913 = vmatpush.msra.mxu0 %v3273
    %8914 = vmatpush.msra.mxu0 %v3272
    %8915 = vmatpush.msra.mxu0 %v3271
    %8916 = vmatpush.msra.mxu0 %v3270
    %8917 = vmatpush.msra.mxu0 %v3269
    %8918 = vmatpush.msra.mxu0 %v3268
    %8919 = vmatmul.f32.gmra.mxu0 %v4715
    %v8920 = vpop.f32.mrf.mxu0
    %v8921 = vadd.f32 %v8901, %v8920
    %8922 = vdwg.mxu0
    %8923 = vmatpush.msra.mxu0 %v3299
    %8924 = vmatpush.msra.mxu0 %v3298
    %8925 = vmatpush.msra.mxu0 %v3297
    %8926 = vmatpush.msra.mxu0 %v3296
    %8927 = vmatpush.msra.mxu0 %v3295
    %8928 = vmatpush.msra.mxu0 %v3294
    %8929 = vmatpush.msra.mxu0 %v3293
    %8930 = vmatpush.msra.mxu0 %v3292
    %8931 = vmatpush.msra.mxu0 %v3291
    %8932 = vmatpush.msra.mxu0 %v3290
    %8933 = vmatpush.msra.mxu0 %v3289
    %8934 = vmatpush.msra.mxu0 %v3288
    %8935 = vmatpush.msra.mxu0 %v3287
    %8936 = vmatpush.msra.mxu0 %v3286
    %8937 = vmatpush.msra.mxu0 %v3285
    %8938 = vmatpush.msra.mxu0 %v3284
    %8939 = vmatmul.f32.gmra.mxu0 %v4716
    %v8940 = vpop.f32.mrf.mxu0
    %v8941 = vadd.f32 %v8921, %v8940
    %8942 = vdwg.mxu0
    %8943 = vmatpush.msra.mxu0 %v3315
    %8944 = vmatpush.msra.mxu0 %v3314
    %8945 = vmatpush.msra.mxu0 %v3313
    %8946 = vmatpush.msra.mxu0 %v3312
    %8947 = vmatpush.msra.mxu0 %v3311
    %8948 = vmatpush.msra.mxu0 %v3310
    %8949 = vmatpush.msra.mxu0 %v3309
    %8950 = vmatpush.msra.mxu0 %v3308
    %8951 = vmatpush.msra.mxu0 %v3307
    %8952 = vmatpush.msra.mxu0 %v3306
    %8953 = vmatpush.msra.mxu0 %v3305
    %8954 = vmatpush.msra.mxu0 %v3304
    %8955 = vmatpush.msra.mxu0 %v3303
    %8956 = vmatpush.msra.mxu0 %v3302
    %8957 = vmatpush.msra.mxu0 %v3301
    %8958 = vmatpush.msra.mxu0 %v3300
    %8959 = vmatmul.f32.gmra.mxu0 %v4717
    %v8960 = vpop.f32.mrf.mxu0
    %v8961 = vadd.f32 %v8941, %v8960
    %8962 = vdwg.mxu0
    %8963 = vmatpush.msra.mxu0 %v3331
    %8964 = vmatpush.msra.mxu0 %v3330
    %8965 = vmatpush.msra.mxu0 %v3329
    %8966 = vmatpush.msra.mxu0 %v3328
    %8967 = vmatpush.msra.mxu0 %v3327
    %8968 = vmatpush.msra.mxu0 %v3326
    %8969 = vmatpush.msra.mxu0 %v3325
    %8970 = vmatpush.msra.mxu0 %v3324
    %8971 = vmatpush.msra.mxu0 %v3323
    %8972 = vmatpush.msra.mxu0 %v3322
    %8973 = vmatpush.msra.mxu0 %v3321
    %8974 = vmatpush.msra.mxu0 %v3320
    %8975 = vmatpush.msra.mxu0 %v3319
    %8976 = vmatpush.msra.mxu0 %v3318
    %8977 = vmatpush.msra.mxu0 %v3317
    %8978 = vmatpush.msra.mxu0 %v3316
    %8979 = vmatmul.f32.gmra.mxu0 %v4718
    %v8980 = vpop.f32.mrf.mxu0
    %v8981 = vadd.f32 %v8961, %v8980
    %8982 = vdwg.mxu0
    %8983 = vmatpush.msra.mxu0 %v3347
    %8984 = vmatpush.msra.mxu0 %v3346
    %8985 = vmatpush.msra.mxu0 %v3345
    %8986 = vmatpush.msra.mxu0 %v3344
    %8987 = vmatpush.msra.mxu0 %v3343
    %8988 = vmatpush.msra.mxu0 %v3342
    %8989 = vmatpush.msra.mxu0 %v3341
    %8990 = vmatpush.msra.mxu0 %v3340
    %8991 = vmatpush.msra.mxu0 %v3339
    %8992 = vmatpush.msra.mxu0 %v3338
    %8993 = vmatpush.msra.mxu0 %v3337
    %8994 = vmatpush.msra.mxu0 %v3336
    %8995 = vmatpush.msra.mxu0 %v3335
    %8996 = vmatpush.msra.mxu0 %v3334
    %8997 = vmatpush.msra.mxu0 %v3333
    %8998 = vmatpush.msra.mxu0 %v3332
    %8999 = vmatmul.f32.gmra.mxu0 %v4719
    %v9000 = vpop.f32.mrf.mxu0
    %v9001 = vadd.f32 %v8981, %v9000
    %9002 = vdwg.mxu0
    %9003 = vmatpush.msra.mxu0 %v3363
    %9004 = vmatpush.msra.mxu0 %v3362
    %9005 = vmatpush.msra.mxu0 %v3361
    %9006 = vmatpush.msra.mxu0 %v3360
    %9007 = vmatpush.msra.mxu0 %v3359
    %9008 = vmatpush.msra.mxu0 %v3358
    %9009 = vmatpush.msra.mxu0 %v3357
    %9010 = vmatpush.msra.mxu0 %v3356
    %9011 = vmatpush.msra.mxu0 %v3355
    %9012 = vmatpush.msra.mxu0 %v3354
    %9013 = vmatpush.msra.mxu0 %v3353
    %9014 = vmatpush.msra.mxu0 %v3352
    %9015 = vmatpush.msra.mxu0 %v3351
    %9016 = vmatpush.msra.mxu0 %v3350
    %9017 = vmatpush.msra.mxu0 %v3349
    %9018 = vmatpush.msra.mxu0 %v3348
    %9019 = vmatmul.f32.gmra.mxu0 %v4720
    %v9020 = vpop.f32.mrf.mxu0
    %v9021 = vadd.f32 %v9001, %v9020
    %9022 = vdwg.mxu0
    %9023 = vmatpush.msra.mxu0 %v3379
    %9024 = vmatpush.msra.mxu0 %v3378
    %9025 = vmatpush.msra.mxu0 %v3377
    %9026 = vmatpush.msra.mxu0 %v3376
    %9027 = vmatpush.msra.mxu0 %v3375
    %9028 = vmatpush.msra.mxu0 %v3374
    %9029 = vmatpush.msra.mxu0 %v3373
    %9030 = vmatpush.msra.mxu0 %v3372
    %9031 = vmatpush.msra.mxu0 %v3371
    %9032 = vmatpush.msra.mxu0 %v3370
    %9033 = vmatpush.msra.mxu0 %v3369
    %9034 = vmatpush.msra.mxu0 %v3368
    %9035 = vmatpush.msra.mxu0 %v3367
    %9036 = vmatpush.msra.mxu0 %v3366
    %9037 = vmatpush.msra.mxu0 %v3365
    %9038 = vmatpush.msra.mxu0 %v3364
    %9039 = vmatmul.f32.gmra.mxu0 %v4721
    %v9040 = vpop.f32.mrf.mxu0
    %v9041 = vadd.f32 %v9021, %v9040
    %9042 = vdwg.mxu0
    %9043 = vmatpush.msra.mxu0 %v3395
    %9044 = vmatpush.msra.mxu0 %v3394
    %9045 = vmatpush.msra.mxu0 %v3393
    %9046 = vmatpush.msra.mxu0 %v3392
    %9047 = vmatpush.msra.mxu0 %v3391
    %9048 = vmatpush.msra.mxu0 %v3390
    %9049 = vmatpush.msra.mxu0 %v3389
    %9050 = vmatpush.msra.mxu0 %v3388
    %9051 = vmatpush.msra.mxu0 %v3387
    %9052 = vmatpush.msra.mxu0 %v3386
    %9053 = vmatpush.msra.mxu0 %v3385
    %9054 = vmatpush.msra.mxu0 %v3384
    %9055 = vmatpush.msra.mxu0 %v3383
    %9056 = vmatpush.msra.mxu0 %v3382
    %9057 = vmatpush.msra.mxu0 %v3381
    %9058 = vmatpush.msra.mxu0 %v3380
    %9059 = vmatmul.f32.gmra.mxu0 %v4722
    %v9060 = vpop.f32.mrf.mxu0
    %v9061 = vadd.f32 %v9041, %v9060
    %9062 = vdwg.mxu0
    %9063 = vmatpush.msra.mxu0 %v3411
    %9064 = vmatpush.msra.mxu0 %v3410
    %9065 = vmatpush.msra.mxu0 %v3409
    %9066 = vmatpush.msra.mxu0 %v3408
    %9067 = vmatpush.msra.mxu0 %v3407
    %9068 = vmatpush.msra.mxu0 %v3406
    %9069 = vmatpush.msra.mxu0 %v3405
    %9070 = vmatpush.msra.mxu0 %v3404
    %9071 = vmatpush.msra.mxu0 %v3403
    %9072 = vmatpush.msra.mxu0 %v3402
    %9073 = vmatpush.msra.mxu0 %v3401
    %9074 = vmatpush.msra.mxu0 %v3400
    %9075 = vmatpush.msra.mxu0 %v3399
    %9076 = vmatpush.msra.mxu0 %v3398
    %9077 = vmatpush.msra.mxu0 %v3397
    %9078 = vmatpush.msra.mxu0 %v3396
    %9079 = vmatmul.f32.gmra.mxu0 %v4727
    %v9080 = vpop.f32.mrf.mxu0
    %v9081 = vadd.f32 %v9061, %v9080
    %9082 = vdwg.mxu0
    %9083 = vmatpush.msra.mxu0 %v3427
    %9084 = vmatpush.msra.mxu0 %v3426
    %9085 = vmatpush.msra.mxu0 %v3425
    %9086 = vmatpush.msra.mxu0 %v3424
    %9087 = vmatpush.msra.mxu0 %v3423
    %9088 = vmatpush.msra.mxu0 %v3422
    %9089 = vmatpush.msra.mxu0 %v3421
    %9090 = vmatpush.msra.mxu0 %v3420
    %9091 = vmatpush.msra.mxu0 %v3419
    %9092 = vmatpush.msra.mxu0 %v3418
    %9093 = vmatpush.msra.mxu0 %v3417
    %9094 = vmatpush.msra.mxu0 %v3416
    %9095 = vmatpush.msra.mxu0 %v3415
    %9096 = vmatpush.msra.mxu0 %v3414
    %9097 = vmatpush.msra.mxu0 %v3413
    %9098 = vmatpush.msra.mxu0 %v3412
    %9099 = vmatmul.f32.gmra.mxu0 %v4728
    %v9100 = vpop.f32.mrf.mxu0
    %v9101 = vadd.f32 %v9081, %v9100
    %9102 = vdwg.mxu0
    %9103 = vmatpush.msra.mxu0 %v3443
    %9104 = vmatpush.msra.mxu0 %v3442
    %9105 = vmatpush.msra.mxu0 %v3441
    %9106 = vmatpush.msra.mxu0 %v3440
    %9107 = vmatpush.msra.mxu0 %v3439
    %9108 = vmatpush.msra.mxu0 %v3438
    %9109 = vmatpush.msra.mxu0 %v3437
    %9110 = vmatpush.msra.mxu0 %v3436
    %9111 = vmatpush.msra.mxu0 %v3435
    %9112 = vmatpush.msra.mxu0 %v3434
    %9113 = vmatpush.msra.mxu0 %v3433
    %9114 = vmatpush.msra.mxu0 %v3432
    %9115 = vmatpush.msra.mxu0 %v3431
    %9116 = vmatpush.msra.mxu0 %v3430
    %9117 = vmatpush.msra.mxu0 %v3429
    %9118 = vmatpush.msra.mxu0 %v3428
    %9119 = vmatmul.f32.gmra.mxu0 %v4729
    %v9120 = vpop.f32.mrf.mxu0
    %v9121 = vadd.f32 %v9101, %v9120
    %9122 = vdwg.mxu0
    %9123 = vmatpush.msra.mxu0 %v3459
    %9124 = vmatpush.msra.mxu0 %v3458
    %9125 = vmatpush.msra.mxu0 %v3457
    %9126 = vmatpush.msra.mxu0 %v3456
    %9127 = vmatpush.msra.mxu0 %v3455
    %9128 = vmatpush.msra.mxu0 %v3454
    %9129 = vmatpush.msra.mxu0 %v3453
    %9130 = vmatpush.msra.mxu0 %v3452
    %9131 = vmatpush.msra.mxu0 %v3451
    %9132 = vmatpush.msra.mxu0 %v3450
    %9133 = vmatpush.msra.mxu0 %v3449
    %9134 = vmatpush.msra.mxu0 %v3448
    %9135 = vmatpush.msra.mxu0 %v3447
    %9136 = vmatpush.msra.mxu0 %v3446
    %9137 = vmatpush.msra.mxu0 %v3445
    %9138 = vmatpush.msra.mxu0 %v3444
    %9139 = vmatmul.f32.gmra.mxu0 %v4730
    %v9140 = vpop.f32.mrf.mxu0
    %v9141 = vadd.f32 %v9121, %v9140
    %9142 = vdwg.mxu0
    %9143 = vmatpush.msra.mxu0 %v3475
    %9144 = vmatpush.msra.mxu0 %v3474
    %9145 = vmatpush.msra.mxu0 %v3473
    %9146 = vmatpush.msra.mxu0 %v3472
    %9147 = vmatpush.msra.mxu0 %v3471
    %9148 = vmatpush.msra.mxu0 %v3470
    %9149 = vmatpush.msra.mxu0 %v3469
    %9150 = vmatpush.msra.mxu0 %v3468
    %9151 = vmatpush.msra.mxu0 %v3467
    %9152 = vmatpush.msra.mxu0 %v3466
    %9153 = vmatpush.msra.mxu0 %v3465
    %9154 = vmatpush.msra.mxu0 %v3464
    %9155 = vmatpush.msra.mxu0 %v3463
    %9156 = vmatpush.msra.mxu0 %v3462
    %9157 = vmatpush.msra.mxu0 %v3461
    %9158 = vmatpush.msra.mxu0 %v3460
    %9159 = vmatmul.f32.gmra.mxu0 %v4731
    %v9160 = vpop.f32.mrf.mxu0
    %v9161 = vadd.f32 %v9141, %v9160
    %9162 = vdwg.mxu0
    %9163 = vmatpush.msra.mxu0 %v3491
    %9164 = vmatpush.msra.mxu0 %v3490
    %9165 = vmatpush.msra.mxu0 %v3489
    %9166 = vmatpush.msra.mxu0 %v3488
    %9167 = vmatpush.msra.mxu0 %v3487
    %9168 = vmatpush.msra.mxu0 %v3486
    %9169 = vmatpush.msra.mxu0 %v3485
    %9170 = vmatpush.msra.mxu0 %v3484
    %9171 = vmatpush.msra.mxu0 %v3483
    %9172 = vmatpush.msra.mxu0 %v3482
    %9173 = vmatpush.msra.mxu0 %v3481
    %9174 = vmatpush.msra.mxu0 %v3480
    %9175 = vmatpush.msra.mxu0 %v3479
    %9176 = vmatpush.msra.mxu0 %v3478
    %9177 = vmatpush.msra.mxu0 %v3477
    %9178 = vmatpush.msra.mxu0 %v3476
    %9179 = vmatmul.f32.gmra.mxu0 %v4732
    %v9180 = vpop.f32.mrf.mxu0
    %v9181 = vadd.f32 %v9161, %v9180
    %9182 = vdwg.mxu0
    %9183 = vmatpush.msra.mxu0 %v3507
    %9184 = vmatpush.msra.mxu0 %v3506
    %9185 = vmatpush.msra.mxu0 %v3505
    %9186 = vmatpush.msra.mxu0 %v3504
    %9187 = vmatpush.msra.mxu0 %v3503
    %9188 = vmatpush.msra.mxu0 %v3502
    %9189 = vmatpush.msra.mxu0 %v3501
    %9190 = vmatpush.msra.mxu0 %v3500
    %9191 = vmatpush.msra.mxu0 %v3499
    %9192 = vmatpush.msra.mxu0 %v3498
    %9193 = vmatpush.msra.mxu0 %v3497
    %9194 = vmatpush.msra.mxu0 %v3496
    %9195 = vmatpush.msra.mxu0 %v3495
    %9196 = vmatpush.msra.mxu0 %v3494
    %9197 = vmatpush.msra.mxu0 %v3493
    %9198 = vmatpush.msra.mxu0 %v3492
    %9199 = vmatmul.f32.gmra.mxu0 %v4733
    %v9200 = vpop.f32.mrf.mxu0
    %v9201 = vadd.f32 %v9181, %v9200
    %9202 = vdwg.mxu0
    %9203 = vmatpush.msra.mxu0 %v3523
    %9204 = vmatpush.msra.mxu0 %v3522
    %9205 = vmatpush.msra.mxu0 %v3521
    %9206 = vmatpush.msra.mxu0 %v3520
    %9207 = vmatpush.msra.mxu0 %v3519
    %9208 = vmatpush.msra.mxu0 %v3518
    %9209 = vmatpush.msra.mxu0 %v3517
    %9210 = vmatpush.msra.mxu0 %v3516
    %9211 = vmatpush.msra.mxu0 %v3515
    %9212 = vmatpush.msra.mxu0 %v3514
    %9213 = vmatpush.msra.mxu0 %v3513
    %9214 = vmatpush.msra.mxu0 %v3512
    %9215 = vmatpush.msra.mxu0 %v3511
    %9216 = vmatpush.msra.mxu0 %v3510
    %9217 = vmatpush.msra.mxu0 %v3509
    %9218 = vmatpush.msra.mxu0 %v3508
    %9219 = vmatmul.f32.gmra.mxu0 %v4734
    %v9220 = vpop.f32.mrf.mxu0
    %v9221 = vadd.f32 %v9201, %v9220
    %9222 = vdwg.mxu0
    %9223 = vmatpush.msra.mxu0 %v3539
    %9224 = vmatpush.msra.mxu0 %v3538
    %9225 = vmatpush.msra.mxu0 %v3537
    %9226 = vmatpush.msra.mxu0 %v3536
    %9227 = vmatpush.msra.mxu0 %v3535
    %9228 = vmatpush.msra.mxu0 %v3534
    %9229 = vmatpush.msra.mxu0 %v3533
    %9230 = vmatpush.msra.mxu0 %v3532
    %9231 = vmatpush.msra.mxu0 %v3531
    %9232 = vmatpush.msra.mxu0 %v3530
    %9233 = vmatpush.msra.mxu0 %v3529
    %9234 = vmatpush.msra.mxu0 %v3528
    %9235 = vmatpush.msra.mxu0 %v3527
    %9236 = vmatpush.msra.mxu0 %v3526
    %9237 = vmatpush.msra.mxu0 %v3525
    %9238 = vmatpush.msra.mxu0 %v3524
    %9239 = vmatmul.f32.gmra.mxu0 %v4739
    %v9240 = vpop.f32.mrf.mxu0
    %v9241 = vadd.f32 %v9221, %v9240
    %9242 = vdwg.mxu0
    %9243 = vmatpush.msra.mxu0 %v3555
    %9244 = vmatpush.msra.mxu0 %v3554
    %9245 = vmatpush.msra.mxu0 %v3553
    %9246 = vmatpush.msra.mxu0 %v3552
    %9247 = vmatpush.msra.mxu0 %v3551
    %9248 = vmatpush.msra.mxu0 %v3550
    %9249 = vmatpush.msra.mxu0 %v3549
    %9250 = vmatpush.msra.mxu0 %v3548
    %9251 = vmatpush.msra.mxu0 %v3547
    %9252 = vmatpush.msra.mxu0 %v3546
    %9253 = vmatpush.msra.mxu0 %v3545
    %9254 = vmatpush.msra.mxu0 %v3544
    %9255 = vmatpush.msra.mxu0 %v3543
    %9256 = vmatpush.msra.mxu0 %v3542
    %9257 = vmatpush.msra.mxu0 %v3541
    %9258 = vmatpush.msra.mxu0 %v3540
    %9259 = vmatmul.f32.gmra.mxu0 %v4740
    %v9260 = vpop.f32.mrf.mxu0
    %v9261 = vadd.f32 %v9241, %v9260
    %9262 = vdwg.mxu0
    %9263 = vmatpush.msra.mxu0 %v3571
    %9264 = vmatpush.msra.mxu0 %v3570
    %9265 = vmatpush.msra.mxu0 %v3569
    %9266 = vmatpush.msra.mxu0 %v3568
    %9267 = vmatpush.msra.mxu0 %v3567
    %9268 = vmatpush.msra.mxu0 %v3566
    %9269 = vmatpush.msra.mxu0 %v3565
    %9270 = vmatpush.msra.mxu0 %v3564
    %9271 = vmatpush.msra.mxu0 %v3563
    %9272 = vmatpush.msra.mxu0 %v3562
    %9273 = vmatpush.msra.mxu0 %v3561
    %9274 = vmatpush.msra.mxu0 %v3560
    %9275 = vmatpush.msra.mxu0 %v3559
    %9276 = vmatpush.msra.mxu0 %v3558
    %9277 = vmatpush.msra.mxu0 %v3557
    %9278 = vmatpush.msra.mxu0 %v3556
    %9279 = vmatmul.f32.gmra.mxu0 %v4741
    %v9280 = vpop.f32.mrf.mxu0
    %v9281 = vadd.f32 %v9261, %v9280
    %9282 = vdwg.mxu0
    %9283 = vmatpush.msra.mxu0 %v3587
    %9284 = vmatpush.msra.mxu0 %v3586
    %9285 = vmatpush.msra.mxu0 %v3585
    %9286 = vmatpush.msra.mxu0 %v3584
    %9287 = vmatpush.msra.mxu0 %v3583
    %9288 = vmatpush.msra.mxu0 %v3582
    %9289 = vmatpush.msra.mxu0 %v3581
    %9290 = vmatpush.msra.mxu0 %v3580
    %9291 = vmatpush.msra.mxu0 %v3579
    %9292 = vmatpush.msra.mxu0 %v3578
    %9293 = vmatpush.msra.mxu0 %v3577
    %9294 = vmatpush.msra.mxu0 %v3576
    %9295 = vmatpush.msra.mxu0 %v3575
    %9296 = vmatpush.msra.mxu0 %v3574
    %9297 = vmatpush.msra.mxu0 %v3573
    %9298 = vmatpush.msra.mxu0 %v3572
    %9299 = vmatmul.f32.gmra.mxu0 %v4742
    %v9300 = vpop.f32.mrf.mxu0
    %v9301 = vadd.f32 %v9281, %v9300
    %9302 = vdwg.mxu0
    %9303 = vmatpush.msra.mxu0 %v3603
    %9304 = vmatpush.msra.mxu0 %v3602
    %9305 = vmatpush.msra.mxu0 %v3601
    %9306 = vmatpush.msra.mxu0 %v3600
    %9307 = vmatpush.msra.mxu0 %v3599
    %9308 = vmatpush.msra.mxu0 %v3598
    %9309 = vmatpush.msra.mxu0 %v3597
    %9310 = vmatpush.msra.mxu0 %v3596
    %9311 = vmatpush.msra.mxu0 %v3595
    %9312 = vmatpush.msra.mxu0 %v3594
    %9313 = vmatpush.msra.mxu0 %v3593
    %9314 = vmatpush.msra.mxu0 %v3592
    %9315 = vmatpush.msra.mxu0 %v3591
    %9316 = vmatpush.msra.mxu0 %v3590
    %9317 = vmatpush.msra.mxu0 %v3589
    %9318 = vmatpush.msra.mxu0 %v3588
    %9319 = vmatmul.f32.gmra.mxu0 %v4743
    %v9320 = vpop.f32.mrf.mxu0
    %v9321 = vadd.f32 %v9301, %v9320
    %9322 = vdwg.mxu0
    %9323 = vmatpush.msra.mxu0 %v3619
    %9324 = vmatpush.msra.mxu0 %v3618
    %9325 = vmatpush.msra.mxu0 %v3617
    %9326 = vmatpush.msra.mxu0 %v3616
    %9327 = vmatpush.msra.mxu0 %v3615
    %9328 = vmatpush.msra.mxu0 %v3614
    %9329 = vmatpush.msra.mxu0 %v3613
    %9330 = vmatpush.msra.mxu0 %v3612
    %9331 = vmatpush.msra.mxu0 %v3611
    %9332 = vmatpush.msra.mxu0 %v3610
    %9333 = vmatpush.msra.mxu0 %v3609
    %9334 = vmatpush.msra.mxu0 %v3608
    %9335 = vmatpush.msra.mxu0 %v3607
    %9336 = vmatpush.msra.mxu0 %v3606
    %9337 = vmatpush.msra.mxu0 %v3605
    %9338 = vmatpush.msra.mxu0 %v3604
    %9339 = vmatmul.f32.gmra.mxu0 %v4744
    %v9340 = vpop.f32.mrf.mxu0
    %v9341 = vadd.f32 %v9321, %v9340
    %9342 = vdwg.mxu0
    %9343 = vmatpush.msra.mxu0 %v3635
    %9344 = vmatpush.msra.mxu0 %v3634
    %9345 = vmatpush.msra.mxu0 %v3633
    %9346 = vmatpush.msra.mxu0 %v3632
    %9347 = vmatpush.msra.mxu0 %v3631
    %9348 = vmatpush.msra.mxu0 %v3630
    %9349 = vmatpush.msra.mxu0 %v3629
    %9350 = vmatpush.msra.mxu0 %v3628
    %9351 = vmatpush.msra.mxu0 %v3627
    %9352 = vmatpush.msra.mxu0 %v3626
    %9353 = vmatpush.msra.mxu0 %v3625
    %9354 = vmatpush.msra.mxu0 %v3624
    %9355 = vmatpush.msra.mxu0 %v3623
    %9356 = vmatpush.msra.mxu0 %v3622
    %9357 = vmatpush.msra.mxu0 %v3621
    %9358 = vmatpush.msra.mxu0 %v3620
    %9359 = vmatmul.f32.gmra.mxu0 %v4745
    %v9360 = vpop.f32.mrf.mxu0
    %v9361 = vadd.f32 %v9341, %v9360
    %9362 = vdwg.mxu0
    %9363 = vmatpush.msra.mxu0 %v3651
    %9364 = vmatpush.msra.mxu0 %v3650
    %9365 = vmatpush.msra.mxu0 %v3649
    %9366 = vmatpush.msra.mxu0 %v3648
    %9367 = vmatpush.msra.mxu0 %v3647
    %9368 = vmatpush.msra.mxu0 %v3646
    %9369 = vmatpush.msra.mxu0 %v3645
    %9370 = vmatpush.msra.mxu0 %v3644
    %9371 = vmatpush.msra.mxu0 %v3643
    %9372 = vmatpush.msra.mxu0 %v3642
    %9373 = vmatpush.msra.mxu0 %v3641
    %9374 = vmatpush.msra.mxu0 %v3640
    %9375 = vmatpush.msra.mxu0 %v3639
    %9376 = vmatpush.msra.mxu0 %v3638
    %9377 = vmatpush.msra.mxu0 %v3637
    %9378 = vmatpush.msra.mxu0 %v3636
    %9379 = vmatmul.f32.gmra.mxu0 %v4746
    %v9380 = vpop.f32.mrf.mxu0
    %v9381 = vadd.f32 %v9361, %v9380
    %9382 = vdwg.mxu0
    %9383 = vmatpush.msra.mxu0 %v3667
    %9384 = vmatpush.msra.mxu0 %v3666
    %9385 = vmatpush.msra.mxu0 %v3665
    %9386 = vmatpush.msra.mxu0 %v3664
    %9387 = vmatpush.msra.mxu0 %v3663
    %9388 = vmatpush.msra.mxu0 %v3662
    %9389 = vmatpush.msra.mxu0 %v3661
    %9390 = vmatpush.msra.mxu0 %v3660
    %9391 = vmatpush.msra.mxu0 %v3659
    %9392 = vmatpush.msra.mxu0 %v3658
    %9393 = vmatpush.msra.mxu0 %v3657
    %9394 = vmatpush.msra.mxu0 %v3656
    %9395 = vmatpush.msra.mxu0 %v3655
    %9396 = vmatpush.msra.mxu0 %v3654
    %9397 = vmatpush.msra.mxu0 %v3653
    %9398 = vmatpush.msra.mxu0 %v3652
    %9399 = vmatmul.f32.gmra.mxu0 %v4751
    %v9400 = vpop.f32.mrf.mxu0
    %v9401 = vadd.f32 %v9381, %v9400
    %9402 = vdwg.mxu0
    %9403 = vmatpush.msra.mxu0 %v3683
    %9404 = vmatpush.msra.mxu0 %v3682
    %9405 = vmatpush.msra.mxu0 %v3681
    %9406 = vmatpush.msra.mxu0 %v3680
    %9407 = vmatpush.msra.mxu0 %v3679
    %9408 = vmatpush.msra.mxu0 %v3678
    %9409 = vmatpush.msra.mxu0 %v3677
    %9410 = vmatpush.msra.mxu0 %v3676
    %9411 = vmatpush.msra.mxu0 %v3675
    %9412 = vmatpush.msra.mxu0 %v3674
    %9413 = vmatpush.msra.mxu0 %v3673
    %9414 = vmatpush.msra.mxu0 %v3672
    %9415 = vmatpush.msra.mxu0 %v3671
    %9416 = vmatpush.msra.mxu0 %v3670
    %9417 = vmatpush.msra.mxu0 %v3669
    %9418 = vmatpush.msra.mxu0 %v3668
    %9419 = vmatmul.f32.gmra.mxu0 %v4752
    %v9420 = vpop.f32.mrf.mxu0
    %v9421 = vadd.f32 %v9401, %v9420
    %9422 = vdwg.mxu0
    %9423 = vmatpush.msra.mxu0 %v3699
    %9424 = vmatpush.msra.mxu0 %v3698
    %9425 = vmatpush.msra.mxu0 %v3697
    %9426 = vmatpush.msra.mxu0 %v3696
    %9427 = vmatpush.msra.mxu0 %v3695
    %9428 = vmatpush.msra.mxu0 %v3694
    %9429 = vmatpush.msra.mxu0 %v3693
    %9430 = vmatpush.msra.mxu0 %v3692
    %9431 = vmatpush.msra.mxu0 %v3691
    %9432 = vmatpush.msra.mxu0 %v3690
    %9433 = vmatpush.msra.mxu0 %v3689
    %9434 = vmatpush.msra.mxu0 %v3688
    %9435 = vmatpush.msra.mxu0 %v3687
    %9436 = vmatpush.msra.mxu0 %v3686
    %9437 = vmatpush.msra.mxu0 %v3685
    %9438 = vmatpush.msra.mxu0 %v3684
    %9439 = vmatmul.f32.gmra.mxu0 %v4753
    %v9440 = vpop.f32.mrf.mxu0
    %v9441 = vadd.f32 %v9421, %v9440
    %9442 = vdwg.mxu0
    %9443 = vmatpush.msra.mxu0 %v3715
    %9444 = vmatpush.msra.mxu0 %v3714
    %9445 = vmatpush.msra.mxu0 %v3713
    %9446 = vmatpush.msra.mxu0 %v3712
    %9447 = vmatpush.msra.mxu0 %v3711
    %9448 = vmatpush.msra.mxu0 %v3710
    %9449 = vmatpush.msra.mxu0 %v3709
    %9450 = vmatpush.msra.mxu0 %v3708
    %9451 = vmatpush.msra.mxu0 %v3707
    %9452 = vmatpush.msra.mxu0 %v3706
    %9453 = vmatpush.msra.mxu0 %v3705
    %9454 = vmatpush.msra.mxu0 %v3704
    %9455 = vmatpush.msra.mxu0 %v3703
    %9456 = vmatpush.msra.mxu0 %v3702
    %9457 = vmatpush.msra.mxu0 %v3701
    %9458 = vmatpush.msra.mxu0 %v3700
    %9459 = vmatmul.f32.gmra.mxu0 %v4754
    %v9460 = vpop.f32.mrf.mxu0
    %v9461 = vadd.f32 %v9441, %v9460
    %9462 = vdwg.mxu0
    %9463 = vmatpush.msra.mxu0 %v3731
    %9464 = vmatpush.msra.mxu0 %v3730
    %9465 = vmatpush.msra.mxu0 %v3729
    %9466 = vmatpush.msra.mxu0 %v3728
    %9467 = vmatpush.msra.mxu0 %v3727
    %9468 = vmatpush.msra.mxu0 %v3726
    %9469 = vmatpush.msra.mxu0 %v3725
    %9470 = vmatpush.msra.mxu0 %v3724
    %9471 = vmatpush.msra.mxu0 %v3723
    %9472 = vmatpush.msra.mxu0 %v3722
    %9473 = vmatpush.msra.mxu0 %v3721
    %9474 = vmatpush.msra.mxu0 %v3720
    %9475 = vmatpush.msra.mxu0 %v3719
    %9476 = vmatpush.msra.mxu0 %v3718
    %9477 = vmatpush.msra.mxu0 %v3717
    %9478 = vmatpush.msra.mxu0 %v3716
    %9479 = vmatmul.f32.gmra.mxu0 %v4755
    %v9480 = vpop.f32.mrf.mxu0
    %v9481 = vadd.f32 %v9461, %v9480
    %9482 = vdwg.mxu0
    %9483 = vmatpush.msra.mxu0 %v3747
    %9484 = vmatpush.msra.mxu0 %v3746
    %9485 = vmatpush.msra.mxu0 %v3745
    %9486 = vmatpush.msra.mxu0 %v3744
    %9487 = vmatpush.msra.mxu0 %v3743
    %9488 = vmatpush.msra.mxu0 %v3742
    %9489 = vmatpush.msra.mxu0 %v3741
    %9490 = vmatpush.msra.mxu0 %v3740
    %9491 = vmatpush.msra.mxu0 %v3739
    %9492 = vmatpush.msra.mxu0 %v3738
    %9493 = vmatpush.msra.mxu0 %v3737
    %9494 = vmatpush.msra.mxu0 %v3736
    %9495 = vmatpush.msra.mxu0 %v3735
    %9496 = vmatpush.msra.mxu0 %v3734
    %9497 = vmatpush.msra.mxu0 %v3733
    %9498 = vmatpush.msra.mxu0 %v3732
    %9499 = vmatmul.f32.gmra.mxu0 %v4756
    %v9500 = vpop.f32.mrf.mxu0
    %v9501 = vadd.f32 %v9481, %v9500
    %9502 = vdwg.mxu0
    %9503 = vmatpush.msra.mxu0 %v3763
    %9504 = vmatpush.msra.mxu0 %v3762
    %9505 = vmatpush.msra.mxu0 %v3761
    %9506 = vmatpush.msra.mxu0 %v3760
    %9507 = vmatpush.msra.mxu0 %v3759
    %9508 = vmatpush.msra.mxu0 %v3758
    %9509 = vmatpush.msra.mxu0 %v3757
    %9510 = vmatpush.msra.mxu0 %v3756
    %9511 = vmatpush.msra.mxu0 %v3755
    %9512 = vmatpush.msra.mxu0 %v3754
    %9513 = vmatpush.msra.mxu0 %v3753
    %9514 = vmatpush.msra.mxu0 %v3752
    %9515 = vmatpush.msra.mxu0 %v3751
    %9516 = vmatpush.msra.mxu0 %v3750
    %9517 = vmatpush.msra.mxu0 %v3749
    %9518 = vmatpush.msra.mxu0 %v3748
    %9519 = vmatmul.f32.gmra.mxu0 %v4757
    %v9520 = vpop.f32.mrf.mxu0
    %v9521 = vadd.f32 %v9501, %v9520
    %9522 = vdwg.mxu0
    %9523 = vmatpush.msra.mxu0 %v3779
    %9524 = vmatpush.msra.mxu0 %v3778
    %9525 = vmatpush.msra.mxu0 %v3777
    %9526 = vmatpush.msra.mxu0 %v3776
    %9527 = vmatpush.msra.mxu0 %v3775
    %9528 = vmatpush.msra.mxu0 %v3774
    %9529 = vmatpush.msra.mxu0 %v3773
    %9530 = vmatpush.msra.mxu0 %v3772
    %9531 = vmatpush.msra.mxu0 %v3771
    %9532 = vmatpush.msra.mxu0 %v3770
    %9533 = vmatpush.msra.mxu0 %v3769
    %9534 = vmatpush.msra.mxu0 %v3768
    %9535 = vmatpush.msra.mxu0 %v3767
    %9536 = vmatpush.msra.mxu0 %v3766
    %9537 = vmatpush.msra.mxu0 %v3765
    %9538 = vmatpush.msra.mxu0 %v3764
    %9539 = vmatmul.f32.gmra.mxu0 %v4758
    %v9540 = vpop.f32.mrf.mxu0
    %v9541 = vadd.f32 %v9521, %v9540
    %9542 = vdwg.mxu0
    %9543 = vmatpush.msra.mxu0 %v3795
    %9544 = vmatpush.msra.mxu0 %v3794
    %9545 = vmatpush.msra.mxu0 %v3793
    %9546 = vmatpush.msra.mxu0 %v3792
    %9547 = vmatpush.msra.mxu0 %v3791
    %9548 = vmatpush.msra.mxu0 %v3790
    %9549 = vmatpush.msra.mxu0 %v3789
    %9550 = vmatpush.msra.mxu0 %v3788
    %9551 = vmatpush.msra.mxu0 %v3787
    %9552 = vmatpush.msra.mxu0 %v3786
    %9553 = vmatpush.msra.mxu0 %v3785
    %9554 = vmatpush.msra.mxu0 %v3784
    %9555 = vmatpush.msra.mxu0 %v3783
    %9556 = vmatpush.msra.mxu0 %v3782
    %9557 = vmatpush.msra.mxu0 %v3781
    %9558 = vmatpush.msra.mxu0 %v3780
    %9559 = vmatmul.f32.gmra.mxu0 %v4763
    %v9560 = vpop.f32.mrf.mxu0
    %v9561 = vadd.f32 %v9541, %v9560
    %9562 = vdwg.mxu0
    %9563 = vmatpush.msra.mxu0 %v3811
    %9564 = vmatpush.msra.mxu0 %v3810
    %9565 = vmatpush.msra.mxu0 %v3809
    %9566 = vmatpush.msra.mxu0 %v3808
    %9567 = vmatpush.msra.mxu0 %v3807
    %9568 = vmatpush.msra.mxu0 %v3806
    %9569 = vmatpush.msra.mxu0 %v3805
    %9570 = vmatpush.msra.mxu0 %v3804
    %9571 = vmatpush.msra.mxu0 %v3803
    %9572 = vmatpush.msra.mxu0 %v3802
    %9573 = vmatpush.msra.mxu0 %v3801
    %9574 = vmatpush.msra.mxu0 %v3800
    %9575 = vmatpush.msra.mxu0 %v3799
    %9576 = vmatpush.msra.mxu0 %v3798
    %9577 = vmatpush.msra.mxu0 %v3797
    %9578 = vmatpush.msra.mxu0 %v3796
    %9579 = vmatmul.f32.gmra.mxu0 %v4764
    %v9580 = vpop.f32.mrf.mxu0
    %v9581 = vadd.f32 %v9561, %v9580
    %9582 = vdwg.mxu0
    %9583 = vmatpush.msra.mxu0 %v3827
    %9584 = vmatpush.msra.mxu0 %v3826
    %9585 = vmatpush.msra.mxu0 %v3825
    %9586 = vmatpush.msra.mxu0 %v3824
    %9587 = vmatpush.msra.mxu0 %v3823
    %9588 = vmatpush.msra.mxu0 %v3822
    %9589 = vmatpush.msra.mxu0 %v3821
    %9590 = vmatpush.msra.mxu0 %v3820
    %9591 = vmatpush.msra.mxu0 %v3819
    %9592 = vmatpush.msra.mxu0 %v3818
    %9593 = vmatpush.msra.mxu0 %v3817
    %9594 = vmatpush.msra.mxu0 %v3816
    %9595 = vmatpush.msra.mxu0 %v3815
    %9596 = vmatpush.msra.mxu0 %v3814
    %9597 = vmatpush.msra.mxu0 %v3813
    %9598 = vmatpush.msra.mxu0 %v3812
    %9599 = vmatmul.f32.gmra.mxu0 %v4765
    %v9600 = vpop.f32.mrf.mxu0
    %v9601 = vadd.f32 %v9581, %v9600
    %9602 = vdwg.mxu0
    %9603 = vmatpush.msra.mxu0 %v3843
    %9604 = vmatpush.msra.mxu0 %v3842
    %9605 = vmatpush.msra.mxu0 %v3841
    %9606 = vmatpush.msra.mxu0 %v3840
    %9607 = vmatpush.msra.mxu0 %v3839
    %9608 = vmatpush.msra.mxu0 %v3838
    %9609 = vmatpush.msra.mxu0 %v3837
    %9610 = vmatpush.msra.mxu0 %v3836
    %9611 = vmatpush.msra.mxu0 %v3835
    %9612 = vmatpush.msra.mxu0 %v3834
    %9613 = vmatpush.msra.mxu0 %v3833
    %9614 = vmatpush.msra.mxu0 %v3832
    %9615 = vmatpush.msra.mxu0 %v3831
    %9616 = vmatpush.msra.mxu0 %v3830
    %9617 = vmatpush.msra.mxu0 %v3829
    %9618 = vmatpush.msra.mxu0 %v3828
    %9619 = vmatmul.f32.gmra.mxu0 %v4766
    %v9620 = vpop.f32.mrf.mxu0
    %v9621 = vadd.f32 %v9601, %v9620
    %9622 = vdwg.mxu0
    %9623 = vmatpush.msra.mxu0 %v3859
    %9624 = vmatpush.msra.mxu0 %v3858
    %9625 = vmatpush.msra.mxu0 %v3857
    %9626 = vmatpush.msra.mxu0 %v3856
    %9627 = vmatpush.msra.mxu0 %v3855
    %9628 = vmatpush.msra.mxu0 %v3854
    %9629 = vmatpush.msra.mxu0 %v3853
    %9630 = vmatpush.msra.mxu0 %v3852
    %9631 = vmatpush.msra.mxu0 %v3851
    %9632 = vmatpush.msra.mxu0 %v3850
    %9633 = vmatpush.msra.mxu0 %v3849
    %9634 = vmatpush.msra.mxu0 %v3848
    %9635 = vmatpush.msra.mxu0 %v3847
    %9636 = vmatpush.msra.mxu0 %v3846
    %9637 = vmatpush.msra.mxu0 %v3845
    %9638 = vmatpush.msra.mxu0 %v3844
    %9639 = vmatmul.f32.gmra.mxu0 %v4767
    %v9640 = vpop.f32.mrf.mxu0
    %v9641 = vadd.f32 %v9621, %v9640
    %9642 = vdwg.mxu0
    %9643 = vmatpush.msra.mxu0 %v3875
    %9644 = vmatpush.msra.mxu0 %v3874
    %9645 = vmatpush.msra.mxu0 %v3873
    %9646 = vmatpush.msra.mxu0 %v3872
    %9647 = vmatpush.msra.mxu0 %v3871
    %9648 = vmatpush.msra.mxu0 %v3870
    %9649 = vmatpush.msra.mxu0 %v3869
    %9650 = vmatpush.msra.mxu0 %v3868
    %9651 = vmatpush.msra.mxu0 %v3867
    %9652 = vmatpush.msra.mxu0 %v3866
    %9653 = vmatpush.msra.mxu0 %v3865
    %9654 = vmatpush.msra.mxu0 %v3864
    %9655 = vmatpush.msra.mxu0 %v3863
    %9656 = vmatpush.msra.mxu0 %v3862
    %9657 = vmatpush.msra.mxu0 %v3861
    %9658 = vmatpush.msra.mxu0 %v3860
    %9659 = vmatmul.f32.gmra.mxu0 %v4768
    %v9660 = vpop.f32.mrf.mxu0
    %v9661 = vadd.f32 %v9641, %v9660
    %9662 = vdwg.mxu0
    %9663 = vmatpush.msra.mxu0 %v3891
    %9664 = vmatpush.msra.mxu0 %v3890
    %9665 = vmatpush.msra.mxu0 %v3889
    %9666 = vmatpush.msra.mxu0 %v3888
    %9667 = vmatpush.msra.mxu0 %v3887
    %9668 = vmatpush.msra.mxu0 %v3886
    %9669 = vmatpush.msra.mxu0 %v3885
    %9670 = vmatpush.msra.mxu0 %v3884
    %9671 = vmatpush.msra.mxu0 %v3883
    %9672 = vmatpush.msra.mxu0 %v3882
    %9673 = vmatpush.msra.mxu0 %v3881
    %9674 = vmatpush.msra.mxu0 %v3880
    %9675 = vmatpush.msra.mxu0 %v3879
    %9676 = vmatpush.msra.mxu0 %v3878
    %9677 = vmatpush.msra.mxu0 %v3877
    %9678 = vmatpush.msra.mxu0 %v3876
    %9679 = vmatmul.f32.gmra.mxu0 %v4769
    %v9680 = vpop.f32.mrf.mxu0
    %v9681 = vadd.f32 %v9661, %v9680
    %9682 = vdwg.mxu0
    %9683 = vmatpush.msra.mxu0 %v3907
    %9684 = vmatpush.msra.mxu0 %v3906
    %9685 = vmatpush.msra.mxu0 %v3905
    %9686 = vmatpush.msra.mxu0 %v3904
    %9687 = vmatpush.msra.mxu0 %v3903
    %9688 = vmatpush.msra.mxu0 %v3902
    %9689 = vmatpush.msra.mxu0 %v3901
    %9690 = vmatpush.msra.mxu0 %v3900
    %9691 = vmatpush.msra.mxu0 %v3899
    %9692 = vmatpush.msra.mxu0 %v3898
    %9693 = vmatpush.msra.mxu0 %v3897
    %9694 = vmatpush.msra.mxu0 %v3896
    %9695 = vmatpush.msra.mxu0 %v3895
    %9696 = vmatpush.msra.mxu0 %v3894
    %9697 = vmatpush.msra.mxu0 %v3893
    %9698 = vmatpush.msra.mxu0 %v3892
    %9699 = vmatmul.f32.gmra.mxu0 %v4770
    %v9700 = vpop.f32.mrf.mxu0
    %v9701 = vadd.f32 %v9681, %v9700
    %9702 = vdwg.mxu0
    %9703 = vmatpush.msra.mxu0 %v3923
    %9704 = vmatpush.msra.mxu0 %v3922
    %9705 = vmatpush.msra.mxu0 %v3921
    %9706 = vmatpush.msra.mxu0 %v3920
    %9707 = vmatpush.msra.mxu0 %v3919
    %9708 = vmatpush.msra.mxu0 %v3918
    %9709 = vmatpush.msra.mxu0 %v3917
    %9710 = vmatpush.msra.mxu0 %v3916
    %9711 = vmatpush.msra.mxu0 %v3915
    %9712 = vmatpush.msra.mxu0 %v3914
    %9713 = vmatpush.msra.mxu0 %v3913
    %9714 = vmatpush.msra.mxu0 %v3912
    %9715 = vmatpush.msra.mxu0 %v3911
    %9716 = vmatpush.msra.mxu0 %v3910
    %9717 = vmatpush.msra.mxu0 %v3909
    %9718 = vmatpush.msra.mxu0 %v3908
    %9719 = vmatmul.f32.gmra.mxu0 %v4775
    %v9720 = vpop.f32.mrf.mxu0
    %v9721 = vadd.f32 %v9701, %v9720
    %9722 = vdwg.mxu0
    %9723 = vmatpush.msra.mxu0 %v3939
    %9724 = vmatpush.msra.mxu0 %v3938
    %9725 = vmatpush.msra.mxu0 %v3937
    %9726 = vmatpush.msra.mxu0 %v3936
    %9727 = vmatpush.msra.mxu0 %v3935
    %9728 = vmatpush.msra.mxu0 %v3934
    %9729 = vmatpush.msra.mxu0 %v3933
    %9730 = vmatpush.msra.mxu0 %v3932
    %9731 = vmatpush.msra.mxu0 %v3931
    %9732 = vmatpush.msra.mxu0 %v3930
    %9733 = vmatpush.msra.mxu0 %v3929
    %9734 = vmatpush.msra.mxu0 %v3928
    %9735 = vmatpush.msra.mxu0 %v3927
    %9736 = vmatpush.msra.mxu0 %v3926
    %9737 = vmatpush.msra.mxu0 %v3925
    %9738 = vmatpush.msra.mxu0 %v3924
    %9739 = vmatmul.f32.gmra.mxu0 %v4776
    %v9740 = vpop.f32.mrf.mxu0
    %v9741 = vadd.f32 %v9721, %v9740
    %9742 = vdwg.mxu0
    %9743 = vmatpush.msra.mxu0 %v3955
    %9744 = vmatpush.msra.mxu0 %v3954
    %9745 = vmatpush.msra.mxu0 %v3953
    %9746 = vmatpush.msra.mxu0 %v3952
    %9747 = vmatpush.msra.mxu0 %v3951
    %9748 = vmatpush.msra.mxu0 %v3950
    %9749 = vmatpush.msra.mxu0 %v3949
    %9750 = vmatpush.msra.mxu0 %v3948
    %9751 = vmatpush.msra.mxu0 %v3947
    %9752 = vmatpush.msra.mxu0 %v3946
    %9753 = vmatpush.msra.mxu0 %v3945
    %9754 = vmatpush.msra.mxu0 %v3944
    %9755 = vmatpush.msra.mxu0 %v3943
    %9756 = vmatpush.msra.mxu0 %v3942
    %9757 = vmatpush.msra.mxu0 %v3941
    %9758 = vmatpush.msra.mxu0 %v3940
    %9759 = vmatmul.f32.gmra.mxu0 %v4777
    %v9760 = vpop.f32.mrf.mxu0
    %v9761 = vadd.f32 %v9741, %v9760
    %9762 = vdwg.mxu0
    %9763 = vmatpush.msra.mxu0 %v3971
    %9764 = vmatpush.msra.mxu0 %v3970
    %9765 = vmatpush.msra.mxu0 %v3969
    %9766 = vmatpush.msra.mxu0 %v3968
    %9767 = vmatpush.msra.mxu0 %v3967
    %9768 = vmatpush.msra.mxu0 %v3966
    %9769 = vmatpush.msra.mxu0 %v3965
    %9770 = vmatpush.msra.mxu0 %v3964
    %9771 = vmatpush.msra.mxu0 %v3963
    %9772 = vmatpush.msra.mxu0 %v3962
    %9773 = vmatpush.msra.mxu0 %v3961
    %9774 = vmatpush.msra.mxu0 %v3960
    %9775 = vmatpush.msra.mxu0 %v3959
    %9776 = vmatpush.msra.mxu0 %v3958
    %9777 = vmatpush.msra.mxu0 %v3957
    %9778 = vmatpush.msra.mxu0 %v3956
    %9779 = vmatmul.f32.gmra.mxu0 %v4778
    %v9780 = vpop.f32.mrf.mxu0
    %v9781 = vadd.f32 %v9761, %v9780
    %9782 = vdwg.mxu0
    %9783 = vmatpush.msra.mxu0 %v3987
    %9784 = vmatpush.msra.mxu0 %v3986
    %9785 = vmatpush.msra.mxu0 %v3985
    %9786 = vmatpush.msra.mxu0 %v3984
    %9787 = vmatpush.msra.mxu0 %v3983
    %9788 = vmatpush.msra.mxu0 %v3982
    %9789 = vmatpush.msra.mxu0 %v3981
    %9790 = vmatpush.msra.mxu0 %v3980
    %9791 = vmatpush.msra.mxu0 %v3979
    %9792 = vmatpush.msra.mxu0 %v3978
    %9793 = vmatpush.msra.mxu0 %v3977
    %9794 = vmatpush.msra.mxu0 %v3976
    %9795 = vmatpush.msra.mxu0 %v3975
    %9796 = vmatpush.msra.mxu0 %v3974
    %9797 = vmatpush.msra.mxu0 %v3973
    %9798 = vmatpush.msra.mxu0 %v3972
    %9799 = vmatmul.f32.gmra.mxu0 %v4779
    %v9800 = vpop.f32.mrf.mxu0
    %v9801 = vadd.f32 %v9781, %v9800
    %9802 = vdwg.mxu0
    %9803 = vmatpush.msra.mxu0 %v4003
    %9804 = vmatpush.msra.mxu0 %v4002
    %9805 = vmatpush.msra.mxu0 %v4001
    %9806 = vmatpush.msra.mxu0 %v4000
    %9807 = vmatpush.msra.mxu0 %v3999
    %9808 = vmatpush.msra.mxu0 %v3998
    %9809 = vmatpush.msra.mxu0 %v3997
    %9810 = vmatpush.msra.mxu0 %v3996
    %9811 = vmatpush.msra.mxu0 %v3995
    %9812 = vmatpush.msra.mxu0 %v3994
    %9813 = vmatpush.msra.mxu0 %v3993
    %9814 = vmatpush.msra.mxu0 %v3992
    %9815 = vmatpush.msra.mxu0 %v3991
    %9816 = vmatpush.msra.mxu0 %v3990
    %9817 = vmatpush.msra.mxu0 %v3989
    %9818 = vmatpush.msra.mxu0 %v3988
    %9819 = vmatmul.f32.gmra.mxu0 %v4780
    %v9820 = vpop.f32.mrf.mxu0
    %v9821 = vadd.f32 %v9801, %v9820
    %9822 = vdwg.mxu0
    %9823 = vmatpush.msra.mxu0 %v4019
    %9824 = vmatpush.msra.mxu0 %v4018
    %9825 = vmatpush.msra.mxu0 %v4017
    %9826 = vmatpush.msra.mxu0 %v4016
    %9827 = vmatpush.msra.mxu0 %v4015
    %9828 = vmatpush.msra.mxu0 %v4014
    %9829 = vmatpush.msra.mxu0 %v4013
    %9830 = vmatpush.msra.mxu0 %v4012
    %9831 = vmatpush.msra.mxu0 %v4011
    %9832 = vmatpush.msra.mxu0 %v4010
    %9833 = vmatpush.msra.mxu0 %v4009
    %9834 = vmatpush.msra.mxu0 %v4008
    %9835 = vmatpush.msra.mxu0 %v4007
    %9836 = vmatpush.msra.mxu0 %v4006
    %9837 = vmatpush.msra.mxu0 %v4005
    %9838 = vmatpush.msra.mxu0 %v4004
    %9839 = vmatmul.f32.gmra.mxu0 %v4781
    %v9840 = vpop.f32.mrf.mxu0
    %v9841 = vadd.f32 %v9821, %v9840
    %9842 = vdwg.mxu0
    %9843 = vmatpush.msra.mxu0 %v4035
    %9844 = vmatpush.msra.mxu0 %v4034
    %9845 = vmatpush.msra.mxu0 %v4033
    %9846 = vmatpush.msra.mxu0 %v4032
    %9847 = vmatpush.msra.mxu0 %v4031
    %9848 = vmatpush.msra.mxu0 %v4030
    %9849 = vmatpush.msra.mxu0 %v4029
    %9850 = vmatpush.msra.mxu0 %v4028
    %9851 = vmatpush.msra.mxu0 %v4027
    %9852 = vmatpush.msra.mxu0 %v4026
    %9853 = vmatpush.msra.mxu0 %v4025
    %9854 = vmatpush.msra.mxu0 %v4024
    %9855 = vmatpush.msra.mxu0 %v4023
    %9856 = vmatpush.msra.mxu0 %v4022
    %9857 = vmatpush.msra.mxu0 %v4021
    %9858 = vmatpush.msra.mxu0 %v4020
    %9859 = vmatmul.f32.gmra.mxu0 %v4782
    %v9860 = vpop.f32.mrf.mxu0
    %v9861 = vadd.f32 %v9841, %v9860
    %9862 = vdwg.mxu0
    %9863 = vmatpush.msra.mxu0 %v4051
    %9864 = vmatpush.msra.mxu0 %v4050
    %9865 = vmatpush.msra.mxu0 %v4049
    %9866 = vmatpush.msra.mxu0 %v4048
    %9867 = vmatpush.msra.mxu0 %v4047
    %9868 = vmatpush.msra.mxu0 %v4046
    %9869 = vmatpush.msra.mxu0 %v4045
    %9870 = vmatpush.msra.mxu0 %v4044
    %9871 = vmatpush.msra.mxu0 %v4043
    %9872 = vmatpush.msra.mxu0 %v4042
    %9873 = vmatpush.msra.mxu0 %v4041
    %9874 = vmatpush.msra.mxu0 %v4040
    %9875 = vmatpush.msra.mxu0 %v4039
    %9876 = vmatpush.msra.mxu0 %v4038
    %9877 = vmatpush.msra.mxu0 %v4037
    %9878 = vmatpush.msra.mxu0 %v4036
    %9879 = vmatmul.f32.gmra.mxu0 %v4787
    %v9880 = vpop.f32.mrf.mxu0
    %v9881 = vadd.f32 %v9861, %v9880
    %9882 = vdwg.mxu0
    %9883 = vmatpush.msra.mxu0 %v4067
    %9884 = vmatpush.msra.mxu0 %v4066
    %9885 = vmatpush.msra.mxu0 %v4065
    %9886 = vmatpush.msra.mxu0 %v4064
    %9887 = vmatpush.msra.mxu0 %v4063
    %9888 = vmatpush.msra.mxu0 %v4062
    %9889 = vmatpush.msra.mxu0 %v4061
    %9890 = vmatpush.msra.mxu0 %v4060
    %9891 = vmatpush.msra.mxu0 %v4059
    %9892 = vmatpush.msra.mxu0 %v4058
    %9893 = vmatpush.msra.mxu0 %v4057
    %9894 = vmatpush.msra.mxu0 %v4056
    %9895 = vmatpush.msra.mxu0 %v4055
    %9896 = vmatpush.msra.mxu0 %v4054
    %9897 = vmatpush.msra.mxu0 %v4053
    %9898 = vmatpush.msra.mxu0 %v4052
    %9899 = vmatmul.f32.gmra.mxu0 %v4788
    %v9900 = vpop.f32.mrf.mxu0
    %v9901 = vadd.f32 %v9881, %v9900
    %9902 = vdwg.mxu0
    %9903 = vmatpush.msra.mxu0 %v4083
    %9904 = vmatpush.msra.mxu0 %v4082
    %9905 = vmatpush.msra.mxu0 %v4081
    %9906 = vmatpush.msra.mxu0 %v4080
    %9907 = vmatpush.msra.mxu0 %v4079
    %9908 = vmatpush.msra.mxu0 %v4078
    %9909 = vmatpush.msra.mxu0 %v4077
    %9910 = vmatpush.msra.mxu0 %v4076
    %9911 = vmatpush.msra.mxu0 %v4075
    %9912 = vmatpush.msra.mxu0 %v4074
    %9913 = vmatpush.msra.mxu0 %v4073
    %9914 = vmatpush.msra.mxu0 %v4072
    %9915 = vmatpush.msra.mxu0 %v4071
    %9916 = vmatpush.msra.mxu0 %v4070
    %9917 = vmatpush.msra.mxu0 %v4069
    %9918 = vmatpush.msra.mxu0 %v4068
    %9919 = vmatmul.f32.gmra.mxu0 %v4789
    %v9920 = vpop.f32.mrf.mxu0
    %v9921 = vadd.f32 %v9901, %v9920
    %9922 = vdwg.mxu0
    %9923 = vmatpush.msra.mxu0 %v4099
    %9924 = vmatpush.msra.mxu0 %v4098
    %9925 = vmatpush.msra.mxu0 %v4097
    %9926 = vmatpush.msra.mxu0 %v4096
    %9927 = vmatpush.msra.mxu0 %v4095
    %9928 = vmatpush.msra.mxu0 %v4094
    %9929 = vmatpush.msra.mxu0 %v4093
    %9930 = vmatpush.msra.mxu0 %v4092
    %9931 = vmatpush.msra.mxu0 %v4091
    %9932 = vmatpush.msra.mxu0 %v4090
    %9933 = vmatpush.msra.mxu0 %v4089
    %9934 = vmatpush.msra.mxu0 %v4088
    %9935 = vmatpush.msra.mxu0 %v4087
    %9936 = vmatpush.msra.mxu0 %v4086
    %9937 = vmatpush.msra.mxu0 %v4085
    %9938 = vmatpush.msra.mxu0 %v4084
    %9939 = vmatmul.f32.gmra.mxu0 %v4790
    %v9940 = vpop.f32.mrf.mxu0
    %v9941 = vadd.f32 %v9921, %v9940
    %9942 = vdwg.mxu0
    %9943 = vmatpush.msra.mxu0 %v4115
    %9944 = vmatpush.msra.mxu0 %v4114
    %9945 = vmatpush.msra.mxu0 %v4113
    %9946 = vmatpush.msra.mxu0 %v4112
    %9947 = vmatpush.msra.mxu0 %v4111
    %9948 = vmatpush.msra.mxu0 %v4110
    %9949 = vmatpush.msra.mxu0 %v4109
    %9950 = vmatpush.msra.mxu0 %v4108
    %9951 = vmatpush.msra.mxu0 %v4107
    %9952 = vmatpush.msra.mxu0 %v4106
    %9953 = vmatpush.msra.mxu0 %v4105
    %9954 = vmatpush.msra.mxu0 %v4104
    %9955 = vmatpush.msra.mxu0 %v4103
    %9956 = vmatpush.msra.mxu0 %v4102
    %9957 = vmatpush.msra.mxu0 %v4101
    %9958 = vmatpush.msra.mxu0 %v4100
    %9959 = vmatmul.f32.gmra.mxu0 %v4791
    %v9960 = vpop.f32.mrf.mxu0
    %v9961 = vadd.f32 %v9941, %v9960
    %9962 = vdwg.mxu0
    %9963 = vmatpush.msra.mxu0 %v4131
    %9964 = vmatpush.msra.mxu0 %v4130
    %9965 = vmatpush.msra.mxu0 %v4129
    %9966 = vmatpush.msra.mxu0 %v4128
    %9967 = vmatpush.msra.mxu0 %v4127
    %9968 = vmatpush.msra.mxu0 %v4126
    %9969 = vmatpush.msra.mxu0 %v4125
    %9970 = vmatpush.msra.mxu0 %v4124
    %9971 = vmatpush.msra.mxu0 %v4123
    %9972 = vmatpush.msra.mxu0 %v4122
    %9973 = vmatpush.msra.mxu0 %v4121
    %9974 = vmatpush.msra.mxu0 %v4120
    %9975 = vmatpush.msra.mxu0 %v4119
    %9976 = vmatpush.msra.mxu0 %v4118
    %9977 = vmatpush.msra.mxu0 %v4117
    %9978 = vmatpush.msra.mxu0 %v4116
    %9979 = vmatmul.f32.gmra.mxu0 %v4792
    %v9980 = vpop.f32.mrf.mxu0
    %v9981 = vadd.f32 %v9961, %v9980
    %9982 = vdwg.mxu0
    %9983 = vmatpush.msra.mxu0 %v4147
    %9984 = vmatpush.msra.mxu0 %v4146
    %9985 = vmatpush.msra.mxu0 %v4145
    %9986 = vmatpush.msra.mxu0 %v4144
    %9987 = vmatpush.msra.mxu0 %v4143
    %9988 = vmatpush.msra.mxu0 %v4142
    %9989 = vmatpush.msra.mxu0 %v4141
    %9990 = vmatpush.msra.mxu0 %v4140
    %9991 = vmatpush.msra.mxu0 %v4139
    %9992 = vmatpush.msra.mxu0 %v4138
    %9993 = vmatpush.msra.mxu0 %v4137
    %9994 = vmatpush.msra.mxu0 %v4136
    %9995 = vmatpush.msra.mxu0 %v4135
    %9996 = vmatpush.msra.mxu0 %v4134
    %9997 = vmatpush.msra.mxu0 %v4133
    %9998 = vmatpush.msra.mxu0 %v4132
    %9999 = vmatmul.f32.gmra.mxu0 %v4793
    %v10000 = vpop.f32.mrf.mxu0
    %v10001 = vadd.f32 %v9981, %v10000
    %10002 = vdwg.mxu0
    %10003 = vmatpush.msra.mxu0 %v4163
    %10004 = vmatpush.msra.mxu0 %v4162
    %10005 = vmatpush.msra.mxu0 %v4161
    %10006 = vmatpush.msra.mxu0 %v4160
    %10007 = vmatpush.msra.mxu0 %v4159
    %10008 = vmatpush.msra.mxu0 %v4158
    %10009 = vmatpush.msra.mxu0 %v4157
    %10010 = vmatpush.msra.mxu0 %v4156
    %10011 = vmatpush.msra.mxu0 %v4155
    %10012 = vmatpush.msra.mxu0 %v4154
    %10013 = vmatpush.msra.mxu0 %v4153
    %10014 = vmatpush.msra.mxu0 %v4152
    %10015 = vmatpush.msra.mxu0 %v4151
    %10016 = vmatpush.msra.mxu0 %v4150
    %10017 = vmatpush.msra.mxu0 %v4149
    %10018 = vmatpush.msra.mxu0 %v4148
    %10019 = vmatmul.f32.gmra.mxu0 %v4794
    %v10020 = vpop.f32.mrf.mxu0
    %v10021 = vadd.f32 %v10001, %v10020
    %10022 = vdwg.mxu0
    %10023 = vmatpush.msra.mxu0 %v4179
    %10024 = vmatpush.msra.mxu0 %v4178
    %10025 = vmatpush.msra.mxu0 %v4177
    %10026 = vmatpush.msra.mxu0 %v4176
    %10027 = vmatpush.msra.mxu0 %v4175
    %10028 = vmatpush.msra.mxu0 %v4174
    %10029 = vmatpush.msra.mxu0 %v4173
    %10030 = vmatpush.msra.mxu0 %v4172
    %10031 = vmatpush.msra.mxu0 %v4171
    %10032 = vmatpush.msra.mxu0 %v4170
    %10033 = vmatpush.msra.mxu0 %v4169
    %10034 = vmatpush.msra.mxu0 %v4168
    %10035 = vmatpush.msra.mxu0 %v4167
    %10036 = vmatpush.msra.mxu0 %v4166
    %10037 = vmatpush.msra.mxu0 %v4165
    %10038 = vmatpush.msra.mxu0 %v4164
    %10039 = vmatmul.f32.gmra.mxu0 %v4799
    %v10040 = vpop.f32.mrf.mxu0
    %v10041 = vadd.f32 %v10021, %v10040
    %10042 = vdwg.mxu0
    %10043 = vmatpush.msra.mxu0 %v4195
    %10044 = vmatpush.msra.mxu0 %v4194
    %10045 = vmatpush.msra.mxu0 %v4193
    %10046 = vmatpush.msra.mxu0 %v4192
    %10047 = vmatpush.msra.mxu0 %v4191
    %10048 = vmatpush.msra.mxu0 %v4190
    %10049 = vmatpush.msra.mxu0 %v4189
    %10050 = vmatpush.msra.mxu0 %v4188
    %10051 = vmatpush.msra.mxu0 %v4187
    %10052 = vmatpush.msra.mxu0 %v4186
    %10053 = vmatpush.msra.mxu0 %v4185
    %10054 = vmatpush.msra.mxu0 %v4184
    %10055 = vmatpush.msra.mxu0 %v4183
    %10056 = vmatpush.msra.mxu0 %v4182
    %10057 = vmatpush.msra.mxu0 %v4181
    %10058 = vmatpush.msra.mxu0 %v4180
    %10059 = vmatmul.f32.gmra.mxu0 %v4800
    %v10060 = vpop.f32.mrf.mxu0
    %v10061 = vadd.f32 %v10041, %v10060
    %10062 = vdwg.mxu0
    %10063 = vmatpush.msra.mxu0 %v4211
    %10064 = vmatpush.msra.mxu0 %v4210
    %10065 = vmatpush.msra.mxu0 %v4209
    %10066 = vmatpush.msra.mxu0 %v4208
    %10067 = vmatpush.msra.mxu0 %v4207
    %10068 = vmatpush.msra.mxu0 %v4206
    %10069 = vmatpush.msra.mxu0 %v4205
    %10070 = vmatpush.msra.mxu0 %v4204
    %10071 = vmatpush.msra.mxu0 %v4203
    %10072 = vmatpush.msra.mxu0 %v4202
    %10073 = vmatpush.msra.mxu0 %v4201
    %10074 = vmatpush.msra.mxu0 %v4200
    %10075 = vmatpush.msra.mxu0 %v4199
    %10076 = vmatpush.msra.mxu0 %v4198
    %10077 = vmatpush.msra.mxu0 %v4197
    %10078 = vmatpush.msra.mxu0 %v4196
    %10079 = vmatmul.f32.gmra.mxu0 %v4801
    %v10080 = vpop.f32.mrf.mxu0
    %v10081 = vadd.f32 %v10061, %v10080
    %10082 = vdwg.mxu0
    %10083 = vmatpush.msra.mxu0 %v4227
    %10084 = vmatpush.msra.mxu0 %v4226
    %10085 = vmatpush.msra.mxu0 %v4225
    %10086 = vmatpush.msra.mxu0 %v4224
    %10087 = vmatpush.msra.mxu0 %v4223
    %10088 = vmatpush.msra.mxu0 %v4222
    %10089 = vmatpush.msra.mxu0 %v4221
    %10090 = vmatpush.msra.mxu0 %v4220
    %10091 = vmatpush.msra.mxu0 %v4219
    %10092 = vmatpush.msra.mxu0 %v4218
    %10093 = vmatpush.msra.mxu0 %v4217
    %10094 = vmatpush.msra.mxu0 %v4216
    %10095 = vmatpush.msra.mxu0 %v4215
    %10096 = vmatpush.msra.mxu0 %v4214
    %10097 = vmatpush.msra.mxu0 %v4213
    %10098 = vmatpush.msra.mxu0 %v4212
    %10099 = vmatmul.f32.gmra.mxu0 %v4802
    %v10100 = vpop.f32.mrf.mxu0
    %v10101 = vadd.f32 %v10081, %v10100
    %10102 = vdwg.mxu0
    %10103 = vmatpush.msra.mxu0 %v4243
    %10104 = vmatpush.msra.mxu0 %v4242
    %10105 = vmatpush.msra.mxu0 %v4241
    %10106 = vmatpush.msra.mxu0 %v4240
    %10107 = vmatpush.msra.mxu0 %v4239
    %10108 = vmatpush.msra.mxu0 %v4238
    %10109 = vmatpush.msra.mxu0 %v4237
    %10110 = vmatpush.msra.mxu0 %v4236
    %10111 = vmatpush.msra.mxu0 %v4235
    %10112 = vmatpush.msra.mxu0 %v4234
    %10113 = vmatpush.msra.mxu0 %v4233
    %10114 = vmatpush.msra.mxu0 %v4232
    %10115 = vmatpush.msra.mxu0 %v4231
    %10116 = vmatpush.msra.mxu0 %v4230
    %10117 = vmatpush.msra.mxu0 %v4229
    %10118 = vmatpush.msra.mxu0 %v4228
    %10119 = vmatmul.f32.gmra.mxu0 %v4803
    %v10120 = vpop.f32.mrf.mxu0
    %v10121 = vadd.f32 %v10101, %v10120
    %10122 = vdwg.mxu0
    %10123 = vmatpush.msra.mxu0 %v4259
    %10124 = vmatpush.msra.mxu0 %v4258
    %10125 = vmatpush.msra.mxu0 %v4257
    %10126 = vmatpush.msra.mxu0 %v4256
    %10127 = vmatpush.msra.mxu0 %v4255
    %10128 = vmatpush.msra.mxu0 %v4254
    %10129 = vmatpush.msra.mxu0 %v4253
    %10130 = vmatpush.msra.mxu0 %v4252
    %10131 = vmatpush.msra.mxu0 %v4251
    %10132 = vmatpush.msra.mxu0 %v4250
    %10133 = vmatpush.msra.mxu0 %v4249
    %10134 = vmatpush.msra.mxu0 %v4248
    %10135 = vmatpush.msra.mxu0 %v4247
    %10136 = vmatpush.msra.mxu0 %v4246
    %10137 = vmatpush.msra.mxu0 %v4245
    %10138 = vmatpush.msra.mxu0 %v4244
    %10139 = vmatmul.f32.gmra.mxu0 %v4804
    %v10140 = vpop.f32.mrf.mxu0
    %v10141 = vadd.f32 %v10121, %v10140
    %10142 = vdwg.mxu0
    %10143 = vmatpush.msra.mxu0 %v4275
    %10144 = vmatpush.msra.mxu0 %v4274
    %10145 = vmatpush.msra.mxu0 %v4273
    %10146 = vmatpush.msra.mxu0 %v4272
    %10147 = vmatpush.msra.mxu0 %v4271
    %10148 = vmatpush.msra.mxu0 %v4270
    %10149 = vmatpush.msra.mxu0 %v4269
    %10150 = vmatpush.msra.mxu0 %v4268
    %10151 = vmatpush.msra.mxu0 %v4267
    %10152 = vmatpush.msra.mxu0 %v4266
    %10153 = vmatpush.msra.mxu0 %v4265
    %10154 = vmatpush.msra.mxu0 %v4264
    %10155 = vmatpush.msra.mxu0 %v4263
    %10156 = vmatpush.msra.mxu0 %v4262
    %10157 = vmatpush.msra.mxu0 %v4261
    %10158 = vmatpush.msra.mxu0 %v4260
    %10159 = vmatmul.f32.gmra.mxu0 %v4805
    %v10160 = vpop.f32.mrf.mxu0
    %v10161 = vadd.f32 %v10141, %v10160
    %10162 = vdwg.mxu0
    %10163 = vmatpush.msra.mxu0 %v4291
    %10164 = vmatpush.msra.mxu0 %v4290
    %10165 = vmatpush.msra.mxu0 %v4289
    %10166 = vmatpush.msra.mxu0 %v4288
    %10167 = vmatpush.msra.mxu0 %v4287
    %10168 = vmatpush.msra.mxu0 %v4286
    %10169 = vmatpush.msra.mxu0 %v4285
    %10170 = vmatpush.msra.mxu0 %v4284
    %10171 = vmatpush.msra.mxu0 %v4283
    %10172 = vmatpush.msra.mxu0 %v4282
    %10173 = vmatpush.msra.mxu0 %v4281
    %10174 = vmatpush.msra.mxu0 %v4280
    %10175 = vmatpush.msra.mxu0 %v4279
    %10176 = vmatpush.msra.mxu0 %v4278
    %10177 = vmatpush.msra.mxu0 %v4277
    %10178 = vmatpush.msra.mxu0 %v4276
    %10179 = vmatmul.f32.gmra.mxu0 %v4806
    %v10180 = vpop.f32.mrf.mxu0
    %v10181 = vadd.f32 %v10161, %v10180
    %10182 = vdwg.mxu0
    %v10183 = vadd.f32 %v67, %v10181
    %10184 = vst [vmem:[#allocation8] sm:$0xf] %v10183
    // Predicated region
    $region30: #{tpu_custom_call.1} parent=1 // pred_check
      _
    $region31: #{tpu_custom_call.1} parent=1 // pred_check_branch
      %10186 = sbr.rel (0) target = $region33
    $region32: #{tpu_custom_call.1} parent=1 // pred_region
      %10188 = vsyncadd [#allocation4], 0
      %s10190 = sshll.u32 [#allocation8], 4
      %s10191 = int_to_ptr.vmem [resolvable:$true] %s10190
      %s10192 = sshll.u32 %s3, 4
      %s10193 = int_to_ptr.hbm [resolvable:$true] %s10192
      %10195 = dma.vmem_to_hbm [thread:$0]  %s10191, 64, %s10193, [#allocation4]
    $region33: #{tpu_custom_call.1} parent=1 // pred_fallthru
      _
    // Predicated region
    $region34: #{tpu_custom_call.1} parent=1 // pred_check
      _
    $region35: #{tpu_custom_call.1} parent=1 // pred_check_branch
      %10197 = sbr.rel (0) target = $region37
    $region36: #{tpu_custom_call.1} parent=1 // pred_region
      %10199 = dma.done [#allocation4], 64
    $region37: #{tpu_custom_call.1} parent=1 // pred_fallthru
      _
    %10200 = vsyncpa [#allocation3], 1
    %10201 = vsyncpa [#allocation6], 1
    %10202 = vsyncpa [#allocation4], 1

</llo_original>
